<compile_context>
chip_gen: v7x
topology: tpu7x:2x2x1
jax: 0.10.0
libtpu: 0.0.40
codegen_flags: <defaults>
</compile_context>

<pallas_src>
import math
import functools

import jax
import jax.numpy as jnp
from jax.experimental import pallas as pl
from jax.experimental.pallas import tpu as pltpu


# ----------------------------- in-kernel helpers ----------------------------

def _add_layernorm(x, res, gamma, beta, eps=1e-5):
    """LayerNorm(x + res) with torch (biased-variance) semantics."""
    y = x + res
    mean = jnp.mean(y, axis=-1, keepdims=True)
    yc = y - mean
    var = jnp.mean(yc * yc, axis=-1, keepdims=True)
    inv = jax.lax.rsqrt(var + eps)
    return yc * inv * gamma + beta


def _attend_heads(q, k, v, ctx_ref, *, N, Tq, Skv, H, Dh):
    """Per-(batch, head) softmax attention; results assembled into ctx_ref (N*Tq, H*Dh).

    q: (N*Tq, E), k/v: (N*Skv, E) in batch-major row layout, so every (batch, head)
    block is a contiguous static slice (no strided access, no transposes).
    """
    scale = 1.0 / math.sqrt(Dh)
    for b in range(N):
        q_b = q[b * Tq:(b + 1) * Tq, :]
        k_b = k[b * Skv:(b + 1) * Skv, :]
        v_b = v[b * Skv:(b + 1) * Skv, :]
        for h in range(H):
            qh = q_b[:, h * Dh:(h + 1) * Dh]          # (Tq, Dh)
            kh = k_b[:, h * Dh:(h + 1) * Dh]          # (Skv, Dh)
            vh = v_b[:, h * Dh:(h + 1) * Dh]          # (Skv, Dh)
            s = jax.lax.dot_general(qh, kh, (((1,), (1,)), ((), ())),
                                    preferred_element_type=jnp.float32) * scale
            m = jnp.max(s, axis=-1, keepdims=True)
            p = jnp.exp(s - m)
            denom = jnp.sum(p, axis=-1, keepdims=True)
            p = p * pl.reciprocal(denom, approx=True)
            ctx_ref[b * Tq:(b + 1) * Tq, h * Dh:(h + 1) * Dh] = jnp.dot(
                p, vh, preferred_element_type=jnp.float32)


def _self_mha(x, wqkv, bqkv, wo, bo, ctx_ref, *, N, T, H):
    """Self-attention: fused QKV projection + attention + output projection."""
    E = x.shape[1]
    Dh = E // H
    qkv = jnp.dot(x, wqkv, preferred_element_type=jnp.float32) + bqkv   # (N*T, 3E)
    q = qkv[:, :E]
    k = qkv[:, E:2 * E]
    v = qkv[:, 2 * E:]
    _attend_heads(q, k, v, ctx_ref, N=N, Tq=T, Skv=T, H=H, Dh=Dh)
    return jnp.dot(ctx_ref[...], wo, preferred_element_type=jnp.float32) + bo


def _cross_mha(xq, xkv, wq, bq, wkv, bkv, wo, bo, ctx_ref, *, N, Tq, Skv, H):
    """Cross-attention: Q from xq, fused KV from xkv, + output projection."""
    E = xq.shape[1]
    Dh = E // H
    q = jnp.dot(xq, wq, preferred_element_type=jnp.float32) + bq        # (N*Tq, E)
    kv = jnp.dot(xkv, wkv, preferred_element_type=jnp.float32) + bkv    # (N*Skv, 2E)
    k = kv[:, :E]
    v = kv[:, E:]
    _attend_heads(q, k, v, ctx_ref, N=N, Tq=Tq, Skv=Skv, H=H, Dh=Dh)
    return jnp.dot(ctx_ref[...], wo, preferred_element_type=jnp.float32) + bo


def _ffn(x, w1, b1, w2, b2):
    """Linear -> ReLU -> Linear, intermediate (M, 2048) stays in VMEM."""
    h = jnp.maximum(jnp.dot(x, w1, preferred_element_type=jnp.float32) + b1, 0.0)
    return jnp.dot(h, w2, preferred_element_type=jnp.float32) + b2


# ------------------------------- layer kernels -------------------------------

def _encoder_layer_kernel(x_ref, wqkv_ref, bqkv_ref, wo_ref, bo_ref,
                          ln1g_ref, ln1b_ref, w1_ref, b1_ref, w2_ref, b2_ref,
                          ln2g_ref, ln2b_ref, o_ref, ctx_ref, *, N, S, H):
    x = x_ref[...]                                   # (N*S, E)
    attn = _self_mha(x, wqkv_ref[...], bqkv_ref[...], wo_ref[...], bo_ref[...],
                     ctx_ref, N=N, T=S, H=H)
    y = _add_layernorm(x, attn, ln1g_ref[...], ln1b_ref[...])
    ff = _ffn(y, w1_ref[...], b1_ref[...], w2_ref[...], b2_ref[...])
    o_ref[...] = _add_layernorm(y, ff, ln2g_ref[...], ln2b_ref[...])


def _decoder_layer_kernel(x_ref, mem_ref,
                          sa_wqkv_ref, sa_bqkv_ref, sa_wo_ref, sa_bo_ref,
                          ln1g_ref, ln1b_ref,
                          ca_wq_ref, ca_bq_ref, ca_wkv_ref, ca_bkv_ref,
                          ca_wo_ref, ca_bo_ref, ln2g_ref, ln2b_ref,
                          w1_ref, b1_ref, w2_ref, b2_ref, ln3g_ref, ln3b_ref,
                          o_ref, ctx_ref, *, N, T, S, H):
    x = x_ref[...]                                   # (N*T, E)
    mem = mem_ref[...]                               # (N*S, E)
    sa = _self_mha(x, sa_wqkv_ref[...], sa_bqkv_ref[...], sa_wo_ref[...],
                   sa_bo_ref[...], ctx_ref, N=N, T=T, H=H)
    y = _add_layernorm(x, sa, ln1g_ref[...], ln1b_ref[...])
    ca = _cross_mha(y, mem, ca_wq_ref[...], ca_bq_ref[...], ca_wkv_ref[...],
                    ca_bkv_ref[...], ca_wo_ref[...], ca_bo_ref[...],
                    ctx_ref, N=N, Tq=T, Skv=S, H=H)
    z = _add_layernorm(y, ca, ln2g_ref[...], ln2b_ref[...])
    ff = _ffn(z, w1_ref[...], b1_ref[...], w2_ref[...], b2_ref[...])
    o_ref[...] = _add_layernorm(z, ff, ln3g_ref[...], ln3b_ref[...])


# ------------------------------ layer wrappers -------------------------------

def encoder_layer_pallas(x2d, lp, *, nhead, N, S):
    M, E = x2d.shape
    return pl.pallas_call(
        functools.partial(_encoder_layer_kernel, N=N, S=S, H=nhead),
        out_shape=jax.ShapeDtypeStruct((M, E), jnp.float32),
        scratch_shapes=[pltpu.VMEM((M, E), jnp.float32)],
    )(x2d, lp["wqkv"], lp["bqkv"], lp["wo"], lp["bo"],
      lp["ln1_g"], lp["ln1_b"], lp["w1"], lp["b1"], lp["w2"], lp["b2"],
      lp["ln2_g"], lp["ln2_b"])


def decoder_layer_pallas(x2d, mem2d, lp, *, nhead, N, T, S):
    M, E = x2d.shape
    return pl.pallas_call(
        functools.partial(_decoder_layer_kernel, N=N, T=T, S=S, H=nhead),
        out_shape=jax.ShapeDtypeStruct((M, E), jnp.float32),
        scratch_shapes=[pltpu.VMEM((M, E), jnp.float32)],
    )(x2d, mem2d,
      lp["sa_wqkv"], lp["sa_bqkv"], lp["sa_wo"], lp["sa_bo"],
      lp["ln1_g"], lp["ln1_b"],
      lp["ca_wq"], lp["ca_bq"], lp["ca_wkv"], lp["ca_bkv"],
      lp["ca_wo"], lp["ca_bo"], lp["ln2_g"], lp["ln2_b"],
      lp["w1"], lp["b1"], lp["w2"], lp["b2"], lp["ln3_g"], lp["ln3_b"])


# --------------------------------- forward -----------------------------------

def transformer1_forward(src, tgt, params, nhead):
    """src: (S, B, E), tgt: (T, B, E)  ->  (T, B, E)   (PyTorch batch_first=False)."""
    S, B, E = src.shape
    T = tgt.shape[0]
    # single relayout to batch-major 2D slabs; all kernels operate on (B*seq, E)
    x = jnp.transpose(src, (1, 0, 2)).reshape(B * S, E)
    y = jnp.transpose(tgt, (1, 0, 2)).reshape(B * T, E)

    memory = x
    for lp in params["encoder"]:
        memory = encoder_layer_pallas(memory, lp, nhead=nhead, N=B, S=S)

    out = y
    for lp in params["decoder"]:
        out = decoder_layer_pallas(out, memory, lp, nhead=nhead, N=B, T=T, S=S)

    return jnp.transpose(out.reshape(B, T, E), (1, 0, 2))


# ------------------------------ parameter init -------------------------------

def _init_linear(key, in_dim, out_dim, scale=0.05):
    kw, kb = jax.random.split(key)
    w = jax.random.normal(kw, (in_dim, out_dim), jnp.float32) * scale
    b = jax.random.normal(kb, (1, out_dim), jnp.float32) * scale
    return w, b


def _init_self_attn(key, E):
    ks = jax.random.split(key, 4)
    wq, bq = _init_linear(ks[0], E, E)
    wk, bk = _init_linear(ks[1], E, E)
    wv, bv = _init_linear(ks[2], E, E)
    wo, bo = _init_linear(ks[3], E, E)
    return dict(wqkv=jnp.concatenate([wq, wk, wv], axis=1),     # (E, 3E) fused
                bqkv=jnp.concatenate([bq, bk, bv], axis=1),
                wo=wo, bo=bo)


def _init_cross_attn(key, E):
    ks = jax.random.split(key, 4)
    wq, bq = _init_linear(ks[0], E, E)
    wk, bk = _init_linear(ks[1], E, E)
    wv, bv = _init_linear(ks[2], E, E)
    wo, bo = _init_linear(ks[3], E, E)
    return dict(wq=wq, bq=bq,
                wkv=jnp.concatenate([wk, wv], axis=1),          # (E, 2E) fused
                bkv=jnp.concatenate([bk, bv], axis=1),
                wo=wo, bo=bo)


def _ln_params(E):
    return jnp.ones((1, E), jnp.float32), jnp.zeros((1, E), jnp.float32)


def _init_encoder_layer(key, E, FF):
    ks = jax.random.split(key, 3)
    attn = _init_self_attn(ks[0], E)
    w1, b1 = _init_linear(ks[1], E, FF)
    w2, b2 = _init_linear(ks[2], FF, E)
    ln1_g, ln1_b = _ln_params(E)
    ln2_g, ln2_b = _ln_params(E)
    return dict(wqkv=attn["wqkv"], bqkv=attn["bqkv"], wo=attn["wo"], bo=attn["bo"],
                w1=w1, b1=b1, w2=w2, b2=b2,
                ln1_g=ln1_g, ln1_b=ln1_b, ln2_g=ln2_g, ln2_b=ln2_b)


def _init_decoder_layer(key, E, FF):
    ks = jax.random.split(key, 4)
    sa = _init_self_attn(ks[0], E)
    ca = _init_cross_attn(ks[1], E)
    w1, b1 = _init_linear(ks[2], E, FF)
    w2, b2 = _init_linear(ks[3], FF, E)
    ln1_g, ln1_b = _ln_params(E)
    ln2_g, ln2_b = _ln_params(E)
    ln3_g, ln3_b = _ln_params(E)
    return dict(sa_wqkv=sa["wqkv"], sa_bqkv=sa["bqkv"], sa_wo=sa["wo"], sa_bo=sa["bo"],
                ca_wq=ca["wq"], ca_bq=ca["bq"], ca_wkv=ca["wkv"], ca_bkv=ca["bkv"],
                ca_wo=ca["wo"], ca_bo=ca["bo"],
                w1=w1, b1=b1, w2=w2, b2=b2,
                ln1_g=ln1_g, ln1_b=ln1_b, ln2_g=ln2_g, ln2_b=ln2_b,
                ln3_g=ln3_g, ln3_b=ln3_b)


def init_params(key, E, FF, n_enc, n_dec):
    keys = jax.random.split(key, n_enc + n_dec)
    enc = [_init_encoder_layer(keys[i], E, FF) for i in range(n_enc)]
    dec = [_init_decoder_layer(keys[n_enc + i], E, FF) for i in range(n_dec)]
    return dict(encoder=enc, decoder=dec)


# ----------------------------------- main ------------------------------------

if __name__ == "__main__":
    D_MODEL = 32
    NHEAD = 4
    DIM_FF = 2048            # PyTorch TransformerEncoderLayer default
    NUM_ENC = 2
    NUM_DEC = 2
    S, T, B = 8, 8, 2        # src seq, tgt seq, batch

    # TODO(synk): src/tgt/memory attention masks are not supported (the reference
    # forward never passes any); dropout is identity (eval semantics).

    root = jax.random.PRNGKey(0)
    k_param, k_src, k_tgt = jax.random.split(root, 3)

    params = init_params(k_param, D_MODEL, DIM_FF, NUM_ENC, NUM_DEC)
    src = jax.random.normal(k_src, (S, B, D_MODEL), jnp.float32)
    tgt = jax.random.normal(k_tgt, (T, B, D_MODEL), jnp.float32)

    fwd = jax.jit(functools.partial(transformer1_forward, nhead=NHEAD))
    out = fwd(src, tgt, params)
    out = jax.block_until_ready(out)

    assert out.shape == (T, B, D_MODEL)
    assert jnp.all(jnp.isfinite(out))
    print("KERNEL_OK")
</pallas_src>

<mosaic_0001>
module attributes {stable_mosaic.version = 11 : i64} {
  func.func @_encoder_layer_kernel(%arg0: memref<16x32xf32, #tpu.memory_space<vmem>>, %arg1: memref<32x96xf32, #tpu.memory_space<vmem>>, %arg2: memref<1x96xf32, #tpu.memory_space<vmem>>, %arg3: memref<32x32xf32, #tpu.memory_space<vmem>>, %arg4: memref<1x32xf32, #tpu.memory_space<vmem>>, %arg5: memref<1x32xf32, #tpu.memory_space<vmem>>, %arg6: memref<1x32xf32, #tpu.memory_space<vmem>>, %arg7: memref<32x2048xf32, #tpu.memory_space<vmem>>, %arg8: memref<1x2048xf32, #tpu.memory_space<vmem>>, %arg9: memref<2048x32xf32, #tpu.memory_space<vmem>>, %arg10: memref<1x32xf32, #tpu.memory_space<vmem>>, %arg11: memref<1x32xf32, #tpu.memory_space<vmem>>, %arg12: memref<1x32xf32, #tpu.memory_space<vmem>>, %arg13: memref<16x32xf32, #tpu.memory_space<vmem>>, %arg14: memref<16x32xf32, #tpu.memory_space<vmem>>) attributes {dimension_semantics = [], scalar_prefetch = 0 : i64, scratch_operands = 1 : i64, tpu.core_type = #tpu.core_type<tc>} {
    %c0 = arith.constant 0 : index
    %c0_0 = arith.constant 0 : index
    %0 = vector.load %arg0[%c0, %c0_0] : memref<16x32xf32, #tpu.memory_space<vmem>>, vector<16x32xf32>
    %c0_1 = arith.constant 0 : index
    %c0_2 = arith.constant 0 : index
    %1 = vector.load %arg1[%c0_1, %c0_2] : memref<32x96xf32, #tpu.memory_space<vmem>>, vector<32x96xf32>
    %c0_3 = arith.constant 0 : index
    %c0_4 = arith.constant 0 : index
    %2 = vector.load %arg2[%c0_3, %c0_4] : memref<1x96xf32, #tpu.memory_space<vmem>>, vector<1x96xf32>
    %c0_5 = arith.constant 0 : index
    %c0_6 = arith.constant 0 : index
    %3 = vector.load %arg3[%c0_5, %c0_6] : memref<32x32xf32, #tpu.memory_space<vmem>>, vector<32x32xf32>
    %c0_7 = arith.constant 0 : index
    %c0_8 = arith.constant 0 : index
    %4 = vector.load %arg4[%c0_7, %c0_8] : memref<1x32xf32, #tpu.memory_space<vmem>>, vector<1x32xf32>
    %cst = arith.constant dense<0.000000e+00> : vector<16x96xf32>
    %5 = tpu.matmul %0, %1, %cst {dimension_numbers = #tpu.dot_dimension_numbers<[1], [0], [0], [1], [0, 0, 1, 1], [], []>} : vector<16x32xf32>, vector<32x96xf32>, vector<16x96xf32> -> vector<16x96xf32>
    %6 = vector.broadcast %2 : vector<1x96xf32> to vector<16x96xf32>
    %7 = arith.addf %5, %6 : vector<16x96xf32>
    %8 = vector.extract_strided_slice %7 {offsets = [0, 0], sizes = [16, 32], strides = [1, 1]} : vector<16x96xf32> to vector<16x32xf32>
    %9 = vector.extract_strided_slice %7 {offsets = [0, 32], sizes = [16, 32], strides = [1, 1]} : vector<16x96xf32> to vector<16x32xf32>
    %10 = vector.extract_strided_slice %7 {offsets = [0, 64], sizes = [16, 32], strides = [1, 1]} : vector<16x96xf32> to vector<16x32xf32>
    %11 = vector.extract_strided_slice %8 {offsets = [0, 0], sizes = [8, 32], strides = [1, 1]} : vector<16x32xf32> to vector<8x32xf32>
    %12 = vector.extract_strided_slice %9 {offsets = [0, 0], sizes = [8, 32], strides = [1, 1]} : vector<16x32xf32> to vector<8x32xf32>
    %13 = vector.extract_strided_slice %10 {offsets = [0, 0], sizes = [8, 32], strides = [1, 1]} : vector<16x32xf32> to vector<8x32xf32>
    %14 = vector.extract_strided_slice %11 {offsets = [0, 0], sizes = [8, 8], strides = [1, 1]} : vector<8x32xf32> to vector<8x8xf32>
    %15 = vector.extract_strided_slice %12 {offsets = [0, 0], sizes = [8, 8], strides = [1, 1]} : vector<8x32xf32> to vector<8x8xf32>
    %16 = vector.extract_strided_slice %13 {offsets = [0, 0], sizes = [8, 8], strides = [1, 1]} : vector<8x32xf32> to vector<8x8xf32>
    %cst_9 = arith.constant dense<0.000000e+00> : vector<8x8xf32>
    %17 = tpu.matmul %14, %15, %cst_9 {dimension_numbers = #tpu.dot_dimension_numbers<[1], [1], [0], [0], [0, 0, 1, 0], [], []>} : vector<8x8xf32>, vector<8x8xf32>, vector<8x8xf32> -> vector<8x8xf32>
    %cst_10 = arith.constant 0.353553385 : f32
    %18 = vector.broadcast %cst_10 : f32 to vector<8x8xf32>
    %19 = arith.mulf %17, %18 : vector<8x8xf32>
    %cst_11 = arith.constant dense<0xFF800000> : vector<8xf32>
    %20 = vector.multi_reduction <maximumf>, %19, %cst_11 [1] : vector<8x8xf32> to vector<8xf32>
    %21 = vector.shape_cast %20 : vector<8xf32> to vector<8x1xf32>
    %22 = vector.broadcast %21 : vector<8x1xf32> to vector<8x8xf32>
    %23 = arith.subf %19, %22 : vector<8x8xf32>
    %24 = math.exp %23 : vector<8x8xf32>
    %cst_12 = arith.constant dense<0.000000e+00> : vector<8xf32>
    %25 = vector.multi_reduction <add>, %24, %cst_12 [1] : vector<8x8xf32> to vector<8xf32>
    %26 = vector.shape_cast %25 : vector<8xf32> to vector<8x1xf32>
    %27 = tpu.reciprocal %26 {approx = true} : vector<8x1xf32> -> vector<8x1xf32>
    %28 = vector.broadcast %27 : vector<8x1xf32> to vector<8x8xf32>
    %29 = arith.mulf %24, %28 : vector<8x8xf32>
    %cst_13 = arith.constant dense<0.000000e+00> : vector<8x8xf32>
    %30 = tpu.matmul %29, %16, %cst_13 {dimension_numbers = #tpu.dot_dimension_numbers<[1], [0], [0], [1], [0, 0, 1, 1], [], []>} : vector<8x8xf32>, vector<8x8xf32>, vector<8x8xf32> -> vector<8x8xf32>
    %c0_14 = arith.constant 0 : index
    %c0_15 = arith.constant 0 : index
    %31 = vector.load %arg14[%c0_14, %c0_15] : memref<16x32xf32, #tpu.memory_space<vmem>>, vector<8x8xf32>
    tpu.vector_store %arg14[%c0_14, %c0_15], %30 {strides = array<i32>} : memref<16x32xf32, #tpu.memory_space<vmem>>, vector<8x8xf32>,
    %32 = vector.extract_strided_slice %11 {offsets = [0, 8], sizes = [8, 8], strides = [1, 1]} : vector<8x32xf32> to vector<8x8xf32>
    %33 = vector.extract_strided_slice %12 {offsets = [0, 8], sizes = [8, 8], strides = [1, 1]} : vector<8x32xf32> to vector<8x8xf32>
    %34 = vector.extract_strided_slice %13 {offsets = [0, 8], sizes = [8, 8], strides = [1, 1]} : vector<8x32xf32> to vector<8x8xf32>
    %cst_16 = arith.constant dense<0.000000e+00> : vector<8x8xf32>
    %35 = tpu.matmul %32, %33, %cst_16 {dimension_numbers = #tpu.dot_dimension_numbers<[1], [1], [0], [0], [0, 0, 1, 0], [], []>} : vector<8x8xf32>, vector<8x8xf32>, vector<8x8xf32> -> vector<8x8xf32>
    %cst_17 = arith.constant 0.353553385 : f32
    %36 = vector.broadcast %cst_17 : f32 to vector<8x8xf32>
    %37 = arith.mulf %35, %36 : vector<8x8xf32>
    %cst_18 = arith.constant dense<0xFF800000> : vector<8xf32>
    %38 = vector.multi_reduction <maximumf>, %37, %cst_18 [1] : vector<8x8xf32> to vector<8xf32>
    %39 = vector.shape_cast %38 : vector<8xf32> to vector<8x1xf32>
    %40 = vector.broadcast %39 : vector<8x1xf32> to vector<8x8xf32>
    %41 = arith.subf %37, %40 : vector<8x8xf32>
    %42 = math.exp %41 : vector<8x8xf32>
    %cst_19 = arith.constant dense<0.000000e+00> : vector<8xf32>
    %43 = vector.multi_reduction <add>, %42, %cst_19 [1] : vector<8x8xf32> to vector<8xf32>
    %44 = vector.shape_cast %43 : vector<8xf32> to vector<8x1xf32>
    %45 = tpu.reciprocal %44 {approx = true} : vector<8x1xf32> -> vector<8x1xf32>
    %46 = vector.broadcast %45 : vector<8x1xf32> to vector<8x8xf32>
    %47 = arith.mulf %42, %46 : vector<8x8xf32>
    %cst_20 = arith.constant dense<0.000000e+00> : vector<8x8xf32>
    %48 = tpu.matmul %47, %34, %cst_20 {dimension_numbers = #tpu.dot_dimension_numbers<[1], [0], [0], [1], [0, 0, 1, 1], [], []>} : vector<8x8xf32>, vector<8x8xf32>, vector<8x8xf32> -> vector<8x8xf32>
    %c0_21 = arith.constant 0 : index
    %c8 = arith.constant 8 : index
    %49 = vector.load %arg14[%c0_21, %c8] : memref<16x32xf32, #tpu.memory_space<vmem>>, vector<8x8xf32>
    tpu.vector_store %arg14[%c0_21, %c8], %48 {strides = array<i32>} : memref<16x32xf32, #tpu.memory_space<vmem>>, vector<8x8xf32>,
    %50 = vector.extract_strided_slice %11 {offsets = [0, 16], sizes = [8, 8], strides = [1, 1]} : vector<8x32xf32> to vector<8x8xf32>
    %51 = vector.extract_strided_slice %12 {offsets = [0, 16], sizes = [8, 8], strides = [1, 1]} : vector<8x32xf32> to vector<8x8xf32>
    %52 = vector.extract_strided_slice %13 {offsets = [0, 16], sizes = [8, 8], strides = [1, 1]} : vector<8x32xf32> to vector<8x8xf32>
    %cst_22 = arith.constant dense<0.000000e+00> : vector<8x8xf32>
    %53 = tpu.matmul %50, %51, %cst_22 {dimension_numbers = #tpu.dot_dimension_numbers<[1], [1], [0], [0], [0, 0, 1, 0], [], []>} : vector<8x8xf32>, vector<8x8xf32>, vector<8x8xf32> -> vector<8x8xf32>
    %cst_23 = arith.constant 0.353553385 : f32
    %54 = vector.broadcast %cst_23 : f32 to vector<8x8xf32>
    %55 = arith.mulf %53, %54 : vector<8x8xf32>
    %cst_24 = arith.constant dense<0xFF800000> : vector<8xf32>
    %56 = vector.multi_reduction <maximumf>, %55, %cst_24 [1] : vector<8x8xf32> to vector<8xf32>
    %57 = vector.shape_cast %56 : vector<8xf32> to vector<8x1xf32>
    %58 = vector.broadcast %57 : vector<8x1xf32> to vector<8x8xf32>
    %59 = arith.subf %55, %58 : vector<8x8xf32>
    %60 = math.exp %59 : vector<8x8xf32>
    %cst_25 = arith.constant dense<0.000000e+00> : vector<8xf32>
    %61 = vector.multi_reduction <add>, %60, %cst_25 [1] : vector<8x8xf32> to vector<8xf32>
    %62 = vector.shape_cast %61 : vector<8xf32> to vector<8x1xf32>
    %63 = tpu.reciprocal %62 {approx = true} : vector<8x1xf32> -> vector<8x1xf32>
    %64 = vector.broadcast %63 : vector<8x1xf32> to vector<8x8xf32>
    %65 = arith.mulf %60, %64 : vector<8x8xf32>
    %cst_26 = arith.constant dense<0.000000e+00> : vector<8x8xf32>
    %66 = tpu.matmul %65, %52, %cst_26 {dimension_numbers = #tpu.dot_dimension_numbers<[1], [0], [0], [1], [0, 0, 1, 1], [], []>} : vector<8x8xf32>, vector<8x8xf32>, vector<8x8xf32> -> vector<8x8xf32>
    %c0_27 = arith.constant 0 : index
    %c16 = arith.constant 16 : index
    %67 = vector.load %arg14[%c0_27, %c16] : memref<16x32xf32, #tpu.memory_space<vmem>>, vector<8x8xf32>
    tpu.vector_store %arg14[%c0_27, %c16], %66 {strides = array<i32>} : memref<16x32xf32, #tpu.memory_space<vmem>>, vector<8x8xf32>,
    %68 = vector.extract_strided_slice %11 {offsets = [0, 24], sizes = [8, 8], strides = [1, 1]} : vector<8x32xf32> to vector<8x8xf32>
    %69 = vector.extract_strided_slice %12 {offsets = [0, 24], sizes = [8, 8], strides = [1, 1]} : vector<8x32xf32> to vector<8x8xf32>
    %70 = vector.extract_strided_slice %13 {offsets = [0, 24], sizes = [8, 8], strides = [1, 1]} : vector<8x32xf32> to vector<8x8xf32>
    %cst_28 = arith.constant dense<0.000000e+00> : vector<8x8xf32>
    %71 = tpu.matmul %68, %69, %cst_28 {dimension_numbers = #tpu.dot_dimension_numbers<[1], [1], [0], [0], [0, 0, 1, 0], [], []>} : vector<8x8xf32>, vector<8x8xf32>, vector<8x8xf32> -> vector<8x8xf32>
    %cst_29 = arith.constant 0.353553385 : f32
    %72 = vector.broadcast %cst_29 : f32 to vector<8x8xf32>
    %73 = arith.mulf %71, %72 : vector<8x8xf32>
    %cst_30 = arith.constant dense<0xFF800000> : vector<8xf32>
    %74 = vector.multi_reduction <maximumf>, %73, %cst_30 [1] : vector<8x8xf32> to vector<8xf32>
    %75 = vector.shape_cast %74 : vector<8xf32> to vector<8x1xf32>
    %76 = vector.broadcast %75 : vector<8x1xf32> to vector<8x8xf32>
    %77 = arith.subf %73, %76 : vector<8x8xf32>
    %78 = math.exp %77 : vector<8x8xf32>
    %cst_31 = arith.constant dense<0.000000e+00> : vector<8xf32>
    %79 = vector.multi_reduction <add>, %78, %cst_31 [1] : vector<8x8xf32> to vector<8xf32>
    %80 = vector.shape_cast %79 : vector<8xf32> to vector<8x1xf32>
    %81 = tpu.reciprocal %80 {approx = true} : vector<8x1xf32> -> vector<8x1xf32>
    %82 = vector.broadcast %81 : vector<8x1xf32> to vector<8x8xf32>
    %83 = arith.mulf %78, %82 : vector<8x8xf32>
    %cst_32 = arith.constant dense<0.000000e+00> : vector<8x8xf32>
    %84 = tpu.matmul %83, %70, %cst_32 {dimension_numbers = #tpu.dot_dimension_numbers<[1], [0], [0], [1], [0, 0, 1, 1], [], []>} : vector<8x8xf32>, vector<8x8xf32>, vector<8x8xf32> -> vector<8x8xf32>
    %c0_33 = arith.constant 0 : index
    %c24 = arith.constant 24 : index
    %85 = vector.load %arg14[%c0_33, %c24] : memref<16x32xf32, #tpu.memory_space<vmem>>, vector<8x8xf32>
    tpu.vector_store %arg14[%c0_33, %c24], %84 {strides = array<i32>} : memref<16x32xf32, #tpu.memory_space<vmem>>, vector<8x8xf32>,
    %86 = vector.extract_strided_slice %8 {offsets = [8, 0], sizes = [8, 32], strides = [1, 1]} : vector<16x32xf32> to vector<8x32xf32>
    %87 = vector.extract_strided_slice %9 {offsets = [8, 0], sizes = [8, 32], strides = [1, 1]} : vector<16x32xf32> to vector<8x32xf32>
    %88 = vector.extract_strided_slice %10 {offsets = [8, 0], sizes = [8, 32], strides = [1, 1]} : vector<16x32xf32> to vector<8x32xf32>
    %89 = vector.extract_strided_slice %86 {offsets = [0, 0], sizes = [8, 8], strides = [1, 1]} : vector<8x32xf32> to vector<8x8xf32>
    %90 = vector.extract_strided_slice %87 {offsets = [0, 0], sizes = [8, 8], strides = [1, 1]} : vector<8x32xf32> to vector<8x8xf32>
    %91 = vector.extract_strided_slice %88 {offsets = [0, 0], sizes = [8, 8], strides = [1, 1]} : vector<8x32xf32> to vector<8x8xf32>
    %cst_34 = arith.constant dense<0.000000e+00> : vector<8x8xf32>
    %92 = tpu.matmul %89, %90, %cst_34 {dimension_numbers = #tpu.dot_dimension_numbers<[1], [1], [0], [0], [0, 0, 1, 0], [], []>} : vector<8x8xf32>, vector<8x8xf32>, vector<8x8xf32> -> vector<8x8xf32>
    %cst_35 = arith.constant 0.353553385 : f32
    %93 = vector.broadcast %cst_35 : f32 to vector<8x8xf32>
    %94 = arith.mulf %92, %93 : vector<8x8xf32>
    %cst_36 = arith.constant dense<0xFF800000> : vector<8xf32>
    %95 = vector.multi_reduction <maximumf>, %94, %cst_36 [1] : vector<8x8xf32> to vector<8xf32>
    %96 = vector.shape_cast %95 : vector<8xf32> to vector<8x1xf32>
    %97 = vector.broadcast %96 : vector<8x1xf32> to vector<8x8xf32>
    %98 = arith.subf %94, %97 : vector<8x8xf32>
    %99 = math.exp %98 : vector<8x8xf32>
    %cst_37 = arith.constant dense<0.000000e+00> : vector<8xf32>
    %100 = vector.multi_reduction <add>, %99, %cst_37 [1] : vector<8x8xf32> to vector<8xf32>
    %101 = vector.shape_cast %100 : vector<8xf32> to vector<8x1xf32>
    %102 = tpu.reciprocal %101 {approx = true} : vector<8x1xf32> -> vector<8x1xf32>
    %103 = vector.broadcast %102 : vector<8x1xf32> to vector<8x8xf32>
    %104 = arith.mulf %99, %103 : vector<8x8xf32>
    %cst_38 = arith.constant dense<0.000000e+00> : vector<8x8xf32>
    %105 = tpu.matmul %104, %91, %cst_38 {dimension_numbers = #tpu.dot_dimension_numbers<[1], [0], [0], [1], [0, 0, 1, 1], [], []>} : vector<8x8xf32>, vector<8x8xf32>, vector<8x8xf32> -> vector<8x8xf32>
    %c8_39 = arith.constant 8 : index
    %c0_40 = arith.constant 0 : index
    %106 = vector.load %arg14[%c8_39, %c0_40] : memref<16x32xf32, #tpu.memory_space<vmem>>, vector<8x8xf32>
    tpu.vector_store %arg14[%c8_39, %c0_40], %105 {strides = array<i32>} : memref<16x32xf32, #tpu.memory_space<vmem>>, vector<8x8xf32>,
    %107 = vector.extract_strided_slice %86 {offsets = [0, 8], sizes = [8, 8], strides = [1, 1]} : vector<8x32xf32> to vector<8x8xf32>
    %108 = vector.extract_strided_slice %87 {offsets = [0, 8], sizes = [8, 8], strides = [1, 1]} : vector<8x32xf32> to vector<8x8xf32>
    %109 = vector.extract_strided_slice %88 {offsets = [0, 8], sizes = [8, 8], strides = [1, 1]} : vector<8x32xf32> to vector<8x8xf32>
    %cst_41 = arith.constant dense<0.000000e+00> : vector<8x8xf32>
    %110 = tpu.matmul %107, %108, %cst_41 {dimension_numbers = #tpu.dot_dimension_numbers<[1], [1], [0], [0], [0, 0, 1, 0], [], []>} : vector<8x8xf32>, vector<8x8xf32>, vector<8x8xf32> -> vector<8x8xf32>
    %cst_42 = arith.constant 0.353553385 : f32
    %111 = vector.broadcast %cst_42 : f32 to vector<8x8xf32>
    %112 = arith.mulf %110, %111 : vector<8x8xf32>
    %cst_43 = arith.constant dense<0xFF800000> : vector<8xf32>
    %113 = vector.multi_reduction <maximumf>, %112, %cst_43 [1] : vector<8x8xf32> to vector<8xf32>
    %114 = vector.shape_cast %113 : vector<8xf32> to vector<8x1xf32>
    %115 = vector.broadcast %114 : vector<8x1xf32> to vector<8x8xf32>
    %116 = arith.subf %112, %115 : vector<8x8xf32>
    %117 = math.exp %116 : vector<8x8xf32>
    %cst_44 = arith.constant dense<0.000000e+00> : vector<8xf32>
    %118 = vector.multi_reduction <add>, %117, %cst_44 [1] : vector<8x8xf32> to vector<8xf32>
    %119 = vector.shape_cast %118 : vector<8xf32> to vector<8x1xf32>
    %120 = tpu.reciprocal %119 {approx = true} : vector<8x1xf32> -> vector<8x1xf32>
    %121 = vector.broadcast %120 : vector<8x1xf32> to vector<8x8xf32>
    %122 = arith.mulf %117, %121 : vector<8x8xf32>
    %cst_45 = arith.constant dense<0.000000e+00> : vector<8x8xf32>
    %123 = tpu.matmul %122, %109, %cst_45 {dimension_numbers = #tpu.dot_dimension_numbers<[1], [0], [0], [1], [0, 0, 1, 1], [], []>} : vector<8x8xf32>, vector<8x8xf32>, vector<8x8xf32> -> vector<8x8xf32>
    %c8_46 = arith.constant 8 : index
    %c8_47 = arith.constant 8 : index
    %124 = vector.load %arg14[%c8_46, %c8_47] : memref<16x32xf32, #tpu.memory_space<vmem>>, vector<8x8xf32>
    tpu.vector_store %arg14[%c8_46, %c8_47], %123 {strides = array<i32>} : memref<16x32xf32, #tpu.memory_space<vmem>>, vector<8x8xf32>,
    %125 = vector.extract_strided_slice %86 {offsets = [0, 16], sizes = [8, 8], strides = [1, 1]} : vector<8x32xf32> to vector<8x8xf32>
    %126 = vector.extract_strided_slice %87 {offsets = [0, 16], sizes = [8, 8], strides = [1, 1]} : vector<8x32xf32> to vector<8x8xf32>
    %127 = vector.extract_strided_slice %88 {offsets = [0, 16], sizes = [8, 8], strides = [1, 1]} : vector<8x32xf32> to vector<8x8xf32>
    %cst_48 = arith.constant dense<0.000000e+00> : vector<8x8xf32>
    %128 = tpu.matmul %125, %126, %cst_48 {dimension_numbers = #tpu.dot_dimension_numbers<[1], [1], [0], [0], [0, 0, 1, 0], [], []>} : vector<8x8xf32>, vector<8x8xf32>, vector<8x8xf32> -> vector<8x8xf32>
    %cst_49 = arith.constant 0.353553385 : f32
    %129 = vector.broadcast %cst_49 : f32 to vector<8x8xf32>
    %130 = arith.mulf %128, %129 : vector<8x8xf32>
    %cst_50 = arith.constant dense<0xFF800000> : vector<8xf32>
    %131 = vector.multi_reduction <maximumf>, %130, %cst_50 [1] : vector<8x8xf32> to vector<8xf32>
    %132 = vector.shape_cast %131 : vector<8xf32> to vector<8x1xf32>
    %133 = vector.broadcast %132 : vector<8x1xf32> to vector<8x8xf32>
    %134 = arith.subf %130, %133 : vector<8x8xf32>
    %135 = math.exp %134 : vector<8x8xf32>
    %cst_51 = arith.constant dense<0.000000e+00> : vector<8xf32>
    %136 = vector.multi_reduction <add>, %135, %cst_51 [1] : vector<8x8xf32> to vector<8xf32>
    %137 = vector.shape_cast %136 : vector<8xf32> to vector<8x1xf32>
    %138 = tpu.reciprocal %137 {approx = true} : vector<8x1xf32> -> vector<8x1xf32>
    %139 = vector.broadcast %138 : vector<8x1xf32> to vector<8x8xf32>
    %140 = arith.mulf %135, %139 : vector<8x8xf32>
    %cst_52 = arith.constant dense<0.000000e+00> : vector<8x8xf32>
    %141 = tpu.matmul %140, %127, %cst_52 {dimension_numbers = #tpu.dot_dimension_numbers<[1], [0], [0], [1], [0, 0, 1, 1], [], []>} : vector<8x8xf32>, vector<8x8xf32>, vector<8x8xf32> -> vector<8x8xf32>
    %c8_53 = arith.constant 8 : index
    %c16_54 = arith.constant 16 : index
    %142 = vector.load %arg14[%c8_53, %c16_54] : memref<16x32xf32, #tpu.memory_space<vmem>>, vector<8x8xf32>
    tpu.vector_store %arg14[%c8_53, %c16_54], %141 {strides = array<i32>} : memref<16x32xf32, #tpu.memory_space<vmem>>, vector<8x8xf32>,
    %143 = vector.extract_strided_slice %86 {offsets = [0, 24], sizes = [8, 8], strides = [1, 1]} : vector<8x32xf32> to vector<8x8xf32>
    %144 = vector.extract_strided_slice %87 {offsets = [0, 24], sizes = [8, 8], strides = [1, 1]} : vector<8x32xf32> to vector<8x8xf32>
    %145 = vector.extract_strided_slice %88 {offsets = [0, 24], sizes = [8, 8], strides = [1, 1]} : vector<8x32xf32> to vector<8x8xf32>
    %cst_55 = arith.constant dense<0.000000e+00> : vector<8x8xf32>
    %146 = tpu.matmul %143, %144, %cst_55 {dimension_numbers = #tpu.dot_dimension_numbers<[1], [1], [0], [0], [0, 0, 1, 0], [], []>} : vector<8x8xf32>, vector<8x8xf32>, vector<8x8xf32> -> vector<8x8xf32>
    %cst_56 = arith.constant 0.353553385 : f32
    %147 = vector.broadcast %cst_56 : f32 to vector<8x8xf32>
    %148 = arith.mulf %146, %147 : vector<8x8xf32>
    %cst_57 = arith.constant dense<0xFF800000> : vector<8xf32>
    %149 = vector.multi_reduction <maximumf>, %148, %cst_57 [1] : vector<8x8xf32> to vector<8xf32>
    %150 = vector.shape_cast %149 : vector<8xf32> to vector<8x1xf32>
    %151 = vector.broadcast %150 : vector<8x1xf32> to vector<8x8xf32>
    %152 = arith.subf %148, %151 : vector<8x8xf32>
    %153 = math.exp %152 : vector<8x8xf32>
    %cst_58 = arith.constant dense<0.000000e+00> : vector<8xf32>
    %154 = vector.multi_reduction <add>, %153, %cst_58 [1] : vector<8x8xf32> to vector<8xf32>
    %155 = vector.shape_cast %154 : vector<8xf32> to vector<8x1xf32>
    %156 = tpu.reciprocal %155 {approx = true} : vector<8x1xf32> -> vector<8x1xf32>
    %157 = vector.broadcast %156 : vector<8x1xf32> to vector<8x8xf32>
    %158 = arith.mulf %153, %157 : vector<8x8xf32>
    %cst_59 = arith.constant dense<0.000000e+00> : vector<8x8xf32>
    %159 = tpu.matmul %158, %145, %cst_59 {dimension_numbers = #tpu.dot_dimension_numbers<[1], [0], [0], [1], [0, 0, 1, 1], [], []>} : vector<8x8xf32>, vector<8x8xf32>, vector<8x8xf32> -> vector<8x8xf32>
    %c8_60 = arith.constant 8 : index
    %c24_61 = arith.constant 24 : index
    %160 = vector.load %arg14[%c8_60, %c24_61] : memref<16x32xf32, #tpu.memory_space<vmem>>, vector<8x8xf32>
    tpu.vector_store %arg14[%c8_60, %c24_61], %159 {strides = array<i32>} : memref<16x32xf32, #tpu.memory_space<vmem>>, vector<8x8xf32>,
    %c0_62 = arith.constant 0 : index
    %c0_63 = arith.constant 0 : index
    %161 = vector.load %arg14[%c0_62, %c0_63] : memref<16x32xf32, #tpu.memory_space<vmem>>, vector<16x32xf32>
    %cst_64 = arith.constant dense<0.000000e+00> : vector<16x32xf32>
    %162 = tpu.matmul %161, %3, %cst_64 {dimension_numbers = #tpu.dot_dimension_numbers<[1], [0], [0], [1], [0, 0, 1, 1], [], []>} : vector<16x32xf32>, vector<32x32xf32>, vector<16x32xf32> -> vector<16x32xf32>
    %163 = vector.broadcast %4 : vector<1x32xf32> to vector<16x32xf32>
    %164 = arith.addf %162, %163 : vector<16x32xf32>
    %c0_65 = arith.constant 0 : index
    %c0_66 = arith.constant 0 : index
    %165 = vector.load %arg5[%c0_65, %c0_66] : memref<1x32xf32, #tpu.memory_space<vmem>>, vector<1x32xf32>
    %c0_67 = arith.constant 0 : index
    %c0_68 = arith.constant 0 : index
    %166 = vector.load %arg6[%c0_67, %c0_68] : memref<1x32xf32, #tpu.memory_space<vmem>>, vector<1x32xf32>
    %167 = arith.addf %0, %164 : vector<16x32xf32>
    %cst_69 = arith.constant dense<0.000000e+00> : vector<16xf32>
    %168 = vector.multi_reduction <add>, %167, %cst_69 [1] : vector<16x32xf32> to vector<16xf32>
    %169 = vector.shape_cast %168 : vector<16xf32> to vector<16x1xf32>
    %cst_70 = arith.constant 3.200000e+01 : f32
    %170 = vector.broadcast %cst_70 : f32 to vector<16x1xf32>
    %171 = arith.divf %169, %170 : vector<16x1xf32>
    %172 = vector.broadcast %171 : vector<16x1xf32> to vector<16x32xf32>
    %173 = arith.subf %167, %172 : vector<16x32xf32>
    %174 = arith.mulf %173, %173 : vector<16x32xf32>
    %cst_71 = arith.constant dense<0.000000e+00> : vector<16xf32>
    %175 = vector.multi_reduction <add>, %174, %cst_71 [1] : vector<16x32xf32> to vector<16xf32>
    %176 = vector.shape_cast %175 : vector<16xf32> to vector<16x1xf32>
    %cst_72 = arith.constant 3.200000e+01 : f32
    %177 = vector.broadcast %cst_72 : f32 to vector<16x1xf32>
    %178 = arith.divf %176, %177 : vector<16x1xf32>
    %cst_73 = arith.constant 9.99999974E-6 : f32
    %179 = vector.broadcast %cst_73 : f32 to vector<16x1xf32>
    %180 = arith.addf %178, %179 : vector<16x1xf32>
    %181 = math.rsqrt %180 : vector<16x1xf32>
    %182 = vector.broadcast %181 : vector<16x1xf32> to vector<16x32xf32>
    %183 = arith.mulf %173, %182 : vector<16x32xf32>
    %184 = vector.broadcast %165 : vector<1x32xf32> to vector<16x32xf32>
    %185 = arith.mulf %183, %184 : vector<16x32xf32>
    %186 = vector.broadcast %166 : vector<1x32xf32> to vector<16x32xf32>
    %187 = arith.addf %185, %186 : vector<16x32xf32>
    %c0_74 = arith.constant 0 : index
    %c0_75 = arith.constant 0 : index
    %188 = vector.load %arg7[%c0_74, %c0_75] : memref<32x2048xf32, #tpu.memory_space<vmem>>, vector<32x2048xf32>
    %c0_76 = arith.constant 0 : index
    %c0_77 = arith.constant 0 : index
    %189 = vector.load %arg8[%c0_76, %c0_77] : memref<1x2048xf32, #tpu.memory_space<vmem>>, vector<1x2048xf32>
    %c0_78 = arith.constant 0 : index
    %c0_79 = arith.constant 0 : index
    %190 = vector.load %arg9[%c0_78, %c0_79] : memref<2048x32xf32, #tpu.memory_space<vmem>>, vector<2048x32xf32>
    %c0_80 = arith.constant 0 : index
    %c0_81 = arith.constant 0 : index
    %191 = vector.load %arg10[%c0_80, %c0_81] : memref<1x32xf32, #tpu.memory_space<vmem>>, vector<1x32xf32>
    %cst_82 = arith.constant dense<0.000000e+00> : vector<16x2048xf32>
    %192 = tpu.matmul %187, %188, %cst_82 {dimension_numbers = #tpu.dot_dimension_numbers<[1], [0], [0], [1], [0, 0, 1, 1], [], []>} : vector<16x32xf32>, vector<32x2048xf32>, vector<16x2048xf32> -> vector<16x2048xf32>
    %193 = vector.broadcast %189 : vector<1x2048xf32> to vector<16x2048xf32>
    %194 = arith.addf %192, %193 : vector<16x2048xf32>
    %cst_83 = arith.constant 0.000000e+00 : f32
    %195 = vector.broadcast %cst_83 : f32 to vector<16x2048xf32>
    %196 = arith.maximumf %194, %195 : vector<16x2048xf32>
    %cst_84 = arith.constant dense<0.000000e+00> : vector<16x32xf32>
    %197 = tpu.matmul %196, %190, %cst_84 {dimension_numbers = #tpu.dot_dimension_numbers<[1], [0], [0], [1], [0, 0, 1, 1], [], []>} : vector<16x2048xf32>, vector<2048x32xf32>, vector<16x32xf32> -> vector<16x32xf32>
    %198 = vector.broadcast %191 : vector<1x32xf32> to vector<16x32xf32>
    %199 = arith.addf %197, %198 : vector<16x32xf32>
    %c0_85 = arith.constant 0 : index
    %c0_86 = arith.constant 0 : index
    %200 = vector.load %arg11[%c0_85, %c0_86] : memref<1x32xf32, #tpu.memory_space<vmem>>, vector<1x32xf32>
    %c0_87 = arith.constant 0 : index
    %c0_88 = arith.constant 0 : index
    %201 = vector.load %arg12[%c0_87, %c0_88] : memref<1x32xf32, #tpu.memory_space<vmem>>, vector<1x32xf32>
    %202 = arith.addf %187, %199 : vector<16x32xf32>
    %cst_89 = arith.constant dense<0.000000e+00> : vector<16xf32>
    %203 = vector.multi_reduction <add>, %202, %cst_89 [1] : vector<16x32xf32> to vector<16xf32>
    %204 = vector.shape_cast %203 : vector<16xf32> to vector<16x1xf32>
    %cst_90 = arith.constant 3.200000e+01 : f32
    %205 = vector.broadcast %cst_90 : f32 to vector<16x1xf32>
    %206 = arith.divf %204, %205 : vector<16x1xf32>
    %207 = vector.broadcast %206 : vector<16x1xf32> to vector<16x32xf32>
    %208 = arith.subf %202, %207 : vector<16x32xf32>
    %209 = arith.mulf %208, %208 : vector<16x32xf32>
    %cst_91 = arith.constant dense<0.000000e+00> : vector<16xf32>
    %210 = vector.multi_reduction <add>, %209, %cst_91 [1] : vector<16x32xf32> to vector<16xf32>
    %211 = vector.shape_cast %210 : vector<16xf32> to vector<16x1xf32>
    %cst_92 = arith.constant 3.200000e+01 : f32
    %212 = vector.broadcast %cst_92 : f32 to vector<16x1xf32>
    %213 = arith.divf %211, %212 : vector<16x1xf32>
    %cst_93 = arith.constant 9.99999974E-6 : f32
    %214 = vector.broadcast %cst_93 : f32 to vector<16x1xf32>
    %215 = arith.addf %213, %214 : vector<16x1xf32>
    %216 = math.rsqrt %215 : vector<16x1xf32>
    %217 = vector.broadcast %216 : vector<16x1xf32> to vector<16x32xf32>
    %218 = arith.mulf %208, %217 : vector<16x32xf32>
    %219 = vector.broadcast %200 : vector<1x32xf32> to vector<16x32xf32>
    %220 = arith.mulf %218, %219 : vector<16x32xf32>
    %221 = vector.broadcast %201 : vector<1x32xf32> to vector<16x32xf32>
    %222 = arith.addf %220, %221 : vector<16x32xf32>
    %c0_94 = arith.constant 0 : index
    %c0_95 = arith.constant 0 : index
    %223 = vector.load %arg13[%c0_94, %c0_95] : memref<16x32xf32, #tpu.memory_space<vmem>>, vector<16x32xf32>
    tpu.vector_store %arg13[%c0_94, %c0_95], %222 {strides = array<i32>} : memref<16x32xf32, #tpu.memory_space<vmem>>, vector<16x32xf32>,
    return
  }
}

module attributes {stable_mosaic.version = 11 : i64} {
  func.func @_decoder_layer_kernel(%arg0: memref<16x32xf32, #tpu.memory_space<vmem>>, %arg1: memref<16x32xf32, #tpu.memory_space<vmem>>, %arg2: memref<32x96xf32, #tpu.memory_space<vmem>>, %arg3: memref<1x96xf32, #tpu.memory_space<vmem>>, %arg4: memref<32x32xf32, #tpu.memory_space<vmem>>, %arg5: memref<1x32xf32, #tpu.memory_space<vmem>>, %arg6: memref<1x32xf32, #tpu.memory_space<vmem>>, %arg7: memref<1x32xf32, #tpu.memory_space<vmem>>, %arg8: memref<32x32xf32, #tpu.memory_space<vmem>>, %arg9: memref<1x32xf32, #tpu.memory_space<vmem>>, %arg10: memref<32x64xf32, #tpu.memory_space<vmem>>, %arg11: memref<1x64xf32, #tpu.memory_space<vmem>>, %arg12: memref<32x32xf32, #tpu.memory_space<vmem>>, %arg13: memref<1x32xf32, #tpu.memory_space<vmem>>, %arg14: memref<1x32xf32, #tpu.memory_space<vmem>>, %arg15: memref<1x32xf32, #tpu.memory_space<vmem>>, %arg16: memref<32x2048xf32, #tpu.memory_space<vmem>>, %arg17: memref<1x2048xf32, #tpu.memory_space<vmem>>, %arg18: memref<2048x32xf32, #tpu.memory_space<vmem>>, %arg19: memref<1x32xf32, #tpu.memory_space<vmem>>, %arg20: memref<1x32xf32, #tpu.memory_space<vmem>>, %arg21: memref<1x32xf32, #tpu.memory_space<vmem>>, %arg22: memref<16x32xf32, #tpu.memory_space<vmem>>, %arg23: memref<16x32xf32, #tpu.memory_space<vmem>>) attributes {dimension_semantics = [], scalar_prefetch = 0 : i64, scratch_operands = 1 : i64, tpu.core_type = #tpu.core_type<tc>} {
    %c0 = arith.constant 0 : index
    %c0_0 = arith.constant 0 : index
    %0 = vector.load %arg0[%c0, %c0_0] : memref<16x32xf32, #tpu.memory_space<vmem>>, vector<16x32xf32>
    %c0_1 = arith.constant 0 : index
    %c0_2 = arith.constant 0 : index
    %1 = vector.load %arg1[%c0_1, %c0_2] : memref<16x32xf32, #tpu.memory_space<vmem>>, vector<16x32xf32>
    %c0_3 = arith.constant 0 : index
    %c0_4 = arith.constant 0 : index
    %2 = vector.load %arg2[%c0_3, %c0_4] : memref<32x96xf32, #tpu.memory_space<vmem>>, vector<32x96xf32>
    %c0_5 = arith.constant 0 : index
    %c0_6 = arith.constant 0 : index
    %3 = vector.load %arg3[%c0_5, %c0_6] : memref<1x96xf32, #tpu.memory_space<vmem>>, vector<1x96xf32>
    %c0_7 = arith.constant 0 : index
    %c0_8 = arith.constant 0 : index
    %4 = vector.load %arg4[%c0_7, %c0_8] : memref<32x32xf32, #tpu.memory_space<vmem>>, vector<32x32xf32>
    %c0_9 = arith.constant 0 : index
    %c0_10 = arith.constant 0 : index
    %5 = vector.load %arg5[%c0_9, %c0_10] : memref<1x32xf32, #tpu.memory_space<vmem>>, vector<1x32xf32>
    %cst = arith.constant dense<0.000000e+00> : vector<16x96xf32>
    %6 = tpu.matmul %0, %2, %cst {dimension_numbers = #tpu.dot_dimension_numbers<[1], [0], [0], [1], [0, 0, 1, 1], [], []>} : vector<16x32xf32>, vector<32x96xf32>, vector<16x96xf32> -> vector<16x96xf32>
    %7 = vector.broadcast %3 : vector<1x96xf32> to vector<16x96xf32>
    %8 = arith.addf %6, %7 : vector<16x96xf32>
    %9 = vector.extract_strided_slice %8 {offsets = [0, 0], sizes = [16, 32], strides = [1, 1]} : vector<16x96xf32> to vector<16x32xf32>
    %10 = vector.extract_strided_slice %8 {offsets = [0, 32], sizes = [16, 32], strides = [1, 1]} : vector<16x96xf32> to vector<16x32xf32>
    %11 = vector.extract_strided_slice %8 {offsets = [0, 64], sizes = [16, 32], strides = [1, 1]} : vector<16x96xf32> to vector<16x32xf32>
    %12 = vector.extract_strided_slice %9 {offsets = [0, 0], sizes = [8, 32], strides = [1, 1]} : vector<16x32xf32> to vector<8x32xf32>
    %13 = vector.extract_strided_slice %10 {offsets = [0, 0], sizes = [8, 32], strides = [1, 1]} : vector<16x32xf32> to vector<8x32xf32>
    %14 = vector.extract_strided_slice %11 {offsets = [0, 0], sizes = [8, 32], strides = [1, 1]} : vector<16x32xf32> to vector<8x32xf32>
    %15 = vector.extract_strided_slice %12 {offsets = [0, 0], sizes = [8, 8], strides = [1, 1]} : vector<8x32xf32> to vector<8x8xf32>
    %16 = vector.extract_strided_slice %13 {offsets = [0, 0], sizes = [8, 8], strides = [1, 1]} : vector<8x32xf32> to vector<8x8xf32>
    %17 = vector.extract_strided_slice %14 {offsets = [0, 0], sizes = [8, 8], strides = [1, 1]} : vector<8x32xf32> to vector<8x8xf32>
    %cst_11 = arith.constant dense<0.000000e+00> : vector<8x8xf32>
    %18 = tpu.matmul %15, %16, %cst_11 {dimension_numbers = #tpu.dot_dimension_numbers<[1], [1], [0], [0], [0, 0, 1, 0], [], []>} : vector<8x8xf32>, vector<8x8xf32>, vector<8x8xf32> -> vector<8x8xf32>
    %cst_12 = arith.constant 0.353553385 : f32
    %19 = vector.broadcast %cst_12 : f32 to vector<8x8xf32>
    %20 = arith.mulf %18, %19 : vector<8x8xf32>
    %cst_13 = arith.constant dense<0xFF800000> : vector<8xf32>
    %21 = vector.multi_reduction <maximumf>, %20, %cst_13 [1] : vector<8x8xf32> to vector<8xf32>
    %22 = vector.shape_cast %21 : vector<8xf32> to vector<8x1xf32>
    %23 = vector.broadcast %22 : vector<8x1xf32> to vector<8x8xf32>
    %24 = arith.subf %20, %23 : vector<8x8xf32>
    %25 = math.exp %24 : vector<8x8xf32>
    %cst_14 = arith.constant dense<0.000000e+00> : vector<8xf32>
    %26 = vector.multi_reduction <add>, %25, %cst_14 [1] : vector<8x8xf32> to vector<8xf32>
    %27 = vector.shape_cast %26 : vector<8xf32> to vector<8x1xf32>
    %28 = tpu.reciprocal %27 {approx = true} : vector<8x1xf32> -> vector<8x1xf32>
    %29 = vector.broadcast %28 : vector<8x1xf32> to vector<8x8xf32>
    %30 = arith.mulf %25, %29 : vector<8x8xf32>
    %cst_15 = arith.constant dense<0.000000e+00> : vector<8x8xf32>
    %31 = tpu.matmul %30, %17, %cst_15 {dimension_numbers = #tpu.dot_dimension_numbers<[1], [0], [0], [1], [0, 0, 1, 1], [], []>} : vector<8x8xf32>, vector<8x8xf32>, vector<8x8xf32> -> vector<8x8xf32>
    %c0_16 = arith.constant 0 : index
    %c0_17 = arith.constant 0 : index
    %32 = vector.load %arg23[%c0_16, %c0_17] : memref<16x32xf32, #tpu.memory_space<vmem>>, vector<8x8xf32>
    tpu.vector_store %arg23[%c0_16, %c0_17], %31 {strides = array<i32>} : memref<16x32xf32, #tpu.memory_space<vmem>>, vector<8x8xf32>,
    %33 = vector.extract_strided_slice %12 {offsets = [0, 8], sizes = [8, 8], strides = [1, 1]} : vector<8x32xf32> to vector<8x8xf32>
    %34 = vector.extract_strided_slice %13 {offsets = [0, 8], sizes = [8, 8], strides = [1, 1]} : vector<8x32xf32> to vector<8x8xf32>
    %35 = vector.extract_strided_slice %14 {offsets = [0, 8], sizes = [8, 8], strides = [1, 1]} : vector<8x32xf32> to vector<8x8xf32>
    %cst_18 = arith.constant dense<0.000000e+00> : vector<8x8xf32>
    %36 = tpu.matmul %33, %34, %cst_18 {dimension_numbers = #tpu.dot_dimension_numbers<[1], [1], [0], [0], [0, 0, 1, 0], [], []>} : vector<8x8xf32>, vector<8x8xf32>, vector<8x8xf32> -> vector<8x8xf32>
    %cst_19 = arith.constant 0.353553385 : f32
    %37 = vector.broadcast %cst_19 : f32 to vector<8x8xf32>
    %38 = arith.mulf %36, %37 : vector<8x8xf32>
    %cst_20 = arith.constant dense<0xFF800000> : vector<8xf32>
    %39 = vector.multi_reduction <maximumf>, %38, %cst_20 [1] : vector<8x8xf32> to vector<8xf32>
    %40 = vector.shape_cast %39 : vector<8xf32> to vector<8x1xf32>
    %41 = vector.broadcast %40 : vector<8x1xf32> to vector<8x8xf32>
    %42 = arith.subf %38, %41 : vector<8x8xf32>
    %43 = math.exp %42 : vector<8x8xf32>
    %cst_21 = arith.constant dense<0.000000e+00> : vector<8xf32>
    %44 = vector.multi_reduction <add>, %43, %cst_21 [1] : vector<8x8xf32> to vector<8xf32>
    %45 = vector.shape_cast %44 : vector<8xf32> to vector<8x1xf32>
    %46 = tpu.reciprocal %45 {approx = true} : vector<8x1xf32> -> vector<8x1xf32>
    %47 = vector.broadcast %46 : vector<8x1xf32> to vector<8x8xf32>
    %48 = arith.mulf %43, %47 : vector<8x8xf32>
    %cst_22 = arith.constant dense<0.000000e+00> : vector<8x8xf32>
    %49 = tpu.matmul %48, %35, %cst_22 {dimension_numbers = #tpu.dot_dimension_numbers<[1], [0], [0], [1], [0, 0, 1, 1], [], []>} : vector<8x8xf32>, vector<8x8xf32>, vector<8x8xf32> -> vector<8x8xf32>
    %c0_23 = arith.constant 0 : index
    %c8 = arith.constant 8 : index
    %50 = vector.load %arg23[%c0_23, %c8] : memref<16x32xf32, #tpu.memory_space<vmem>>, vector<8x8xf32>
    tpu.vector_store %arg23[%c0_23, %c8], %49 {strides = array<i32>} : memref<16x32xf32, #tpu.memory_space<vmem>>, vector<8x8xf32>,
    %51 = vector.extract_strided_slice %12 {offsets = [0, 16], sizes = [8, 8], strides = [1, 1]} : vector<8x32xf32> to vector<8x8xf32>
    %52 = vector.extract_strided_slice %13 {offsets = [0, 16], sizes = [8, 8], strides = [1, 1]} : vector<8x32xf32> to vector<8x8xf32>
    %53 = vector.extract_strided_slice %14 {offsets = [0, 16], sizes = [8, 8], strides = [1, 1]} : vector<8x32xf32> to vector<8x8xf32>
    %cst_24 = arith.constant dense<0.000000e+00> : vector<8x8xf32>
    %54 = tpu.matmul %51, %52, %cst_24 {dimension_numbers = #tpu.dot_dimension_numbers<[1], [1], [0], [0], [0, 0, 1, 0], [], []>} : vector<8x8xf32>, vector<8x8xf32>, vector<8x8xf32> -> vector<8x8xf32>
    %cst_25 = arith.constant 0.353553385 : f32
    %55 = vector.broadcast %cst_25 : f32 to vector<8x8xf32>
    %56 = arith.mulf %54, %55 : vector<8x8xf32>
    %cst_26 = arith.constant dense<0xFF800000> : vector<8xf32>
    %57 = vector.multi_reduction <maximumf>, %56, %cst_26 [1] : vector<8x8xf32> to vector<8xf32>
    %58 = vector.shape_cast %57 : vector<8xf32> to vector<8x1xf32>
    %59 = vector.broadcast %58 : vector<8x1xf32> to vector<8x8xf32>
    %60 = arith.subf %56, %59 : vector<8x8xf32>
    %61 = math.exp %60 : vector<8x8xf32>
    %cst_27 = arith.constant dense<0.000000e+00> : vector<8xf32>
    %62 = vector.multi_reduction <add>, %61, %cst_27 [1] : vector<8x8xf32> to vector<8xf32>
    %63 = vector.shape_cast %62 : vector<8xf32> to vector<8x1xf32>
    %64 = tpu.reciprocal %63 {approx = true} : vector<8x1xf32> -> vector<8x1xf32>
    %65 = vector.broadcast %64 : vector<8x1xf32> to vector<8x8xf32>
    %66 = arith.mulf %61, %65 : vector<8x8xf32>
    %cst_28 = arith.constant dense<0.000000e+00> : vector<8x8xf32>
    %67 = tpu.matmul %66, %53, %cst_28 {dimension_numbers = #tpu.dot_dimension_numbers<[1], [0], [0], [1], [0, 0, 1, 1], [], []>} : vector<8x8xf32>, vector<8x8xf32>, vector<8x8xf32> -> vector<8x8xf32>
    %c0_29 = arith.constant 0 : index
    %c16 = arith.constant 16 : index
    %68 = vector.load %arg23[%c0_29, %c16] : memref<16x32xf32, #tpu.memory_space<vmem>>, vector<8x8xf32>
    tpu.vector_store %arg23[%c0_29, %c16], %67 {strides = array<i32>} : memref<16x32xf32, #tpu.memory_space<vmem>>, vector<8x8xf32>,
    %69 = vector.extract_strided_slice %12 {offsets = [0, 24], sizes = [8, 8], strides = [1, 1]} : vector<8x32xf32> to vector<8x8xf32>
    %70 = vector.extract_strided_slice %13 {offsets = [0, 24], sizes = [8, 8], strides = [1, 1]} : vector<8x32xf32> to vector<8x8xf32>
    %71 = vector.extract_strided_slice %14 {offsets = [0, 24], sizes = [8, 8], strides = [1, 1]} : vector<8x32xf32> to vector<8x8xf32>
    %cst_30 = arith.constant dense<0.000000e+00> : vector<8x8xf32>
    %72 = tpu.matmul %69, %70, %cst_30 {dimension_numbers = #tpu.dot_dimension_numbers<[1], [1], [0], [0], [0, 0, 1, 0], [], []>} : vector<8x8xf32>, vector<8x8xf32>, vector<8x8xf32> -> vector<8x8xf32>
    %cst_31 = arith.constant 0.353553385 : f32
    %73 = vector.broadcast %cst_31 : f32 to vector<8x8xf32>
    %74 = arith.mulf %72, %73 : vector<8x8xf32>
    %cst_32 = arith.constant dense<0xFF800000> : vector<8xf32>
    %75 = vector.multi_reduction <maximumf>, %74, %cst_32 [1] : vector<8x8xf32> to vector<8xf32>
    %76 = vector.shape_cast %75 : vector<8xf32> to vector<8x1xf32>
    %77 = vector.broadcast %76 : vector<8x1xf32> to vector<8x8xf32>
    %78 = arith.subf %74, %77 : vector<8x8xf32>
    %79 = math.exp %78 : vector<8x8xf32>
    %cst_33 = arith.constant dense<0.000000e+00> : vector<8xf32>
    %80 = vector.multi_reduction <add>, %79, %cst_33 [1] : vector<8x8xf32> to vector<8xf32>
    %81 = vector.shape_cast %80 : vector<8xf32> to vector<8x1xf32>
    %82 = tpu.reciprocal %81 {approx = true} : vector<8x1xf32> -> vector<8x1xf32>
    %83 = vector.broadcast %82 : vector<8x1xf32> to vector<8x8xf32>
    %84 = arith.mulf %79, %83 : vector<8x8xf32>
    %cst_34 = arith.constant dense<0.000000e+00> : vector<8x8xf32>
    %85 = tpu.matmul %84, %71, %cst_34 {dimension_numbers = #tpu.dot_dimension_numbers<[1], [0], [0], [1], [0, 0, 1, 1], [], []>} : vector<8x8xf32>, vector<8x8xf32>, vector<8x8xf32> -> vector<8x8xf32>
    %c0_35 = arith.constant 0 : index
    %c24 = arith.constant 24 : index
    %86 = vector.load %arg23[%c0_35, %c24] : memref<16x32xf32, #tpu.memory_space<vmem>>, vector<8x8xf32>
    tpu.vector_store %arg23[%c0_35, %c24], %85 {strides = array<i32>} : memref<16x32xf32, #tpu.memory_space<vmem>>, vector<8x8xf32>,
    %87 = vector.extract_strided_slice %9 {offsets = [8, 0], sizes = [8, 32], strides = [1, 1]} : vector<16x32xf32> to vector<8x32xf32>
    %88 = vector.extract_strided_slice %10 {offsets = [8, 0], sizes = [8, 32], strides = [1, 1]} : vector<16x32xf32> to vector<8x32xf32>
    %89 = vector.extract_strided_slice %11 {offsets = [8, 0], sizes = [8, 32], strides = [1, 1]} : vector<16x32xf32> to vector<8x32xf32>
    %90 = vector.extract_strided_slice %87 {offsets = [0, 0], sizes = [8, 8], strides = [1, 1]} : vector<8x32xf32> to vector<8x8xf32>
    %91 = vector.extract_strided_slice %88 {offsets = [0, 0], sizes = [8, 8], strides = [1, 1]} : vector<8x32xf32> to vector<8x8xf32>
    %92 = vector.extract_strided_slice %89 {offsets = [0, 0], sizes = [8, 8], strides = [1, 1]} : vector<8x32xf32> to vector<8x8xf32>
    %cst_36 = arith.constant dense<0.000000e+00> : vector<8x8xf32>
    %93 = tpu.matmul %90, %91, %cst_36 {dimension_numbers = #tpu.dot_dimension_numbers<[1], [1], [0], [0], [0, 0, 1, 0], [], []>} : vector<8x8xf32>, vector<8x8xf32>, vector<8x8xf32> -> vector<8x8xf32>
    %cst_37 = arith.constant 0.353553385 : f32
    %94 = vector.broadcast %cst_37 : f32 to vector<8x8xf32>
    %95 = arith.mulf %93, %94 : vector<8x8xf32>
    %cst_38 = arith.constant dense<0xFF800000> : vector<8xf32>
    %96 = vector.multi_reduction <maximumf>, %95, %cst_38 [1] : vector<8x8xf32> to vector<8xf32>
    %97 = vector.shape_cast %96 : vector<8xf32> to vector<8x1xf32>
    %98 = vector.broadcast %97 : vector<8x1xf32> to vector<8x8xf32>
    %99 = arith.subf %95, %98 : vector<8x8xf32>
    %100 = math.exp %99 : vector<8x8xf32>
    %cst_39 = arith.constant dense<0.000000e+00> : vector<8xf32>
    %101 = vector.multi_reduction <add>, %100, %cst_39 [1] : vector<8x8xf32> to vector<8xf32>
    %102 = vector.shape_cast %101 : vector<8xf32> to vector<8x1xf32>
    %103 = tpu.reciprocal %102 {approx = true} : vector<8x1xf32> -> vector<8x1xf32>
    %104 = vector.broadcast %103 : vector<8x1xf32> to vector<8x8xf32>
    %105 = arith.mulf %100, %104 : vector<8x8xf32>
    %cst_40 = arith.constant dense<0.000000e+00> : vector<8x8xf32>
    %106 = tpu.matmul %105, %92, %cst_40 {dimension_numbers = #tpu.dot_dimension_numbers<[1], [0], [0], [1], [0, 0, 1, 1], [], []>} : vector<8x8xf32>, vector<8x8xf32>, vector<8x8xf32> -> vector<8x8xf32>
    %c8_41 = arith.constant 8 : index
    %c0_42 = arith.constant 0 : index
    %107 = vector.load %arg23[%c8_41, %c0_42] : memref<16x32xf32, #tpu.memory_space<vmem>>, vector<8x8xf32>
    tpu.vector_store %arg23[%c8_41, %c0_42], %106 {strides = array<i32>} : memref<16x32xf32, #tpu.memory_space<vmem>>, vector<8x8xf32>,
    %108 = vector.extract_strided_slice %87 {offsets = [0, 8], sizes = [8, 8], strides = [1, 1]} : vector<8x32xf32> to vector<8x8xf32>
    %109 = vector.extract_strided_slice %88 {offsets = [0, 8], sizes = [8, 8], strides = [1, 1]} : vector<8x32xf32> to vector<8x8xf32>
    %110 = vector.extract_strided_slice %89 {offsets = [0, 8], sizes = [8, 8], strides = [1, 1]} : vector<8x32xf32> to vector<8x8xf32>
    %cst_43 = arith.constant dense<0.000000e+00> : vector<8x8xf32>
    %111 = tpu.matmul %108, %109, %cst_43 {dimension_numbers = #tpu.dot_dimension_numbers<[1], [1], [0], [0], [0, 0, 1, 0], [], []>} : vector<8x8xf32>, vector<8x8xf32>, vector<8x8xf32> -> vector<8x8xf32>
    %cst_44 = arith.constant 0.353553385 : f32
    %112 = vector.broadcast %cst_44 : f32 to vector<8x8xf32>
    %113 = arith.mulf %111, %112 : vector<8x8xf32>
    %cst_45 = arith.constant dense<0xFF800000> : vector<8xf32>
    %114 = vector.multi_reduction <maximumf>, %113, %cst_45 [1] : vector<8x8xf32> to vector<8xf32>
    %115 = vector.shape_cast %114 : vector<8xf32> to vector<8x1xf32>
    %116 = vector.broadcast %115 : vector<8x1xf32> to vector<8x8xf32>
    %117 = arith.subf %113, %116 : vector<8x8xf32>
    %118 = math.exp %117 : vector<8x8xf32>
    %cst_46 = arith.constant dense<0.000000e+00> : vector<8xf32>
    %119 = vector.multi_reduction <add>, %118, %cst_46 [1] : vector<8x8xf32> to vector<8xf32>
    %120 = vector.shape_cast %119 : vector<8xf32> to vector<8x1xf32>
    %121 = tpu.reciprocal %120 {approx = true} : vector<8x1xf32> -> vector<8x1xf32>
    %122 = vector.broadcast %121 : vector<8x1xf32> to vector<8x8xf32>
    %123 = arith.mulf %118, %122 : vector<8x8xf32>
    %cst_47 = arith.constant dense<0.000000e+00> : vector<8x8xf32>
    %124 = tpu.matmul %123, %110, %cst_47 {dimension_numbers = #tpu.dot_dimension_numbers<[1], [0], [0], [1], [0, 0, 1, 1], [], []>} : vector<8x8xf32>, vector<8x8xf32>, vector<8x8xf32> -> vector<8x8xf32>
    %c8_48 = arith.constant 8 : index
    %c8_49 = arith.constant 8 : index
    %125 = vector.load %arg23[%c8_48, %c8_49] : memref<16x32xf32, #tpu.memory_space<vmem>>, vector<8x8xf32>
    tpu.vector_store %arg23[%c8_48, %c8_49], %124 {strides = array<i32>} : memref<16x32xf32, #tpu.memory_space<vmem>>, vector<8x8xf32>,
    %126 = vector.extract_strided_slice %87 {offsets = [0, 16], sizes = [8, 8], strides = [1, 1]} : vector<8x32xf32> to vector<8x8xf32>
    %127 = vector.extract_strided_slice %88 {offsets = [0, 16], sizes = [8, 8], strides = [1, 1]} : vector<8x32xf32> to vector<8x8xf32>
    %128 = vector.extract_strided_slice %89 {offsets = [0, 16], sizes = [8, 8], strides = [1, 1]} : vector<8x32xf32> to vector<8x8xf32>
    %cst_50 = arith.constant dense<0.000000e+00> : vector<8x8xf32>
    %129 = tpu.matmul %126, %127, %cst_50 {dimension_numbers = #tpu.dot_dimension_numbers<[1], [1], [0], [0], [0, 0, 1, 0], [], []>} : vector<8x8xf32>, vector<8x8xf32>, vector<8x8xf32> -> vector<8x8xf32>
    %cst_51 = arith.constant 0.353553385 : f32
    %130 = vector.broadcast %cst_51 : f32 to vector<8x8xf32>
    %131 = arith.mulf %129, %130 : vector<8x8xf32>
    %cst_52 = arith.constant dense<0xFF800000> : vector<8xf32>
    %132 = vector.multi_reduction <maximumf>, %131, %cst_52 [1] : vector<8x8xf32> to vector<8xf32>
    %133 = vector.shape_cast %132 : vector<8xf32> to vector<8x1xf32>
    %134 = vector.broadcast %133 : vector<8x1xf32> to vector<8x8xf32>
    %135 = arith.subf %131, %134 : vector<8x8xf32>
    %136 = math.exp %135 : vector<8x8xf32>
    %cst_53 = arith.constant dense<0.000000e+00> : vector<8xf32>
    %137 = vector.multi_reduction <add>, %136, %cst_53 [1] : vector<8x8xf32> to vector<8xf32>
    %138 = vector.shape_cast %137 : vector<8xf32> to vector<8x1xf32>
    %139 = tpu.reciprocal %138 {approx = true} : vector<8x1xf32> -> vector<8x1xf32>
    %140 = vector.broadcast %139 : vector<8x1xf32> to vector<8x8xf32>
    %141 = arith.mulf %136, %140 : vector<8x8xf32>
    %cst_54 = arith.constant dense<0.000000e+00> : vector<8x8xf32>
    %142 = tpu.matmul %141, %128, %cst_54 {dimension_numbers = #tpu.dot_dimension_numbers<[1], [0], [0], [1], [0, 0, 1, 1], [], []>} : vector<8x8xf32>, vector<8x8xf32>, vector<8x8xf32> -> vector<8x8xf32>
    %c8_55 = arith.constant 8 : index
    %c16_56 = arith.constant 16 : index
    %143 = vector.load %arg23[%c8_55, %c16_56] : memref<16x32xf32, #tpu.memory_space<vmem>>, vector<8x8xf32>
    tpu.vector_store %arg23[%c8_55, %c16_56], %142 {strides = array<i32>} : memref<16x32xf32, #tpu.memory_space<vmem>>, vector<8x8xf32>,
    %144 = vector.extract_strided_slice %87 {offsets = [0, 24], sizes = [8, 8], strides = [1, 1]} : vector<8x32xf32> to vector<8x8xf32>
    %145 = vector.extract_strided_slice %88 {offsets = [0, 24], sizes = [8, 8], strides = [1, 1]} : vector<8x32xf32> to vector<8x8xf32>
    %146 = vector.extract_strided_slice %89 {offsets = [0, 24], sizes = [8, 8], strides = [1, 1]} : vector<8x32xf32> to vector<8x8xf32>
    %cst_57 = arith.constant dense<0.000000e+00> : vector<8x8xf32>
    %147 = tpu.matmul %144, %145, %cst_57 {dimension_numbers = #tpu.dot_dimension_numbers<[1], [1], [0], [0], [0, 0, 1, 0], [], []>} : vector<8x8xf32>, vector<8x8xf32>, vector<8x8xf32> -> vector<8x8xf32>
    %cst_58 = arith.constant 0.353553385 : f32
    %148 = vector.broadcast %cst_58 : f32 to vector<8x8xf32>
    %149 = arith.mulf %147, %148 : vector<8x8xf32>
    %cst_59 = arith.constant dense<0xFF800000> : vector<8xf32>
    %150 = vector.multi_reduction <maximumf>, %149, %cst_59 [1] : vector<8x8xf32> to vector<8xf32>
    %151 = vector.shape_cast %150 : vector<8xf32> to vector<8x1xf32>
    %152 = vector.broadcast %151 : vector<8x1xf32> to vector<8x8xf32>
    %153 = arith.subf %149, %152 : vector<8x8xf32>
    %154 = math.exp %153 : vector<8x8xf32>
    %cst_60 = arith.constant dense<0.000000e+00> : vector<8xf32>
    %155 = vector.multi_reduction <add>, %154, %cst_60 [1] : vector<8x8xf32> to vector<8xf32>
    %156 = vector.shape_cast %155 : vector<8xf32> to vector<8x1xf32>
    %157 = tpu.reciprocal %156 {approx = true} : vector<8x1xf32> -> vector<8x1xf32>
    %158 = vector.broadcast %157 : vector<8x1xf32> to vector<8x8xf32>
    %159 = arith.mulf %154, %158 : vector<8x8xf32>
    %cst_61 = arith.constant dense<0.000000e+00> : vector<8x8xf32>
    %160 = tpu.matmul %159, %146, %cst_61 {dimension_numbers = #tpu.dot_dimension_numbers<[1], [0], [0], [1], [0, 0, 1, 1], [], []>} : vector<8x8xf32>, vector<8x8xf32>, vector<8x8xf32> -> vector<8x8xf32>
    %c8_62 = arith.constant 8 : index
    %c24_63 = arith.constant 24 : index
    %161 = vector.load %arg23[%c8_62, %c24_63] : memref<16x32xf32, #tpu.memory_space<vmem>>, vector<8x8xf32>
    tpu.vector_store %arg23[%c8_62, %c24_63], %160 {strides = array<i32>} : memref<16x32xf32, #tpu.memory_space<vmem>>, vector<8x8xf32>,
    %c0_64 = arith.constant 0 : index
    %c0_65 = arith.constant 0 : index
    %162 = vector.load %arg23[%c0_64, %c0_65] : memref<16x32xf32, #tpu.memory_space<vmem>>, vector<16x32xf32>
    %cst_66 = arith.constant dense<0.000000e+00> : vector<16x32xf32>
    %163 = tpu.matmul %162, %4, %cst_66 {dimension_numbers = #tpu.dot_dimension_numbers<[1], [0], [0], [1], [0, 0, 1, 1], [], []>} : vector<16x32xf32>, vector<32x32xf32>, vector<16x32xf32> -> vector<16x32xf32>
    %164 = vector.broadcast %5 : vector<1x32xf32> to vector<16x32xf32>
    %165 = arith.addf %163, %164 : vector<16x32xf32>
    %c0_67 = arith.constant 0 : index
    %c0_68 = arith.constant 0 : index
    %166 = vector.load %arg6[%c0_67, %c0_68] : memref<1x32xf32, #tpu.memory_space<vmem>>, vector<1x32xf32>
    %c0_69 = arith.constant 0 : index
    %c0_70 = arith.constant 0 : index
    %167 = vector.load %arg7[%c0_69, %c0_70] : memref<1x32xf32, #tpu.memory_space<vmem>>, vector<1x32xf32>
    %168 = arith.addf %0, %165 : vector<16x32xf32>
    %cst_71 = arith.constant dense<0.000000e+00> : vector<16xf32>
    %169 = vector.multi_reduction <add>, %168, %cst_71 [1] : vector<16x32xf32> to vector<16xf32>
    %170 = vector.shape_cast %169 : vector<16xf32> to vector<16x1xf32>
    %cst_72 = arith.constant 3.200000e+01 : f32
    %171 = vector.broadcast %cst_72 : f32 to vector<16x1xf32>
    %172 = arith.divf %170, %171 : vector<16x1xf32>
    %173 = vector.broadcast %172 : vector<16x1xf32> to vector<16x32xf32>
    %174 = arith.subf %168, %173 : vector<16x32xf32>
    %175 = arith.mulf %174, %174 : vector<16x32xf32>
    %cst_73 = arith.constant dense<0.000000e+00> : vector<16xf32>
    %176 = vector.multi_reduction <add>, %175, %cst_73 [1] : vector<16x32xf32> to vector<16xf32>
    %177 = vector.shape_cast %176 : vector<16xf32> to vector<16x1xf32>
    %cst_74 = arith.constant 3.200000e+01 : f32
    %178 = vector.broadcast %cst_74 : f32 to vector<16x1xf32>
    %179 = arith.divf %177, %178 : vector<16x1xf32>
    %cst_75 = arith.constant 9.99999974E-6 : f32
    %180 = vector.broadcast %cst_75 : f32 to vector<16x1xf32>
    %181 = arith.addf %179, %180 : vector<16x1xf32>
    %182 = math.rsqrt %181 : vector<16x1xf32>
    %183 = vector.broadcast %182 : vector<16x1xf32> to vector<16x32xf32>
    %184 = arith.mulf %174, %183 : vector<16x32xf32>
    %185 = vector.broadcast %166 : vector<1x32xf32> to vector<16x32xf32>
    %186 = arith.mulf %184, %185 : vector<16x32xf32>
    %187 = vector.broadcast %167 : vector<1x32xf32> to vector<16x32xf32>
    %188 = arith.addf %186, %187 : vector<16x32xf32>
    %c0_76 = arith.constant 0 : index
    %c0_77 = arith.constant 0 : index
    %189 = vector.load %arg8[%c0_76, %c0_77] : memref<32x32xf32, #tpu.memory_space<vmem>>, vector<32x32xf32>
    %c0_78 = arith.constant 0 : index
    %c0_79 = arith.constant 0 : index
    %190 = vector.load %arg9[%c0_78, %c0_79] : memref<1x32xf32, #tpu.memory_space<vmem>>, vector<1x32xf32>
    %c0_80 = arith.constant 0 : index
    %c0_81 = arith.constant 0 : index
    %191 = vector.load %arg10[%c0_80, %c0_81] : memref<32x64xf32, #tpu.memory_space<vmem>>, vector<32x64xf32>
    %c0_82 = arith.constant 0 : index
    %c0_83 = arith.constant 0 : index
    %192 = vector.load %arg11[%c0_82, %c0_83] : memref<1x64xf32, #tpu.memory_space<vmem>>, vector<1x64xf32>
    %c0_84 = arith.constant 0 : index
    %c0_85 = arith.constant 0 : index
    %193 = vector.load %arg12[%c0_84, %c0_85] : memref<32x32xf32, #tpu.memory_space<vmem>>, vector<32x32xf32>
    %c0_86 = arith.constant 0 : index
    %c0_87 = arith.constant 0 : index
    %194 = vector.load %arg13[%c0_86, %c0_87] : memref<1x32xf32, #tpu.memory_space<vmem>>, vector<1x32xf32>
    %cst_88 = arith.constant dense<0.000000e+00> : vector<16x32xf32>
    %195 = tpu.matmul %188, %189, %cst_88 {dimension_numbers = #tpu.dot_dimension_numbers<[1], [0], [0], [1], [0, 0, 1, 1], [], []>} : vector<16x32xf32>, vector<32x32xf32>, vector<16x32xf32> -> vector<16x32xf32>
    %196 = vector.broadcast %190 : vector<1x32xf32> to vector<16x32xf32>
    %197 = arith.addf %195, %196 : vector<16x32xf32>
    %cst_89 = arith.constant dense<0.000000e+00> : vector<16x64xf32>
    %198 = tpu.matmul %1, %191, %cst_89 {dimension_numbers = #tpu.dot_dimension_numbers<[1], [0], [0], [1], [0, 0, 1, 1], [], []>} : vector<16x32xf32>, vector<32x64xf32>, vector<16x64xf32> -> vector<16x64xf32>
    %199 = vector.broadcast %192 : vector<1x64xf32> to vector<16x64xf32>
    %200 = arith.addf %198, %199 : vector<16x64xf32>
    %201 = vector.extract_strided_slice %200 {offsets = [0, 0], sizes = [16, 32], strides = [1, 1]} : vector<16x64xf32> to vector<16x32xf32>
    %202 = vector.extract_strided_slice %200 {offsets = [0, 32], sizes = [16, 32], strides = [1, 1]} : vector<16x64xf32> to vector<16x32xf32>
    %203 = vector.extract_strided_slice %197 {offsets = [0, 0], sizes = [8, 32], strides = [1, 1]} : vector<16x32xf32> to vector<8x32xf32>
    %204 = vector.extract_strided_slice %201 {offsets = [0, 0], sizes = [8, 32], strides = [1, 1]} : vector<16x32xf32> to vector<8x32xf32>
    %205 = vector.extract_strided_slice %202 {offsets = [0, 0], sizes = [8, 32], strides = [1, 1]} : vector<16x32xf32> to vector<8x32xf32>
    %206 = vector.extract_strided_slice %203 {offsets = [0, 0], sizes = [8, 8], strides = [1, 1]} : vector<8x32xf32> to vector<8x8xf32>
    %207 = vector.extract_strided_slice %204 {offsets = [0, 0], sizes = [8, 8], strides = [1, 1]} : vector<8x32xf32> to vector<8x8xf32>
    %208 = vector.extract_strided_slice %205 {offsets = [0, 0], sizes = [8, 8], strides = [1, 1]} : vector<8x32xf32> to vector<8x8xf32>
    %cst_90 = arith.constant dense<0.000000e+00> : vector<8x8xf32>
    %209 = tpu.matmul %206, %207, %cst_90 {dimension_numbers = #tpu.dot_dimension_numbers<[1], [1], [0], [0], [0, 0, 1, 0], [], []>} : vector<8x8xf32>, vector<8x8xf32>, vector<8x8xf32> -> vector<8x8xf32>
    %cst_91 = arith.constant 0.353553385 : f32
    %210 = vector.broadcast %cst_91 : f32 to vector<8x8xf32>
    %211 = arith.mulf %209, %210 : vector<8x8xf32>
    %cst_92 = arith.constant dense<0xFF800000> : vector<8xf32>
    %212 = vector.multi_reduction <maximumf>, %211, %cst_92 [1] : vector<8x8xf32> to vector<8xf32>
    %213 = vector.shape_cast %212 : vector<8xf32> to vector<8x1xf32>
    %214 = vector.broadcast %213 : vector<8x1xf32> to vector<8x8xf32>
    %215 = arith.subf %211, %214 : vector<8x8xf32>
    %216 = math.exp %215 : vector<8x8xf32>
    %cst_93 = arith.constant dense<0.000000e+00> : vector<8xf32>
    %217 = vector.multi_reduction <add>, %216, %cst_93 [1] : vector<8x8xf32> to vector<8xf32>
    %218 = vector.shape_cast %217 : vector<8xf32> to vector<8x1xf32>
    %219 = tpu.reciprocal %218 {approx = true} : vector<8x1xf32> -> vector<8x1xf32>
    %220 = vector.broadcast %219 : vector<8x1xf32> to vector<8x8xf32>
    %221 = arith.mulf %216, %220 : vector<8x8xf32>
    %cst_94 = arith.constant dense<0.000000e+00> : vector<8x8xf32>
    %222 = tpu.matmul %221, %208, %cst_94 {dimension_numbers = #tpu.dot_dimension_numbers<[1], [0], [0], [1], [0, 0, 1, 1], [], []>} : vector<8x8xf32>, vector<8x8xf32>, vector<8x8xf32> -> vector<8x8xf32>
    %c0_95 = arith.constant 0 : index
    %c0_96 = arith.constant 0 : index
    %223 = vector.load %arg23[%c0_95, %c0_96] : memref<16x32xf32, #tpu.memory_space<vmem>>, vector<8x8xf32>
    tpu.vector_store %arg23[%c0_95, %c0_96], %222 {strides = array<i32>} : memref<16x32xf32, #tpu.memory_space<vmem>>, vector<8x8xf32>,
    %224 = vector.extract_strided_slice %203 {offsets = [0, 8], sizes = [8, 8], strides = [1, 1]} : vector<8x32xf32> to vector<8x8xf32>
    %225 = vector.extract_strided_slice %204 {offsets = [0, 8], sizes = [8, 8], strides = [1, 1]} : vector<8x32xf32> to vector<8x8xf32>
    %226 = vector.extract_strided_slice %205 {offsets = [0, 8], sizes = [8, 8], strides = [1, 1]} : vector<8x32xf32> to vector<8x8xf32>
    %cst_97 = arith.constant dense<0.000000e+00> : vector<8x8xf32>
    %227 = tpu.matmul %224, %225, %cst_97 {dimension_numbers = #tpu.dot_dimension_numbers<[1], [1], [0], [0], [0, 0, 1, 0], [], []>} : vector<8x8xf32>, vector<8x8xf32>, vector<8x8xf32> -> vector<8x8xf32>
    %cst_98 = arith.constant 0.353553385 : f32
    %228 = vector.broadcast %cst_98 : f32 to vector<8x8xf32>
    %229 = arith.mulf %227, %228 : vector<8x8xf32>
    %cst_99 = arith.constant dense<0xFF800000> : vector<8xf32>
    %230 = vector.multi_reduction <maximumf>, %229, %cst_99 [1] : vector<8x8xf32> to vector<8xf32>
    %231 = vector.shape_cast %230 : vector<8xf32> to vector<8x1xf32>
    %232 = vector.broadcast %231 : vector<8x1xf32> to vector<8x8xf32>
    %233 = arith.subf %229, %232 : vector<8x8xf32>
    %234 = math.exp %233 : vector<8x8xf32>
    %cst_100 = arith.constant dense<0.000000e+00> : vector<8xf32>
    %235 = vector.multi_reduction <add>, %234, %cst_100 [1] : vector<8x8xf32> to vector<8xf32>
    %236 = vector.shape_cast %235 : vector<8xf32> to vector<8x1xf32>
    %237 = tpu.reciprocal %236 {approx = true} : vector<8x1xf32> -> vector<8x1xf32>
    %238 = vector.broadcast %237 : vector<8x1xf32> to vector<8x8xf32>
    %239 = arith.mulf %234, %238 : vector<8x8xf32>
    %cst_101 = arith.constant dense<0.000000e+00> : vector<8x8xf32>
    %240 = tpu.matmul %239, %226, %cst_101 {dimension_numbers = #tpu.dot_dimension_numbers<[1], [0], [0], [1], [0, 0, 1, 1], [], []>} : vector<8x8xf32>, vector<8x8xf32>, vector<8x8xf32> -> vector<8x8xf32>
    %c0_102 = arith.constant 0 : index
    %c8_103 = arith.constant 8 : index
    %241 = vector.load %arg23[%c0_102, %c8_103] : memref<16x32xf32, #tpu.memory_space<vmem>>, vector<8x8xf32>
    tpu.vector_store %arg23[%c0_102, %c8_103], %240 {strides = array<i32>} : memref<16x32xf32, #tpu.memory_space<vmem>>, vector<8x8xf32>,
    %242 = vector.extract_strided_slice %203 {offsets = [0, 16], sizes = [8, 8], strides = [1, 1]} : vector<8x32xf32> to vector<8x8xf32>
    %243 = vector.extract_strided_slice %204 {offsets = [0, 16], sizes = [8, 8], strides = [1, 1]} : vector<8x32xf32> to vector<8x8xf32>
    %244 = vector.extract_strided_slice %205 {offsets = [0, 16], sizes = [8, 8], strides = [1, 1]} : vector<8x32xf32> to vector<8x8xf32>
    %cst_104 = arith.constant dense<0.000000e+00> : vector<8x8xf32>
    %245 = tpu.matmul %242, %243, %cst_104 {dimension_numbers = #tpu.dot_dimension_numbers<[1], [1], [0], [0], [0, 0, 1, 0], [], []>} : vector<8x8xf32>, vector<8x8xf32>, vector<8x8xf32> -> vector<8x8xf32>
    %cst_105 = arith.constant 0.353553385 : f32
    %246 = vector.broadcast %cst_105 : f32 to vector<8x8xf32>
    %247 = arith.mulf %245, %246 : vector<8x8xf32>
    %cst_106 = arith.constant dense<0xFF800000> : vector<8xf32>
    %248 = vector.multi_reduction <maximumf>, %247, %cst_106 [1] : vector<8x8xf32> to vector<8xf32>
    %249 = vector.shape_cast %248 : vector<8xf32> to vector<8x1xf32>
    %250 = vector.broadcast %249 : vector<8x1xf32> to vector<8x8xf32>
    %251 = arith.subf %247, %250 : vector<8x8xf32>
    %252 = math.exp %251 : vector<8x8xf32>
    %cst_107 = arith.constant dense<0.000000e+00> : vector<8xf32>
    %253 = vector.multi_reduction <add>, %252, %cst_107 [1] : vector<8x8xf32> to vector<8xf32>
    %254 = vector.shape_cast %253 : vector<8xf32> to vector<8x1xf32>
    %255 = tpu.reciprocal %254 {approx = true} : vector<8x1xf32> -> vector<8x1xf32>
    %256 = vector.broadcast %255 : vector<8x1xf32> to vector<8x8xf32>
    %257 = arith.mulf %252, %256 : vector<8x8xf32>
    %cst_108 = arith.constant dense<0.000000e+00> : vector<8x8xf32>
    %258 = tpu.matmul %257, %244, %cst_108 {dimension_numbers = #tpu.dot_dimension_numbers<[1], [0], [0], [1], [0, 0, 1, 1], [], []>} : vector<8x8xf32>, vector<8x8xf32>, vector<8x8xf32> -> vector<8x8xf32>
    %c0_109 = arith.constant 0 : index
    %c16_110 = arith.constant 16 : index
    %259 = vector.load %arg23[%c0_109, %c16_110] : memref<16x32xf32, #tpu.memory_space<vmem>>, vector<8x8xf32>
    tpu.vector_store %arg23[%c0_109, %c16_110], %258 {strides = array<i32>} : memref<16x32xf32, #tpu.memory_space<vmem>>, vector<8x8xf32>,
    %260 = vector.extract_strided_slice %203 {offsets = [0, 24], sizes = [8, 8], strides = [1, 1]} : vector<8x32xf32> to vector<8x8xf32>
    %261 = vector.extract_strided_slice %204 {offsets = [0, 24], sizes = [8, 8], strides = [1, 1]} : vector<8x32xf32> to vector<8x8xf32>
    %262 = vector.extract_strided_slice %205 {offsets = [0, 24], sizes = [8, 8], strides = [1, 1]} : vector<8x32xf32> to vector<8x8xf32>
    %cst_111 = arith.constant dense<0.000000e+00> : vector<8x8xf32>
    %263 = tpu.matmul %260, %261, %cst_111 {dimension_numbers = #tpu.dot_dimension_numbers<[1], [1], [0], [0], [0, 0, 1, 0], [], []>} : vector<8x8xf32>, vector<8x8xf32>, vector<8x8xf32> -> vector<8x8xf32>
    %cst_112 = arith.constant 0.353553385 : f32
    %264 = vector.broadcast %cst_112 : f32 to vector<8x8xf32>
    %265 = arith.mulf %263, %264 : vector<8x8xf32>
    %cst_113 = arith.constant dense<0xFF800000> : vector<8xf32>
    %266 = vector.multi_reduction <maximumf>, %265, %cst_113 [1] : vector<8x8xf32> to vector<8xf32>
    %267 = vector.shape_cast %266 : vector<8xf32> to vector<8x1xf32>
    %268 = vector.broadcast %267 : vector<8x1xf32> to vector<8x8xf32>
    %269 = arith.subf %265, %268 : vector<8x8xf32>
    %270 = math.exp %269 : vector<8x8xf32>
    %cst_114 = arith.constant dense<0.000000e+00> : vector<8xf32>
    %271 = vector.multi_reduction <add>, %270, %cst_114 [1] : vector<8x8xf32> to vector<8xf32>
    %272 = vector.shape_cast %271 : vector<8xf32> to vector<8x1xf32>
    %273 = tpu.reciprocal %272 {approx = true} : vector<8x1xf32> -> vector<8x1xf32>
    %274 = vector.broadcast %273 : vector<8x1xf32> to vector<8x8xf32>
    %275 = arith.mulf %270, %274 : vector<8x8xf32>
    %cst_115 = arith.constant dense<0.000000e+00> : vector<8x8xf32>
    %276 = tpu.matmul %275, %262, %cst_115 {dimension_numbers = #tpu.dot_dimension_numbers<[1], [0], [0], [1], [0, 0, 1, 1], [], []>} : vector<8x8xf32>, vector<8x8xf32>, vector<8x8xf32> -> vector<8x8xf32>
    %c0_116 = arith.constant 0 : index
    %c24_117 = arith.constant 24 : index
    %277 = vector.load %arg23[%c0_116, %c24_117] : memref<16x32xf32, #tpu.memory_space<vmem>>, vector<8x8xf32>
    tpu.vector_store %arg23[%c0_116, %c24_117], %276 {strides = array<i32>} : memref<16x32xf32, #tpu.memory_space<vmem>>, vector<8x8xf32>,
    %278 = vector.extract_strided_slice %197 {offsets = [8, 0], sizes = [8, 32], strides = [1, 1]} : vector<16x32xf32> to vector<8x32xf32>
    %279 = vector.extract_strided_slice %201 {offsets = [8, 0], sizes = [8, 32], strides = [1, 1]} : vector<16x32xf32> to vector<8x32xf32>
    %280 = vector.extract_strided_slice %202 {offsets = [8, 0], sizes = [8, 32], strides = [1, 1]} : vector<16x32xf32> to vector<8x32xf32>
    %281 = vector.extract_strided_slice %278 {offsets = [0, 0], sizes = [8, 8], strides = [1, 1]} : vector<8x32xf32> to vector<8x8xf32>
    %282 = vector.extract_strided_slice %279 {offsets = [0, 0], sizes = [8, 8], strides = [1, 1]} : vector<8x32xf32> to vector<8x8xf32>
    %283 = vector.extract_strided_slice %280 {offsets = [0, 0], sizes = [8, 8], strides = [1, 1]} : vector<8x32xf32> to vector<8x8xf32>
    %cst_118 = arith.constant dense<0.000000e+00> : vector<8x8xf32>
    %284 = tpu.matmul %281, %282, %cst_118 {dimension_numbers = #tpu.dot_dimension_numbers<[1], [1], [0], [0], [0, 0, 1, 0], [], []>} : vector<8x8xf32>, vector<8x8xf32>, vector<8x8xf32> -> vector<8x8xf32>
    %cst_119 = arith.constant 0.353553385 : f32
    %285 = vector.broadcast %cst_119 : f32 to vector<8x8xf32>
    %286 = arith.mulf %284, %285 : vector<8x8xf32>
    %cst_120 = arith.constant dense<0xFF800000> : vector<8xf32>
    %287 = vector.multi_reduction <maximumf>, %286, %cst_120 [1] : vector<8x8xf32> to vector<8xf32>
    %288 = vector.shape_cast %287 : vector<8xf32> to vector<8x1xf32>
    %289 = vector.broadcast %288 : vector<8x1xf32> to vector<8x8xf32>
    %290 = arith.subf %286, %289 : vector<8x8xf32>
    %291 = math.exp %290 : vector<8x8xf32>
    %cst_121 = arith.constant dense<0.000000e+00> : vector<8xf32>
    %292 = vector.multi_reduction <add>, %291, %cst_121 [1] : vector<8x8xf32> to vector<8xf32>
    %293 = vector.shape_cast %292 : vector<8xf32> to vector<8x1xf32>
    %294 = tpu.reciprocal %293 {approx = true} : vector<8x1xf32> -> vector<8x1xf32>
    %295 = vector.broadcast %294 : vector<8x1xf32> to vector<8x8xf32>
    %296 = arith.mulf %291, %295 : vector<8x8xf32>
    %cst_122 = arith.constant dense<0.000000e+00> : vector<8x8xf32>
    %297 = tpu.matmul %296, %283, %cst_122 {dimension_numbers = #tpu.dot_dimension_numbers<[1], [0], [0], [1], [0, 0, 1, 1], [], []>} : vector<8x8xf32>, vector<8x8xf32>, vector<8x8xf32> -> vector<8x8xf32>
    %c8_123 = arith.constant 8 : index
    %c0_124 = arith.constant 0 : index
    %298 = vector.load %arg23[%c8_123, %c0_124] : memref<16x32xf32, #tpu.memory_space<vmem>>, vector<8x8xf32>
    tpu.vector_store %arg23[%c8_123, %c0_124], %297 {strides = array<i32>} : memref<16x32xf32, #tpu.memory_space<vmem>>, vector<8x8xf32>,
    %299 = vector.extract_strided_slice %278 {offsets = [0, 8], sizes = [8, 8], strides = [1, 1]} : vector<8x32xf32> to vector<8x8xf32>
    %300 = vector.extract_strided_slice %279 {offsets = [0, 8], sizes = [8, 8], strides = [1, 1]} : vector<8x32xf32> to vector<8x8xf32>
    %301 = vector.extract_strided_slice %280 {offsets = [0, 8], sizes = [8, 8], strides = [1, 1]} : vector<8x32xf32> to vector<8x8xf32>
    %cst_125 = arith.constant dense<0.000000e+00> : vector<8x8xf32>
    %302 = tpu.matmul %299, %300, %cst_125 {dimension_numbers = #tpu.dot_dimension_numbers<[1], [1], [0], [0], [0, 0, 1, 0], [], []>} : vector<8x8xf32>, vector<8x8xf32>, vector<8x8xf32> -> vector<8x8xf32>
    %cst_126 = arith.constant 0.353553385 : f32
    %303 = vector.broadcast %cst_126 : f32 to vector<8x8xf32>
    %304 = arith.mulf %302, %303 : vector<8x8xf32>
    %cst_127 = arith.constant dense<0xFF800000> : vector<8xf32>
    %305 = vector.multi_reduction <maximumf>, %304, %cst_127 [1] : vector<8x8xf32> to vector<8xf32>
    %306 = vector.shape_cast %305 : vector<8xf32> to vector<8x1xf32>
    %307 = vector.broadcast %306 : vector<8x1xf32> to vector<8x8xf32>
    %308 = arith.subf %304, %307 : vector<8x8xf32>
    %309 = math.exp %308 : vector<8x8xf32>
    %cst_128 = arith.constant dense<0.000000e+00> : vector<8xf32>
    %310 = vector.multi_reduction <add>, %309, %cst_128 [1] : vector<8x8xf32> to vector<8xf32>
    %311 = vector.shape_cast %310 : vector<8xf32> to vector<8x1xf32>
    %312 = tpu.reciprocal %311 {approx = true} : vector<8x1xf32> -> vector<8x1xf32>
    %313 = vector.broadcast %312 : vector<8x1xf32> to vector<8x8xf32>
    %314 = arith.mulf %309, %313 : vector<8x8xf32>
    %cst_129 = arith.constant dense<0.000000e+00> : vector<8x8xf32>
    %315 = tpu.matmul %314, %301, %cst_129 {dimension_numbers = #tpu.dot_dimension_numbers<[1], [0], [0], [1], [0, 0, 1, 1], [], []>} : vector<8x8xf32>, vector<8x8xf32>, vector<8x8xf32> -> vector<8x8xf32>
    %c8_130 = arith.constant 8 : index
    %c8_131 = arith.constant 8 : index
    %316 = vector.load %arg23[%c8_130, %c8_131] : memref<16x32xf32, #tpu.memory_space<vmem>>, vector<8x8xf32>
    tpu.vector_store %arg23[%c8_130, %c8_131], %315 {strides = array<i32>} : memref<16x32xf32, #tpu.memory_space<vmem>>, vector<8x8xf32>,
    %317 = vector.extract_strided_slice %278 {offsets = [0, 16], sizes = [8, 8], strides = [1, 1]} : vector<8x32xf32> to vector<8x8xf32>
    %318 = vector.extract_strided_slice %279 {offsets = [0, 16], sizes = [8, 8], strides = [1, 1]} : vector<8x32xf32> to vector<8x8xf32>
    %319 = vector.extract_strided_slice %280 {offsets = [0, 16], sizes = [8, 8], strides = [1, 1]} : vector<8x32xf32> to vector<8x8xf32>
    %cst_132 = arith.constant dense<0.000000e+00> : vector<8x8xf32>
    %320 = tpu.matmul %317, %318, %cst_132 {dimension_numbers = #tpu.dot_dimension_numbers<[1], [1], [0], [0], [0, 0, 1, 0], [], []>} : vector<8x8xf32>, vector<8x8xf32>, vector<8x8xf32> -> vector<8x8xf32>
    %cst_133 = arith.constant 0.353553385 : f32
    %321 = vector.broadcast %cst_133 : f32 to vector<8x8xf32>
    %322 = arith.mulf %320, %321 : vector<8x8xf32>
    %cst_134 = arith.constant dense<0xFF800000> : vector<8xf32>
    %323 = vector.multi_reduction <maximumf>, %322, %cst_134 [1] : vector<8x8xf32> to vector<8xf32>
    %324 = vector.shape_cast %323 : vector<8xf32> to vector<8x1xf32>
    %325 = vector.broadcast %324 : vector<8x1xf32> to vector<8x8xf32>
    %326 = arith.subf %322, %325 : vector<8x8xf32>
    %327 = math.exp %326 : vector<8x8xf32>
    %cst_135 = arith.constant dense<0.000000e+00> : vector<8xf32>
    %328 = vector.multi_reduction <add>, %327, %cst_135 [1] : vector<8x8xf32> to vector<8xf32>
    %329 = vector.shape_cast %328 : vector<8xf32> to vector<8x1xf32>
    %330 = tpu.reciprocal %329 {approx = true} : vector<8x1xf32> -> vector<8x1xf32>
    %331 = vector.broadcast %330 : vector<8x1xf32> to vector<8x8xf32>
    %332 = arith.mulf %327, %331 : vector<8x8xf32>
    %cst_136 = arith.constant dense<0.000000e+00> : vector<8x8xf32>
    %333 = tpu.matmul %332, %319, %cst_136 {dimension_numbers = #tpu.dot_dimension_numbers<[1], [0], [0], [1], [0, 0, 1, 1], [], []>} : vector<8x8xf32>, vector<8x8xf32>, vector<8x8xf32> -> vector<8x8xf32>
    %c8_137 = arith.constant 8 : index
    %c16_138 = arith.constant 16 : index
    %334 = vector.load %arg23[%c8_137, %c16_138] : memref<16x32xf32, #tpu.memory_space<vmem>>, vector<8x8xf32>
    tpu.vector_store %arg23[%c8_137, %c16_138], %333 {strides = array<i32>} : memref<16x32xf32, #tpu.memory_space<vmem>>, vector<8x8xf32>,
    %335 = vector.extract_strided_slice %278 {offsets = [0, 24], sizes = [8, 8], strides = [1, 1]} : vector<8x32xf32> to vector<8x8xf32>
    %336 = vector.extract_strided_slice %279 {offsets = [0, 24], sizes = [8, 8], strides = [1, 1]} : vector<8x32xf32> to vector<8x8xf32>
    %337 = vector.extract_strided_slice %280 {offsets = [0, 24], sizes = [8, 8], strides = [1, 1]} : vector<8x32xf32> to vector<8x8xf32>
    %cst_139 = arith.constant dense<0.000000e+00> : vector<8x8xf32>
    %338 = tpu.matmul %335, %336, %cst_139 {dimension_numbers = #tpu.dot_dimension_numbers<[1], [1], [0], [0], [0, 0, 1, 0], [], []>} : vector<8x8xf32>, vector<8x8xf32>, vector<8x8xf32> -> vector<8x8xf32>
    %cst_140 = arith.constant 0.353553385 : f32
    %339 = vector.broadcast %cst_140 : f32 to vector<8x8xf32>
    %340 = arith.mulf %338, %339 : vector<8x8xf32>
    %cst_141 = arith.constant dense<0xFF800000> : vector<8xf32>
    %341 = vector.multi_reduction <maximumf>, %340, %cst_141 [1] : vector<8x8xf32> to vector<8xf32>
    %342 = vector.shape_cast %341 : vector<8xf32> to vector<8x1xf32>
    %343 = vector.broadcast %342 : vector<8x1xf32> to vector<8x8xf32>
    %344 = arith.subf %340, %343 : vector<8x8xf32>
    %345 = math.exp %344 : vector<8x8xf32>
    %cst_142 = arith.constant dense<0.000000e+00> : vector<8xf32>
    %346 = vector.multi_reduction <add>, %345, %cst_142 [1] : vector<8x8xf32> to vector<8xf32>
    %347 = vector.shape_cast %346 : vector<8xf32> to vector<8x1xf32>
    %348 = tpu.reciprocal %347 {approx = true} : vector<8x1xf32> -> vector<8x1xf32>
    %349 = vector.broadcast %348 : vector<8x1xf32> to vector<8x8xf32>
    %350 = arith.mulf %345, %349 : vector<8x8xf32>
    %cst_143 = arith.constant dense<0.000000e+00> : vector<8x8xf32>
    %351 = tpu.matmul %350, %337, %cst_143 {dimension_numbers = #tpu.dot_dimension_numbers<[1], [0], [0], [1], [0, 0, 1, 1], [], []>} : vector<8x8xf32>, vector<8x8xf32>, vector<8x8xf32> -> vector<8x8xf32>
    %c8_144 = arith.constant 8 : index
    %c24_145 = arith.constant 24 : index
    %352 = vector.load %arg23[%c8_144, %c24_145] : memref<16x32xf32, #tpu.memory_space<vmem>>, vector<8x8xf32>
    tpu.vector_store %arg23[%c8_144, %c24_145], %351 {strides = array<i32>} : memref<16x32xf32, #tpu.memory_space<vmem>>, vector<8x8xf32>,
    %c0_146 = arith.constant 0 : index
    %c0_147 = arith.constant 0 : index
    %353 = vector.load %arg23[%c0_146, %c0_147] : memref<16x32xf32, #tpu.memory_space<vmem>>, vector<16x32xf32>
    %cst_148 = arith.constant dense<0.000000e+00> : vector<16x32xf32>
    %354 = tpu.matmul %353, %193, %cst_148 {dimension_numbers = #tpu.dot_dimension_numbers<[1], [0], [0], [1], [0, 0, 1, 1], [], []>} : vector<16x32xf32>, vector<32x32xf32>, vector<16x32xf32> -> vector<16x32xf32>
    %355 = vector.broadcast %194 : vector<1x32xf32> to vector<16x32xf32>
    %356 = arith.addf %354, %355 : vector<16x32xf32>
    %c0_149 = arith.constant 0 : index
    %c0_150 = arith.constant 0 : index
    %357 = vector.load %arg14[%c0_149, %c0_150] : memref<1x32xf32, #tpu.memory_space<vmem>>, vector<1x32xf32>
    %c0_151 = arith.constant 0 : index
    %c0_152 = arith.constant 0 : index
    %358 = vector.load %arg15[%c0_151, %c0_152] : memref<1x32xf32, #tpu.memory_space<vmem>>, vector<1x32xf32>
    %359 = arith.addf %188, %356 : vector<16x32xf32>
    %cst_153 = arith.constant dense<0.000000e+00> : vector<16xf32>
    %360 = vector.multi_reduction <add>, %359, %cst_153 [1] : vector<16x32xf32> to vector<16xf32>
    %361 = vector.shape_cast %360 : vector<16xf32> to vector<16x1xf32>
    %cst_154 = arith.constant 3.200000e+01 : f32
    %362 = vector.broadcast %cst_154 : f32 to vector<16x1xf32>
    %363 = arith.divf %361, %362 : vector<16x1xf32>
    %364 = vector.broadcast %363 : vector<16x1xf32> to vector<16x32xf32>
    %365 = arith.subf %359, %364 : vector<16x32xf32>
    %366 = arith.mulf %365, %365 : vector<16x32xf32>
    %cst_155 = arith.constant dense<0.000000e+00> : vector<16xf32>
    %367 = vector.multi_reduction <add>, %366, %cst_155 [1] : vector<16x32xf32> to vector<16xf32>
    %368 = vector.shape_cast %367 : vector<16xf32> to vector<16x1xf32>
    %cst_156 = arith.constant 3.200000e+01 : f32
    %369 = vector.broadcast %cst_156 : f32 to vector<16x1xf32>
    %370 = arith.divf %368, %369 : vector<16x1xf32>
    %cst_157 = arith.constant 9.99999974E-6 : f32
    %371 = vector.broadcast %cst_157 : f32 to vector<16x1xf32>
    %372 = arith.addf %370, %371 : vector<16x1xf32>
    %373 = math.rsqrt %372 : vector<16x1xf32>
    %374 = vector.broadcast %373 : vector<16x1xf32> to vector<16x32xf32>
    %375 = arith.mulf %365, %374 : vector<16x32xf32>
    %376 = vector.broadcast %357 : vector<1x32xf32> to vector<16x32xf32>
    %377 = arith.mulf %375, %376 : vector<16x32xf32>
    %378 = vector.broadcast %358 : vector<1x32xf32> to vector<16x32xf32>
    %379 = arith.addf %377, %378 : vector<16x32xf32>
    %c0_158 = arith.constant 0 : index
    %c0_159 = arith.constant 0 : index
    %380 = vector.load %arg16[%c0_158, %c0_159] : memref<32x2048xf32, #tpu.memory_space<vmem>>, vector<32x2048xf32>
    %c0_160 = arith.constant 0 : index
    %c0_161 = arith.constant 0 : index
    %381 = vector.load %arg17[%c0_160, %c0_161] : memref<1x2048xf32, #tpu.memory_space<vmem>>, vector<1x2048xf32>
    %c0_162 = arith.constant 0 : index
    %c0_163 = arith.constant 0 : index
    %382 = vector.load %arg18[%c0_162, %c0_163] : memref<2048x32xf32, #tpu.memory_space<vmem>>, vector<2048x32xf32>
    %c0_164 = arith.constant 0 : index
    %c0_165 = arith.constant 0 : index
    %383 = vector.load %arg19[%c0_164, %c0_165] : memref<1x32xf32, #tpu.memory_space<vmem>>, vector<1x32xf32>
    %cst_166 = arith.constant dense<0.000000e+00> : vector<16x2048xf32>
    %384 = tpu.matmul %379, %380, %cst_166 {dimension_numbers = #tpu.dot_dimension_numbers<[1], [0], [0], [1], [0, 0, 1, 1], [], []>} : vector<16x32xf32>, vector<32x2048xf32>, vector<16x2048xf32> -> vector<16x2048xf32>
    %385 = vector.broadcast %381 : vector<1x2048xf32> to vector<16x2048xf32>
    %386 = arith.addf %384, %385 : vector<16x2048xf32>
    %cst_167 = arith.constant 0.000000e+00 : f32
    %387 = vector.broadcast %cst_167 : f32 to vector<16x2048xf32>
    %388 = arith.maximumf %386, %387 : vector<16x2048xf32>
    %cst_168 = arith.constant dense<0.000000e+00> : vector<16x32xf32>
    %389 = tpu.matmul %388, %382, %cst_168 {dimension_numbers = #tpu.dot_dimension_numbers<[1], [0], [0], [1], [0, 0, 1, 1], [], []>} : vector<16x2048xf32>, vector<2048x32xf32>, vector<16x32xf32> -> vector<16x32xf32>
    %390 = vector.broadcast %383 : vector<1x32xf32> to vector<16x32xf32>
    %391 = arith.addf %389, %390 : vector<16x32xf32>
    %c0_169 = arith.constant 0 : index
    %c0_170 = arith.constant 0 : index
    %392 = vector.load %arg20[%c0_169, %c0_170] : memref<1x32xf32, #tpu.memory_space<vmem>>, vector<1x32xf32>
    %c0_171 = arith.constant 0 : index
    %c0_172 = arith.constant 0 : index
    %393 = vector.load %arg21[%c0_171, %c0_172] : memref<1x32xf32, #tpu.memory_space<vmem>>, vector<1x32xf32>
    %394 = arith.addf %379, %391 : vector<16x32xf32>
    %cst_173 = arith.constant dense<0.000000e+00> : vector<16xf32>
    %395 = vector.multi_reduction <add>, %394, %cst_173 [1] : vector<16x32xf32> to vector<16xf32>
    %396 = vector.shape_cast %395 : vector<16xf32> to vector<16x1xf32>
    %cst_174 = arith.constant 3.200000e+01 : f32
    %397 = vector.broadcast %cst_174 : f32 to vector<16x1xf32>
    %398 = arith.divf %396, %397 : vector<16x1xf32>
    %399 = vector.broadcast %398 : vector<16x1xf32> to vector<16x32xf32>
    %400 = arith.subf %394, %399 : vector<16x32xf32>
    %401 = arith.mulf %400, %400 : vector<16x32xf32>
    %cst_175 = arith.constant dense<0.000000e+00> : vector<16xf32>
    %402 = vector.multi_reduction <add>, %401, %cst_175 [1] : vector<16x32xf32> to vector<16xf32>
    %403 = vector.shape_cast %402 : vector<16xf32> to vector<16x1xf32>
    %cst_176 = arith.constant 3.200000e+01 : f32
    %404 = vector.broadcast %cst_176 : f32 to vector<16x1xf32>
    %405 = arith.divf %403, %404 : vector<16x1xf32>
    %cst_177 = arith.constant 9.99999974E-6 : f32
    %406 = vector.broadcast %cst_177 : f32 to vector<16x1xf32>
    %407 = arith.addf %405, %406 : vector<16x1xf32>
    %408 = math.rsqrt %407 : vector<16x1xf32>
    %409 = vector.broadcast %408 : vector<16x1xf32> to vector<16x32xf32>
    %410 = arith.mulf %400, %409 : vector<16x32xf32>
    %411 = vector.broadcast %392 : vector<1x32xf32> to vector<16x32xf32>
    %412 = arith.mulf %410, %411 : vector<16x32xf32>
    %413 = vector.broadcast %393 : vector<1x32xf32> to vector<16x32xf32>
    %414 = arith.addf %412, %413 : vector<16x32xf32>
    %c0_178 = arith.constant 0 : index
    %c0_179 = arith.constant 0 : index
    %415 = vector.load %arg22[%c0_178, %c0_179] : memref<16x32xf32, #tpu.memory_space<vmem>>, vector<16x32xf32>
    tpu.vector_store %arg22[%c0_178, %c0_179], %414 {strides = array<i32>} : memref<16x32xf32, #tpu.memory_space<vmem>>, vector<16x32xf32>,
    return
  }
}

</mosaic_0001>

<llo_original>
// kernel: transformer1_forward.4
$region0: #{transformer1_forward.4}
  #allocation0 [shape = 'u32[]', space=smem, size = 0x4, offset = 0x4, fixed_abs, tag = 'smem constant byte address 0x4 - core index']
  #allocation1 [shape = 'u32[144,128]{1,0:T(1,128)}', space=vmem, size = 0x12000, scoped, tag = 'internal scratch']
  #allocation2 [shape = 'f32[16,32]{1,0:T(8,128)}', space=vmem, size = 0x2000, scoped, tag = 'scratch operand']
  %s0 = inlined_call_operand.vmem [shape: f32[16,32], index: 0, kind: input, shape index: {}]
  %s1 = inlined_call_operand.vmem [shape: f32[32,96], index: 1, kind: input, shape index: {}]
  %s2 = inlined_call_operand.vmem [shape: f32[1,96], index: 2, kind: input, shape index: {}]
  %s3 = inlined_call_operand.vmem [shape: f32[32,32], index: 3, kind: input, shape index: {}]
  %s4 = inlined_call_operand.vmem [shape: f32[1,32], index: 4, kind: input, shape index: {}]
  %s5 = inlined_call_operand.vmem [shape: f32[1,32], index: 5, kind: input, shape index: {}]
  %s6 = inlined_call_operand.vmem [shape: f32[1,32], index: 6, kind: input, shape index: {}]
  %s7 = inlined_call_operand.vmem [shape: f32[32,2048], index: 7, kind: input, shape index: {}]
  %s8 = inlined_call_operand.vmem [shape: f32[1,2048], index: 8, kind: input, shape index: {}]
  %s9 = inlined_call_operand.vmem [shape: f32[2048,32], index: 9, kind: input, shape index: {}]
  %s10 = inlined_call_operand.vmem [shape: f32[1,32], index: 10, kind: input, shape index: {}]
  %s11 = inlined_call_operand.vmem [shape: f32[1,32], index: 11, kind: input, shape index: {}]
  %s12 = inlined_call_operand.vmem [shape: f32[1,32], index: 12, kind: input, shape index: {}]
  %s13 = inlined_call_operand.vmem [shape: f32[16,32], index: 13, kind: output, shape index: {}]
  %s14 = sld [smem:[#allocation0]]
  $region62: #{transformer1_forward.4} parent=0
    _
  %s16 = ssub.s32 1, %s14
  %s17 = scalar_select 0, %s16, %s14
  // Predicated region
  $region2: #{transformer1_forward.4} parent=0 // pred_check
    _
  $region3: #{transformer1_forward.4} parent=0 // pred_check_branch
    %19 = sbr.rel (0) target = $region5
  $region4: #{transformer1_forward.4} parent=0 // pred_region
    _
  $region5: #{transformer1_forward.4} parent=0 // pred_fallthru
    _
  // Predicated region
  $region6: #{transformer1_forward.4} parent=0 // pred_check
    _
  $region7: #{transformer1_forward.4} parent=0 // pred_check_branch
    %21 = sbr.rel (0) target = $region9
  $region8: #{transformer1_forward.4} parent=0 // pred_region
    _
  $region9: #{transformer1_forward.4} parent=0 // pred_fallthru
    _
  // Predicated region
  $region10: #{transformer1_forward.4} parent=0 // pred_check
    _
  $region11: #{transformer1_forward.4} parent=0 // pred_check_branch
    %23 = sbr.rel (0) target = $region13
  $region12: #{transformer1_forward.4} parent=0 // pred_region
    _
  $region13: #{transformer1_forward.4} parent=0 // pred_fallthru
    _
  // Predicated region
  $region14: #{transformer1_forward.4} parent=0 // pred_check
    _
  $region15: #{transformer1_forward.4} parent=0 // pred_check_branch
    %25 = sbr.rel (0) target = $region17
  $region16: #{transformer1_forward.4} parent=0 // pred_region
    _
  $region17: #{transformer1_forward.4} parent=0 // pred_fallthru
    _
  // Predicated region
  $region18: #{transformer1_forward.4} parent=0 // pred_check
    _
  $region19: #{transformer1_forward.4} parent=0 // pred_check_branch
    %27 = sbr.rel (0) target = $region21
  $region20: #{transformer1_forward.4} parent=0 // pred_region
    _
  $region21: #{transformer1_forward.4} parent=0 // pred_fallthru
    _
  // Predicated region
  $region22: #{transformer1_forward.4} parent=0 // pred_check
    _
  $region23: #{transformer1_forward.4} parent=0 // pred_check_branch
    %29 = sbr.rel (0) target = $region25
  $region24: #{transformer1_forward.4} parent=0 // pred_region
    _
  $region25: #{transformer1_forward.4} parent=0 // pred_fallthru
    _
  // Predicated region
  $region26: #{transformer1_forward.4} parent=0 // pred_check
    _
  $region27: #{transformer1_forward.4} parent=0 // pred_check_branch
    %31 = sbr.rel (0) target = $region29
  $region28: #{transformer1_forward.4} parent=0 // pred_region
    _
  $region29: #{transformer1_forward.4} parent=0 // pred_fallthru
    _
  // Predicated region
  $region30: #{transformer1_forward.4} parent=0 // pred_check
    _
  $region31: #{transformer1_forward.4} parent=0 // pred_check_branch
    %33 = sbr.rel (0) target = $region33
  $region32: #{transformer1_forward.4} parent=0 // pred_region
    _
  $region33: #{transformer1_forward.4} parent=0 // pred_fallthru
    _
  // Predicated region
  $region34: #{transformer1_forward.4} parent=0 // pred_check
    _
  $region35: #{transformer1_forward.4} parent=0 // pred_check_branch
    %35 = sbr.rel (0) target = $region37
  $region36: #{transformer1_forward.4} parent=0 // pred_region
    _
  $region37: #{transformer1_forward.4} parent=0 // pred_fallthru
    _
  // Predicated region
  $region38: #{transformer1_forward.4} parent=0 // pred_check
    _
  $region39: #{transformer1_forward.4} parent=0 // pred_check_branch
    %37 = sbr.rel (0) target = $region41
  $region40: #{transformer1_forward.4} parent=0 // pred_region
    _
  $region41: #{transformer1_forward.4} parent=0 // pred_fallthru
    _
  // Predicated region
  $region42: #{transformer1_forward.4} parent=0 // pred_check
    _
  $region43: #{transformer1_forward.4} parent=0 // pred_check_branch
    %39 = sbr.rel (0) target = $region45
  $region44: #{transformer1_forward.4} parent=0 // pred_region
    _
  $region45: #{transformer1_forward.4} parent=0 // pred_fallthru
    _
  // Predicated region
  $region46: #{transformer1_forward.4} parent=0 // pred_check
    _
  $region47: #{transformer1_forward.4} parent=0 // pred_check_branch
    %41 = sbr.rel (0) target = $region49
  $region48: #{transformer1_forward.4} parent=0 // pred_region
    _
  $region49: #{transformer1_forward.4} parent=0 // pred_fallthru
    _
  // Predicated region
  $region50: #{transformer1_forward.4} parent=0 // pred_check
    _
  $region51: #{transformer1_forward.4} parent=0 // pred_check_branch
    %43 = sbr.rel (0) target = $region53
  $region52: #{transformer1_forward.4} parent=0 // pred_region
    _
  $region53: #{transformer1_forward.4} parent=0 // pred_fallthru
    _
  %v44 = vld [vmem:[%s0] sm:$0xff]
  %v45 = vld [vmem:[%s0 + $0x8] sm:$0xff]
  %v46 = vld [vmem:[%s1] sm:$0xff]
  %v47 = vld [vmem:[%s1 + $0x8] sm:$0xff]
  %v48 = vld [vmem:[%s1 + $0x10] sm:$0xff]
  %v49 = vld [vmem:[%s1 + $0x18] sm:$0xff]
  %v50 = vld [vmem:[%s2] sm:$0x1]
  %v51 = vld [vmem:[%s3] sm:$0xff]
  %v52 = vld [vmem:[%s3 + $0x8] sm:$0xff]
  %v53 = vld [vmem:[%s3 + $0x10] sm:$0xff]
  %v54 = vld [vmem:[%s3 + $0x18] sm:$0xff]
  %v55 = vld [vmem:[%s4] sm:$0x1]
  %v57 = vlaneseq
  %v58 = vshrl.u32 %v57, 7
  %v59 = vsub.s32 0, %v58
  %v60 = vrot.slane %v50, %v59
  %vm62 = vcmask 261120
  %v64 = vsel %vm62, %v44, 0
  %v67 = vsel %vm62, %v45, 0
  %69 = vmatprep.subr.mxu0 0.0
  %70 = vmatpush1.msra.mxu0 %v46
  %71 = vmatprep.subr.mxu0 0.0
  %72 = vmatpush1.msra.mxu0 %v47
  %73 = vmatprep.subr.mxu0 0.0
  %74 = vmatpush1.msra.mxu0 %v48
  %75 = vmatprep.subr.mxu0 0.0
  %76 = vmatpush1.msra.mxu0 %v49
  %77 = vmatprep.subr.mxu0 0.0
  %78 = vmatpush1.msra.mxu0 0.0
  %79 = vmatprep.subr.mxu0 0.0
  %80 = vmatpush1.msra.mxu0 0.0
  %81 = vmatprep.subr.mxu0 0.0
  %82 = vmatpush1.msra.mxu0 0.0
  %83 = vmatprep.subr.mxu0 0.0
  %84 = vmatpush1.msra.mxu0 0.0
  %85 = vmatprep.subr.mxu0 0.0
  %86 = vmatpush1.msra.mxu0 0.0
  %87 = vmatprep.subr.mxu0 0.0
  %88 = vmatpush1.msra.mxu0 0.0
  %89 = vmatprep.subr.mxu0 0.0
  %90 = vmatpush1.msra.mxu0 0.0
  %91 = vmatprep.subr.mxu0 0.0
  %92 = vmatpush1.msra.mxu0 0.0
  %93 = vmatprep.subr.mxu0 0.0
  %94 = vmatpush1.msra.mxu0 0.0
  %95 = vmatprep.subr.mxu0 0.0
  %96 = vmatpush1.msra.mxu0 0.0
  %97 = vmatprep.subr.mxu0 0.0
  %98 = vmatpush1.msra.mxu0 0.0
  %99 = vmatprep.subr.mxu0 0.0
  %100 = vmatpush1.msra.mxu0 0.0
  %101 = vmatprep.subr.mxu0 0.0
  %102 = vmatpush1.msra.mxu0 0.0
  %103 = vmatprep.subr.mxu0 0.0
  %104 = vmatpush1.msra.mxu0 0.0
  %105 = vmatprep.subr.mxu0 0.0
  %106 = vmatpush1.msra.mxu0 0.0
  %107 = vmatprep.subr.mxu0 0.0
  %108 = vmatpush1.msra.mxu0 0.0
  %109 = vmatprep.subr.mxu0 0.0
  %110 = vmatpush1.msra.mxu0 0.0
  %111 = vmatprep.subr.mxu0 0.0
  %112 = vmatpush1.msra.mxu0 0.0
  %113 = vmatprep.subr.mxu0 0.0
  %114 = vmatpush1.msra.mxu0 0.0
  %115 = vmatprep.subr.mxu0 0.0
  %116 = vmatpush1.msra.mxu0 0.0
  %117 = vmatprep.subr.mxu0 0.0
  %118 = vmatpush1.msra.mxu0 0.0
  %119 = vmatprep.subr.mxu0 0.0
  %120 = vmatpush1.msra.mxu0 0.0
  %121 = vmatprep.subr.mxu0 0.0
  %122 = vmatpush1.msra.mxu0 0.0
  %123 = vmatprep.subr.mxu0 0.0
  %124 = vmatpush1.msra.mxu0 0.0
  %125 = vmatprep.subr.mxu0 0.0
  %126 = vmatpush1.msra.mxu0 0.0
  %127 = vmatprep.subr.mxu0 0.0
  %128 = vmatpush1.msra.mxu0 0.0
  %129 = vmatprep.subr.mxu0 0.0
  %130 = vmatpush1.msra.mxu0 0.0
  %131 = vmatprep.subr.mxu0 0.0
  %132 = vmatpush1.msra.mxu0 0.0
  %133 = vmatprep.mubr.f32.mxu0 0.0
  %134 = vmatmul.mubr.f32.gmra.mrb[0].mxu0 %v64
  %v135 = vpop.f32.mrb[0].mxu0
  %v136 = vadd.f32 %v60, %v135
  %v137 = vpop.f32.mrb[0].mxu0
  %138 = vmatprep.mubr.f32.mxu0 0.0
  %139 = vmatmul.mubr.f32.gmra.mrb[0].mxu0 %v67
  %v140 = vpop.f32.mrb[0].mxu0
  %v141 = vadd.f32 %v60, %v140
  %v142 = vpop.f32.mrb[0].mxu0
  %143 = vdwg.mxu0
  %145 = vrot.lane.b32.xlu0 %v136, 96
  %v146 = vpop.permute.xlu0 %145
  %vm147 = vcmask 64512
  %v148 = vsel %vm147, %v136, 0
  %v150 = vsel %vm147, %v146, 0
  %152 = vmatprep.subr.mxu0 0.0
  %153 = vmatpush1.xpose.msra.mxu0 %v150
  %154 = vmatprep.subr.mxu0 0.0
  %155 = vmatpush1.xpose.msra.mxu0 0.0
  %156 = vmatprep.subr.mxu0 0.0
  %157 = vmatpush1.xpose.msra.mxu0 0.0
  %158 = vmatprep.subr.mxu0 0.0
  %159 = vmatpush1.xpose.msra.mxu0 0.0
  %160 = vmatprep.subr.mxu0 0.0
  %161 = vmatpush1.xpose.msra.mxu0 0.0
  %162 = vmatprep.subr.mxu0 0.0
  %163 = vmatpush1.xpose.msra.mxu0 0.0
  %164 = vmatprep.subr.mxu0 0.0
  %165 = vmatpush1.xpose.msra.mxu0 0.0
  %166 = vmatprep.subr.mxu0 0.0
  %167 = vmatpush1.xpose.msra.mxu0 0.0
  %168 = vmatprep.subr.mxu0 0.0
  %169 = vmatpush1.xpose.msra.mxu0 0.0
  %170 = vmatprep.subr.mxu0 0.0
  %171 = vmatpush1.xpose.msra.mxu0 0.0
  %172 = vmatprep.subr.mxu0 0.0
  %173 = vmatpush1.xpose.msra.mxu0 0.0
  %174 = vmatprep.subr.mxu0 0.0
  %175 = vmatpush1.xpose.msra.mxu0 0.0
  %176 = vmatprep.subr.mxu0 0.0
  %177 = vmatpush1.xpose.msra.mxu0 0.0
  %178 = vmatprep.subr.mxu0 0.0
  %179 = vmatpush1.xpose.msra.mxu0 0.0
  %180 = vmatprep.subr.mxu0 0.0
  %181 = vmatpush1.xpose.msra.mxu0 0.0
  %182 = vmatprep.subr.mxu0 0.0
  %183 = vmatpush1.xpose.msra.mxu0 0.0
  %184 = vmatprep.subr.mxu0 0.0
  %185 = vmatpush1.xpose.msra.mxu0 0.0
  %186 = vmatprep.subr.mxu0 0.0
  %187 = vmatpush1.xpose.msra.mxu0 0.0
  %188 = vmatprep.subr.mxu0 0.0
  %189 = vmatpush1.xpose.msra.mxu0 0.0
  %190 = vmatprep.subr.mxu0 0.0
  %191 = vmatpush1.xpose.msra.mxu0 0.0
  %192 = vmatprep.subr.mxu0 0.0
  %193 = vmatpush1.xpose.msra.mxu0 0.0
  %194 = vmatprep.subr.mxu0 0.0
  %195 = vmatpush1.xpose.msra.mxu0 0.0
  %196 = vmatprep.subr.mxu0 0.0
  %197 = vmatpush1.xpose.msra.mxu0 0.0
  %198 = vmatprep.subr.mxu0 0.0
  %199 = vmatpush1.xpose.msra.mxu0 0.0
  %200 = vmatprep.subr.mxu0 0.0
  %201 = vmatpush1.xpose.msra.mxu0 0.0
  %202 = vmatprep.subr.mxu0 0.0
  %203 = vmatpush1.xpose.msra.mxu0 0.0
  %204 = vmatprep.subr.mxu0 0.0
  %205 = vmatpush1.xpose.msra.mxu0 0.0
  %206 = vmatprep.subr.mxu0 0.0
  %207 = vmatpush1.xpose.msra.mxu0 0.0
  %208 = vmatprep.subr.mxu0 0.0
  %209 = vmatpush1.xpose.msra.mxu0 0.0
  %210 = vmatprep.subr.mxu0 0.0
  %211 = vmatpush1.xpose.msra.mxu0 0.0
  %212 = vmatprep.subr.mxu0 0.0
  %213 = vmatpush1.xpose.msra.mxu0 0.0
  %214 = vmatprep.subr.mxu0 0.0
  %215 = vmatpush1.xpose.msra.mxu0 0.0
  %216 = vmatprep.mubr.f32.mxu0 0.0
  %217 = vmatmul.mubr.f32.gmra.mrb[0].mxu0 %v148
  %v218 = vpop.f32.mrb[0].mxu0
  %v219 = vadd.f32 0.0, %v218
  %v220 = vpop.f32.mrb[0].mxu0
  %221 = vdwg.mxu0
  %v222 = vmul.f32 %v219, 0.35355338
  %v223 = vsel %vm147, %v222, -inf
  %224 = vmax.xlane.f32.xlu0 %v223
  %v225 = vpop.xlane.xlu0 %224
  %v226 = vsub.f32 %v222, %v225
  %v227 = vmul.f32 %v226, 1.442695
  %v228 = vpow.pop %v227
  %v229 = vsel %vm147, %v228, 0.0
  %230 = vadd.xlane.f32.xlu0 %v229
  %v231 = vpop.xlane.xlu0 %230
  %v232 = vrcp.pop %v231
  %v233 = vmul.f32 %v228, %v232
  %234 = vrot.lane.b32.xlu0 %v136, 64
  %v235 = vpop.permute.xlu0 %234
  %v238 = vsel %vm147, %v233, 0
  %240 = vmatprep.subr.mxu0 0.0
  %241 = vmatpush1.msra.mxu0 %v235
  %242 = vmatprep.subr.mxu0 0.0
  %243 = vmatpush1.msra.mxu0 0.0
  %244 = vmatprep.subr.mxu0 0.0
  %245 = vmatpush1.msra.mxu0 0.0
  %246 = vmatprep.subr.mxu0 0.0
  %247 = vmatpush1.msra.mxu0 0.0
  %248 = vmatprep.subr.mxu0 0.0
  %249 = vmatpush1.msra.mxu0 0.0
  %250 = vmatprep.subr.mxu0 0.0
  %251 = vmatpush1.msra.mxu0 0.0
  %252 = vmatprep.subr.mxu0 0.0
  %253 = vmatpush1.msra.mxu0 0.0
  %254 = vmatprep.subr.mxu0 0.0
  %255 = vmatpush1.msra.mxu0 0.0
  %256 = vmatprep.subr.mxu0 0.0
  %257 = vmatpush1.msra.mxu0 0.0
  %258 = vmatprep.subr.mxu0 0.0
  %259 = vmatpush1.msra.mxu0 0.0
  %260 = vmatprep.subr.mxu0 0.0
  %261 = vmatpush1.msra.mxu0 0.0
  %262 = vmatprep.subr.mxu0 0.0
  %263 = vmatpush1.msra.mxu0 0.0
  %264 = vmatprep.subr.mxu0 0.0
  %265 = vmatpush1.msra.mxu0 0.0
  %266 = vmatprep.subr.mxu0 0.0
  %267 = vmatpush1.msra.mxu0 0.0
  %268 = vmatprep.subr.mxu0 0.0
  %269 = vmatpush1.msra.mxu0 0.0
  %270 = vmatprep.subr.mxu0 0.0
  %271 = vmatpush1.msra.mxu0 0.0
  %272 = vmatprep.subr.mxu0 0.0
  %273 = vmatpush1.msra.mxu0 0.0
  %274 = vmatprep.subr.mxu0 0.0
  %275 = vmatpush1.msra.mxu0 0.0
  %276 = vmatprep.subr.mxu0 0.0
  %277 = vmatpush1.msra.mxu0 0.0
  %278 = vmatprep.subr.mxu0 0.0
  %279 = vmatpush1.msra.mxu0 0.0
  %280 = vmatprep.subr.mxu0 0.0
  %281 = vmatpush1.msra.mxu0 0.0
  %282 = vmatprep.subr.mxu0 0.0
  %283 = vmatpush1.msra.mxu0 0.0
  %284 = vmatprep.subr.mxu0 0.0
  %285 = vmatpush1.msra.mxu0 0.0
  %286 = vmatprep.subr.mxu0 0.0
  %287 = vmatpush1.msra.mxu0 0.0
  %288 = vmatprep.subr.mxu0 0.0
  %289 = vmatpush1.msra.mxu0 0.0
  %290 = vmatprep.subr.mxu0 0.0
  %291 = vmatpush1.msra.mxu0 0.0
  %292 = vmatprep.subr.mxu0 0.0
  %293 = vmatpush1.msra.mxu0 0.0
  %294 = vmatprep.subr.mxu0 0.0
  %295 = vmatpush1.msra.mxu0 0.0
  %296 = vmatprep.subr.mxu0 0.0
  %297 = vmatpush1.msra.mxu0 0.0
  %298 = vmatprep.subr.mxu0 0.0
  %299 = vmatpush1.msra.mxu0 0.0
  %300 = vmatprep.subr.mxu0 0.0
  %301 = vmatpush1.msra.mxu0 0.0
  %302 = vmatprep.subr.mxu0 0.0
  %303 = vmatpush1.msra.mxu0 0.0
  %304 = vmatprep.mubr.f32.mxu0 0.0
  %305 = vmatmul.mubr.f32.gmra.mrb[0].mxu0 %v238
  %v306 = vpop.f32.mrb[0].mxu0
  %v307 = vadd.f32 0.0, %v306
  %v308 = vpop.f32.mrb[0].mxu0
  %309 = vdwg.mxu0
  %310 = vst.msk [vmem:[#allocation2] sm:$0xff] %vm147, %v307
  %311 = vrot.lane.b32.xlu0 %v136, 120
  %v312 = vpop.permute.xlu0 %311
  %313 = vrot.lane.b32.xlu0 %v136, 88
  %v314 = vpop.permute.xlu0 %313
  %v315 = vsel %vm147, %v312, 0
  %v317 = vsel %vm147, %v314, 0
  %319 = vmatprep.subr.mxu0 0.0
  %320 = vmatpush1.xpose.msra.mxu0 %v317
  %321 = vmatprep.subr.mxu0 0.0
  %322 = vmatpush1.xpose.msra.mxu0 0.0
  %323 = vmatprep.subr.mxu0 0.0
  %324 = vmatpush1.xpose.msra.mxu0 0.0
  %325 = vmatprep.subr.mxu0 0.0
  %326 = vmatpush1.xpose.msra.mxu0 0.0
  %327 = vmatprep.subr.mxu0 0.0
  %328 = vmatpush1.xpose.msra.mxu0 0.0
  %329 = vmatprep.subr.mxu0 0.0
  %330 = vmatpush1.xpose.msra.mxu0 0.0
  %331 = vmatprep.subr.mxu0 0.0
  %332 = vmatpush1.xpose.msra.mxu0 0.0
  %333 = vmatprep.subr.mxu0 0.0
  %334 = vmatpush1.xpose.msra.mxu0 0.0
  %335 = vmatprep.subr.mxu0 0.0
  %336 = vmatpush1.xpose.msra.mxu0 0.0
  %337 = vmatprep.subr.mxu0 0.0
  %338 = vmatpush1.xpose.msra.mxu0 0.0
  %339 = vmatprep.subr.mxu0 0.0
  %340 = vmatpush1.xpose.msra.mxu0 0.0
  %341 = vmatprep.subr.mxu0 0.0
  %342 = vmatpush1.xpose.msra.mxu0 0.0
  %343 = vmatprep.subr.mxu0 0.0
  %344 = vmatpush1.xpose.msra.mxu0 0.0
  %345 = vmatprep.subr.mxu0 0.0
  %346 = vmatpush1.xpose.msra.mxu0 0.0
  %347 = vmatprep.subr.mxu0 0.0
  %348 = vmatpush1.xpose.msra.mxu0 0.0
  %349 = vmatprep.subr.mxu0 0.0
  %350 = vmatpush1.xpose.msra.mxu0 0.0
  %351 = vmatprep.subr.mxu0 0.0
  %352 = vmatpush1.xpose.msra.mxu0 0.0
  %353 = vmatprep.subr.mxu0 0.0
  %354 = vmatpush1.xpose.msra.mxu0 0.0
  %355 = vmatprep.subr.mxu0 0.0
  %356 = vmatpush1.xpose.msra.mxu0 0.0
  %357 = vmatprep.subr.mxu0 0.0
  %358 = vmatpush1.xpose.msra.mxu0 0.0
  %359 = vmatprep.subr.mxu0 0.0
  %360 = vmatpush1.xpose.msra.mxu0 0.0
  %361 = vmatprep.subr.mxu0 0.0
  %362 = vmatpush1.xpose.msra.mxu0 0.0
  %363 = vmatprep.subr.mxu0 0.0
  %364 = vmatpush1.xpose.msra.mxu0 0.0
  %365 = vmatprep.subr.mxu0 0.0
  %366 = vmatpush1.xpose.msra.mxu0 0.0
  %367 = vmatprep.subr.mxu0 0.0
  %368 = vmatpush1.xpose.msra.mxu0 0.0
  %369 = vmatprep.subr.mxu0 0.0
  %370 = vmatpush1.xpose.msra.mxu0 0.0
  %371 = vmatprep.subr.mxu0 0.0
  %372 = vmatpush1.xpose.msra.mxu0 0.0
  %373 = vmatprep.subr.mxu0 0.0
  %374 = vmatpush1.xpose.msra.mxu0 0.0
  %375 = vmatprep.subr.mxu0 0.0
  %376 = vmatpush1.xpose.msra.mxu0 0.0
  %377 = vmatprep.subr.mxu0 0.0
  %378 = vmatpush1.xpose.msra.mxu0 0.0
  %379 = vmatprep.subr.mxu0 0.0
  %380 = vmatpush1.xpose.msra.mxu0 0.0
  %381 = vmatprep.subr.mxu0 0.0
  %382 = vmatpush1.xpose.msra.mxu0 0.0
  %383 = vmatprep.mubr.f32.mxu0 0.0
  %384 = vmatmul.mubr.f32.gmra.mrb[0].mxu0 %v315
  %v385 = vpop.f32.mrb[0].mxu0
  %v386 = vadd.f32 0.0, %v385
  %v387 = vpop.f32.mrb[0].mxu0
  %388 = vdwg.mxu0
  %v389 = vmul.f32 %v386, 0.35355338
  %v390 = vsel %vm147, %v389, -inf
  %391 = vmax.xlane.f32.xlu0 %v390
  %v392 = vpop.xlane.xlu0 %391
  %v393 = vsub.f32 %v389, %v392
  %v394 = vmul.f32 %v393, 1.442695
  %v395 = vpow.pop %v394
  %v396 = vsel %vm147, %v395, 0.0
  %397 = vadd.xlane.f32.xlu0 %v396
  %v398 = vpop.xlane.xlu0 %397
  %v399 = vrcp.pop %v398
  %v400 = vmul.f32 %v395, %v399
  %401 = vrot.lane.b32.xlu0 %v136, 56
  %v402 = vpop.permute.xlu0 %401
  %v405 = vsel %vm147, %v400, 0
  %407 = vmatprep.subr.mxu0 0.0
  %408 = vmatpush1.msra.mxu0 %v402
  %409 = vmatprep.subr.mxu0 0.0
  %410 = vmatpush1.msra.mxu0 0.0
  %411 = vmatprep.subr.mxu0 0.0
  %412 = vmatpush1.msra.mxu0 0.0
  %413 = vmatprep.subr.mxu0 0.0
  %414 = vmatpush1.msra.mxu0 0.0
  %415 = vmatprep.subr.mxu0 0.0
  %416 = vmatpush1.msra.mxu0 0.0
  %417 = vmatprep.subr.mxu0 0.0
  %418 = vmatpush1.msra.mxu0 0.0
  %419 = vmatprep.subr.mxu0 0.0
  %420 = vmatpush1.msra.mxu0 0.0
  %421 = vmatprep.subr.mxu0 0.0
  %422 = vmatpush1.msra.mxu0 0.0
  %423 = vmatprep.subr.mxu0 0.0
  %424 = vmatpush1.msra.mxu0 0.0
  %425 = vmatprep.subr.mxu0 0.0
  %426 = vmatpush1.msra.mxu0 0.0
  %427 = vmatprep.subr.mxu0 0.0
  %428 = vmatpush1.msra.mxu0 0.0
  %429 = vmatprep.subr.mxu0 0.0
  %430 = vmatpush1.msra.mxu0 0.0
  %431 = vmatprep.subr.mxu0 0.0
  %432 = vmatpush1.msra.mxu0 0.0
  %433 = vmatprep.subr.mxu0 0.0
  %434 = vmatpush1.msra.mxu0 0.0
  %435 = vmatprep.subr.mxu0 0.0
  %436 = vmatpush1.msra.mxu0 0.0
  %437 = vmatprep.subr.mxu0 0.0
  %438 = vmatpush1.msra.mxu0 0.0
  %439 = vmatprep.subr.mxu0 0.0
  %440 = vmatpush1.msra.mxu0 0.0
  %441 = vmatprep.subr.mxu0 0.0
  %442 = vmatpush1.msra.mxu0 0.0
  %443 = vmatprep.subr.mxu0 0.0
  %444 = vmatpush1.msra.mxu0 0.0
  %445 = vmatprep.subr.mxu0 0.0
  %446 = vmatpush1.msra.mxu0 0.0
  %447 = vmatprep.subr.mxu0 0.0
  %448 = vmatpush1.msra.mxu0 0.0
  %449 = vmatprep.subr.mxu0 0.0
  %450 = vmatpush1.msra.mxu0 0.0
  %451 = vmatprep.subr.mxu0 0.0
  %452 = vmatpush1.msra.mxu0 0.0
  %453 = vmatprep.subr.mxu0 0.0
  %454 = vmatpush1.msra.mxu0 0.0
  %455 = vmatprep.subr.mxu0 0.0
  %456 = vmatpush1.msra.mxu0 0.0
  %457 = vmatprep.subr.mxu0 0.0
  %458 = vmatpush1.msra.mxu0 0.0
  %459 = vmatprep.subr.mxu0 0.0
  %460 = vmatpush1.msra.mxu0 0.0
  %461 = vmatprep.subr.mxu0 0.0
  %462 = vmatpush1.msra.mxu0 0.0
  %463 = vmatprep.subr.mxu0 0.0
  %464 = vmatpush1.msra.mxu0 0.0
  %465 = vmatprep.subr.mxu0 0.0
  %466 = vmatpush1.msra.mxu0 0.0
  %467 = vmatprep.subr.mxu0 0.0
  %468 = vmatpush1.msra.mxu0 0.0
  %469 = vmatprep.subr.mxu0 0.0
  %470 = vmatpush1.msra.mxu0 0.0
  %471 = vmatprep.mubr.f32.mxu0 0.0
  %472 = vmatmul.mubr.f32.gmra.mrb[0].mxu0 %v405
  %v473 = vpop.f32.mrb[0].mxu0
  %v474 = vadd.f32 0.0, %v473
  %v475 = vpop.f32.mrb[0].mxu0
  %476 = vdwg.mxu0
  %478 = vrot.lane.b32.xlu0 %v474, 8
  %v479 = vpop.permute.xlu0 %478
  %vm481 = vcmask 130112
  %482 = vst.msk [vmem:[#allocation2] sm:$0xff] %vm481, %v479
  %483 = vrot.lane.b32.xlu0 %v136, 112
  %v484 = vpop.permute.xlu0 %483
  %485 = vrot.lane.b32.xlu0 %v136, 80
  %v486 = vpop.permute.xlu0 %485
  %v487 = vsel %vm147, %v484, 0
  %v489 = vsel %vm147, %v486, 0
  %491 = vmatprep.subr.mxu0 0.0
  %492 = vmatpush1.xpose.msra.mxu0 %v489
  %493 = vmatprep.subr.mxu0 0.0
  %494 = vmatpush1.xpose.msra.mxu0 0.0
  %495 = vmatprep.subr.mxu0 0.0
  %496 = vmatpush1.xpose.msra.mxu0 0.0
  %497 = vmatprep.subr.mxu0 0.0
  %498 = vmatpush1.xpose.msra.mxu0 0.0
  %499 = vmatprep.subr.mxu0 0.0
  %500 = vmatpush1.xpose.msra.mxu0 0.0
  %501 = vmatprep.subr.mxu0 0.0
  %502 = vmatpush1.xpose.msra.mxu0 0.0
  %503 = vmatprep.subr.mxu0 0.0
  %504 = vmatpush1.xpose.msra.mxu0 0.0
  %505 = vmatprep.subr.mxu0 0.0
  %506 = vmatpush1.xpose.msra.mxu0 0.0
  %507 = vmatprep.subr.mxu0 0.0
  %508 = vmatpush1.xpose.msra.mxu0 0.0
  %509 = vmatprep.subr.mxu0 0.0
  %510 = vmatpush1.xpose.msra.mxu0 0.0
  %511 = vmatprep.subr.mxu0 0.0
  %512 = vmatpush1.xpose.msra.mxu0 0.0
  %513 = vmatprep.subr.mxu0 0.0
  %514 = vmatpush1.xpose.msra.mxu0 0.0
  %515 = vmatprep.subr.mxu0 0.0
  %516 = vmatpush1.xpose.msra.mxu0 0.0
  %517 = vmatprep.subr.mxu0 0.0
  %518 = vmatpush1.xpose.msra.mxu0 0.0
  %519 = vmatprep.subr.mxu0 0.0
  %520 = vmatpush1.xpose.msra.mxu0 0.0
  %521 = vmatprep.subr.mxu0 0.0
  %522 = vmatpush1.xpose.msra.mxu0 0.0
  %523 = vmatprep.subr.mxu0 0.0
  %524 = vmatpush1.xpose.msra.mxu0 0.0
  %525 = vmatprep.subr.mxu0 0.0
  %526 = vmatpush1.xpose.msra.mxu0 0.0
  %527 = vmatprep.subr.mxu0 0.0
  %528 = vmatpush1.xpose.msra.mxu0 0.0
  %529 = vmatprep.subr.mxu0 0.0
  %530 = vmatpush1.xpose.msra.mxu0 0.0
  %531 = vmatprep.subr.mxu0 0.0
  %532 = vmatpush1.xpose.msra.mxu0 0.0
  %533 = vmatprep.subr.mxu0 0.0
  %534 = vmatpush1.xpose.msra.mxu0 0.0
  %535 = vmatprep.subr.mxu0 0.0
  %536 = vmatpush1.xpose.msra.mxu0 0.0
  %537 = vmatprep.subr.mxu0 0.0
  %538 = vmatpush1.xpose.msra.mxu0 0.0
  %539 = vmatprep.subr.mxu0 0.0
  %540 = vmatpush1.xpose.msra.mxu0 0.0
  %541 = vmatprep.subr.mxu0 0.0
  %542 = vmatpush1.xpose.msra.mxu0 0.0
  %543 = vmatprep.subr.mxu0 0.0
  %544 = vmatpush1.xpose.msra.mxu0 0.0
  %545 = vmatprep.subr.mxu0 0.0
  %546 = vmatpush1.xpose.msra.mxu0 0.0
  %547 = vmatprep.subr.mxu0 0.0
  %548 = vmatpush1.xpose.msra.mxu0 0.0
  %549 = vmatprep.subr.mxu0 0.0
  %550 = vmatpush1.xpose.msra.mxu0 0.0
  %551 = vmatprep.subr.mxu0 0.0
  %552 = vmatpush1.xpose.msra.mxu0 0.0
  %553 = vmatprep.subr.mxu0 0.0
  %554 = vmatpush1.xpose.msra.mxu0 0.0
  %555 = vmatprep.mubr.f32.mxu0 0.0
  %556 = vmatmul.mubr.f32.gmra.mrb[0].mxu0 %v487
  %v557 = vpop.f32.mrb[0].mxu0
  %v558 = vadd.f32 0.0, %v557
  %v559 = vpop.f32.mrb[0].mxu0
  %560 = vdwg.mxu0
  %v561 = vmul.f32 %v558, 0.35355338
  %v562 = vsel %vm147, %v561, -inf
  %563 = vmax.xlane.f32.xlu0 %v562
  %v564 = vpop.xlane.xlu0 %563
  %v565 = vsub.f32 %v561, %v564
  %v566 = vmul.f32 %v565, 1.442695
  %v567 = vpow.pop %v566
  %v568 = vsel %vm147, %v567, 0.0
  %569 = vadd.xlane.f32.xlu0 %v568
  %v570 = vpop.xlane.xlu0 %569
  %v571 = vrcp.pop %v570
  %v572 = vmul.f32 %v567, %v571
  %573 = vrot.lane.b32.xlu0 %v136, 48
  %v574 = vpop.permute.xlu0 %573
  %v577 = vsel %vm147, %v572, 0
  %579 = vmatprep.subr.mxu0 0.0
  %580 = vmatpush1.msra.mxu0 %v574
  %581 = vmatprep.subr.mxu0 0.0
  %582 = vmatpush1.msra.mxu0 0.0
  %583 = vmatprep.subr.mxu0 0.0
  %584 = vmatpush1.msra.mxu0 0.0
  %585 = vmatprep.subr.mxu0 0.0
  %586 = vmatpush1.msra.mxu0 0.0
  %587 = vmatprep.subr.mxu0 0.0
  %588 = vmatpush1.msra.mxu0 0.0
  %589 = vmatprep.subr.mxu0 0.0
  %590 = vmatpush1.msra.mxu0 0.0
  %591 = vmatprep.subr.mxu0 0.0
  %592 = vmatpush1.msra.mxu0 0.0
  %593 = vmatprep.subr.mxu0 0.0
  %594 = vmatpush1.msra.mxu0 0.0
  %595 = vmatprep.subr.mxu0 0.0
  %596 = vmatpush1.msra.mxu0 0.0
  %597 = vmatprep.subr.mxu0 0.0
  %598 = vmatpush1.msra.mxu0 0.0
  %599 = vmatprep.subr.mxu0 0.0
  %600 = vmatpush1.msra.mxu0 0.0
  %601 = vmatprep.subr.mxu0 0.0
  %602 = vmatpush1.msra.mxu0 0.0
  %603 = vmatprep.subr.mxu0 0.0
  %604 = vmatpush1.msra.mxu0 0.0
  %605 = vmatprep.subr.mxu0 0.0
  %606 = vmatpush1.msra.mxu0 0.0
  %607 = vmatprep.subr.mxu0 0.0
  %608 = vmatpush1.msra.mxu0 0.0
  %609 = vmatprep.subr.mxu0 0.0
  %610 = vmatpush1.msra.mxu0 0.0
  %611 = vmatprep.subr.mxu0 0.0
  %612 = vmatpush1.msra.mxu0 0.0
  %613 = vmatprep.subr.mxu0 0.0
  %614 = vmatpush1.msra.mxu0 0.0
  %615 = vmatprep.subr.mxu0 0.0
  %616 = vmatpush1.msra.mxu0 0.0
  %617 = vmatprep.subr.mxu0 0.0
  %618 = vmatpush1.msra.mxu0 0.0
  %619 = vmatprep.subr.mxu0 0.0
  %620 = vmatpush1.msra.mxu0 0.0
  %621 = vmatprep.subr.mxu0 0.0
  %622 = vmatpush1.msra.mxu0 0.0
  %623 = vmatprep.subr.mxu0 0.0
  %624 = vmatpush1.msra.mxu0 0.0
  %625 = vmatprep.subr.mxu0 0.0
  %626 = vmatpush1.msra.mxu0 0.0
  %627 = vmatprep.subr.mxu0 0.0
  %628 = vmatpush1.msra.mxu0 0.0
  %629 = vmatprep.subr.mxu0 0.0
  %630 = vmatpush1.msra.mxu0 0.0
  %631 = vmatprep.subr.mxu0 0.0
  %632 = vmatpush1.msra.mxu0 0.0
  %633 = vmatprep.subr.mxu0 0.0
  %634 = vmatpush1.msra.mxu0 0.0
  %635 = vmatprep.subr.mxu0 0.0
  %636 = vmatpush1.msra.mxu0 0.0
  %637 = vmatprep.subr.mxu0 0.0
  %638 = vmatpush1.msra.mxu0 0.0
  %639 = vmatprep.subr.mxu0 0.0
  %640 = vmatpush1.msra.mxu0 0.0
  %641 = vmatprep.subr.mxu0 0.0
  %642 = vmatpush1.msra.mxu0 0.0
  %643 = vmatprep.mubr.f32.mxu0 0.0
  %644 = vmatmul.mubr.f32.gmra.mrb[0].mxu0 %v577
  %v645 = vpop.f32.mrb[0].mxu0
  %v646 = vadd.f32 0.0, %v645
  %v647 = vpop.f32.mrb[0].mxu0
  %648 = vdwg.mxu0
  %650 = vrot.lane.b32.xlu0 %v646, 16
  %v651 = vpop.permute.xlu0 %650
  %vm653 = vcmask 195712
  %654 = vst.msk [vmem:[#allocation2] sm:$0xff] %vm653, %v651
  %655 = vrot.lane.b32.xlu0 %v136, 104
  %v656 = vpop.permute.xlu0 %655
  %657 = vrot.lane.b32.xlu0 %v136, 72
  %v658 = vpop.permute.xlu0 %657
  %v659 = vsel %vm147, %v656, 0
  %v661 = vsel %vm147, %v658, 0
  %663 = vmatprep.subr.mxu0 0.0
  %664 = vmatpush1.xpose.msra.mxu0 %v661
  %665 = vmatprep.subr.mxu0 0.0
  %666 = vmatpush1.xpose.msra.mxu0 0.0
  %667 = vmatprep.subr.mxu0 0.0
  %668 = vmatpush1.xpose.msra.mxu0 0.0
  %669 = vmatprep.subr.mxu0 0.0
  %670 = vmatpush1.xpose.msra.mxu0 0.0
  %671 = vmatprep.subr.mxu0 0.0
  %672 = vmatpush1.xpose.msra.mxu0 0.0
  %673 = vmatprep.subr.mxu0 0.0
  %674 = vmatpush1.xpose.msra.mxu0 0.0
  %675 = vmatprep.subr.mxu0 0.0
  %676 = vmatpush1.xpose.msra.mxu0 0.0
  %677 = vmatprep.subr.mxu0 0.0
  %678 = vmatpush1.xpose.msra.mxu0 0.0
  %679 = vmatprep.subr.mxu0 0.0
  %680 = vmatpush1.xpose.msra.mxu0 0.0
  %681 = vmatprep.subr.mxu0 0.0
  %682 = vmatpush1.xpose.msra.mxu0 0.0
  %683 = vmatprep.subr.mxu0 0.0
  %684 = vmatpush1.xpose.msra.mxu0 0.0
  %685 = vmatprep.subr.mxu0 0.0
  %686 = vmatpush1.xpose.msra.mxu0 0.0
  %687 = vmatprep.subr.mxu0 0.0
  %688 = vmatpush1.xpose.msra.mxu0 0.0
  %689 = vmatprep.subr.mxu0 0.0
  %690 = vmatpush1.xpose.msra.mxu0 0.0
  %691 = vmatprep.subr.mxu0 0.0
  %692 = vmatpush1.xpose.msra.mxu0 0.0
  %693 = vmatprep.subr.mxu0 0.0
  %694 = vmatpush1.xpose.msra.mxu0 0.0
  %695 = vmatprep.subr.mxu0 0.0
  %696 = vmatpush1.xpose.msra.mxu0 0.0
  %697 = vmatprep.subr.mxu0 0.0
  %698 = vmatpush1.xpose.msra.mxu0 0.0
  %699 = vmatprep.subr.mxu0 0.0
  %700 = vmatpush1.xpose.msra.mxu0 0.0
  %701 = vmatprep.subr.mxu0 0.0
  %702 = vmatpush1.xpose.msra.mxu0 0.0
  %703 = vmatprep.subr.mxu0 0.0
  %704 = vmatpush1.xpose.msra.mxu0 0.0
  %705 = vmatprep.subr.mxu0 0.0
  %706 = vmatpush1.xpose.msra.mxu0 0.0
  %707 = vmatprep.subr.mxu0 0.0
  %708 = vmatpush1.xpose.msra.mxu0 0.0
  %709 = vmatprep.subr.mxu0 0.0
  %710 = vmatpush1.xpose.msra.mxu0 0.0
  %711 = vmatprep.subr.mxu0 0.0
  %712 = vmatpush1.xpose.msra.mxu0 0.0
  %713 = vmatprep.subr.mxu0 0.0
  %714 = vmatpush1.xpose.msra.mxu0 0.0
  %715 = vmatprep.subr.mxu0 0.0
  %716 = vmatpush1.xpose.msra.mxu0 0.0
  %717 = vmatprep.subr.mxu0 0.0
  %718 = vmatpush1.xpose.msra.mxu0 0.0
  %719 = vmatprep.subr.mxu0 0.0
  %720 = vmatpush1.xpose.msra.mxu0 0.0
  %721 = vmatprep.subr.mxu0 0.0
  %722 = vmatpush1.xpose.msra.mxu0 0.0
  %723 = vmatprep.subr.mxu0 0.0
  %724 = vmatpush1.xpose.msra.mxu0 0.0
  %725 = vmatprep.subr.mxu0 0.0
  %726 = vmatpush1.xpose.msra.mxu0 0.0
  %727 = vmatprep.mubr.f32.mxu0 0.0
  %728 = vmatmul.mubr.f32.gmra.mrb[0].mxu0 %v659
  %v729 = vpop.f32.mrb[0].mxu0
  %v730 = vadd.f32 0.0, %v729
  %v731 = vpop.f32.mrb[0].mxu0
  %732 = vdwg.mxu0
  %v733 = vmul.f32 %v730, 0.35355338
  %v734 = vsel %vm147, %v733, -inf
  %735 = vmax.xlane.f32.xlu0 %v734
  %v736 = vpop.xlane.xlu0 %735
  %v737 = vsub.f32 %v733, %v736
  %v738 = vmul.f32 %v737, 1.442695
  %v739 = vpow.pop %v738
  %v740 = vsel %vm147, %v739, 0.0
  %741 = vadd.xlane.f32.xlu0 %v740
  %v742 = vpop.xlane.xlu0 %741
  %v743 = vrcp.pop %v742
  %v744 = vmul.f32 %v739, %v743
  %745 = vrot.lane.b32.xlu0 %v136, 40
  %v746 = vpop.permute.xlu0 %745
  %v749 = vsel %vm147, %v744, 0
  %751 = vmatprep.subr.mxu0 0.0
  %752 = vmatpush1.msra.mxu0 %v746
  %753 = vmatprep.subr.mxu0 0.0
  %754 = vmatpush1.msra.mxu0 0.0
  %755 = vmatprep.subr.mxu0 0.0
  %756 = vmatpush1.msra.mxu0 0.0
  %757 = vmatprep.subr.mxu0 0.0
  %758 = vmatpush1.msra.mxu0 0.0
  %759 = vmatprep.subr.mxu0 0.0
  %760 = vmatpush1.msra.mxu0 0.0
  %761 = vmatprep.subr.mxu0 0.0
  %762 = vmatpush1.msra.mxu0 0.0
  %763 = vmatprep.subr.mxu0 0.0
  %764 = vmatpush1.msra.mxu0 0.0
  %765 = vmatprep.subr.mxu0 0.0
  %766 = vmatpush1.msra.mxu0 0.0
  %767 = vmatprep.subr.mxu0 0.0
  %768 = vmatpush1.msra.mxu0 0.0
  %769 = vmatprep.subr.mxu0 0.0
  %770 = vmatpush1.msra.mxu0 0.0
  %771 = vmatprep.subr.mxu0 0.0
  %772 = vmatpush1.msra.mxu0 0.0
  %773 = vmatprep.subr.mxu0 0.0
  %774 = vmatpush1.msra.mxu0 0.0
  %775 = vmatprep.subr.mxu0 0.0
  %776 = vmatpush1.msra.mxu0 0.0
  %777 = vmatprep.subr.mxu0 0.0
  %778 = vmatpush1.msra.mxu0 0.0
  %779 = vmatprep.subr.mxu0 0.0
  %780 = vmatpush1.msra.mxu0 0.0
  %781 = vmatprep.subr.mxu0 0.0
  %782 = vmatpush1.msra.mxu0 0.0
  %783 = vmatprep.subr.mxu0 0.0
  %784 = vmatpush1.msra.mxu0 0.0
  %785 = vmatprep.subr.mxu0 0.0
  %786 = vmatpush1.msra.mxu0 0.0
  %787 = vmatprep.subr.mxu0 0.0
  %788 = vmatpush1.msra.mxu0 0.0
  %789 = vmatprep.subr.mxu0 0.0
  %790 = vmatpush1.msra.mxu0 0.0
  %791 = vmatprep.subr.mxu0 0.0
  %792 = vmatpush1.msra.mxu0 0.0
  %793 = vmatprep.subr.mxu0 0.0
  %794 = vmatpush1.msra.mxu0 0.0
  %795 = vmatprep.subr.mxu0 0.0
  %796 = vmatpush1.msra.mxu0 0.0
  %797 = vmatprep.subr.mxu0 0.0
  %798 = vmatpush1.msra.mxu0 0.0
  %799 = vmatprep.subr.mxu0 0.0
  %800 = vmatpush1.msra.mxu0 0.0
  %801 = vmatprep.subr.mxu0 0.0
  %802 = vmatpush1.msra.mxu0 0.0
  %803 = vmatprep.subr.mxu0 0.0
  %804 = vmatpush1.msra.mxu0 0.0
  %805 = vmatprep.subr.mxu0 0.0
  %806 = vmatpush1.msra.mxu0 0.0
  %807 = vmatprep.subr.mxu0 0.0
  %808 = vmatpush1.msra.mxu0 0.0
  %809 = vmatprep.subr.mxu0 0.0
  %810 = vmatpush1.msra.mxu0 0.0
  %811 = vmatprep.subr.mxu0 0.0
  %812 = vmatpush1.msra.mxu0 0.0
  %813 = vmatprep.subr.mxu0 0.0
  %814 = vmatpush1.msra.mxu0 0.0
  %815 = vmatprep.mubr.f32.mxu0 0.0
  %816 = vmatmul.mubr.f32.gmra.mrb[0].mxu0 %v749
  %v817 = vpop.f32.mrb[0].mxu0
  %v818 = vadd.f32 0.0, %v817
  %v819 = vpop.f32.mrb[0].mxu0
  %820 = vdwg.mxu0
  %822 = vrot.lane.b32.xlu0 %v818, 24
  %v823 = vpop.permute.xlu0 %822
  %vm825 = vcmask 261312
  %826 = vst.msk [vmem:[#allocation2] sm:$0xff] %vm825, %v823
  %828 = vrot.lane.b32.xlu0 %v141, 96
  %v829 = vpop.permute.xlu0 %828
  %v830 = vsel %vm147, %v141, 0
  %v832 = vsel %vm147, %v829, 0
  %834 = vmatprep.subr.mxu0 0.0
  %835 = vmatpush1.xpose.msra.mxu0 %v832
  %836 = vmatprep.subr.mxu0 0.0
  %837 = vmatpush1.xpose.msra.mxu0 0.0
  %838 = vmatprep.subr.mxu0 0.0
  %839 = vmatpush1.xpose.msra.mxu0 0.0
  %840 = vmatprep.subr.mxu0 0.0
  %841 = vmatpush1.xpose.msra.mxu0 0.0
  %842 = vmatprep.subr.mxu0 0.0
  %843 = vmatpush1.xpose.msra.mxu0 0.0
  %844 = vmatprep.subr.mxu0 0.0
  %845 = vmatpush1.xpose.msra.mxu0 0.0
  %846 = vmatprep.subr.mxu0 0.0
  %847 = vmatpush1.xpose.msra.mxu0 0.0
  %848 = vmatprep.subr.mxu0 0.0
  %849 = vmatpush1.xpose.msra.mxu0 0.0
  %850 = vmatprep.subr.mxu0 0.0
  %851 = vmatpush1.xpose.msra.mxu0 0.0
  %852 = vmatprep.subr.mxu0 0.0
  %853 = vmatpush1.xpose.msra.mxu0 0.0
  %854 = vmatprep.subr.mxu0 0.0
  %855 = vmatpush1.xpose.msra.mxu0 0.0
  %856 = vmatprep.subr.mxu0 0.0
  %857 = vmatpush1.xpose.msra.mxu0 0.0
  %858 = vmatprep.subr.mxu0 0.0
  %859 = vmatpush1.xpose.msra.mxu0 0.0
  %860 = vmatprep.subr.mxu0 0.0
  %861 = vmatpush1.xpose.msra.mxu0 0.0
  %862 = vmatprep.subr.mxu0 0.0
  %863 = vmatpush1.xpose.msra.mxu0 0.0
  %864 = vmatprep.subr.mxu0 0.0
  %865 = vmatpush1.xpose.msra.mxu0 0.0
  %866 = vmatprep.subr.mxu0 0.0
  %867 = vmatpush1.xpose.msra.mxu0 0.0
  %868 = vmatprep.subr.mxu0 0.0
  %869 = vmatpush1.xpose.msra.mxu0 0.0
  %870 = vmatprep.subr.mxu0 0.0
  %871 = vmatpush1.xpose.msra.mxu0 0.0
  %872 = vmatprep.subr.mxu0 0.0
  %873 = vmatpush1.xpose.msra.mxu0 0.0
  %874 = vmatprep.subr.mxu0 0.0
  %875 = vmatpush1.xpose.msra.mxu0 0.0
  %876 = vmatprep.subr.mxu0 0.0
  %877 = vmatpush1.xpose.msra.mxu0 0.0
  %878 = vmatprep.subr.mxu0 0.0
  %879 = vmatpush1.xpose.msra.mxu0 0.0
  %880 = vmatprep.subr.mxu0 0.0
  %881 = vmatpush1.xpose.msra.mxu0 0.0
  %882 = vmatprep.subr.mxu0 0.0
  %883 = vmatpush1.xpose.msra.mxu0 0.0
  %884 = vmatprep.subr.mxu0 0.0
  %885 = vmatpush1.xpose.msra.mxu0 0.0
  %886 = vmatprep.subr.mxu0 0.0
  %887 = vmatpush1.xpose.msra.mxu0 0.0
  %888 = vmatprep.subr.mxu0 0.0
  %889 = vmatpush1.xpose.msra.mxu0 0.0
  %890 = vmatprep.subr.mxu0 0.0
  %891 = vmatpush1.xpose.msra.mxu0 0.0
  %892 = vmatprep.subr.mxu0 0.0
  %893 = vmatpush1.xpose.msra.mxu0 0.0
  %894 = vmatprep.subr.mxu0 0.0
  %895 = vmatpush1.xpose.msra.mxu0 0.0
  %896 = vmatprep.subr.mxu0 0.0
  %897 = vmatpush1.xpose.msra.mxu0 0.0
  %898 = vmatprep.mubr.f32.mxu0 0.0
  %899 = vmatmul.mubr.f32.gmra.mrb[0].mxu0 %v830
  %v900 = vpop.f32.mrb[0].mxu0
  %v901 = vadd.f32 0.0, %v900
  %v902 = vpop.f32.mrb[0].mxu0
  %903 = vdwg.mxu0
  %v904 = vmul.f32 %v901, 0.35355338
  %v905 = vsel %vm147, %v904, -inf
  %906 = vmax.xlane.f32.xlu0 %v905
  %v907 = vpop.xlane.xlu0 %906
  %v908 = vsub.f32 %v904, %v907
  %v909 = vmul.f32 %v908, 1.442695
  %v910 = vpow.pop %v909
  %v911 = vsel %vm147, %v910, 0.0
  %912 = vadd.xlane.f32.xlu0 %v911
  %v913 = vpop.xlane.xlu0 %912
  %v914 = vrcp.pop %v913
  %v915 = vmul.f32 %v910, %v914
  %916 = vrot.lane.b32.xlu0 %v141, 64
  %v917 = vpop.permute.xlu0 %916
  %v920 = vsel %vm147, %v915, 0
  %922 = vmatprep.subr.mxu0 0.0
  %923 = vmatpush1.msra.mxu0 %v917
  %924 = vmatprep.subr.mxu0 0.0
  %925 = vmatpush1.msra.mxu0 0.0
  %926 = vmatprep.subr.mxu0 0.0
  %927 = vmatpush1.msra.mxu0 0.0
  %928 = vmatprep.subr.mxu0 0.0
  %929 = vmatpush1.msra.mxu0 0.0
  %930 = vmatprep.subr.mxu0 0.0
  %931 = vmatpush1.msra.mxu0 0.0
  %932 = vmatprep.subr.mxu0 0.0
  %933 = vmatpush1.msra.mxu0 0.0
  %934 = vmatprep.subr.mxu0 0.0
  %935 = vmatpush1.msra.mxu0 0.0
  %936 = vmatprep.subr.mxu0 0.0
  %937 = vmatpush1.msra.mxu0 0.0
  %938 = vmatprep.subr.mxu0 0.0
  %939 = vmatpush1.msra.mxu0 0.0
  %940 = vmatprep.subr.mxu0 0.0
  %941 = vmatpush1.msra.mxu0 0.0
  %942 = vmatprep.subr.mxu0 0.0
  %943 = vmatpush1.msra.mxu0 0.0
  %944 = vmatprep.subr.mxu0 0.0
  %945 = vmatpush1.msra.mxu0 0.0
  %946 = vmatprep.subr.mxu0 0.0
  %947 = vmatpush1.msra.mxu0 0.0
  %948 = vmatprep.subr.mxu0 0.0
  %949 = vmatpush1.msra.mxu0 0.0
  %950 = vmatprep.subr.mxu0 0.0
  %951 = vmatpush1.msra.mxu0 0.0
  %952 = vmatprep.subr.mxu0 0.0
  %953 = vmatpush1.msra.mxu0 0.0
  %954 = vmatprep.subr.mxu0 0.0
  %955 = vmatpush1.msra.mxu0 0.0
  %956 = vmatprep.subr.mxu0 0.0
  %957 = vmatpush1.msra.mxu0 0.0
  %958 = vmatprep.subr.mxu0 0.0
  %959 = vmatpush1.msra.mxu0 0.0
  %960 = vmatprep.subr.mxu0 0.0
  %961 = vmatpush1.msra.mxu0 0.0
  %962 = vmatprep.subr.mxu0 0.0
  %963 = vmatpush1.msra.mxu0 0.0
  %964 = vmatprep.subr.mxu0 0.0
  %965 = vmatpush1.msra.mxu0 0.0
  %966 = vmatprep.subr.mxu0 0.0
  %967 = vmatpush1.msra.mxu0 0.0
  %968 = vmatprep.subr.mxu0 0.0
  %969 = vmatpush1.msra.mxu0 0.0
  %970 = vmatprep.subr.mxu0 0.0
  %971 = vmatpush1.msra.mxu0 0.0
  %972 = vmatprep.subr.mxu0 0.0
  %973 = vmatpush1.msra.mxu0 0.0
  %974 = vmatprep.subr.mxu0 0.0
  %975 = vmatpush1.msra.mxu0 0.0
  %976 = vmatprep.subr.mxu0 0.0
  %977 = vmatpush1.msra.mxu0 0.0
  %978 = vmatprep.subr.mxu0 0.0
  %979 = vmatpush1.msra.mxu0 0.0
  %980 = vmatprep.subr.mxu0 0.0
  %981 = vmatpush1.msra.mxu0 0.0
  %982 = vmatprep.subr.mxu0 0.0
  %983 = vmatpush1.msra.mxu0 0.0
  %984 = vmatprep.subr.mxu0 0.0
  %985 = vmatpush1.msra.mxu0 0.0
  %986 = vmatprep.mubr.f32.mxu0 0.0
  %987 = vmatmul.mubr.f32.gmra.mrb[0].mxu0 %v920
  %v988 = vpop.f32.mrb[0].mxu0
  %v989 = vadd.f32 0.0, %v988
  %v990 = vpop.f32.mrb[0].mxu0
  %991 = vdwg.mxu0
  %992 = vst.msk [vmem:[#allocation2 + $0x8] sm:$0xff] %vm147, %v989
  %993 = vrot.lane.b32.xlu0 %v141, 120
  %v994 = vpop.permute.xlu0 %993
  %995 = vrot.lane.b32.xlu0 %v141, 88
  %v996 = vpop.permute.xlu0 %995
  %v997 = vsel %vm147, %v994, 0
  %v999 = vsel %vm147, %v996, 0
  %1001 = vmatprep.subr.mxu0 0.0
  %1002 = vmatpush1.xpose.msra.mxu0 %v999
  %1003 = vmatprep.subr.mxu0 0.0
  %1004 = vmatpush1.xpose.msra.mxu0 0.0
  %1005 = vmatprep.subr.mxu0 0.0
  %1006 = vmatpush1.xpose.msra.mxu0 0.0
  %1007 = vmatprep.subr.mxu0 0.0
  %1008 = vmatpush1.xpose.msra.mxu0 0.0
  %1009 = vmatprep.subr.mxu0 0.0
  %1010 = vmatpush1.xpose.msra.mxu0 0.0
  %1011 = vmatprep.subr.mxu0 0.0
  %1012 = vmatpush1.xpose.msra.mxu0 0.0
  %1013 = vmatprep.subr.mxu0 0.0
  %1014 = vmatpush1.xpose.msra.mxu0 0.0
  %1015 = vmatprep.subr.mxu0 0.0
  %1016 = vmatpush1.xpose.msra.mxu0 0.0
  %1017 = vmatprep.subr.mxu0 0.0
  %1018 = vmatpush1.xpose.msra.mxu0 0.0
  %1019 = vmatprep.subr.mxu0 0.0
  %1020 = vmatpush1.xpose.msra.mxu0 0.0
  %1021 = vmatprep.subr.mxu0 0.0
  %1022 = vmatpush1.xpose.msra.mxu0 0.0
  %1023 = vmatprep.subr.mxu0 0.0
  %1024 = vmatpush1.xpose.msra.mxu0 0.0
  %1025 = vmatprep.subr.mxu0 0.0
  %1026 = vmatpush1.xpose.msra.mxu0 0.0
  %1027 = vmatprep.subr.mxu0 0.0
  %1028 = vmatpush1.xpose.msra.mxu0 0.0
  %1029 = vmatprep.subr.mxu0 0.0
  %1030 = vmatpush1.xpose.msra.mxu0 0.0
  %1031 = vmatprep.subr.mxu0 0.0
  %1032 = vmatpush1.xpose.msra.mxu0 0.0
  %1033 = vmatprep.subr.mxu0 0.0
  %1034 = vmatpush1.xpose.msra.mxu0 0.0
  %1035 = vmatprep.subr.mxu0 0.0
  %1036 = vmatpush1.xpose.msra.mxu0 0.0
  %1037 = vmatprep.subr.mxu0 0.0
  %1038 = vmatpush1.xpose.msra.mxu0 0.0
  %1039 = vmatprep.subr.mxu0 0.0
  %1040 = vmatpush1.xpose.msra.mxu0 0.0
  %1041 = vmatprep.subr.mxu0 0.0
  %1042 = vmatpush1.xpose.msra.mxu0 0.0
  %1043 = vmatprep.subr.mxu0 0.0
  %1044 = vmatpush1.xpose.msra.mxu0 0.0
  %1045 = vmatprep.subr.mxu0 0.0
  %1046 = vmatpush1.xpose.msra.mxu0 0.0
  %1047 = vmatprep.subr.mxu0 0.0
  %1048 = vmatpush1.xpose.msra.mxu0 0.0
  %1049 = vmatprep.subr.mxu0 0.0
  %1050 = vmatpush1.xpose.msra.mxu0 0.0
  %1051 = vmatprep.subr.mxu0 0.0
  %1052 = vmatpush1.xpose.msra.mxu0 0.0
  %1053 = vmatprep.subr.mxu0 0.0
  %1054 = vmatpush1.xpose.msra.mxu0 0.0
  %1055 = vmatprep.subr.mxu0 0.0
  %1056 = vmatpush1.xpose.msra.mxu0 0.0
  %1057 = vmatprep.subr.mxu0 0.0
  %1058 = vmatpush1.xpose.msra.mxu0 0.0
  %1059 = vmatprep.subr.mxu0 0.0
  %1060 = vmatpush1.xpose.msra.mxu0 0.0
  %1061 = vmatprep.subr.mxu0 0.0
  %1062 = vmatpush1.xpose.msra.mxu0 0.0
  %1063 = vmatprep.subr.mxu0 0.0
  %1064 = vmatpush1.xpose.msra.mxu0 0.0
  %1065 = vmatprep.mubr.f32.mxu0 0.0
  %1066 = vmatmul.mubr.f32.gmra.mrb[0].mxu0 %v997
  %v1067 = vpop.f32.mrb[0].mxu0
  %v1068 = vadd.f32 0.0, %v1067
  %v1069 = vpop.f32.mrb[0].mxu0
  %1070 = vdwg.mxu0
  %v1071 = vmul.f32 %v1068, 0.35355338
  %v1072 = vsel %vm147, %v1071, -inf
  %1073 = vmax.xlane.f32.xlu0 %v1072
  %v1074 = vpop.xlane.xlu0 %1073
  %v1075 = vsub.f32 %v1071, %v1074
  %v1076 = vmul.f32 %v1075, 1.442695
  %v1077 = vpow.pop %v1076
  %v1078 = vsel %vm147, %v1077, 0.0
  %1079 = vadd.xlane.f32.xlu0 %v1078
  %v1080 = vpop.xlane.xlu0 %1079
  %v1081 = vrcp.pop %v1080
  %v1082 = vmul.f32 %v1077, %v1081
  %1083 = vrot.lane.b32.xlu0 %v141, 56
  %v1084 = vpop.permute.xlu0 %1083
  %v1087 = vsel %vm147, %v1082, 0
  %1089 = vmatprep.subr.mxu0 0.0
  %1090 = vmatpush1.msra.mxu0 %v1084
  %1091 = vmatprep.subr.mxu0 0.0
  %1092 = vmatpush1.msra.mxu0 0.0
  %1093 = vmatprep.subr.mxu0 0.0
  %1094 = vmatpush1.msra.mxu0 0.0
  %1095 = vmatprep.subr.mxu0 0.0
  %1096 = vmatpush1.msra.mxu0 0.0
  %1097 = vmatprep.subr.mxu0 0.0
  %1098 = vmatpush1.msra.mxu0 0.0
  %1099 = vmatprep.subr.mxu0 0.0
  %1100 = vmatpush1.msra.mxu0 0.0
  %1101 = vmatprep.subr.mxu0 0.0
  %1102 = vmatpush1.msra.mxu0 0.0
  %1103 = vmatprep.subr.mxu0 0.0
  %1104 = vmatpush1.msra.mxu0 0.0
  %1105 = vmatprep.subr.mxu0 0.0
  %1106 = vmatpush1.msra.mxu0 0.0
  %1107 = vmatprep.subr.mxu0 0.0
  %1108 = vmatpush1.msra.mxu0 0.0
  %1109 = vmatprep.subr.mxu0 0.0
  %1110 = vmatpush1.msra.mxu0 0.0
  %1111 = vmatprep.subr.mxu0 0.0
  %1112 = vmatpush1.msra.mxu0 0.0
  %1113 = vmatprep.subr.mxu0 0.0
  %1114 = vmatpush1.msra.mxu0 0.0
  %1115 = vmatprep.subr.mxu0 0.0
  %1116 = vmatpush1.msra.mxu0 0.0
  %1117 = vmatprep.subr.mxu0 0.0
  %1118 = vmatpush1.msra.mxu0 0.0
  %1119 = vmatprep.subr.mxu0 0.0
  %1120 = vmatpush1.msra.mxu0 0.0
  %1121 = vmatprep.subr.mxu0 0.0
  %1122 = vmatpush1.msra.mxu0 0.0
  %1123 = vmatprep.subr.mxu0 0.0
  %1124 = vmatpush1.msra.mxu0 0.0
  %1125 = vmatprep.subr.mxu0 0.0
  %1126 = vmatpush1.msra.mxu0 0.0
  %1127 = vmatprep.subr.mxu0 0.0
  %1128 = vmatpush1.msra.mxu0 0.0
  %1129 = vmatprep.subr.mxu0 0.0
  %1130 = vmatpush1.msra.mxu0 0.0
  %1131 = vmatprep.subr.mxu0 0.0
  %1132 = vmatpush1.msra.mxu0 0.0
  %1133 = vmatprep.subr.mxu0 0.0
  %1134 = vmatpush1.msra.mxu0 0.0
  %1135 = vmatprep.subr.mxu0 0.0
  %1136 = vmatpush1.msra.mxu0 0.0
  %1137 = vmatprep.subr.mxu0 0.0
  %1138 = vmatpush1.msra.mxu0 0.0
  %1139 = vmatprep.subr.mxu0 0.0
  %1140 = vmatpush1.msra.mxu0 0.0
  %1141 = vmatprep.subr.mxu0 0.0
  %1142 = vmatpush1.msra.mxu0 0.0
  %1143 = vmatprep.subr.mxu0 0.0
  %1144 = vmatpush1.msra.mxu0 0.0
  %1145 = vmatprep.subr.mxu0 0.0
  %1146 = vmatpush1.msra.mxu0 0.0
  %1147 = vmatprep.subr.mxu0 0.0
  %1148 = vmatpush1.msra.mxu0 0.0
  %1149 = vmatprep.subr.mxu0 0.0
  %1150 = vmatpush1.msra.mxu0 0.0
  %1151 = vmatprep.subr.mxu0 0.0
  %1152 = vmatpush1.msra.mxu0 0.0
  %1153 = vmatprep.mubr.f32.mxu0 0.0
  %1154 = vmatmul.mubr.f32.gmra.mrb[0].mxu0 %v1087
  %v1155 = vpop.f32.mrb[0].mxu0
  %v1156 = vadd.f32 0.0, %v1155
  %v1157 = vpop.f32.mrb[0].mxu0
  %1158 = vdwg.mxu0
  %1160 = vrot.lane.b32.xlu0 %v1156, 8
  %v1161 = vpop.permute.xlu0 %1160
  %1163 = vst.msk [vmem:[#allocation2 + $0x8] sm:$0xff] %vm481, %v1161
  %1164 = vrot.lane.b32.xlu0 %v141, 112
  %v1165 = vpop.permute.xlu0 %1164
  %1166 = vrot.lane.b32.xlu0 %v141, 80
  %v1167 = vpop.permute.xlu0 %1166
  %v1168 = vsel %vm147, %v1165, 0
  %v1170 = vsel %vm147, %v1167, 0
  %1172 = vmatprep.subr.mxu0 0.0
  %1173 = vmatpush1.xpose.msra.mxu0 %v1170
  %1174 = vmatprep.subr.mxu0 0.0
  %1175 = vmatpush1.xpose.msra.mxu0 0.0
  %1176 = vmatprep.subr.mxu0 0.0
  %1177 = vmatpush1.xpose.msra.mxu0 0.0
  %1178 = vmatprep.subr.mxu0 0.0
  %1179 = vmatpush1.xpose.msra.mxu0 0.0
  %1180 = vmatprep.subr.mxu0 0.0
  %1181 = vmatpush1.xpose.msra.mxu0 0.0
  %1182 = vmatprep.subr.mxu0 0.0
  %1183 = vmatpush1.xpose.msra.mxu0 0.0
  %1184 = vmatprep.subr.mxu0 0.0
  %1185 = vmatpush1.xpose.msra.mxu0 0.0
  %1186 = vmatprep.subr.mxu0 0.0
  %1187 = vmatpush1.xpose.msra.mxu0 0.0
  %1188 = vmatprep.subr.mxu0 0.0
  %1189 = vmatpush1.xpose.msra.mxu0 0.0
  %1190 = vmatprep.subr.mxu0 0.0
  %1191 = vmatpush1.xpose.msra.mxu0 0.0
  %1192 = vmatprep.subr.mxu0 0.0
  %1193 = vmatpush1.xpose.msra.mxu0 0.0
  %1194 = vmatprep.subr.mxu0 0.0
  %1195 = vmatpush1.xpose.msra.mxu0 0.0
  %1196 = vmatprep.subr.mxu0 0.0
  %1197 = vmatpush1.xpose.msra.mxu0 0.0
  %1198 = vmatprep.subr.mxu0 0.0
  %1199 = vmatpush1.xpose.msra.mxu0 0.0
  %1200 = vmatprep.subr.mxu0 0.0
  %1201 = vmatpush1.xpose.msra.mxu0 0.0
  %1202 = vmatprep.subr.mxu0 0.0
  %1203 = vmatpush1.xpose.msra.mxu0 0.0
  %1204 = vmatprep.subr.mxu0 0.0
  %1205 = vmatpush1.xpose.msra.mxu0 0.0
  %1206 = vmatprep.subr.mxu0 0.0
  %1207 = vmatpush1.xpose.msra.mxu0 0.0
  %1208 = vmatprep.subr.mxu0 0.0
  %1209 = vmatpush1.xpose.msra.mxu0 0.0
  %1210 = vmatprep.subr.mxu0 0.0
  %1211 = vmatpush1.xpose.msra.mxu0 0.0
  %1212 = vmatprep.subr.mxu0 0.0
  %1213 = vmatpush1.xpose.msra.mxu0 0.0
  %1214 = vmatprep.subr.mxu0 0.0
  %1215 = vmatpush1.xpose.msra.mxu0 0.0
  %1216 = vmatprep.subr.mxu0 0.0
  %1217 = vmatpush1.xpose.msra.mxu0 0.0
  %1218 = vmatprep.subr.mxu0 0.0
  %1219 = vmatpush1.xpose.msra.mxu0 0.0
  %1220 = vmatprep.subr.mxu0 0.0
  %1221 = vmatpush1.xpose.msra.mxu0 0.0
  %1222 = vmatprep.subr.mxu0 0.0
  %1223 = vmatpush1.xpose.msra.mxu0 0.0
  %1224 = vmatprep.subr.mxu0 0.0
  %1225 = vmatpush1.xpose.msra.mxu0 0.0
  %1226 = vmatprep.subr.mxu0 0.0
  %1227 = vmatpush1.xpose.msra.mxu0 0.0
  %1228 = vmatprep.subr.mxu0 0.0
  %1229 = vmatpush1.xpose.msra.mxu0 0.0
  %1230 = vmatprep.subr.mxu0 0.0
  %1231 = vmatpush1.xpose.msra.mxu0 0.0
  %1232 = vmatprep.subr.mxu0 0.0
  %1233 = vmatpush1.xpose.msra.mxu0 0.0
  %1234 = vmatprep.subr.mxu0 0.0
  %1235 = vmatpush1.xpose.msra.mxu0 0.0
  %1236 = vmatprep.mubr.f32.mxu0 0.0
  %1237 = vmatmul.mubr.f32.gmra.mrb[0].mxu0 %v1168
  %v1238 = vpop.f32.mrb[0].mxu0
  %v1239 = vadd.f32 0.0, %v1238
  %v1240 = vpop.f32.mrb[0].mxu0
  %1241 = vdwg.mxu0
  %v1242 = vmul.f32 %v1239, 0.35355338
  %v1243 = vsel %vm147, %v1242, -inf
  %1244 = vmax.xlane.f32.xlu0 %v1243
  %v1245 = vpop.xlane.xlu0 %1244
  %v1246 = vsub.f32 %v1242, %v1245
  %v1247 = vmul.f32 %v1246, 1.442695
  %v1248 = vpow.pop %v1247
  %v1249 = vsel %vm147, %v1248, 0.0
  %1250 = vadd.xlane.f32.xlu0 %v1249
  %v1251 = vpop.xlane.xlu0 %1250
  %v1252 = vrcp.pop %v1251
  %v1253 = vmul.f32 %v1248, %v1252
  %1254 = vrot.lane.b32.xlu0 %v141, 48
  %v1255 = vpop.permute.xlu0 %1254
  %v1258 = vsel %vm147, %v1253, 0
  %1260 = vmatprep.subr.mxu0 0.0
  %1261 = vmatpush1.msra.mxu0 %v1255
  %1262 = vmatprep.subr.mxu0 0.0
  %1263 = vmatpush1.msra.mxu0 0.0
  %1264 = vmatprep.subr.mxu0 0.0
  %1265 = vmatpush1.msra.mxu0 0.0
  %1266 = vmatprep.subr.mxu0 0.0
  %1267 = vmatpush1.msra.mxu0 0.0
  %1268 = vmatprep.subr.mxu0 0.0
  %1269 = vmatpush1.msra.mxu0 0.0
  %1270 = vmatprep.subr.mxu0 0.0
  %1271 = vmatpush1.msra.mxu0 0.0
  %1272 = vmatprep.subr.mxu0 0.0
  %1273 = vmatpush1.msra.mxu0 0.0
  %1274 = vmatprep.subr.mxu0 0.0
  %1275 = vmatpush1.msra.mxu0 0.0
  %1276 = vmatprep.subr.mxu0 0.0
  %1277 = vmatpush1.msra.mxu0 0.0
  %1278 = vmatprep.subr.mxu0 0.0
  %1279 = vmatpush1.msra.mxu0 0.0
  %1280 = vmatprep.subr.mxu0 0.0
  %1281 = vmatpush1.msra.mxu0 0.0
  %1282 = vmatprep.subr.mxu0 0.0
  %1283 = vmatpush1.msra.mxu0 0.0
  %1284 = vmatprep.subr.mxu0 0.0
  %1285 = vmatpush1.msra.mxu0 0.0
  %1286 = vmatprep.subr.mxu0 0.0
  %1287 = vmatpush1.msra.mxu0 0.0
  %1288 = vmatprep.subr.mxu0 0.0
  %1289 = vmatpush1.msra.mxu0 0.0
  %1290 = vmatprep.subr.mxu0 0.0
  %1291 = vmatpush1.msra.mxu0 0.0
  %1292 = vmatprep.subr.mxu0 0.0
  %1293 = vmatpush1.msra.mxu0 0.0
  %1294 = vmatprep.subr.mxu0 0.0
  %1295 = vmatpush1.msra.mxu0 0.0
  %1296 = vmatprep.subr.mxu0 0.0
  %1297 = vmatpush1.msra.mxu0 0.0
  %1298 = vmatprep.subr.mxu0 0.0
  %1299 = vmatpush1.msra.mxu0 0.0
  %1300 = vmatprep.subr.mxu0 0.0
  %1301 = vmatpush1.msra.mxu0 0.0
  %1302 = vmatprep.subr.mxu0 0.0
  %1303 = vmatpush1.msra.mxu0 0.0
  %1304 = vmatprep.subr.mxu0 0.0
  %1305 = vmatpush1.msra.mxu0 0.0
  %1306 = vmatprep.subr.mxu0 0.0
  %1307 = vmatpush1.msra.mxu0 0.0
  %1308 = vmatprep.subr.mxu0 0.0
  %1309 = vmatpush1.msra.mxu0 0.0
  %1310 = vmatprep.subr.mxu0 0.0
  %1311 = vmatpush1.msra.mxu0 0.0
  %1312 = vmatprep.subr.mxu0 0.0
  %1313 = vmatpush1.msra.mxu0 0.0
  %1314 = vmatprep.subr.mxu0 0.0
  %1315 = vmatpush1.msra.mxu0 0.0
  %1316 = vmatprep.subr.mxu0 0.0
  %1317 = vmatpush1.msra.mxu0 0.0
  %1318 = vmatprep.subr.mxu0 0.0
  %1319 = vmatpush1.msra.mxu0 0.0
  %1320 = vmatprep.subr.mxu0 0.0
  %1321 = vmatpush1.msra.mxu0 0.0
  %1322 = vmatprep.subr.mxu0 0.0
  %1323 = vmatpush1.msra.mxu0 0.0
  %1324 = vmatprep.mubr.f32.mxu0 0.0
  %1325 = vmatmul.mubr.f32.gmra.mrb[0].mxu0 %v1258
  %v1326 = vpop.f32.mrb[0].mxu0
  %v1327 = vadd.f32 0.0, %v1326
  %v1328 = vpop.f32.mrb[0].mxu0
  %1329 = vdwg.mxu0
  %1331 = vrot.lane.b32.xlu0 %v1327, 16
  %v1332 = vpop.permute.xlu0 %1331
  %1334 = vst.msk [vmem:[#allocation2 + $0x8] sm:$0xff] %vm653, %v1332
  %1335 = vrot.lane.b32.xlu0 %v141, 104
  %v1336 = vpop.permute.xlu0 %1335
  %1337 = vrot.lane.b32.xlu0 %v141, 72
  %v1338 = vpop.permute.xlu0 %1337
  %v1339 = vsel %vm147, %v1336, 0
  %v1341 = vsel %vm147, %v1338, 0
  %1343 = vmatprep.subr.mxu0 0.0
  %1344 = vmatpush1.xpose.msra.mxu0 %v1341
  %1345 = vmatprep.subr.mxu0 0.0
  %1346 = vmatpush1.xpose.msra.mxu0 0.0
  %1347 = vmatprep.subr.mxu0 0.0
  %1348 = vmatpush1.xpose.msra.mxu0 0.0
  %1349 = vmatprep.subr.mxu0 0.0
  %1350 = vmatpush1.xpose.msra.mxu0 0.0
  %1351 = vmatprep.subr.mxu0 0.0
  %1352 = vmatpush1.xpose.msra.mxu0 0.0
  %1353 = vmatprep.subr.mxu0 0.0
  %1354 = vmatpush1.xpose.msra.mxu0 0.0
  %1355 = vmatprep.subr.mxu0 0.0
  %1356 = vmatpush1.xpose.msra.mxu0 0.0
  %1357 = vmatprep.subr.mxu0 0.0
  %1358 = vmatpush1.xpose.msra.mxu0 0.0
  %1359 = vmatprep.subr.mxu0 0.0
  %1360 = vmatpush1.xpose.msra.mxu0 0.0
  %1361 = vmatprep.subr.mxu0 0.0
  %1362 = vmatpush1.xpose.msra.mxu0 0.0
  %1363 = vmatprep.subr.mxu0 0.0
  %1364 = vmatpush1.xpose.msra.mxu0 0.0
  %1365 = vmatprep.subr.mxu0 0.0
  %1366 = vmatpush1.xpose.msra.mxu0 0.0
  %1367 = vmatprep.subr.mxu0 0.0
  %1368 = vmatpush1.xpose.msra.mxu0 0.0
  %1369 = vmatprep.subr.mxu0 0.0
  %1370 = vmatpush1.xpose.msra.mxu0 0.0
  %1371 = vmatprep.subr.mxu0 0.0
  %1372 = vmatpush1.xpose.msra.mxu0 0.0
  %1373 = vmatprep.subr.mxu0 0.0
  %1374 = vmatpush1.xpose.msra.mxu0 0.0
  %1375 = vmatprep.subr.mxu0 0.0
  %1376 = vmatpush1.xpose.msra.mxu0 0.0
  %1377 = vmatprep.subr.mxu0 0.0
  %1378 = vmatpush1.xpose.msra.mxu0 0.0
  %1379 = vmatprep.subr.mxu0 0.0
  %1380 = vmatpush1.xpose.msra.mxu0 0.0
  %1381 = vmatprep.subr.mxu0 0.0
  %1382 = vmatpush1.xpose.msra.mxu0 0.0
  %1383 = vmatprep.subr.mxu0 0.0
  %1384 = vmatpush1.xpose.msra.mxu0 0.0
  %1385 = vmatprep.subr.mxu0 0.0
  %1386 = vmatpush1.xpose.msra.mxu0 0.0
  %1387 = vmatprep.subr.mxu0 0.0
  %1388 = vmatpush1.xpose.msra.mxu0 0.0
  %1389 = vmatprep.subr.mxu0 0.0
  %1390 = vmatpush1.xpose.msra.mxu0 0.0
  %1391 = vmatprep.subr.mxu0 0.0
  %1392 = vmatpush1.xpose.msra.mxu0 0.0
  %1393 = vmatprep.subr.mxu0 0.0
  %1394 = vmatpush1.xpose.msra.mxu0 0.0
  %1395 = vmatprep.subr.mxu0 0.0
  %1396 = vmatpush1.xpose.msra.mxu0 0.0
  %1397 = vmatprep.subr.mxu0 0.0
  %1398 = vmatpush1.xpose.msra.mxu0 0.0
  %1399 = vmatprep.subr.mxu0 0.0
  %1400 = vmatpush1.xpose.msra.mxu0 0.0
  %1401 = vmatprep.subr.mxu0 0.0
  %1402 = vmatpush1.xpose.msra.mxu0 0.0
  %1403 = vmatprep.subr.mxu0 0.0
  %1404 = vmatpush1.xpose.msra.mxu0 0.0
  %1405 = vmatprep.subr.mxu0 0.0
  %1406 = vmatpush1.xpose.msra.mxu0 0.0
  %1407 = vmatprep.mubr.f32.mxu0 0.0
  %1408 = vmatmul.mubr.f32.gmra.mrb[0].mxu0 %v1339
  %v1409 = vpop.f32.mrb[0].mxu0
  %v1410 = vadd.f32 0.0, %v1409
  %v1411 = vpop.f32.mrb[0].mxu0
  %1412 = vdwg.mxu0
  %v1413 = vmul.f32 %v1410, 0.35355338
  %v1414 = vsel %vm147, %v1413, -inf
  %1415 = vmax.xlane.f32.xlu0 %v1414
  %v1416 = vpop.xlane.xlu0 %1415
  %v1417 = vsub.f32 %v1413, %v1416
  %v1418 = vmul.f32 %v1417, 1.442695
  %v1419 = vpow.pop %v1418
  %v1420 = vsel %vm147, %v1419, 0.0
  %1421 = vadd.xlane.f32.xlu0 %v1420
  %v1422 = vpop.xlane.xlu0 %1421
  %v1423 = vrcp.pop %v1422
  %v1424 = vmul.f32 %v1419, %v1423
  %1425 = vrot.lane.b32.xlu0 %v141, 40
  %v1426 = vpop.permute.xlu0 %1425
  %v1429 = vsel %vm147, %v1424, 0
  %1431 = vmatprep.subr.mxu0 0.0
  %1432 = vmatpush1.msra.mxu0 %v1426
  %1433 = vmatprep.subr.mxu0 0.0
  %1434 = vmatpush1.msra.mxu0 0.0
  %1435 = vmatprep.subr.mxu0 0.0
  %1436 = vmatpush1.msra.mxu0 0.0
  %1437 = vmatprep.subr.mxu0 0.0
  %1438 = vmatpush1.msra.mxu0 0.0
  %1439 = vmatprep.subr.mxu0 0.0
  %1440 = vmatpush1.msra.mxu0 0.0
  %1441 = vmatprep.subr.mxu0 0.0
  %1442 = vmatpush1.msra.mxu0 0.0
  %1443 = vmatprep.subr.mxu0 0.0
  %1444 = vmatpush1.msra.mxu0 0.0
  %1445 = vmatprep.subr.mxu0 0.0
  %1446 = vmatpush1.msra.mxu0 0.0
  %1447 = vmatprep.subr.mxu0 0.0
  %1448 = vmatpush1.msra.mxu0 0.0
  %1449 = vmatprep.subr.mxu0 0.0
  %1450 = vmatpush1.msra.mxu0 0.0
  %1451 = vmatprep.subr.mxu0 0.0
  %1452 = vmatpush1.msra.mxu0 0.0
  %1453 = vmatprep.subr.mxu0 0.0
  %1454 = vmatpush1.msra.mxu0 0.0
  %1455 = vmatprep.subr.mxu0 0.0
  %1456 = vmatpush1.msra.mxu0 0.0
  %1457 = vmatprep.subr.mxu0 0.0
  %1458 = vmatpush1.msra.mxu0 0.0
  %1459 = vmatprep.subr.mxu0 0.0
  %1460 = vmatpush1.msra.mxu0 0.0
  %1461 = vmatprep.subr.mxu0 0.0
  %1462 = vmatpush1.msra.mxu0 0.0
  %1463 = vmatprep.subr.mxu0 0.0
  %1464 = vmatpush1.msra.mxu0 0.0
  %1465 = vmatprep.subr.mxu0 0.0
  %1466 = vmatpush1.msra.mxu0 0.0
  %1467 = vmatprep.subr.mxu0 0.0
  %1468 = vmatpush1.msra.mxu0 0.0
  %1469 = vmatprep.subr.mxu0 0.0
  %1470 = vmatpush1.msra.mxu0 0.0
  %1471 = vmatprep.subr.mxu0 0.0
  %1472 = vmatpush1.msra.mxu0 0.0
  %1473 = vmatprep.subr.mxu0 0.0
  %1474 = vmatpush1.msra.mxu0 0.0
  %1475 = vmatprep.subr.mxu0 0.0
  %1476 = vmatpush1.msra.mxu0 0.0
  %1477 = vmatprep.subr.mxu0 0.0
  %1478 = vmatpush1.msra.mxu0 0.0
  %1479 = vmatprep.subr.mxu0 0.0
  %1480 = vmatpush1.msra.mxu0 0.0
  %1481 = vmatprep.subr.mxu0 0.0
  %1482 = vmatpush1.msra.mxu0 0.0
  %1483 = vmatprep.subr.mxu0 0.0
  %1484 = vmatpush1.msra.mxu0 0.0
  %1485 = vmatprep.subr.mxu0 0.0
  %1486 = vmatpush1.msra.mxu0 0.0
  %1487 = vmatprep.subr.mxu0 0.0
  %1488 = vmatpush1.msra.mxu0 0.0
  %1489 = vmatprep.subr.mxu0 0.0
  %1490 = vmatpush1.msra.mxu0 0.0
  %1491 = vmatprep.subr.mxu0 0.0
  %1492 = vmatpush1.msra.mxu0 0.0
  %1493 = vmatprep.subr.mxu0 0.0
  %1494 = vmatpush1.msra.mxu0 0.0
  %1495 = vmatprep.mubr.f32.mxu0 0.0
  %1496 = vmatmul.mubr.f32.gmra.mrb[0].mxu0 %v1429
  %v1497 = vpop.f32.mrb[0].mxu0
  %v1498 = vadd.f32 0.0, %v1497
  %v1499 = vpop.f32.mrb[0].mxu0
  %1500 = vdwg.mxu0
  %1502 = vrot.lane.b32.xlu0 %v1498, 24
  %v1503 = vpop.permute.xlu0 %1502
  %1505 = vst.msk [vmem:[#allocation2 + $0x8] sm:$0xff] %vm825, %v1503
  %v1506 = vld [vmem:[#allocation2] sm:$0xff]
  %v1507 = vld [vmem:[#allocation2 + $0x8] sm:$0xff]
  %v1509 = vlaneseq
  %v1510 = vshrl.u32 %v1509, 7
  %v1511 = vsub.s32 0, %v1510
  %v1512 = vrot.slane %v55, %v1511
  %v1515 = vsel %vm62, %v1506, 0
  %v1518 = vsel %vm62, %v1507, 0
  %1520 = vmatprep.subr.mxu0 0.0
  %1521 = vmatpush1.msra.mxu0 %v51
  %1522 = vmatprep.subr.mxu0 0.0
  %1523 = vmatpush1.msra.mxu0 %v52
  %1524 = vmatprep.subr.mxu0 0.0
  %1525 = vmatpush1.msra.mxu0 %v53
  %1526 = vmatprep.subr.mxu0 0.0
  %1527 = vmatpush1.msra.mxu0 %v54
  %1528 = vmatprep.subr.mxu0 0.0
  %1529 = vmatpush1.msra.mxu0 0.0
  %1530 = vmatprep.subr.mxu0 0.0
  %1531 = vmatpush1.msra.mxu0 0.0
  %1532 = vmatprep.subr.mxu0 0.0
  %1533 = vmatpush1.msra.mxu0 0.0
  %1534 = vmatprep.subr.mxu0 0.0
  %1535 = vmatpush1.msra.mxu0 0.0
  %1536 = vmatprep.subr.mxu0 0.0
  %1537 = vmatpush1.msra.mxu0 0.0
  %1538 = vmatprep.subr.mxu0 0.0
  %1539 = vmatpush1.msra.mxu0 0.0
  %1540 = vmatprep.subr.mxu0 0.0
  %1541 = vmatpush1.msra.mxu0 0.0
  %1542 = vmatprep.subr.mxu0 0.0
  %1543 = vmatpush1.msra.mxu0 0.0
  %1544 = vmatprep.subr.mxu0 0.0
  %1545 = vmatpush1.msra.mxu0 0.0
  %1546 = vmatprep.subr.mxu0 0.0
  %1547 = vmatpush1.msra.mxu0 0.0
  %1548 = vmatprep.subr.mxu0 0.0
  %1549 = vmatpush1.msra.mxu0 0.0
  %1550 = vmatprep.subr.mxu0 0.0
  %1551 = vmatpush1.msra.mxu0 0.0
  %1552 = vmatprep.subr.mxu0 0.0
  %1553 = vmatpush1.msra.mxu0 0.0
  %1554 = vmatprep.subr.mxu0 0.0
  %1555 = vmatpush1.msra.mxu0 0.0
  %1556 = vmatprep.subr.mxu0 0.0
  %1557 = vmatpush1.msra.mxu0 0.0
  %1558 = vmatprep.subr.mxu0 0.0
  %1559 = vmatpush1.msra.mxu0 0.0
  %1560 = vmatprep.subr.mxu0 0.0
  %1561 = vmatpush1.msra.mxu0 0.0
  %1562 = vmatprep.subr.mxu0 0.0
  %1563 = vmatpush1.msra.mxu0 0.0
  %1564 = vmatprep.subr.mxu0 0.0
  %1565 = vmatpush1.msra.mxu0 0.0
  %1566 = vmatprep.subr.mxu0 0.0
  %1567 = vmatpush1.msra.mxu0 0.0
  %1568 = vmatprep.subr.mxu0 0.0
  %1569 = vmatpush1.msra.mxu0 0.0
  %1570 = vmatprep.subr.mxu0 0.0
  %1571 = vmatpush1.msra.mxu0 0.0
  %1572 = vmatprep.subr.mxu0 0.0
  %1573 = vmatpush1.msra.mxu0 0.0
  %1574 = vmatprep.subr.mxu0 0.0
  %1575 = vmatpush1.msra.mxu0 0.0
  %1576 = vmatprep.subr.mxu0 0.0
  %1577 = vmatpush1.msra.mxu0 0.0
  %1578 = vmatprep.subr.mxu0 0.0
  %1579 = vmatpush1.msra.mxu0 0.0
  %1580 = vmatprep.subr.mxu0 0.0
  %1581 = vmatpush1.msra.mxu0 0.0
  %1582 = vmatprep.subr.mxu0 0.0
  %1583 = vmatpush1.msra.mxu0 0.0
  %1584 = vmatprep.mubr.f32.mxu0 0.0
  %1585 = vmatmul.mubr.f32.gmra.mrb[0].mxu0 %v1515
  %v1586 = vpop.f32.mrb[0].mxu0
  %v1587 = vadd.f32 %v1512, %v1586
  %v1588 = vpop.f32.mrb[0].mxu0
  %1589 = vmatprep.mubr.f32.mxu0 0.0
  %1590 = vmatmul.mubr.f32.gmra.mrb[0].mxu0 %v1518
  %v1591 = vpop.f32.mrb[0].mxu0
  %v1592 = vadd.f32 %v1512, %v1591
  %v1593 = vpop.f32.mrb[0].mxu0
  %1594 = vdwg.mxu0
  %v1595 = vld [vmem:[%s5] sm:$0x1]
  %v1596 = vld [vmem:[%s6] sm:$0x1]
  %v1597 = vadd.f32 %v44, %v1587
  %v1598 = vadd.f32 %v45, %v1592
  %v1599 = vsel %vm62, %v1597, 0.0
  %1600 = vadd.xlane.f32.xlu0 %v1599
  %v1601 = vpop.xlane.xlu0 %1600
  %v1602 = vsel %vm62, %v1598, 0.0
  %1603 = vadd.xlane.f32.xlu0 %v1602
  %v1604 = vpop.xlane.xlu0 %1603
  %v1605 = vrcp.pop 32.0
  %v1606 = vmul.f32 %v1601, %v1605
  %v1607 = vmul.f32 %v1604, %v1605
  %v1608 = vsub.f32 %v1597, %v1606
  %v1609 = vsub.f32 %v1598, %v1607
  %v1610 = vmul.f32 %v1608, %v1608
  %v1611 = vmul.f32 %v1609, %v1609
  %v1612 = vsel %vm62, %v1610, 0.0
  %1613 = vadd.xlane.f32.xlu0 %v1612
  %v1614 = vpop.xlane.xlu0 %1613
  %v1615 = vsel %vm62, %v1611, 0.0
  %1616 = vadd.xlane.f32.xlu0 %v1615
  %v1617 = vpop.xlane.xlu0 %1616
  %v1618 = vmul.f32 %v1614, %v1605
  %v1619 = vmul.f32 %v1617, %v1605
  %v1620 = vadd.f32 %v1618, 1e-05
  %v1621 = vadd.f32 %v1619, 1e-05
  %v1622 = vrsqrt.pop %v1620
  %v1623 = vrsqrt.pop %v1621
  %v1624 = vmul.f32 %v1608, %v1622
  %v1625 = vmul.f32 %v1609, %v1623
  %v1627 = vlaneseq
  %v1628 = vshrl.u32 %v1627, 7
  %v1629 = vsub.s32 0, %v1628
  %v1630 = vrot.slane %v1595, %v1629
  %v1632 = vmul.f32 %v1624, %v1630
  %v1633 = vmul.f32 %v1625, %v1630
  %v1635 = vlaneseq
  %v1636 = vshrl.u32 %v1635, 7
  %v1637 = vsub.s32 0, %v1636
  %v1638 = vrot.slane %v1596, %v1637
  %v1640 = vadd.f32 %v1632, %v1638
  %v1641 = vadd.f32 %v1633, %v1638
  %v1642 = vld [vmem:[%s7] sm:$0xff]
  %v1643 = vld [vmem:[%s7 + $0x8] sm:$0xff]
  %v1644 = vld [vmem:[%s7 + $0x10] sm:$0xff]
  %v1645 = vld [vmem:[%s7 + $0x18] sm:$0xff]
  %v1646 = vld [vmem:[%s7 + $0x20] sm:$0xff]
  %v1647 = vld [vmem:[%s7 + $0x28] sm:$0xff]
  %v1648 = vld [vmem:[%s7 + $0x30] sm:$0xff]
  %v1649 = vld [vmem:[%s7 + $0x38] sm:$0xff]
  %v1650 = vld [vmem:[%s7 + $0x40] sm:$0xff]
  %v1651 = vld [vmem:[%s7 + $0x48] sm:$0xff]
  %v1652 = vld [vmem:[%s7 + $0x50] sm:$0xff]
  %v1653 = vld [vmem:[%s7 + $0x58] sm:$0xff]
  %v1654 = vld [vmem:[%s7 + $0x60] sm:$0xff]
  %v1655 = vld [vmem:[%s7 + $0x68] sm:$0xff]
  %v1656 = vld [vmem:[%s7 + $0x70] sm:$0xff]
  %v1657 = vld [vmem:[%s7 + $0x78] sm:$0xff]
  %v1658 = vld [vmem:[%s7 + $0x80] sm:$0xff]
  %v1659 = vld [vmem:[%s7 + $0x88] sm:$0xff]
  %v1660 = vld [vmem:[%s7 + $0x90] sm:$0xff]
  %v1661 = vld [vmem:[%s7 + $0x98] sm:$0xff]
  %v1662 = vld [vmem:[%s7 + $0xa0] sm:$0xff]
  %v1663 = vld [vmem:[%s7 + $0xa8] sm:$0xff]
  %v1664 = vld [vmem:[%s7 + $0xb0] sm:$0xff]
  %v1665 = vld [vmem:[%s7 + $0xb8] sm:$0xff]
  %v1666 = vld [vmem:[%s7 + $0xc0] sm:$0xff]
  %v1667 = vld [vmem:[%s7 + $0xc8] sm:$0xff]
  %v1668 = vld [vmem:[%s7 + $0xd0] sm:$0xff]
  %v1669 = vld [vmem:[%s7 + $0xd8] sm:$0xff]
  %v1670 = vld [vmem:[%s7 + $0xe0] sm:$0xff]
  %v1671 = vld [vmem:[%s7 + $0xe8] sm:$0xff]
  %v1672 = vld [vmem:[%s7 + $0xf0] sm:$0xff]
  %v1673 = vld [vmem:[%s7 + $0xf8] sm:$0xff]
  %v1674 = vld [vmem:[%s7 + $0x100] sm:$0xff]
  %v1675 = vld [vmem:[%s7 + $0x108] sm:$0xff]
  %v1676 = vld [vmem:[%s7 + $0x110] sm:$0xff]
  %v1677 = vld [vmem:[%s7 + $0x118] sm:$0xff]
  %v1678 = vld [vmem:[%s7 + $0x120] sm:$0xff]
  %v1679 = vld [vmem:[%s7 + $0x128] sm:$0xff]
  %v1680 = vld [vmem:[%s7 + $0x130] sm:$0xff]
  %v1681 = vld [vmem:[%s7 + $0x138] sm:$0xff]
  %v1682 = vld [vmem:[%s7 + $0x140] sm:$0xff]
  %v1683 = vld [vmem:[%s7 + $0x148] sm:$0xff]
  %v1684 = vld [vmem:[%s7 + $0x150] sm:$0xff]
  %v1685 = vld [vmem:[%s7 + $0x158] sm:$0xff]
  %v1686 = vld [vmem:[%s7 + $0x160] sm:$0xff]
  %v1687 = vld [vmem:[%s7 + $0x168] sm:$0xff]
  %v1688 = vld [vmem:[%s7 + $0x170] sm:$0xff]
  %v1689 = vld [vmem:[%s7 + $0x178] sm:$0xff]
  %v1690 = vld [vmem:[%s7 + $0x180] sm:$0xff]
  %v1691 = vld [vmem:[%s7 + $0x188] sm:$0xff]
  %v1692 = vld [vmem:[%s7 + $0x190] sm:$0xff]
  %v1693 = vld [vmem:[%s7 + $0x198] sm:$0xff]
  %v1694 = vld [vmem:[%s7 + $0x1a0] sm:$0xff]
  %v1695 = vld [vmem:[%s7 + $0x1a8] sm:$0xff]
  %v1696 = vld [vmem:[%s7 + $0x1b0] sm:$0xff]
  %v1697 = vld [vmem:[%s7 + $0x1b8] sm:$0xff]
  %v1698 = vld [vmem:[%s7 + $0x1c0] sm:$0xff]
  %v1699 = vld [vmem:[%s7 + $0x1c8] sm:$0xff]
  %v1700 = vld [vmem:[%s7 + $0x1d0] sm:$0xff]
  %v1701 = vld [vmem:[%s7 + $0x1d8] sm:$0xff]
  %v1702 = vld [vmem:[%s7 + $0x1e0] sm:$0xff]
  %v1703 = vld [vmem:[%s7 + $0x1e8] sm:$0xff]
  %v1704 = vld [vmem:[%s7 + $0x1f0] sm:$0xff]
  %v1705 = vld [vmem:[%s7 + $0x1f8] sm:$0xff]
  %v1706 = vld [vmem:[%s8] sm:$0xff]
  %v1707 = vld [vmem:[%s8 + $0x8] sm:$0xff]
  %v1708 = vld [vmem:[%s9] sm:$0xff]
  %v1709 = vld [vmem:[%s9 + $0x8] sm:$0xff]
  %v1710 = vld [vmem:[%s9 + $0x10] sm:$0xff]
  %v1711 = vld [vmem:[%s9 + $0x18] sm:$0xff]
  %v1712 = vld [vmem:[%s9 + $0x20] sm:$0xff]
  %v1713 = vld [vmem:[%s9 + $0x28] sm:$0xff]
  %v1714 = vld [vmem:[%s9 + $0x30] sm:$0xff]
  %v1715 = vld [vmem:[%s9 + $0x38] sm:$0xff]
  %v1716 = vld [vmem:[%s9 + $0x40] sm:$0xff]
  %v1717 = vld [vmem:[%s9 + $0x48] sm:$0xff]
  %v1718 = vld [vmem:[%s9 + $0x50] sm:$0xff]
  %v1719 = vld [vmem:[%s9 + $0x58] sm:$0xff]
  %v1720 = vld [vmem:[%s9 + $0x60] sm:$0xff]
  %v1721 = vld [vmem:[%s9 + $0x68] sm:$0xff]
  %v1722 = vld [vmem:[%s9 + $0x70] sm:$0xff]
  %v1723 = vld [vmem:[%s9 + $0x78] sm:$0xff]
  %v1724 = vld [vmem:[%s9 + $0x80] sm:$0xff]
  %v1725 = vld [vmem:[%s9 + $0x88] sm:$0xff]
  %v1726 = vld [vmem:[%s9 + $0x90] sm:$0xff]
  %v1727 = vld [vmem:[%s9 + $0x98] sm:$0xff]
  %v1728 = vld [vmem:[%s9 + $0xa0] sm:$0xff]
  %v1729 = vld [vmem:[%s9 + $0xa8] sm:$0xff]
  %v1730 = vld [vmem:[%s9 + $0xb0] sm:$0xff]
  %v1731 = vld [vmem:[%s9 + $0xb8] sm:$0xff]
  %v1732 = vld [vmem:[%s9 + $0xc0] sm:$0xff]
  %v1733 = vld [vmem:[%s9 + $0xc8] sm:$0xff]
  %v1734 = vld [vmem:[%s9 + $0xd0] sm:$0xff]
  %v1735 = vld [vmem:[%s9 + $0xd8] sm:$0xff]
  %v1736 = vld [vmem:[%s9 + $0xe0] sm:$0xff]
  %v1737 = vld [vmem:[%s9 + $0xe8] sm:$0xff]
  %v1738 = vld [vmem:[%s9 + $0xf0] sm:$0xff]
  %v1739 = vld [vmem:[%s9 + $0xf8] sm:$0xff]
  %v1740 = vld [vmem:[%s9 + $0x100] sm:$0xff]
  %v1741 = vld [vmem:[%s9 + $0x108] sm:$0xff]
  %v1742 = vld [vmem:[%s9 + $0x110] sm:$0xff]
  %v1743 = vld [vmem:[%s9 + $0x118] sm:$0xff]
  %v1744 = vld [vmem:[%s9 + $0x120] sm:$0xff]
  %v1745 = vld [vmem:[%s9 + $0x128] sm:$0xff]
  %v1746 = vld [vmem:[%s9 + $0x130] sm:$0xff]
  %v1747 = vld [vmem:[%s9 + $0x138] sm:$0xff]
  %v1748 = vld [vmem:[%s9 + $0x140] sm:$0xff]
  %v1749 = vld [vmem:[%s9 + $0x148] sm:$0xff]
  %v1750 = vld [vmem:[%s9 + $0x150] sm:$0xff]
  %v1751 = vld [vmem:[%s9 + $0x158] sm:$0xff]
  %v1752 = vld [vmem:[%s9 + $0x160] sm:$0xff]
  %v1753 = vld [vmem:[%s9 + $0x168] sm:$0xff]
  %v1754 = vld [vmem:[%s9 + $0x170] sm:$0xff]
  %v1755 = vld [vmem:[%s9 + $0x178] sm:$0xff]
  %v1756 = vld [vmem:[%s9 + $0x180] sm:$0xff]
  %v1757 = vld [vmem:[%s9 + $0x188] sm:$0xff]
  %v1758 = vld [vmem:[%s9 + $0x190] sm:$0xff]
  %v1759 = vld [vmem:[%s9 + $0x198] sm:$0xff]
  %v1760 = vld [vmem:[%s9 + $0x1a0] sm:$0xff]
  %v1761 = vld [vmem:[%s9 + $0x1a8] sm:$0xff]
  %v1762 = vld [vmem:[%s9 + $0x1b0] sm:$0xff]
  %v1763 = vld [vmem:[%s9 + $0x1b8] sm:$0xff]
  %v1764 = vld [vmem:[%s9 + $0x1c0] sm:$0xff]
  %v1765 = vld [vmem:[%s9 + $0x1c8] sm:$0xff]
  %v1766 = vld [vmem:[%s9 + $0x1d0] sm:$0xff]
  %v1767 = vld [vmem:[%s9 + $0x1d8] sm:$0xff]
  %v1768 = vld [vmem:[%s9 + $0x1e0] sm:$0xff]
  %v1769 = vld [vmem:[%s9 + $0x1e8] sm:$0xff]
  %v1770 = vld [vmem:[%s9 + $0x1f0] sm:$0xff]
  %v1771 = vld [vmem:[%s9 + $0x1f8] sm:$0xff]
  %v1772 = vld [vmem:[%s9 + $0x200] sm:$0xff]
  %v1773 = vld [vmem:[%s9 + $0x208] sm:$0xff]
  %v1774 = vld [vmem:[%s9 + $0x210] sm:$0xff]
  %v1775 = vld [vmem:[%s9 + $0x218] sm:$0xff]
  %v1776 = vld [vmem:[%s9 + $0x220] sm:$0xff]
  %v1777 = vld [vmem:[%s9 + $0x228] sm:$0xff]
  %v1778 = vld [vmem:[%s9 + $0x230] sm:$0xff]
  %v1779 = vld [vmem:[%s9 + $0x238] sm:$0xff]
  %v1780 = vld [vmem:[%s9 + $0x240] sm:$0xff]
  %v1781 = vld [vmem:[%s9 + $0x248] sm:$0xff]
  %v1782 = vld [vmem:[%s9 + $0x250] sm:$0xff]
  %v1783 = vld [vmem:[%s9 + $0x258] sm:$0xff]
  %v1784 = vld [vmem:[%s9 + $0x260] sm:$0xff]
  %v1785 = vld [vmem:[%s9 + $0x268] sm:$0xff]
  %v1786 = vld [vmem:[%s9 + $0x270] sm:$0xff]
  %v1787 = vld [vmem:[%s9 + $0x278] sm:$0xff]
  %v1788 = vld [vmem:[%s9 + $0x280] sm:$0xff]
  %v1789 = vld [vmem:[%s9 + $0x288] sm:$0xff]
  %v1790 = vld [vmem:[%s9 + $0x290] sm:$0xff]
  %v1791 = vld [vmem:[%s9 + $0x298] sm:$0xff]
  %v1792 = vld [vmem:[%s9 + $0x2a0] sm:$0xff]
  %v1793 = vld [vmem:[%s9 + $0x2a8] sm:$0xff]
  %v1794 = vld [vmem:[%s9 + $0x2b0] sm:$0xff]
  %v1795 = vld [vmem:[%s9 + $0x2b8] sm:$0xff]
  %v1796 = vld [vmem:[%s9 + $0x2c0] sm:$0xff]
  %v1797 = vld [vmem:[%s9 + $0x2c8] sm:$0xff]
  %v1798 = vld [vmem:[%s9 + $0x2d0] sm:$0xff]
  %v1799 = vld [vmem:[%s9 + $0x2d8] sm:$0xff]
  %v1800 = vld [vmem:[%s9 + $0x2e0] sm:$0xff]
  %v1801 = vld [vmem:[%s9 + $0x2e8] sm:$0xff]
  %v1802 = vld [vmem:[%s9 + $0x2f0] sm:$0xff]
  %v1803 = vld [vmem:[%s9 + $0x2f8] sm:$0xff]
  %v1804 = vld [vmem:[%s9 + $0x300] sm:$0xff]
  %v1805 = vld [vmem:[%s9 + $0x308] sm:$0xff]
  %v1806 = vld [vmem:[%s9 + $0x310] sm:$0xff]
  %v1807 = vld [vmem:[%s9 + $0x318] sm:$0xff]
  %v1808 = vld [vmem:[%s9 + $0x320] sm:$0xff]
  %v1809 = vld [vmem:[%s9 + $0x328] sm:$0xff]
  %v1810 = vld [vmem:[%s9 + $0x330] sm:$0xff]
  %v1811 = vld [vmem:[%s9 + $0x338] sm:$0xff]
  %v1812 = vld [vmem:[%s9 + $0x340] sm:$0xff]
  %v1813 = vld [vmem:[%s9 + $0x348] sm:$0xff]
  %v1814 = vld [vmem:[%s9 + $0x350] sm:$0xff]
  %v1815 = vld [vmem:[%s9 + $0x358] sm:$0xff]
  %v1816 = vld [vmem:[%s9 + $0x360] sm:$0xff]
  %v1817 = vld [vmem:[%s9 + $0x368] sm:$0xff]
  %v1818 = vld [vmem:[%s9 + $0x370] sm:$0xff]
  %v1819 = vld [vmem:[%s9 + $0x378] sm:$0xff]
  %v1820 = vld [vmem:[%s9 + $0x380] sm:$0xff]
  %v1821 = vld [vmem:[%s9 + $0x388] sm:$0xff]
  %v1822 = vld [vmem:[%s9 + $0x390] sm:$0xff]
  %v1823 = vld [vmem:[%s9 + $0x398] sm:$0xff]
  %v1824 = vld [vmem:[%s9 + $0x3a0] sm:$0xff]
  %v1825 = vld [vmem:[%s9 + $0x3a8] sm:$0xff]
  %v1826 = vld [vmem:[%s9 + $0x3b0] sm:$0xff]
  %v1827 = vld [vmem:[%s9 + $0x3b8] sm:$0xff]
  %v1828 = vld [vmem:[%s9 + $0x3c0] sm:$0xff]
  %v1829 = vld [vmem:[%s9 + $0x3c8] sm:$0xff]
  %v1830 = vld [vmem:[%s9 + $0x3d0] sm:$0xff]
  %v1831 = vld [vmem:[%s9 + $0x3d8] sm:$0xff]
  %v1832 = vld [vmem:[%s9 + $0x3e0] sm:$0xff]
  %v1833 = vld [vmem:[%s9 + $0x3e8] sm:$0xff]
  %v1834 = vld [vmem:[%s9 + $0x3f0] sm:$0xff]
  %v1835 = vld [vmem:[%s9 + $0x3f8] sm:$0xff]
  %v1836 = vld [vmem:[%s9 + $0x400] sm:$0xff]
  %v1837 = vld [vmem:[%s9 + $0x408] sm:$0xff]
  %v1838 = vld [vmem:[%s9 + $0x410] sm:$0xff]
  %v1839 = vld [vmem:[%s9 + $0x418] sm:$0xff]
  %v1840 = vld [vmem:[%s9 + $0x420] sm:$0xff]
  %v1841 = vld [vmem:[%s9 + $0x428] sm:$0xff]
  %v1842 = vld [vmem:[%s9 + $0x430] sm:$0xff]
  %v1843 = vld [vmem:[%s9 + $0x438] sm:$0xff]
  %v1844 = vld [vmem:[%s9 + $0x440] sm:$0xff]
  %v1845 = vld [vmem:[%s9 + $0x448] sm:$0xff]
  %v1846 = vld [vmem:[%s9 + $0x450] sm:$0xff]
  %v1847 = vld [vmem:[%s9 + $0x458] sm:$0xff]
  %v1848 = vld [vmem:[%s9 + $0x460] sm:$0xff]
  %v1849 = vld [vmem:[%s9 + $0x468] sm:$0xff]
  %v1850 = vld [vmem:[%s9 + $0x470] sm:$0xff]
  %v1851 = vld [vmem:[%s9 + $0x478] sm:$0xff]
  %v1852 = vld [vmem:[%s9 + $0x480] sm:$0xff]
  %v1853 = vld [vmem:[%s9 + $0x488] sm:$0xff]
  %v1854 = vld [vmem:[%s9 + $0x490] sm:$0xff]
  %v1855 = vld [vmem:[%s9 + $0x498] sm:$0xff]
  %v1856 = vld [vmem:[%s9 + $0x4a0] sm:$0xff]
  %v1857 = vld [vmem:[%s9 + $0x4a8] sm:$0xff]
  %v1858 = vld [vmem:[%s9 + $0x4b0] sm:$0xff]
  %v1859 = vld [vmem:[%s9 + $0x4b8] sm:$0xff]
  %v1860 = vld [vmem:[%s9 + $0x4c0] sm:$0xff]
  %v1861 = vld [vmem:[%s9 + $0x4c8] sm:$0xff]
  %v1862 = vld [vmem:[%s9 + $0x4d0] sm:$0xff]
  %v1863 = vld [vmem:[%s9 + $0x4d8] sm:$0xff]
  %v1864 = vld [vmem:[%s9 + $0x4e0] sm:$0xff]
  %v1865 = vld [vmem:[%s9 + $0x4e8] sm:$0xff]
  %v1866 = vld [vmem:[%s9 + $0x4f0] sm:$0xff]
  %v1867 = vld [vmem:[%s9 + $0x4f8] sm:$0xff]
  %v1868 = vld [vmem:[%s9 + $0x500] sm:$0xff]
  %v1869 = vld [vmem:[%s9 + $0x508] sm:$0xff]
  %v1870 = vld [vmem:[%s9 + $0x510] sm:$0xff]
  %v1871 = vld [vmem:[%s9 + $0x518] sm:$0xff]
  %v1872 = vld [vmem:[%s9 + $0x520] sm:$0xff]
  %v1873 = vld [vmem:[%s9 + $0x528] sm:$0xff]
  %v1874 = vld [vmem:[%s9 + $0x530] sm:$0xff]
  %v1875 = vld [vmem:[%s9 + $0x538] sm:$0xff]
  %v1876 = vld [vmem:[%s9 + $0x540] sm:$0xff]
  %v1877 = vld [vmem:[%s9 + $0x548] sm:$0xff]
  %v1878 = vld [vmem:[%s9 + $0x550] sm:$0xff]
  %v1879 = vld [vmem:[%s9 + $0x558] sm:$0xff]
  %v1880 = vld [vmem:[%s9 + $0x560] sm:$0xff]
  %v1881 = vld [vmem:[%s9 + $0x568] sm:$0xff]
  %v1882 = vld [vmem:[%s9 + $0x570] sm:$0xff]
  %v1883 = vld [vmem:[%s9 + $0x578] sm:$0xff]
  %v1884 = vld [vmem:[%s9 + $0x580] sm:$0xff]
  %v1885 = vld [vmem:[%s9 + $0x588] sm:$0xff]
  %v1886 = vld [vmem:[%s9 + $0x590] sm:$0xff]
  %v1887 = vld [vmem:[%s9 + $0x598] sm:$0xff]
  %v1888 = vld [vmem:[%s9 + $0x5a0] sm:$0xff]
  %v1889 = vld [vmem:[%s9 + $0x5a8] sm:$0xff]
  %v1890 = vld [vmem:[%s9 + $0x5b0] sm:$0xff]
  %v1891 = vld [vmem:[%s9 + $0x5b8] sm:$0xff]
  %v1892 = vld [vmem:[%s9 + $0x5c0] sm:$0xff]
  %v1893 = vld [vmem:[%s9 + $0x5c8] sm:$0xff]
  %v1894 = vld [vmem:[%s9 + $0x5d0] sm:$0xff]
  %v1895 = vld [vmem:[%s9 + $0x5d8] sm:$0xff]
  %v1896 = vld [vmem:[%s9 + $0x5e0] sm:$0xff]
  %v1897 = vld [vmem:[%s9 + $0x5e8] sm:$0xff]
  %v1898 = vld [vmem:[%s9 + $0x5f0] sm:$0xff]
  %v1899 = vld [vmem:[%s9 + $0x5f8] sm:$0xff]
  %v1900 = vld [vmem:[%s9 + $0x600] sm:$0xff]
  %v1901 = vld [vmem:[%s9 + $0x608] sm:$0xff]
  %v1902 = vld [vmem:[%s9 + $0x610] sm:$0xff]
  %v1903 = vld [vmem:[%s9 + $0x618] sm:$0xff]
  %v1904 = vld [vmem:[%s9 + $0x620] sm:$0xff]
  %v1905 = vld [vmem:[%s9 + $0x628] sm:$0xff]
  %v1906 = vld [vmem:[%s9 + $0x630] sm:$0xff]
  %v1907 = vld [vmem:[%s9 + $0x638] sm:$0xff]
  %v1908 = vld [vmem:[%s9 + $0x640] sm:$0xff]
  %v1909 = vld [vmem:[%s9 + $0x648] sm:$0xff]
  %v1910 = vld [vmem:[%s9 + $0x650] sm:$0xff]
  %v1911 = vld [vmem:[%s9 + $0x658] sm:$0xff]
  %v1912 = vld [vmem:[%s9 + $0x660] sm:$0xff]
  %v1913 = vld [vmem:[%s9 + $0x668] sm:$0xff]
  %v1914 = vld [vmem:[%s9 + $0x670] sm:$0xff]
  %v1915 = vld [vmem:[%s9 + $0x678] sm:$0xff]
  %v1916 = vld [vmem:[%s9 + $0x680] sm:$0xff]
  %v1917 = vld [vmem:[%s9 + $0x688] sm:$0xff]
  %v1918 = vld [vmem:[%s9 + $0x690] sm:$0xff]
  %v1919 = vld [vmem:[%s9 + $0x698] sm:$0xff]
  %v1920 = vld [vmem:[%s9 + $0x6a0] sm:$0xff]
  %v1921 = vld [vmem:[%s9 + $0x6a8] sm:$0xff]
  %v1922 = vld [vmem:[%s9 + $0x6b0] sm:$0xff]
  %v1923 = vld [vmem:[%s9 + $0x6b8] sm:$0xff]
  %v1924 = vld [vmem:[%s9 + $0x6c0] sm:$0xff]
  %v1925 = vld [vmem:[%s9 + $0x6c8] sm:$0xff]
  %v1926 = vld [vmem:[%s9 + $0x6d0] sm:$0xff]
  %v1927 = vld [vmem:[%s9 + $0x6d8] sm:$0xff]
  %v1928 = vld [vmem:[%s9 + $0x6e0] sm:$0xff]
  %v1929 = vld [vmem:[%s9 + $0x6e8] sm:$0xff]
  %v1930 = vld [vmem:[%s9 + $0x6f0] sm:$0xff]
  %v1931 = vld [vmem:[%s9 + $0x6f8] sm:$0xff]
  %v1932 = vld [vmem:[%s9 + $0x700] sm:$0xff]
  %v1933 = vld [vmem:[%s9 + $0x708] sm:$0xff]
  %v1934 = vld [vmem:[%s9 + $0x710] sm:$0xff]
  %v1935 = vld [vmem:[%s9 + $0x718] sm:$0xff]
  %v1936 = vld [vmem:[%s9 + $0x720] sm:$0xff]
  %v1937 = vld [vmem:[%s9 + $0x728] sm:$0xff]
  %v1938 = vld [vmem:[%s9 + $0x730] sm:$0xff]
  %v1939 = vld [vmem:[%s9 + $0x738] sm:$0xff]
  %v1940 = vld [vmem:[%s9 + $0x740] sm:$0xff]
  %v1941 = vld [vmem:[%s9 + $0x748] sm:$0xff]
  %v1942 = vld [vmem:[%s9 + $0x750] sm:$0xff]
  %v1943 = vld [vmem:[%s9 + $0x758] sm:$0xff]
  %v1944 = vld [vmem:[%s9 + $0x760] sm:$0xff]
  %v1945 = vld [vmem:[%s9 + $0x768] sm:$0xff]
  %v1946 = vld [vmem:[%s9 + $0x770] sm:$0xff]
  %v1947 = vld [vmem:[%s9 + $0x778] sm:$0xff]
  %v1948 = vld [vmem:[%s9 + $0x780] sm:$0xff]
  %v1949 = vld [vmem:[%s9 + $0x788] sm:$0xff]
  %v1950 = vld [vmem:[%s9 + $0x790] sm:$0xff]
  %v1951 = vld [vmem:[%s9 + $0x798] sm:$0xff]
  %v1952 = vld [vmem:[%s9 + $0x7a0] sm:$0xff]
  %v1953 = vld [vmem:[%s9 + $0x7a8] sm:$0xff]
  %v1954 = vld [vmem:[%s9 + $0x7b0] sm:$0xff]
  %v1955 = vld [vmem:[%s9 + $0x7b8] sm:$0xff]
  %v1956 = vld [vmem:[%s9 + $0x7c0] sm:$0xff]
  %v1957 = vld [vmem:[%s9 + $0x7c8] sm:$0xff]
  %v1958 = vld [vmem:[%s9 + $0x7d0] sm:$0xff]
  %v1959 = vld [vmem:[%s9 + $0x7d8] sm:$0xff]
  %v1960 = vld [vmem:[%s9 + $0x7e0] sm:$0xff]
  %v1961 = vld [vmem:[%s9 + $0x7e8] sm:$0xff]
  %v1962 = vld [vmem:[%s9 + $0x7f0] sm:$0xff]
  %v1963 = vld [vmem:[%s9 + $0x7f8] sm:$0xff]
  %v1964 = vld [vmem:[%s10] sm:$0x1]
  %v1967 = vlaneseq
  %v1968 = vshrl.u32 %v1967, 7
  %v1969 = vsub.s32 0, %v1968
  %v1970 = vrot.slane %v1706, %v1969
  %v1971 = vlaneseq
  %v1972 = vshrl.u32 %v1971, 7
  %v1973 = vsub.s32 1, %v1972
  %v1974 = vrot.slane %v1706, %v1973
  %v1975 = vlaneseq
  %v1976 = vshrl.u32 %v1975, 7
  %v1977 = vsub.s32 2, %v1976
  %v1978 = vrot.slane %v1706, %v1977
  %v1979 = vlaneseq
  %v1980 = vshrl.u32 %v1979, 7
  %v1981 = vsub.s32 3, %v1980
  %v1982 = vrot.slane %v1706, %v1981
  %v1983 = vlaneseq
  %v1984 = vshrl.u32 %v1983, 7
  %v1985 = vsub.s32 4, %v1984
  %v1986 = vrot.slane %v1706, %v1985
  %v1987 = vlaneseq
  %v1988 = vshrl.u32 %v1987, 7
  %v1989 = vsub.s32 5, %v1988
  %v1990 = vrot.slane %v1706, %v1989
  %v1991 = vlaneseq
  %v1992 = vshrl.u32 %v1991, 7
  %v1993 = vsub.s32 6, %v1992
  %v1994 = vrot.slane %v1706, %v1993
  %v1995 = vlaneseq
  %v1996 = vshrl.u32 %v1995, 7
  %v1997 = vsub.s32 7, %v1996
  %v1998 = vrot.slane %v1706, %v1997
  %v1999 = vlaneseq
  %v2000 = vshrl.u32 %v1999, 7
  %v2001 = vsub.s32 0, %v2000
  %v2002 = vrot.slane %v1707, %v2001
  %v2003 = vlaneseq
  %v2004 = vshrl.u32 %v2003, 7
  %v2005 = vsub.s32 1, %v2004
  %v2006 = vrot.slane %v1707, %v2005
  %v2007 = vlaneseq
  %v2008 = vshrl.u32 %v2007, 7
  %v2009 = vsub.s32 2, %v2008
  %v2010 = vrot.slane %v1707, %v2009
  %v2011 = vlaneseq
  %v2012 = vshrl.u32 %v2011, 7
  %v2013 = vsub.s32 3, %v2012
  %v2014 = vrot.slane %v1707, %v2013
  %v2015 = vlaneseq
  %v2016 = vshrl.u32 %v2015, 7
  %v2017 = vsub.s32 4, %v2016
  %v2018 = vrot.slane %v1707, %v2017
  %v2019 = vlaneseq
  %v2020 = vshrl.u32 %v2019, 7
  %v2021 = vsub.s32 5, %v2020
  %v2022 = vrot.slane %v1707, %v2021
  %v2023 = vlaneseq
  %v2024 = vshrl.u32 %v2023, 7
  %v2025 = vsub.s32 6, %v2024
  %v2026 = vrot.slane %v1707, %v2025
  %v2027 = vlaneseq
  %v2028 = vshrl.u32 %v2027, 7
  %v2029 = vsub.s32 7, %v2028
  %v2030 = vrot.slane %v1707, %v2029
  %v2048 = vsel %vm62, %v1640, 0
  %v2051 = vsel %vm62, %v1641, 0
  %2053 = vmatprep.subr.mxu0 %v1643
  %2054 = vmatpush1.msra.mxu0 %v1642
  %2055 = vmatprep.subr.mxu0 %v1659
  %2056 = vmatpush1.msra.mxu0 %v1658
  %2057 = vmatprep.subr.mxu0 %v1675
  %2058 = vmatpush1.msra.mxu0 %v1674
  %2059 = vmatprep.subr.mxu0 %v1691
  %2060 = vmatpush1.msra.mxu0 %v1690
  %2061 = vmatprep.subr.mxu0 0.0
  %2062 = vmatpush1.msra.mxu0 0.0
  %2063 = vmatprep.subr.mxu0 0.0
  %2064 = vmatpush1.msra.mxu0 0.0
  %2065 = vmatprep.subr.mxu0 0.0
  %2066 = vmatpush1.msra.mxu0 0.0
  %2067 = vmatprep.subr.mxu0 0.0
  %2068 = vmatpush1.msra.mxu0 0.0
  %2069 = vmatprep.subr.mxu0 0.0
  %2070 = vmatpush1.msra.mxu0 0.0
  %2071 = vmatprep.subr.mxu0 0.0
  %2072 = vmatpush1.msra.mxu0 0.0
  %2073 = vmatprep.subr.mxu0 0.0
  %2074 = vmatpush1.msra.mxu0 0.0
  %2075 = vmatprep.subr.mxu0 0.0
  %2076 = vmatpush1.msra.mxu0 0.0
  %2077 = vmatprep.subr.mxu0 0.0
  %2078 = vmatpush1.msra.mxu0 0.0
  %2079 = vmatprep.subr.mxu0 0.0
  %2080 = vmatpush1.msra.mxu0 0.0
  %2081 = vmatprep.subr.mxu0 0.0
  %2082 = vmatpush1.msra.mxu0 0.0
  %2083 = vmatprep.subr.mxu0 0.0
  %2084 = vmatpush1.msra.mxu0 0.0
  %2085 = vmatprep.subr.mxu0 0.0
  %2086 = vmatpush1.msra.mxu0 0.0
  %2087 = vmatprep.subr.mxu0 0.0
  %2088 = vmatpush1.msra.mxu0 0.0
  %2089 = vmatprep.subr.mxu0 0.0
  %2090 = vmatpush1.msra.mxu0 0.0
  %2091 = vmatprep.subr.mxu0 0.0
  %2092 = vmatpush1.msra.mxu0 0.0
  %2093 = vmatprep.subr.mxu0 0.0
  %2094 = vmatpush1.msra.mxu0 0.0
  %2095 = vmatprep.subr.mxu0 0.0
  %2096 = vmatpush1.msra.mxu0 0.0
  %2097 = vmatprep.subr.mxu0 0.0
  %2098 = vmatpush1.msra.mxu0 0.0
  %2099 = vmatprep.subr.mxu0 0.0
  %2100 = vmatpush1.msra.mxu0 0.0
  %2101 = vmatprep.subr.mxu0 0.0
  %2102 = vmatpush1.msra.mxu0 0.0
  %2103 = vmatprep.subr.mxu0 0.0
  %2104 = vmatpush1.msra.mxu0 0.0
  %2105 = vmatprep.subr.mxu0 0.0
  %2106 = vmatpush1.msra.mxu0 0.0
  %2107 = vmatprep.subr.mxu0 0.0
  %2108 = vmatpush1.msra.mxu0 0.0
  %2109 = vmatprep.subr.mxu0 0.0
  %2110 = vmatpush1.msra.mxu0 0.0
  %2111 = vmatprep.subr.mxu0 0.0
  %2112 = vmatpush1.msra.mxu0 0.0
  %2113 = vmatprep.subr.mxu0 0.0
  %2114 = vmatpush1.msra.mxu0 0.0
  %2115 = vmatprep.subr.mxu0 0.0
  %2116 = vmatpush1.msra.mxu0 0.0
  %2117 = vmatprep.mubr.f32.mxu0 0.0
  %2118 = vmatmul.mubr.f32.gmra.mrb[0].mxu0 %v2048
  %v2119 = vpop.f32.mrb[0].mxu0
  %v2120 = vadd.f32 %v1970, %v2119
  %v2121 = vpop.f32.mrb[0].mxu0
  %v2122 = vadd.f32 %v1974, %v2121
  %2123 = vmatprep.mubr.f32.mxu0 0.0
  %2124 = vmatmul.mubr.f32.gmra.mrb[0].mxu0 %v2051
  %v2125 = vpop.f32.mrb[0].mxu0
  %v2126 = vadd.f32 %v1970, %v2125
  %v2127 = vpop.f32.mrb[0].mxu0
  %v2128 = vadd.f32 %v1974, %v2127
  %2129 = vdwg.mxu0
  %2130 = vmatprep.subr.mxu0 %v1645
  %2131 = vmatpush1.msra.mxu0 %v1644
  %2132 = vmatprep.subr.mxu0 %v1661
  %2133 = vmatpush1.msra.mxu0 %v1660
  %2134 = vmatprep.subr.mxu0 %v1677
  %2135 = vmatpush1.msra.mxu0 %v1676
  %2136 = vmatprep.subr.mxu0 %v1693
  %2137 = vmatpush1.msra.mxu0 %v1692
  %2138 = vmatprep.subr.mxu0 0.0
  %2139 = vmatpush1.msra.mxu0 0.0
  %2140 = vmatprep.subr.mxu0 0.0
  %2141 = vmatpush1.msra.mxu0 0.0
  %2142 = vmatprep.subr.mxu0 0.0
  %2143 = vmatpush1.msra.mxu0 0.0
  %2144 = vmatprep.subr.mxu0 0.0
  %2145 = vmatpush1.msra.mxu0 0.0
  %2146 = vmatprep.subr.mxu0 0.0
  %2147 = vmatpush1.msra.mxu0 0.0
  %2148 = vmatprep.subr.mxu0 0.0
  %2149 = vmatpush1.msra.mxu0 0.0
  %2150 = vmatprep.subr.mxu0 0.0
  %2151 = vmatpush1.msra.mxu0 0.0
  %2152 = vmatprep.subr.mxu0 0.0
  %2153 = vmatpush1.msra.mxu0 0.0
  %2154 = vmatprep.subr.mxu0 0.0
  %2155 = vmatpush1.msra.mxu0 0.0
  %2156 = vmatprep.subr.mxu0 0.0
  %2157 = vmatpush1.msra.mxu0 0.0
  %2158 = vmatprep.subr.mxu0 0.0
  %2159 = vmatpush1.msra.mxu0 0.0
  %2160 = vmatprep.subr.mxu0 0.0
  %2161 = vmatpush1.msra.mxu0 0.0
  %2162 = vmatprep.subr.mxu0 0.0
  %2163 = vmatpush1.msra.mxu0 0.0
  %2164 = vmatprep.subr.mxu0 0.0
  %2165 = vmatpush1.msra.mxu0 0.0
  %2166 = vmatprep.subr.mxu0 0.0
  %2167 = vmatpush1.msra.mxu0 0.0
  %2168 = vmatprep.subr.mxu0 0.0
  %2169 = vmatpush1.msra.mxu0 0.0
  %2170 = vmatprep.subr.mxu0 0.0
  %2171 = vmatpush1.msra.mxu0 0.0
  %2172 = vmatprep.subr.mxu0 0.0
  %2173 = vmatpush1.msra.mxu0 0.0
  %2174 = vmatprep.subr.mxu0 0.0
  %2175 = vmatpush1.msra.mxu0 0.0
  %2176 = vmatprep.subr.mxu0 0.0
  %2177 = vmatpush1.msra.mxu0 0.0
  %2178 = vmatprep.subr.mxu0 0.0
  %2179 = vmatpush1.msra.mxu0 0.0
  %2180 = vmatprep.subr.mxu0 0.0
  %2181 = vmatpush1.msra.mxu0 0.0
  %2182 = vmatprep.subr.mxu0 0.0
  %2183 = vmatpush1.msra.mxu0 0.0
  %2184 = vmatprep.subr.mxu0 0.0
  %2185 = vmatpush1.msra.mxu0 0.0
  %2186 = vmatprep.subr.mxu0 0.0
  %2187 = vmatpush1.msra.mxu0 0.0
  %2188 = vmatprep.subr.mxu0 0.0
  %2189 = vmatpush1.msra.mxu0 0.0
  %2190 = vmatprep.subr.mxu0 0.0
  %2191 = vmatpush1.msra.mxu0 0.0
  %2192 = vmatprep.subr.mxu0 0.0
  %2193 = vmatpush1.msra.mxu0 0.0
  %2194 = vmatprep.mubr.f32.mxu0 0.0
  %2195 = vmatmul.mubr.f32.gmra.mrb[0].mxu0 %v2048
  %v2196 = vpop.f32.mrb[0].mxu0
  %v2197 = vadd.f32 %v1978, %v2196
  %v2198 = vpop.f32.mrb[0].mxu0
  %v2199 = vadd.f32 %v1982, %v2198
  %2200 = vmatprep.mubr.f32.mxu0 0.0
  %2201 = vmatmul.mubr.f32.gmra.mrb[0].mxu0 %v2051
  %v2202 = vpop.f32.mrb[0].mxu0
  %v2203 = vadd.f32 %v1978, %v2202
  %v2204 = vpop.f32.mrb[0].mxu0
  %v2205 = vadd.f32 %v1982, %v2204
  %2206 = vdwg.mxu0
  %2207 = vmatprep.subr.mxu0 %v1647
  %2208 = vmatpush1.msra.mxu0 %v1646
  %2209 = vmatprep.subr.mxu0 %v1663
  %2210 = vmatpush1.msra.mxu0 %v1662
  %2211 = vmatprep.subr.mxu0 %v1679
  %2212 = vmatpush1.msra.mxu0 %v1678
  %2213 = vmatprep.subr.mxu0 %v1695
  %2214 = vmatpush1.msra.mxu0 %v1694
  %2215 = vmatprep.subr.mxu0 0.0
  %2216 = vmatpush1.msra.mxu0 0.0
  %2217 = vmatprep.subr.mxu0 0.0
  %2218 = vmatpush1.msra.mxu0 0.0
  %2219 = vmatprep.subr.mxu0 0.0
  %2220 = vmatpush1.msra.mxu0 0.0
  %2221 = vmatprep.subr.mxu0 0.0
  %2222 = vmatpush1.msra.mxu0 0.0
  %2223 = vmatprep.subr.mxu0 0.0
  %2224 = vmatpush1.msra.mxu0 0.0
  %2225 = vmatprep.subr.mxu0 0.0
  %2226 = vmatpush1.msra.mxu0 0.0
  %2227 = vmatprep.subr.mxu0 0.0
  %2228 = vmatpush1.msra.mxu0 0.0
  %2229 = vmatprep.subr.mxu0 0.0
  %2230 = vmatpush1.msra.mxu0 0.0
  %2231 = vmatprep.subr.mxu0 0.0
  %2232 = vmatpush1.msra.mxu0 0.0
  %2233 = vmatprep.subr.mxu0 0.0
  %2234 = vmatpush1.msra.mxu0 0.0
  %2235 = vmatprep.subr.mxu0 0.0
  %2236 = vmatpush1.msra.mxu0 0.0
  %2237 = vmatprep.subr.mxu0 0.0
  %2238 = vmatpush1.msra.mxu0 0.0
  %2239 = vmatprep.subr.mxu0 0.0
  %2240 = vmatpush1.msra.mxu0 0.0
  %2241 = vmatprep.subr.mxu0 0.0
  %2242 = vmatpush1.msra.mxu0 0.0
  %2243 = vmatprep.subr.mxu0 0.0
  %2244 = vmatpush1.msra.mxu0 0.0
  %2245 = vmatprep.subr.mxu0 0.0
  %2246 = vmatpush1.msra.mxu0 0.0
  %2247 = vmatprep.subr.mxu0 0.0
  %2248 = vmatpush1.msra.mxu0 0.0
  %2249 = vmatprep.subr.mxu0 0.0
  %2250 = vmatpush1.msra.mxu0 0.0
  %2251 = vmatprep.subr.mxu0 0.0
  %2252 = vmatpush1.msra.mxu0 0.0
  %2253 = vmatprep.subr.mxu0 0.0
  %2254 = vmatpush1.msra.mxu0 0.0
  %2255 = vmatprep.subr.mxu0 0.0
  %2256 = vmatpush1.msra.mxu0 0.0
  %2257 = vmatprep.subr.mxu0 0.0
  %2258 = vmatpush1.msra.mxu0 0.0
  %2259 = vmatprep.subr.mxu0 0.0
  %2260 = vmatpush1.msra.mxu0 0.0
  %2261 = vmatprep.subr.mxu0 0.0
  %2262 = vmatpush1.msra.mxu0 0.0
  %2263 = vmatprep.subr.mxu0 0.0
  %2264 = vmatpush1.msra.mxu0 0.0
  %2265 = vmatprep.subr.mxu0 0.0
  %2266 = vmatpush1.msra.mxu0 0.0
  %2267 = vmatprep.subr.mxu0 0.0
  %2268 = vmatpush1.msra.mxu0 0.0
  %2269 = vmatprep.subr.mxu0 0.0
  %2270 = vmatpush1.msra.mxu0 0.0
  %2271 = vmatprep.mubr.f32.mxu0 0.0
  %2272 = vmatmul.mubr.f32.gmra.mrb[0].mxu0 %v2048
  %v2273 = vpop.f32.mrb[0].mxu0
  %v2274 = vadd.f32 %v1986, %v2273
  %v2275 = vpop.f32.mrb[0].mxu0
  %v2276 = vadd.f32 %v1990, %v2275
  %2277 = vmatprep.mubr.f32.mxu0 0.0
  %2278 = vmatmul.mubr.f32.gmra.mrb[0].mxu0 %v2051
  %v2279 = vpop.f32.mrb[0].mxu0
  %v2280 = vadd.f32 %v1986, %v2279
  %v2281 = vpop.f32.mrb[0].mxu0
  %v2282 = vadd.f32 %v1990, %v2281
  %2283 = vdwg.mxu0
  %2284 = vmatprep.subr.mxu0 %v1649
  %2285 = vmatpush1.msra.mxu0 %v1648
  %2286 = vmatprep.subr.mxu0 %v1665
  %2287 = vmatpush1.msra.mxu0 %v1664
  %2288 = vmatprep.subr.mxu0 %v1681
  %2289 = vmatpush1.msra.mxu0 %v1680
  %2290 = vmatprep.subr.mxu0 %v1697
  %2291 = vmatpush1.msra.mxu0 %v1696
  %2292 = vmatprep.subr.mxu0 0.0
  %2293 = vmatpush1.msra.mxu0 0.0
  %2294 = vmatprep.subr.mxu0 0.0
  %2295 = vmatpush1.msra.mxu0 0.0
  %2296 = vmatprep.subr.mxu0 0.0
  %2297 = vmatpush1.msra.mxu0 0.0
  %2298 = vmatprep.subr.mxu0 0.0
  %2299 = vmatpush1.msra.mxu0 0.0
  %2300 = vmatprep.subr.mxu0 0.0
  %2301 = vmatpush1.msra.mxu0 0.0
  %2302 = vmatprep.subr.mxu0 0.0
  %2303 = vmatpush1.msra.mxu0 0.0
  %2304 = vmatprep.subr.mxu0 0.0
  %2305 = vmatpush1.msra.mxu0 0.0
  %2306 = vmatprep.subr.mxu0 0.0
  %2307 = vmatpush1.msra.mxu0 0.0
  %2308 = vmatprep.subr.mxu0 0.0
  %2309 = vmatpush1.msra.mxu0 0.0
  %2310 = vmatprep.subr.mxu0 0.0
  %2311 = vmatpush1.msra.mxu0 0.0
  %2312 = vmatprep.subr.mxu0 0.0
  %2313 = vmatpush1.msra.mxu0 0.0
  %2314 = vmatprep.subr.mxu0 0.0
  %2315 = vmatpush1.msra.mxu0 0.0
  %2316 = vmatprep.subr.mxu0 0.0
  %2317 = vmatpush1.msra.mxu0 0.0
  %2318 = vmatprep.subr.mxu0 0.0
  %2319 = vmatpush1.msra.mxu0 0.0
  %2320 = vmatprep.subr.mxu0 0.0
  %2321 = vmatpush1.msra.mxu0 0.0
  %2322 = vmatprep.subr.mxu0 0.0
  %2323 = vmatpush1.msra.mxu0 0.0
  %2324 = vmatprep.subr.mxu0 0.0
  %2325 = vmatpush1.msra.mxu0 0.0
  %2326 = vmatprep.subr.mxu0 0.0
  %2327 = vmatpush1.msra.mxu0 0.0
  %2328 = vmatprep.subr.mxu0 0.0
  %2329 = vmatpush1.msra.mxu0 0.0
  %2330 = vmatprep.subr.mxu0 0.0
  %2331 = vmatpush1.msra.mxu0 0.0
  %2332 = vmatprep.subr.mxu0 0.0
  %2333 = vmatpush1.msra.mxu0 0.0
  %2334 = vmatprep.subr.mxu0 0.0
  %2335 = vmatpush1.msra.mxu0 0.0
  %2336 = vmatprep.subr.mxu0 0.0
  %2337 = vmatpush1.msra.mxu0 0.0
  %2338 = vmatprep.subr.mxu0 0.0
  %2339 = vmatpush1.msra.mxu0 0.0
  %2340 = vmatprep.subr.mxu0 0.0
  %2341 = vmatpush1.msra.mxu0 0.0
  %2342 = vmatprep.subr.mxu0 0.0
  %2343 = vmatpush1.msra.mxu0 0.0
  %2344 = vmatprep.subr.mxu0 0.0
  %2345 = vmatpush1.msra.mxu0 0.0
  %2346 = vmatprep.subr.mxu0 0.0
  %2347 = vmatpush1.msra.mxu0 0.0
  %2348 = vmatprep.mubr.f32.mxu0 0.0
  %2349 = vmatmul.mubr.f32.gmra.mrb[0].mxu0 %v2048
  %v2350 = vpop.f32.mrb[0].mxu0
  %v2351 = vadd.f32 %v1994, %v2350
  %v2352 = vpop.f32.mrb[0].mxu0
  %v2353 = vadd.f32 %v1998, %v2352
  %2354 = vmatprep.mubr.f32.mxu0 0.0
  %2355 = vmatmul.mubr.f32.gmra.mrb[0].mxu0 %v2051
  %v2356 = vpop.f32.mrb[0].mxu0
  %v2357 = vadd.f32 %v1994, %v2356
  %v2358 = vpop.f32.mrb[0].mxu0
  %v2359 = vadd.f32 %v1998, %v2358
  %2360 = vdwg.mxu0
  %2361 = vmatprep.subr.mxu0 %v1651
  %2362 = vmatpush1.msra.mxu0 %v1650
  %2363 = vmatprep.subr.mxu0 %v1667
  %2364 = vmatpush1.msra.mxu0 %v1666
  %2365 = vmatprep.subr.mxu0 %v1683
  %2366 = vmatpush1.msra.mxu0 %v1682
  %2367 = vmatprep.subr.mxu0 %v1699
  %2368 = vmatpush1.msra.mxu0 %v1698
  %2369 = vmatprep.subr.mxu0 0.0
  %2370 = vmatpush1.msra.mxu0 0.0
  %2371 = vmatprep.subr.mxu0 0.0
  %2372 = vmatpush1.msra.mxu0 0.0
  %2373 = vmatprep.subr.mxu0 0.0
  %2374 = vmatpush1.msra.mxu0 0.0
  %2375 = vmatprep.subr.mxu0 0.0
  %2376 = vmatpush1.msra.mxu0 0.0
  %2377 = vmatprep.subr.mxu0 0.0
  %2378 = vmatpush1.msra.mxu0 0.0
  %2379 = vmatprep.subr.mxu0 0.0
  %2380 = vmatpush1.msra.mxu0 0.0
  %2381 = vmatprep.subr.mxu0 0.0
  %2382 = vmatpush1.msra.mxu0 0.0
  %2383 = vmatprep.subr.mxu0 0.0
  %2384 = vmatpush1.msra.mxu0 0.0
  %2385 = vmatprep.subr.mxu0 0.0
  %2386 = vmatpush1.msra.mxu0 0.0
  %2387 = vmatprep.subr.mxu0 0.0
  %2388 = vmatpush1.msra.mxu0 0.0
  %2389 = vmatprep.subr.mxu0 0.0
  %2390 = vmatpush1.msra.mxu0 0.0
  %2391 = vmatprep.subr.mxu0 0.0
  %2392 = vmatpush1.msra.mxu0 0.0
  %2393 = vmatprep.subr.mxu0 0.0
  %2394 = vmatpush1.msra.mxu0 0.0
  %2395 = vmatprep.subr.mxu0 0.0
  %2396 = vmatpush1.msra.mxu0 0.0
  %2397 = vmatprep.subr.mxu0 0.0
  %2398 = vmatpush1.msra.mxu0 0.0
  %2399 = vmatprep.subr.mxu0 0.0
  %2400 = vmatpush1.msra.mxu0 0.0
  %2401 = vmatprep.subr.mxu0 0.0
  %2402 = vmatpush1.msra.mxu0 0.0
  %2403 = vmatprep.subr.mxu0 0.0
  %2404 = vmatpush1.msra.mxu0 0.0
  %2405 = vmatprep.subr.mxu0 0.0
  %2406 = vmatpush1.msra.mxu0 0.0
  %2407 = vmatprep.subr.mxu0 0.0
  %2408 = vmatpush1.msra.mxu0 0.0
  %2409 = vmatprep.subr.mxu0 0.0
  %2410 = vmatpush1.msra.mxu0 0.0
  %2411 = vmatprep.subr.mxu0 0.0
  %2412 = vmatpush1.msra.mxu0 0.0
  %2413 = vmatprep.subr.mxu0 0.0
  %2414 = vmatpush1.msra.mxu0 0.0
  %2415 = vmatprep.subr.mxu0 0.0
  %2416 = vmatpush1.msra.mxu0 0.0
  %2417 = vmatprep.subr.mxu0 0.0
  %2418 = vmatpush1.msra.mxu0 0.0
  %2419 = vmatprep.subr.mxu0 0.0
  %2420 = vmatpush1.msra.mxu0 0.0
  %2421 = vmatprep.subr.mxu0 0.0
  %2422 = vmatpush1.msra.mxu0 0.0
  %2423 = vmatprep.subr.mxu0 0.0
  %2424 = vmatpush1.msra.mxu0 0.0
  %2425 = vmatprep.mubr.f32.mxu0 0.0
  %2426 = vmatmul.mubr.f32.gmra.mrb[0].mxu0 %v2048
  %v2427 = vpop.f32.mrb[0].mxu0
  %v2428 = vadd.f32 %v2002, %v2427
  %v2429 = vpop.f32.mrb[0].mxu0
  %v2430 = vadd.f32 %v2006, %v2429
  %2431 = vmatprep.mubr.f32.mxu0 0.0
  %2432 = vmatmul.mubr.f32.gmra.mrb[0].mxu0 %v2051
  %v2433 = vpop.f32.mrb[0].mxu0
  %v2434 = vadd.f32 %v2002, %v2433
  %v2435 = vpop.f32.mrb[0].mxu0
  %v2436 = vadd.f32 %v2006, %v2435
  %2437 = vdwg.mxu0
  %2438 = vmatprep.subr.mxu0 %v1653
  %2439 = vmatpush1.msra.mxu0 %v1652
  %2440 = vmatprep.subr.mxu0 %v1669
  %2441 = vmatpush1.msra.mxu0 %v1668
  %2442 = vmatprep.subr.mxu0 %v1685
  %2443 = vmatpush1.msra.mxu0 %v1684
  %2444 = vmatprep.subr.mxu0 %v1701
  %2445 = vmatpush1.msra.mxu0 %v1700
  %2446 = vmatprep.subr.mxu0 0.0
  %2447 = vmatpush1.msra.mxu0 0.0
  %2448 = vmatprep.subr.mxu0 0.0
  %2449 = vmatpush1.msra.mxu0 0.0
  %2450 = vmatprep.subr.mxu0 0.0
  %2451 = vmatpush1.msra.mxu0 0.0
  %2452 = vmatprep.subr.mxu0 0.0
  %2453 = vmatpush1.msra.mxu0 0.0
  %2454 = vmatprep.subr.mxu0 0.0
  %2455 = vmatpush1.msra.mxu0 0.0
  %2456 = vmatprep.subr.mxu0 0.0
  %2457 = vmatpush1.msra.mxu0 0.0
  %2458 = vmatprep.subr.mxu0 0.0
  %2459 = vmatpush1.msra.mxu0 0.0
  %2460 = vmatprep.subr.mxu0 0.0
  %2461 = vmatpush1.msra.mxu0 0.0
  %2462 = vmatprep.subr.mxu0 0.0
  %2463 = vmatpush1.msra.mxu0 0.0
  %2464 = vmatprep.subr.mxu0 0.0
  %2465 = vmatpush1.msra.mxu0 0.0
  %2466 = vmatprep.subr.mxu0 0.0
  %2467 = vmatpush1.msra.mxu0 0.0
  %2468 = vmatprep.subr.mxu0 0.0
  %2469 = vmatpush1.msra.mxu0 0.0
  %2470 = vmatprep.subr.mxu0 0.0
  %2471 = vmatpush1.msra.mxu0 0.0
  %2472 = vmatprep.subr.mxu0 0.0
  %2473 = vmatpush1.msra.mxu0 0.0
  %2474 = vmatprep.subr.mxu0 0.0
  %2475 = vmatpush1.msra.mxu0 0.0
  %2476 = vmatprep.subr.mxu0 0.0
  %2477 = vmatpush1.msra.mxu0 0.0
  %2478 = vmatprep.subr.mxu0 0.0
  %2479 = vmatpush1.msra.mxu0 0.0
  %2480 = vmatprep.subr.mxu0 0.0
  %2481 = vmatpush1.msra.mxu0 0.0
  %2482 = vmatprep.subr.mxu0 0.0
  %2483 = vmatpush1.msra.mxu0 0.0
  %2484 = vmatprep.subr.mxu0 0.0
  %2485 = vmatpush1.msra.mxu0 0.0
  %2486 = vmatprep.subr.mxu0 0.0
  %2487 = vmatpush1.msra.mxu0 0.0
  %2488 = vmatprep.subr.mxu0 0.0
  %2489 = vmatpush1.msra.mxu0 0.0
  %2490 = vmatprep.subr.mxu0 0.0
  %2491 = vmatpush1.msra.mxu0 0.0
  %2492 = vmatprep.subr.mxu0 0.0
  %2493 = vmatpush1.msra.mxu0 0.0
  %2494 = vmatprep.subr.mxu0 0.0
  %2495 = vmatpush1.msra.mxu0 0.0
  %2496 = vmatprep.subr.mxu0 0.0
  %2497 = vmatpush1.msra.mxu0 0.0
  %2498 = vmatprep.subr.mxu0 0.0
  %2499 = vmatpush1.msra.mxu0 0.0
  %2500 = vmatprep.subr.mxu0 0.0
  %2501 = vmatpush1.msra.mxu0 0.0
  %2502 = vmatprep.mubr.f32.mxu0 0.0
  %2503 = vmatmul.mubr.f32.gmra.mrb[0].mxu0 %v2048
  %v2504 = vpop.f32.mrb[0].mxu0
  %v2505 = vadd.f32 %v2010, %v2504
  %v2506 = vpop.f32.mrb[0].mxu0
  %v2507 = vadd.f32 %v2014, %v2506
  %2508 = vmatprep.mubr.f32.mxu0 0.0
  %2509 = vmatmul.mubr.f32.gmra.mrb[0].mxu0 %v2051
  %v2510 = vpop.f32.mrb[0].mxu0
  %v2511 = vadd.f32 %v2010, %v2510
  %v2512 = vpop.f32.mrb[0].mxu0
  %v2513 = vadd.f32 %v2014, %v2512
  %2514 = vdwg.mxu0
  %2515 = vmatprep.subr.mxu0 %v1655
  %2516 = vmatpush1.msra.mxu0 %v1654
  %2517 = vmatprep.subr.mxu0 %v1671
  %2518 = vmatpush1.msra.mxu0 %v1670
  %2519 = vmatprep.subr.mxu0 %v1687
  %2520 = vmatpush1.msra.mxu0 %v1686
  %2521 = vmatprep.subr.mxu0 %v1703
  %2522 = vmatpush1.msra.mxu0 %v1702
  %2523 = vmatprep.subr.mxu0 0.0
  %2524 = vmatpush1.msra.mxu0 0.0
  %2525 = vmatprep.subr.mxu0 0.0
  %2526 = vmatpush1.msra.mxu0 0.0
  %2527 = vmatprep.subr.mxu0 0.0
  %2528 = vmatpush1.msra.mxu0 0.0
  %2529 = vmatprep.subr.mxu0 0.0
  %2530 = vmatpush1.msra.mxu0 0.0
  %2531 = vmatprep.subr.mxu0 0.0
  %2532 = vmatpush1.msra.mxu0 0.0
  %2533 = vmatprep.subr.mxu0 0.0
  %2534 = vmatpush1.msra.mxu0 0.0
  %2535 = vmatprep.subr.mxu0 0.0
  %2536 = vmatpush1.msra.mxu0 0.0
  %2537 = vmatprep.subr.mxu0 0.0
  %2538 = vmatpush1.msra.mxu0 0.0
  %2539 = vmatprep.subr.mxu0 0.0
  %2540 = vmatpush1.msra.mxu0 0.0
  %2541 = vmatprep.subr.mxu0 0.0
  %2542 = vmatpush1.msra.mxu0 0.0
  %2543 = vmatprep.subr.mxu0 0.0
  %2544 = vmatpush1.msra.mxu0 0.0
  %2545 = vmatprep.subr.mxu0 0.0
  %2546 = vmatpush1.msra.mxu0 0.0
  %2547 = vmatprep.subr.mxu0 0.0
  %2548 = vmatpush1.msra.mxu0 0.0
  %2549 = vmatprep.subr.mxu0 0.0
  %2550 = vmatpush1.msra.mxu0 0.0
  %2551 = vmatprep.subr.mxu0 0.0
  %2552 = vmatpush1.msra.mxu0 0.0
  %2553 = vmatprep.subr.mxu0 0.0
  %2554 = vmatpush1.msra.mxu0 0.0
  %2555 = vmatprep.subr.mxu0 0.0
  %2556 = vmatpush1.msra.mxu0 0.0
  %2557 = vmatprep.subr.mxu0 0.0
  %2558 = vmatpush1.msra.mxu0 0.0
  %2559 = vmatprep.subr.mxu0 0.0
  %2560 = vmatpush1.msra.mxu0 0.0
  %2561 = vmatprep.subr.mxu0 0.0
  %2562 = vmatpush1.msra.mxu0 0.0
  %2563 = vmatprep.subr.mxu0 0.0
  %2564 = vmatpush1.msra.mxu0 0.0
  %2565 = vmatprep.subr.mxu0 0.0
  %2566 = vmatpush1.msra.mxu0 0.0
  %2567 = vmatprep.subr.mxu0 0.0
  %2568 = vmatpush1.msra.mxu0 0.0
  %2569 = vmatprep.subr.mxu0 0.0
  %2570 = vmatpush1.msra.mxu0 0.0
  %2571 = vmatprep.subr.mxu0 0.0
  %2572 = vmatpush1.msra.mxu0 0.0
  %2573 = vmatprep.subr.mxu0 0.0
  %2574 = vmatpush1.msra.mxu0 0.0
  %2575 = vmatprep.subr.mxu0 0.0
  %2576 = vmatpush1.msra.mxu0 0.0
  %2577 = vmatprep.subr.mxu0 0.0
  %2578 = vmatpush1.msra.mxu0 0.0
  %2579 = vmatprep.mubr.f32.mxu0 0.0
  %2580 = vmatmul.mubr.f32.gmra.mrb[0].mxu0 %v2048
  %v2581 = vpop.f32.mrb[0].mxu0
  %v2582 = vadd.f32 %v2018, %v2581
  %v2583 = vpop.f32.mrb[0].mxu0
  %v2584 = vadd.f32 %v2022, %v2583
  %2585 = vmatprep.mubr.f32.mxu0 0.0
  %2586 = vmatmul.mubr.f32.gmra.mrb[0].mxu0 %v2051
  %v2587 = vpop.f32.mrb[0].mxu0
  %v2588 = vadd.f32 %v2018, %v2587
  %v2589 = vpop.f32.mrb[0].mxu0
  %v2590 = vadd.f32 %v2022, %v2589
  %2591 = vdwg.mxu0
  %2592 = vmatprep.subr.mxu0 %v1657
  %2593 = vmatpush1.msra.mxu0 %v1656
  %2594 = vmatprep.subr.mxu0 %v1673
  %2595 = vmatpush1.msra.mxu0 %v1672
  %2596 = vmatprep.subr.mxu0 %v1689
  %2597 = vmatpush1.msra.mxu0 %v1688
  %2598 = vmatprep.subr.mxu0 %v1705
  %2599 = vmatpush1.msra.mxu0 %v1704
  %2600 = vmatprep.subr.mxu0 0.0
  %2601 = vmatpush1.msra.mxu0 0.0
  %2602 = vmatprep.subr.mxu0 0.0
  %2603 = vmatpush1.msra.mxu0 0.0
  %2604 = vmatprep.subr.mxu0 0.0
  %2605 = vmatpush1.msra.mxu0 0.0
  %2606 = vmatprep.subr.mxu0 0.0
  %2607 = vmatpush1.msra.mxu0 0.0
  %2608 = vmatprep.subr.mxu0 0.0
  %2609 = vmatpush1.msra.mxu0 0.0
  %2610 = vmatprep.subr.mxu0 0.0
  %2611 = vmatpush1.msra.mxu0 0.0
  %2612 = vmatprep.subr.mxu0 0.0
  %2613 = vmatpush1.msra.mxu0 0.0
  %2614 = vmatprep.subr.mxu0 0.0
  %2615 = vmatpush1.msra.mxu0 0.0
  %2616 = vmatprep.subr.mxu0 0.0
  %2617 = vmatpush1.msra.mxu0 0.0
  %2618 = vmatprep.subr.mxu0 0.0
  %2619 = vmatpush1.msra.mxu0 0.0
  %2620 = vmatprep.subr.mxu0 0.0
  %2621 = vmatpush1.msra.mxu0 0.0
  %2622 = vmatprep.subr.mxu0 0.0
  %2623 = vmatpush1.msra.mxu0 0.0
  %2624 = vmatprep.subr.mxu0 0.0
  %2625 = vmatpush1.msra.mxu0 0.0
  %2626 = vmatprep.subr.mxu0 0.0
  %2627 = vmatpush1.msra.mxu0 0.0
  %2628 = vmatprep.subr.mxu0 0.0
  %2629 = vmatpush1.msra.mxu0 0.0
  %2630 = vmatprep.subr.mxu0 0.0
  %2631 = vmatpush1.msra.mxu0 0.0
  %2632 = vmatprep.subr.mxu0 0.0
  %2633 = vmatpush1.msra.mxu0 0.0
  %2634 = vmatprep.subr.mxu0 0.0
  %2635 = vmatpush1.msra.mxu0 0.0
  %2636 = vmatprep.subr.mxu0 0.0
  %2637 = vmatpush1.msra.mxu0 0.0
  %2638 = vmatprep.subr.mxu0 0.0
  %2639 = vmatpush1.msra.mxu0 0.0
  %2640 = vmatprep.subr.mxu0 0.0
  %2641 = vmatpush1.msra.mxu0 0.0
  %2642 = vmatprep.subr.mxu0 0.0
  %2643 = vmatpush1.msra.mxu0 0.0
  %2644 = vmatprep.subr.mxu0 0.0
  %2645 = vmatpush1.msra.mxu0 0.0
  %2646 = vmatprep.subr.mxu0 0.0
  %2647 = vmatpush1.msra.mxu0 0.0
  %2648 = vmatprep.subr.mxu0 0.0
  %2649 = vmatpush1.msra.mxu0 0.0
  %2650 = vmatprep.subr.mxu0 0.0
  %2651 = vmatpush1.msra.mxu0 0.0
  %2652 = vmatprep.subr.mxu0 0.0
  %2653 = vmatpush1.msra.mxu0 0.0
  %2654 = vmatprep.subr.mxu0 0.0
  %2655 = vmatpush1.msra.mxu0 0.0
  %2656 = vmatprep.mubr.f32.mxu0 0.0
  %2657 = vmatmul.mubr.f32.gmra.mrb[0].mxu0 %v2048
  %v2658 = vpop.f32.mrb[0].mxu0
  %v2659 = vadd.f32 %v2026, %v2658
  %v2660 = vpop.f32.mrb[0].mxu0
  %v2661 = vadd.f32 %v2030, %v2660
  %2662 = vmatprep.mubr.f32.mxu0 0.0
  %2663 = vmatmul.mubr.f32.gmra.mrb[0].mxu0 %v2051
  %v2664 = vpop.f32.mrb[0].mxu0
  %v2665 = vadd.f32 %v2026, %v2664
  %v2666 = vpop.f32.mrb[0].mxu0
  %v2667 = vadd.f32 %v2030, %v2666
  %2668 = vdwg.mxu0
  %v2669 = vmax.f32 %v2120, 0.0
  %v2670 = vmax.f32 %v2122, 0.0
  %v2671 = vmax.f32 %v2197, 0.0
  %v2672 = vmax.f32 %v2199, 0.0
  %v2673 = vmax.f32 %v2274, 0.0
  %v2674 = vmax.f32 %v2276, 0.0
  %v2675 = vmax.f32 %v2351, 0.0
  %v2676 = vmax.f32 %v2353, 0.0
  %v2677 = vmax.f32 %v2428, 0.0
  %v2678 = vmax.f32 %v2430, 0.0
  %v2679 = vmax.f32 %v2505, 0.0
  %v2680 = vmax.f32 %v2507, 0.0
  %v2681 = vmax.f32 %v2582, 0.0
  %v2682 = vmax.f32 %v2584, 0.0
  %v2683 = vmax.f32 %v2659, 0.0
  %v2684 = vmax.f32 %v2661, 0.0
  %v2685 = vmax.f32 %v2126, 0.0
  %v2686 = vmax.f32 %v2128, 0.0
  %v2687 = vmax.f32 %v2203, 0.0
  %v2688 = vmax.f32 %v2205, 0.0
  %v2689 = vmax.f32 %v2280, 0.0
  %v2690 = vmax.f32 %v2282, 0.0
  %v2691 = vmax.f32 %v2357, 0.0
  %v2692 = vmax.f32 %v2359, 0.0
  %v2693 = vmax.f32 %v2434, 0.0
  %v2694 = vmax.f32 %v2436, 0.0
  %v2695 = vmax.f32 %v2511, 0.0
  %v2696 = vmax.f32 %v2513, 0.0
  %v2697 = vmax.f32 %v2588, 0.0
  %v2698 = vmax.f32 %v2590, 0.0
  %v2699 = vmax.f32 %v2665, 0.0
  %v2700 = vmax.f32 %v2667, 0.0
  %v2702 = vlaneseq
  %v2703 = vshrl.u32 %v2702, 7
  %v2704 = vsub.s32 0, %v2703
  %v2705 = vrot.slane %v1964, %v2704
  %2707 = vmatprep.subr.mxu0 0.0
  %2708 = vmatpush1.msra.mxu0 %v1708
  %2709 = vmatprep.subr.mxu0 0.0
  %2710 = vmatpush1.msra.mxu0 %v1709
  %2711 = vmatprep.subr.mxu0 0.0
  %2712 = vmatpush1.msra.mxu0 %v1710
  %2713 = vmatprep.subr.mxu0 0.0
  %2714 = vmatpush1.msra.mxu0 %v1711
  %2715 = vmatprep.subr.mxu0 0.0
  %2716 = vmatpush1.msra.mxu0 %v1712
  %2717 = vmatprep.subr.mxu0 0.0
  %2718 = vmatpush1.msra.mxu0 %v1713
  %2719 = vmatprep.subr.mxu0 0.0
  %2720 = vmatpush1.msra.mxu0 %v1714
  %2721 = vmatprep.subr.mxu0 0.0
  %2722 = vmatpush1.msra.mxu0 %v1715
  %2723 = vmatprep.subr.mxu0 0.0
  %2724 = vmatpush1.msra.mxu0 %v1716
  %2725 = vmatprep.subr.mxu0 0.0
  %2726 = vmatpush1.msra.mxu0 %v1717
  %2727 = vmatprep.subr.mxu0 0.0
  %2728 = vmatpush1.msra.mxu0 %v1718
  %2729 = vmatprep.subr.mxu0 0.0
  %2730 = vmatpush1.msra.mxu0 %v1719
  %2731 = vmatprep.subr.mxu0 0.0
  %2732 = vmatpush1.msra.mxu0 %v1720
  %2733 = vmatprep.subr.mxu0 0.0
  %2734 = vmatpush1.msra.mxu0 %v1721
  %2735 = vmatprep.subr.mxu0 0.0
  %2736 = vmatpush1.msra.mxu0 %v1722
  %2737 = vmatprep.subr.mxu0 0.0
  %2738 = vmatpush1.msra.mxu0 %v1723
  %2739 = vmatprep.subr.mxu0 0.0
  %2740 = vmatpush1.msra.mxu0 %v1724
  %2741 = vmatprep.subr.mxu0 0.0
  %2742 = vmatpush1.msra.mxu0 %v1725
  %2743 = vmatprep.subr.mxu0 0.0
  %2744 = vmatpush1.msra.mxu0 %v1726
  %2745 = vmatprep.subr.mxu0 0.0
  %2746 = vmatpush1.msra.mxu0 %v1727
  %2747 = vmatprep.subr.mxu0 0.0
  %2748 = vmatpush1.msra.mxu0 %v1728
  %2749 = vmatprep.subr.mxu0 0.0
  %2750 = vmatpush1.msra.mxu0 %v1729
  %2751 = vmatprep.subr.mxu0 0.0
  %2752 = vmatpush1.msra.mxu0 %v1730
  %2753 = vmatprep.subr.mxu0 0.0
  %2754 = vmatpush1.msra.mxu0 %v1731
  %2755 = vmatprep.subr.mxu0 0.0
  %2756 = vmatpush1.msra.mxu0 %v1732
  %2757 = vmatprep.subr.mxu0 0.0
  %2758 = vmatpush1.msra.mxu0 %v1733
  %2759 = vmatprep.subr.mxu0 0.0
  %2760 = vmatpush1.msra.mxu0 %v1734
  %2761 = vmatprep.subr.mxu0 0.0
  %2762 = vmatpush1.msra.mxu0 %v1735
  %2763 = vmatprep.subr.mxu0 0.0
  %2764 = vmatpush1.msra.mxu0 %v1736
  %2765 = vmatprep.subr.mxu0 0.0
  %2766 = vmatpush1.msra.mxu0 %v1737
  %2767 = vmatprep.subr.mxu0 0.0
  %2768 = vmatpush1.msra.mxu0 %v1738
  %2769 = vmatprep.subr.mxu0 0.0
  %2770 = vmatpush1.msra.mxu0 %v1739
  %2771 = vmatprep.mubr.f32.mxu0 %v2670
  %2772 = vmatmul.mubr.f32.gmra.mrb[0].mxu0 %v2669
  %v2773 = vpop.f32.mrb[0].mxu0
  %v2774 = vadd.f32 %v2705, %v2773
  %v2775 = vpop.f32.mrb[0].mxu0
  %2776 = vmatprep.mubr.f32.mxu0 %v2686
  %2777 = vmatmul.mubr.f32.gmra.mrb[0].mxu0 %v2685
  %v2778 = vpop.f32.mrb[0].mxu0
  %v2779 = vadd.f32 %v2705, %v2778
  %v2780 = vpop.f32.mrb[0].mxu0
  %2781 = vdwg.mxu0
  %2782 = vmatprep.subr.mxu0 0.0
  %2783 = vmatpush1.msra.mxu0 %v1740
  %2784 = vmatprep.subr.mxu0 0.0
  %2785 = vmatpush1.msra.mxu0 %v1741
  %2786 = vmatprep.subr.mxu0 0.0
  %2787 = vmatpush1.msra.mxu0 %v1742
  %2788 = vmatprep.subr.mxu0 0.0
  %2789 = vmatpush1.msra.mxu0 %v1743
  %2790 = vmatprep.subr.mxu0 0.0
  %2791 = vmatpush1.msra.mxu0 %v1744
  %2792 = vmatprep.subr.mxu0 0.0
  %2793 = vmatpush1.msra.mxu0 %v1745
  %2794 = vmatprep.subr.mxu0 0.0
  %2795 = vmatpush1.msra.mxu0 %v1746
  %2796 = vmatprep.subr.mxu0 0.0
  %2797 = vmatpush1.msra.mxu0 %v1747
  %2798 = vmatprep.subr.mxu0 0.0
  %2799 = vmatpush1.msra.mxu0 %v1748
  %2800 = vmatprep.subr.mxu0 0.0
  %2801 = vmatpush1.msra.mxu0 %v1749
  %2802 = vmatprep.subr.mxu0 0.0
  %2803 = vmatpush1.msra.mxu0 %v1750
  %2804 = vmatprep.subr.mxu0 0.0
  %2805 = vmatpush1.msra.mxu0 %v1751
  %2806 = vmatprep.subr.mxu0 0.0
  %2807 = vmatpush1.msra.mxu0 %v1752
  %2808 = vmatprep.subr.mxu0 0.0
  %2809 = vmatpush1.msra.mxu0 %v1753
  %2810 = vmatprep.subr.mxu0 0.0
  %2811 = vmatpush1.msra.mxu0 %v1754
  %2812 = vmatprep.subr.mxu0 0.0
  %2813 = vmatpush1.msra.mxu0 %v1755
  %2814 = vmatprep.subr.mxu0 0.0
  %2815 = vmatpush1.msra.mxu0 %v1756
  %2816 = vmatprep.subr.mxu0 0.0
  %2817 = vmatpush1.msra.mxu0 %v1757
  %2818 = vmatprep.subr.mxu0 0.0
  %2819 = vmatpush1.msra.mxu0 %v1758
  %2820 = vmatprep.subr.mxu0 0.0
  %2821 = vmatpush1.msra.mxu0 %v1759
  %2822 = vmatprep.subr.mxu0 0.0
  %2823 = vmatpush1.msra.mxu0 %v1760
  %2824 = vmatprep.subr.mxu0 0.0
  %2825 = vmatpush1.msra.mxu0 %v1761
  %2826 = vmatprep.subr.mxu0 0.0
  %2827 = vmatpush1.msra.mxu0 %v1762
  %2828 = vmatprep.subr.mxu0 0.0
  %2829 = vmatpush1.msra.mxu0 %v1763
  %2830 = vmatprep.subr.mxu0 0.0
  %2831 = vmatpush1.msra.mxu0 %v1764
  %2832 = vmatprep.subr.mxu0 0.0
  %2833 = vmatpush1.msra.mxu0 %v1765
  %2834 = vmatprep.subr.mxu0 0.0
  %2835 = vmatpush1.msra.mxu0 %v1766
  %2836 = vmatprep.subr.mxu0 0.0
  %2837 = vmatpush1.msra.mxu0 %v1767
  %2838 = vmatprep.subr.mxu0 0.0
  %2839 = vmatpush1.msra.mxu0 %v1768
  %2840 = vmatprep.subr.mxu0 0.0
  %2841 = vmatpush1.msra.mxu0 %v1769
  %2842 = vmatprep.subr.mxu0 0.0
  %2843 = vmatpush1.msra.mxu0 %v1770
  %2844 = vmatprep.subr.mxu0 0.0
  %2845 = vmatpush1.msra.mxu0 %v1771
  %2846 = vmatprep.mubr.f32.mxu0 %v2672
  %2847 = vmatmul.mubr.f32.gmra.mrb[0].mxu0 %v2671
  %v2848 = vpop.f32.mrb[0].mxu0
  %v2849 = vadd.f32 %v2774, %v2848
  %v2850 = vpop.f32.mrb[0].mxu0
  %2851 = vmatprep.mubr.f32.mxu0 %v2688
  %2852 = vmatmul.mubr.f32.gmra.mrb[0].mxu0 %v2687
  %v2853 = vpop.f32.mrb[0].mxu0
  %v2854 = vadd.f32 %v2779, %v2853
  %v2855 = vpop.f32.mrb[0].mxu0
  %2856 = vdwg.mxu0
  %2857 = vmatprep.subr.mxu0 0.0
  %2858 = vmatpush1.msra.mxu0 %v1772
  %2859 = vmatprep.subr.mxu0 0.0
  %2860 = vmatpush1.msra.mxu0 %v1773
  %2861 = vmatprep.subr.mxu0 0.0
  %2862 = vmatpush1.msra.mxu0 %v1774
  %2863 = vmatprep.subr.mxu0 0.0
  %2864 = vmatpush1.msra.mxu0 %v1775
  %2865 = vmatprep.subr.mxu0 0.0
  %2866 = vmatpush1.msra.mxu0 %v1776
  %2867 = vmatprep.subr.mxu0 0.0
  %2868 = vmatpush1.msra.mxu0 %v1777
  %2869 = vmatprep.subr.mxu0 0.0
  %2870 = vmatpush1.msra.mxu0 %v1778
  %2871 = vmatprep.subr.mxu0 0.0
  %2872 = vmatpush1.msra.mxu0 %v1779
  %2873 = vmatprep.subr.mxu0 0.0
  %2874 = vmatpush1.msra.mxu0 %v1780
  %2875 = vmatprep.subr.mxu0 0.0
  %2876 = vmatpush1.msra.mxu0 %v1781
  %2877 = vmatprep.subr.mxu0 0.0
  %2878 = vmatpush1.msra.mxu0 %v1782
  %2879 = vmatprep.subr.mxu0 0.0
  %2880 = vmatpush1.msra.mxu0 %v1783
  %2881 = vmatprep.subr.mxu0 0.0
  %2882 = vmatpush1.msra.mxu0 %v1784
  %2883 = vmatprep.subr.mxu0 0.0
  %2884 = vmatpush1.msra.mxu0 %v1785
  %2885 = vmatprep.subr.mxu0 0.0
  %2886 = vmatpush1.msra.mxu0 %v1786
  %2887 = vmatprep.subr.mxu0 0.0
  %2888 = vmatpush1.msra.mxu0 %v1787
  %2889 = vmatprep.subr.mxu0 0.0
  %2890 = vmatpush1.msra.mxu0 %v1788
  %2891 = vmatprep.subr.mxu0 0.0
  %2892 = vmatpush1.msra.mxu0 %v1789
  %2893 = vmatprep.subr.mxu0 0.0
  %2894 = vmatpush1.msra.mxu0 %v1790
  %2895 = vmatprep.subr.mxu0 0.0
  %2896 = vmatpush1.msra.mxu0 %v1791
  %2897 = vmatprep.subr.mxu0 0.0
  %2898 = vmatpush1.msra.mxu0 %v1792
  %2899 = vmatprep.subr.mxu0 0.0
  %2900 = vmatpush1.msra.mxu0 %v1793
  %2901 = vmatprep.subr.mxu0 0.0
  %2902 = vmatpush1.msra.mxu0 %v1794
  %2903 = vmatprep.subr.mxu0 0.0
  %2904 = vmatpush1.msra.mxu0 %v1795
  %2905 = vmatprep.subr.mxu0 0.0
  %2906 = vmatpush1.msra.mxu0 %v1796
  %2907 = vmatprep.subr.mxu0 0.0
  %2908 = vmatpush1.msra.mxu0 %v1797
  %2909 = vmatprep.subr.mxu0 0.0
  %2910 = vmatpush1.msra.mxu0 %v1798
  %2911 = vmatprep.subr.mxu0 0.0
  %2912 = vmatpush1.msra.mxu0 %v1799
  %2913 = vmatprep.subr.mxu0 0.0
  %2914 = vmatpush1.msra.mxu0 %v1800
  %2915 = vmatprep.subr.mxu0 0.0
  %2916 = vmatpush1.msra.mxu0 %v1801
  %2917 = vmatprep.subr.mxu0 0.0
  %2918 = vmatpush1.msra.mxu0 %v1802
  %2919 = vmatprep.subr.mxu0 0.0
  %2920 = vmatpush1.msra.mxu0 %v1803
  %2921 = vmatprep.mubr.f32.mxu0 %v2674
  %2922 = vmatmul.mubr.f32.gmra.mrb[0].mxu0 %v2673
  %v2923 = vpop.f32.mrb[0].mxu0
  %v2924 = vadd.f32 %v2849, %v2923
  %v2925 = vpop.f32.mrb[0].mxu0
  %2926 = vmatprep.mubr.f32.mxu0 %v2690
  %2927 = vmatmul.mubr.f32.gmra.mrb[0].mxu0 %v2689
  %v2928 = vpop.f32.mrb[0].mxu0
  %v2929 = vadd.f32 %v2854, %v2928
  %v2930 = vpop.f32.mrb[0].mxu0
  %2931 = vdwg.mxu0
  %2932 = vmatprep.subr.mxu0 0.0
  %2933 = vmatpush1.msra.mxu0 %v1804
  %2934 = vmatprep.subr.mxu0 0.0
  %2935 = vmatpush1.msra.mxu0 %v1805
  %2936 = vmatprep.subr.mxu0 0.0
  %2937 = vmatpush1.msra.mxu0 %v1806
  %2938 = vmatprep.subr.mxu0 0.0
  %2939 = vmatpush1.msra.mxu0 %v1807
  %2940 = vmatprep.subr.mxu0 0.0
  %2941 = vmatpush1.msra.mxu0 %v1808
  %2942 = vmatprep.subr.mxu0 0.0
  %2943 = vmatpush1.msra.mxu0 %v1809
  %2944 = vmatprep.subr.mxu0 0.0
  %2945 = vmatpush1.msra.mxu0 %v1810
  %2946 = vmatprep.subr.mxu0 0.0
  %2947 = vmatpush1.msra.mxu0 %v1811
  %2948 = vmatprep.subr.mxu0 0.0
  %2949 = vmatpush1.msra.mxu0 %v1812
  %2950 = vmatprep.subr.mxu0 0.0
  %2951 = vmatpush1.msra.mxu0 %v1813
  %2952 = vmatprep.subr.mxu0 0.0
  %2953 = vmatpush1.msra.mxu0 %v1814
  %2954 = vmatprep.subr.mxu0 0.0
  %2955 = vmatpush1.msra.mxu0 %v1815
  %2956 = vmatprep.subr.mxu0 0.0
  %2957 = vmatpush1.msra.mxu0 %v1816
  %2958 = vmatprep.subr.mxu0 0.0
  %2959 = vmatpush1.msra.mxu0 %v1817
  %2960 = vmatprep.subr.mxu0 0.0
  %2961 = vmatpush1.msra.mxu0 %v1818
  %2962 = vmatprep.subr.mxu0 0.0
  %2963 = vmatpush1.msra.mxu0 %v1819
  %2964 = vmatprep.subr.mxu0 0.0
  %2965 = vmatpush1.msra.mxu0 %v1820
  %2966 = vmatprep.subr.mxu0 0.0
  %2967 = vmatpush1.msra.mxu0 %v1821
  %2968 = vmatprep.subr.mxu0 0.0
  %2969 = vmatpush1.msra.mxu0 %v1822
  %2970 = vmatprep.subr.mxu0 0.0
  %2971 = vmatpush1.msra.mxu0 %v1823
  %2972 = vmatprep.subr.mxu0 0.0
  %2973 = vmatpush1.msra.mxu0 %v1824
  %2974 = vmatprep.subr.mxu0 0.0
  %2975 = vmatpush1.msra.mxu0 %v1825
  %2976 = vmatprep.subr.mxu0 0.0
  %2977 = vmatpush1.msra.mxu0 %v1826
  %2978 = vmatprep.subr.mxu0 0.0
  %2979 = vmatpush1.msra.mxu0 %v1827
  %2980 = vmatprep.subr.mxu0 0.0
  %2981 = vmatpush1.msra.mxu0 %v1828
  %2982 = vmatprep.subr.mxu0 0.0
  %2983 = vmatpush1.msra.mxu0 %v1829
  %2984 = vmatprep.subr.mxu0 0.0
  %2985 = vmatpush1.msra.mxu0 %v1830
  %2986 = vmatprep.subr.mxu0 0.0
  %2987 = vmatpush1.msra.mxu0 %v1831
  %2988 = vmatprep.subr.mxu0 0.0
  %2989 = vmatpush1.msra.mxu0 %v1832
  %2990 = vmatprep.subr.mxu0 0.0
  %2991 = vmatpush1.msra.mxu0 %v1833
  %2992 = vmatprep.subr.mxu0 0.0
  %2993 = vmatpush1.msra.mxu0 %v1834
  %2994 = vmatprep.subr.mxu0 0.0
  %2995 = vmatpush1.msra.mxu0 %v1835
  %2996 = vmatprep.mubr.f32.mxu0 %v2676
  %2997 = vmatmul.mubr.f32.gmra.mrb[0].mxu0 %v2675
  %v2998 = vpop.f32.mrb[0].mxu0
  %v2999 = vadd.f32 %v2924, %v2998
  %v3000 = vpop.f32.mrb[0].mxu0
  %3001 = vmatprep.mubr.f32.mxu0 %v2692
  %3002 = vmatmul.mubr.f32.gmra.mrb[0].mxu0 %v2691
  %v3003 = vpop.f32.mrb[0].mxu0
  %v3004 = vadd.f32 %v2929, %v3003
  %v3005 = vpop.f32.mrb[0].mxu0
  %3006 = vdwg.mxu0
  %3007 = vmatprep.subr.mxu0 0.0
  %3008 = vmatpush1.msra.mxu0 %v1836
  %3009 = vmatprep.subr.mxu0 0.0
  %3010 = vmatpush1.msra.mxu0 %v1837
  %3011 = vmatprep.subr.mxu0 0.0
  %3012 = vmatpush1.msra.mxu0 %v1838
  %3013 = vmatprep.subr.mxu0 0.0
  %3014 = vmatpush1.msra.mxu0 %v1839
  %3015 = vmatprep.subr.mxu0 0.0
  %3016 = vmatpush1.msra.mxu0 %v1840
  %3017 = vmatprep.subr.mxu0 0.0
  %3018 = vmatpush1.msra.mxu0 %v1841
  %3019 = vmatprep.subr.mxu0 0.0
  %3020 = vmatpush1.msra.mxu0 %v1842
  %3021 = vmatprep.subr.mxu0 0.0
  %3022 = vmatpush1.msra.mxu0 %v1843
  %3023 = vmatprep.subr.mxu0 0.0
  %3024 = vmatpush1.msra.mxu0 %v1844
  %3025 = vmatprep.subr.mxu0 0.0
  %3026 = vmatpush1.msra.mxu0 %v1845
  %3027 = vmatprep.subr.mxu0 0.0
  %3028 = vmatpush1.msra.mxu0 %v1846
  %3029 = vmatprep.subr.mxu0 0.0
  %3030 = vmatpush1.msra.mxu0 %v1847
  %3031 = vmatprep.subr.mxu0 0.0
  %3032 = vmatpush1.msra.mxu0 %v1848
  %3033 = vmatprep.subr.mxu0 0.0
  %3034 = vmatpush1.msra.mxu0 %v1849
  %3035 = vmatprep.subr.mxu0 0.0
  %3036 = vmatpush1.msra.mxu0 %v1850
  %3037 = vmatprep.subr.mxu0 0.0
  %3038 = vmatpush1.msra.mxu0 %v1851
  %3039 = vmatprep.subr.mxu0 0.0
  %3040 = vmatpush1.msra.mxu0 %v1852
  %3041 = vmatprep.subr.mxu0 0.0
  %3042 = vmatpush1.msra.mxu0 %v1853
  %3043 = vmatprep.subr.mxu0 0.0
  %3044 = vmatpush1.msra.mxu0 %v1854
  %3045 = vmatprep.subr.mxu0 0.0
  %3046 = vmatpush1.msra.mxu0 %v1855
  %3047 = vmatprep.subr.mxu0 0.0
  %3048 = vmatpush1.msra.mxu0 %v1856
  %3049 = vmatprep.subr.mxu0 0.0
  %3050 = vmatpush1.msra.mxu0 %v1857
  %3051 = vmatprep.subr.mxu0 0.0
  %3052 = vmatpush1.msra.mxu0 %v1858
  %3053 = vmatprep.subr.mxu0 0.0
  %3054 = vmatpush1.msra.mxu0 %v1859
  %3055 = vmatprep.subr.mxu0 0.0
  %3056 = vmatpush1.msra.mxu0 %v1860
  %3057 = vmatprep.subr.mxu0 0.0
  %3058 = vmatpush1.msra.mxu0 %v1861
  %3059 = vmatprep.subr.mxu0 0.0
  %3060 = vmatpush1.msra.mxu0 %v1862
  %3061 = vmatprep.subr.mxu0 0.0
  %3062 = vmatpush1.msra.mxu0 %v1863
  %3063 = vmatprep.subr.mxu0 0.0
  %3064 = vmatpush1.msra.mxu0 %v1864
  %3065 = vmatprep.subr.mxu0 0.0
  %3066 = vmatpush1.msra.mxu0 %v1865
  %3067 = vmatprep.subr.mxu0 0.0
  %3068 = vmatpush1.msra.mxu0 %v1866
  %3069 = vmatprep.subr.mxu0 0.0
  %3070 = vmatpush1.msra.mxu0 %v1867
  %3071 = vmatprep.mubr.f32.mxu0 %v2678
  %3072 = vmatmul.mubr.f32.gmra.mrb[0].mxu0 %v2677
  %v3073 = vpop.f32.mrb[0].mxu0
  %v3074 = vadd.f32 %v2999, %v3073
  %v3075 = vpop.f32.mrb[0].mxu0
  %3076 = vmatprep.mubr.f32.mxu0 %v2694
  %3077 = vmatmul.mubr.f32.gmra.mrb[0].mxu0 %v2693
  %v3078 = vpop.f32.mrb[0].mxu0
  %v3079 = vadd.f32 %v3004, %v3078
  %v3080 = vpop.f32.mrb[0].mxu0
  %3081 = vdwg.mxu0
  %3082 = vmatprep.subr.mxu0 0.0
  %3083 = vmatpush1.msra.mxu0 %v1868
  %3084 = vmatprep.subr.mxu0 0.0
  %3085 = vmatpush1.msra.mxu0 %v1869
  %3086 = vmatprep.subr.mxu0 0.0
  %3087 = vmatpush1.msra.mxu0 %v1870
  %3088 = vmatprep.subr.mxu0 0.0
  %3089 = vmatpush1.msra.mxu0 %v1871
  %3090 = vmatprep.subr.mxu0 0.0
  %3091 = vmatpush1.msra.mxu0 %v1872
  %3092 = vmatprep.subr.mxu0 0.0
  %3093 = vmatpush1.msra.mxu0 %v1873
  %3094 = vmatprep.subr.mxu0 0.0
  %3095 = vmatpush1.msra.mxu0 %v1874
  %3096 = vmatprep.subr.mxu0 0.0
  %3097 = vmatpush1.msra.mxu0 %v1875
  %3098 = vmatprep.subr.mxu0 0.0
  %3099 = vmatpush1.msra.mxu0 %v1876
  %3100 = vmatprep.subr.mxu0 0.0
  %3101 = vmatpush1.msra.mxu0 %v1877
  %3102 = vmatprep.subr.mxu0 0.0
  %3103 = vmatpush1.msra.mxu0 %v1878
  %3104 = vmatprep.subr.mxu0 0.0
  %3105 = vmatpush1.msra.mxu0 %v1879
  %3106 = vmatprep.subr.mxu0 0.0
  %3107 = vmatpush1.msra.mxu0 %v1880
  %3108 = vmatprep.subr.mxu0 0.0
  %3109 = vmatpush1.msra.mxu0 %v1881
  %3110 = vmatprep.subr.mxu0 0.0
  %3111 = vmatpush1.msra.mxu0 %v1882
  %3112 = vmatprep.subr.mxu0 0.0
  %3113 = vmatpush1.msra.mxu0 %v1883
  %3114 = vmatprep.subr.mxu0 0.0
  %3115 = vmatpush1.msra.mxu0 %v1884
  %3116 = vmatprep.subr.mxu0 0.0
  %3117 = vmatpush1.msra.mxu0 %v1885
  %3118 = vmatprep.subr.mxu0 0.0
  %3119 = vmatpush1.msra.mxu0 %v1886
  %3120 = vmatprep.subr.mxu0 0.0
  %3121 = vmatpush1.msra.mxu0 %v1887
  %3122 = vmatprep.subr.mxu0 0.0
  %3123 = vmatpush1.msra.mxu0 %v1888
  %3124 = vmatprep.subr.mxu0 0.0
  %3125 = vmatpush1.msra.mxu0 %v1889
  %3126 = vmatprep.subr.mxu0 0.0
  %3127 = vmatpush1.msra.mxu0 %v1890
  %3128 = vmatprep.subr.mxu0 0.0
  %3129 = vmatpush1.msra.mxu0 %v1891
  %3130 = vmatprep.subr.mxu0 0.0
  %3131 = vmatpush1.msra.mxu0 %v1892
  %3132 = vmatprep.subr.mxu0 0.0
  %3133 = vmatpush1.msra.mxu0 %v1893
  %3134 = vmatprep.subr.mxu0 0.0
  %3135 = vmatpush1.msra.mxu0 %v1894
  %3136 = vmatprep.subr.mxu0 0.0
  %3137 = vmatpush1.msra.mxu0 %v1895
  %3138 = vmatprep.subr.mxu0 0.0
  %3139 = vmatpush1.msra.mxu0 %v1896
  %3140 = vmatprep.subr.mxu0 0.0
  %3141 = vmatpush1.msra.mxu0 %v1897
  %3142 = vmatprep.subr.mxu0 0.0
  %3143 = vmatpush1.msra.mxu0 %v1898
  %3144 = vmatprep.subr.mxu0 0.0
  %3145 = vmatpush1.msra.mxu0 %v1899
  %3146 = vmatprep.mubr.f32.mxu0 %v2680
  %3147 = vmatmul.mubr.f32.gmra.mrb[0].mxu0 %v2679
  %v3148 = vpop.f32.mrb[0].mxu0
  %v3149 = vadd.f32 %v3074, %v3148
  %v3150 = vpop.f32.mrb[0].mxu0
  %3151 = vmatprep.mubr.f32.mxu0 %v2696
  %3152 = vmatmul.mubr.f32.gmra.mrb[0].mxu0 %v2695
  %v3153 = vpop.f32.mrb[0].mxu0
  %v3154 = vadd.f32 %v3079, %v3153
  %v3155 = vpop.f32.mrb[0].mxu0
  %3156 = vdwg.mxu0
  %3157 = vmatprep.subr.mxu0 0.0
  %3158 = vmatpush1.msra.mxu0 %v1900
  %3159 = vmatprep.subr.mxu0 0.0
  %3160 = vmatpush1.msra.mxu0 %v1901
  %3161 = vmatprep.subr.mxu0 0.0
  %3162 = vmatpush1.msra.mxu0 %v1902
  %3163 = vmatprep.subr.mxu0 0.0
  %3164 = vmatpush1.msra.mxu0 %v1903
  %3165 = vmatprep.subr.mxu0 0.0
  %3166 = vmatpush1.msra.mxu0 %v1904
  %3167 = vmatprep.subr.mxu0 0.0
  %3168 = vmatpush1.msra.mxu0 %v1905
  %3169 = vmatprep.subr.mxu0 0.0
  %3170 = vmatpush1.msra.mxu0 %v1906
  %3171 = vmatprep.subr.mxu0 0.0
  %3172 = vmatpush1.msra.mxu0 %v1907
  %3173 = vmatprep.subr.mxu0 0.0
  %3174 = vmatpush1.msra.mxu0 %v1908
  %3175 = vmatprep.subr.mxu0 0.0
  %3176 = vmatpush1.msra.mxu0 %v1909
  %3177 = vmatprep.subr.mxu0 0.0
  %3178 = vmatpush1.msra.mxu0 %v1910
  %3179 = vmatprep.subr.mxu0 0.0
  %3180 = vmatpush1.msra.mxu0 %v1911
  %3181 = vmatprep.subr.mxu0 0.0
  %3182 = vmatpush1.msra.mxu0 %v1912
  %3183 = vmatprep.subr.mxu0 0.0
  %3184 = vmatpush1.msra.mxu0 %v1913
  %3185 = vmatprep.subr.mxu0 0.0
  %3186 = vmatpush1.msra.mxu0 %v1914
  %3187 = vmatprep.subr.mxu0 0.0
  %3188 = vmatpush1.msra.mxu0 %v1915
  %3189 = vmatprep.subr.mxu0 0.0
  %3190 = vmatpush1.msra.mxu0 %v1916
  %3191 = vmatprep.subr.mxu0 0.0
  %3192 = vmatpush1.msra.mxu0 %v1917
  %3193 = vmatprep.subr.mxu0 0.0
  %3194 = vmatpush1.msra.mxu0 %v1918
  %3195 = vmatprep.subr.mxu0 0.0
  %3196 = vmatpush1.msra.mxu0 %v1919
  %3197 = vmatprep.subr.mxu0 0.0
  %3198 = vmatpush1.msra.mxu0 %v1920
  %3199 = vmatprep.subr.mxu0 0.0
  %3200 = vmatpush1.msra.mxu0 %v1921
  %3201 = vmatprep.subr.mxu0 0.0
  %3202 = vmatpush1.msra.mxu0 %v1922
  %3203 = vmatprep.subr.mxu0 0.0
  %3204 = vmatpush1.msra.mxu0 %v1923
  %3205 = vmatprep.subr.mxu0 0.0
  %3206 = vmatpush1.msra.mxu0 %v1924
  %3207 = vmatprep.subr.mxu0 0.0
  %3208 = vmatpush1.msra.mxu0 %v1925
  %3209 = vmatprep.subr.mxu0 0.0
  %3210 = vmatpush1.msra.mxu0 %v1926
  %3211 = vmatprep.subr.mxu0 0.0
  %3212 = vmatpush1.msra.mxu0 %v1927
  %3213 = vmatprep.subr.mxu0 0.0
  %3214 = vmatpush1.msra.mxu0 %v1928
  %3215 = vmatprep.subr.mxu0 0.0
  %3216 = vmatpush1.msra.mxu0 %v1929
  %3217 = vmatprep.subr.mxu0 0.0
  %3218 = vmatpush1.msra.mxu0 %v1930
  %3219 = vmatprep.subr.mxu0 0.0
  %3220 = vmatpush1.msra.mxu0 %v1931
  %3221 = vmatprep.mubr.f32.mxu0 %v2682
  %3222 = vmatmul.mubr.f32.gmra.mrb[0].mxu0 %v2681
  %v3223 = vpop.f32.mrb[0].mxu0
  %v3224 = vadd.f32 %v3149, %v3223
  %v3225 = vpop.f32.mrb[0].mxu0
  %3226 = vmatprep.mubr.f32.mxu0 %v2698
  %3227 = vmatmul.mubr.f32.gmra.mrb[0].mxu0 %v2697
  %v3228 = vpop.f32.mrb[0].mxu0
  %v3229 = vadd.f32 %v3154, %v3228
  %v3230 = vpop.f32.mrb[0].mxu0
  %3231 = vdwg.mxu0
  %3232 = vmatprep.subr.mxu0 0.0
  %3233 = vmatpush1.msra.mxu0 %v1932
  %3234 = vmatprep.subr.mxu0 0.0
  %3235 = vmatpush1.msra.mxu0 %v1933
  %3236 = vmatprep.subr.mxu0 0.0
  %3237 = vmatpush1.msra.mxu0 %v1934
  %3238 = vmatprep.subr.mxu0 0.0
  %3239 = vmatpush1.msra.mxu0 %v1935
  %3240 = vmatprep.subr.mxu0 0.0
  %3241 = vmatpush1.msra.mxu0 %v1936
  %3242 = vmatprep.subr.mxu0 0.0
  %3243 = vmatpush1.msra.mxu0 %v1937
  %3244 = vmatprep.subr.mxu0 0.0
  %3245 = vmatpush1.msra.mxu0 %v1938
  %3246 = vmatprep.subr.mxu0 0.0
  %3247 = vmatpush1.msra.mxu0 %v1939
  %3248 = vmatprep.subr.mxu0 0.0
  %3249 = vmatpush1.msra.mxu0 %v1940
  %3250 = vmatprep.subr.mxu0 0.0
  %3251 = vmatpush1.msra.mxu0 %v1941
  %3252 = vmatprep.subr.mxu0 0.0
  %3253 = vmatpush1.msra.mxu0 %v1942
  %3254 = vmatprep.subr.mxu0 0.0
  %3255 = vmatpush1.msra.mxu0 %v1943
  %3256 = vmatprep.subr.mxu0 0.0
  %3257 = vmatpush1.msra.mxu0 %v1944
  %3258 = vmatprep.subr.mxu0 0.0
  %3259 = vmatpush1.msra.mxu0 %v1945
  %3260 = vmatprep.subr.mxu0 0.0
  %3261 = vmatpush1.msra.mxu0 %v1946
  %3262 = vmatprep.subr.mxu0 0.0
  %3263 = vmatpush1.msra.mxu0 %v1947
  %3264 = vmatprep.subr.mxu0 0.0
  %3265 = vmatpush1.msra.mxu0 %v1948
  %3266 = vmatprep.subr.mxu0 0.0
  %3267 = vmatpush1.msra.mxu0 %v1949
  %3268 = vmatprep.subr.mxu0 0.0
  %3269 = vmatpush1.msra.mxu0 %v1950
  %3270 = vmatprep.subr.mxu0 0.0
  %3271 = vmatpush1.msra.mxu0 %v1951
  %3272 = vmatprep.subr.mxu0 0.0
  %3273 = vmatpush1.msra.mxu0 %v1952
  %3274 = vmatprep.subr.mxu0 0.0
  %3275 = vmatpush1.msra.mxu0 %v1953
  %3276 = vmatprep.subr.mxu0 0.0
  %3277 = vmatpush1.msra.mxu0 %v1954
  %3278 = vmatprep.subr.mxu0 0.0
  %3279 = vmatpush1.msra.mxu0 %v1955
  %3280 = vmatprep.subr.mxu0 0.0
  %3281 = vmatpush1.msra.mxu0 %v1956
  %3282 = vmatprep.subr.mxu0 0.0
  %3283 = vmatpush1.msra.mxu0 %v1957
  %3284 = vmatprep.subr.mxu0 0.0
  %3285 = vmatpush1.msra.mxu0 %v1958
  %3286 = vmatprep.subr.mxu0 0.0
  %3287 = vmatpush1.msra.mxu0 %v1959
  %3288 = vmatprep.subr.mxu0 0.0
  %3289 = vmatpush1.msra.mxu0 %v1960
  %3290 = vmatprep.subr.mxu0 0.0
  %3291 = vmatpush1.msra.mxu0 %v1961
  %3292 = vmatprep.subr.mxu0 0.0
  %3293 = vmatpush1.msra.mxu0 %v1962
  %3294 = vmatprep.subr.mxu0 0.0
  %3295 = vmatpush1.msra.mxu0 %v1963
  %3296 = vmatprep.mubr.f32.mxu0 %v2684
  %3297 = vmatmul.mubr.f32.gmra.mrb[0].mxu0 %v2683
  %v3298 = vpop.f32.mrb[0].mxu0
  %v3299 = vadd.f32 %v3224, %v3298
  %v3300 = vpop.f32.mrb[0].mxu0
  %3301 = vmatprep.mubr.f32.mxu0 %v2700
  %3302 = vmatmul.mubr.f32.gmra.mrb[0].mxu0 %v2699
  %v3303 = vpop.f32.mrb[0].mxu0
  %v3304 = vadd.f32 %v3229, %v3303
  %v3305 = vpop.f32.mrb[0].mxu0
  %3306 = vdwg.mxu0
  %v3307 = vld [vmem:[%s11] sm:$0x1]
  %v3308 = vld [vmem:[%s12] sm:$0x1]
  %v3309 = vadd.f32 %v1640, %v3299
  %v3310 = vadd.f32 %v1641, %v3304
  %v3311 = vsel %vm62, %v3309, 0.0
  %3312 = vadd.xlane.f32.xlu0 %v3311
  %v3313 = vpop.xlane.xlu0 %3312
  %v3314 = vsel %vm62, %v3310, 0.0
  %3315 = vadd.xlane.f32.xlu0 %v3314
  %v3316 = vpop.xlane.xlu0 %3315
  %v3317 = vmul.f32 %v3313, %v1605
  %v3318 = vmul.f32 %v3316, %v1605
  %v3319 = vsub.f32 %v3309, %v3317
  %v3320 = vsub.f32 %v3310, %v3318
  %v3321 = vmul.f32 %v3319, %v3319
  %v3322 = vmul.f32 %v3320, %v3320
  %v3323 = vsel %vm62, %v3321, 0.0
  %3324 = vadd.xlane.f32.xlu0 %v3323
  %v3325 = vpop.xlane.xlu0 %3324
  %v3326 = vsel %vm62, %v3322, 0.0
  %3327 = vadd.xlane.f32.xlu0 %v3326
  %v3328 = vpop.xlane.xlu0 %3327
  %v3329 = vmul.f32 %v3325, %v1605
  %v3330 = vmul.f32 %v3328, %v1605
  %v3331 = vadd.f32 %v3329, 1e-05
  %v3332 = vadd.f32 %v3330, 1e-05
  %v3333 = vrsqrt.pop %v3331
  %v3334 = vrsqrt.pop %v3332
  %v3335 = vmul.f32 %v3319, %v3333
  %v3336 = vmul.f32 %v3320, %v3334
  %v3338 = vlaneseq
  %v3339 = vshrl.u32 %v3338, 7
  %v3340 = vsub.s32 0, %v3339
  %v3341 = vrot.slane %v3307, %v3340
  %v3343 = vmul.f32 %v3335, %v3341
  %v3344 = vmul.f32 %v3336, %v3341
  %v3346 = vlaneseq
  %v3347 = vshrl.u32 %v3346, 7
  %v3348 = vsub.s32 0, %v3347
  %v3349 = vrot.slane %v3308, %v3348
  %v3351 = vadd.f32 %v3343, %v3349
  %v3352 = vadd.f32 %v3344, %v3349
  %3353 = vst.msk [vmem:[%s13] sm:$0xff] %vm62, %v3351
  %3354 = vst.msk [vmem:[%s13 + $0x8] sm:$0xff] %vm62, %v3352
  // Predicated region
  $region54: #{transformer1_forward.4} parent=0 // pred_check
    _
  $region55: #{transformer1_forward.4} parent=0 // pred_check_branch
    %3356 = sbr.rel (0) target = $region57
  $region56: #{transformer1_forward.4} parent=0 // pred_region
    _
  $region57: #{transformer1_forward.4} parent=0 // pred_fallthru
    _
  // Predicated region
  $region58: #{transformer1_forward.4} parent=0 // pred_check
    _
  $region59: #{transformer1_forward.4} parent=0 // pred_check_branch
    %3358 = sbr.rel (0) target = $region61
  $region60: #{transformer1_forward.4} parent=0 // pred_region
    _
  $region61: #{transformer1_forward.4} parent=0 // pred_fallthru
    _

// kernel: transformer1_forward.6
$region0: #{transformer1_forward.6}
  #allocation0 [shape = 'u32[]', space=smem, size = 0x4, offset = 0x4, fixed_abs, tag = 'smem constant byte address 0x4 - core index']
  #allocation1 [shape = 'u32[144,128]{1,0:T(1,128)}', space=vmem, size = 0x12000, scoped, tag = 'internal scratch']
  #allocation2 [shape = 'f32[16,32]{1,0:T(8,128)}', space=vmem, size = 0x2000, scoped, tag = 'scratch operand']
  %s0 = inlined_call_operand.vmem [shape: f32[16,32], index: 0, kind: input, shape index: {}]
  %s1 = inlined_call_operand.vmem [shape: f32[16,32], index: 1, kind: input, shape index: {}]
  %s2 = inlined_call_operand.vmem [shape: f32[32,96], index: 2, kind: input, shape index: {}]
  %s3 = inlined_call_operand.vmem [shape: f32[1,96], index: 3, kind: input, shape index: {}]
  %s4 = inlined_call_operand.vmem [shape: f32[32,32], index: 4, kind: input, shape index: {}]
  %s5 = inlined_call_operand.vmem [shape: f32[1,32], index: 5, kind: input, shape index: {}]
  %s6 = inlined_call_operand.vmem [shape: f32[1,32], index: 6, kind: input, shape index: {}]
  %s7 = inlined_call_operand.vmem [shape: f32[1,32], index: 7, kind: input, shape index: {}]
  %s8 = inlined_call_operand.vmem [shape: f32[32,32], index: 8, kind: input, shape index: {}]
  %s9 = inlined_call_operand.vmem [shape: f32[1,32], index: 9, kind: input, shape index: {}]
  %s10 = inlined_call_operand.vmem [shape: f32[32,64], index: 10, kind: input, shape index: {}]
  %s11 = inlined_call_operand.vmem [shape: f32[1,64], index: 11, kind: input, shape index: {}]
  %s12 = inlined_call_operand.vmem [shape: f32[32,32], index: 12, kind: input, shape index: {}]
  %s13 = inlined_call_operand.vmem [shape: f32[1,32], index: 13, kind: input, shape index: {}]
  %s14 = inlined_call_operand.vmem [shape: f32[1,32], index: 14, kind: input, shape index: {}]
  %s15 = inlined_call_operand.vmem [shape: f32[1,32], index: 15, kind: input, shape index: {}]
  %s16 = inlined_call_operand.vmem [shape: f32[32,2048], index: 16, kind: input, shape index: {}]
  %s17 = inlined_call_operand.vmem [shape: f32[1,2048], index: 17, kind: input, shape index: {}]
  %s18 = inlined_call_operand.vmem [shape: f32[2048,32], index: 18, kind: input, shape index: {}]
  %s19 = inlined_call_operand.vmem [shape: f32[1,32], index: 19, kind: input, shape index: {}]
  %s20 = inlined_call_operand.vmem [shape: f32[1,32], index: 20, kind: input, shape index: {}]
  %s21 = inlined_call_operand.vmem [shape: f32[1,32], index: 21, kind: input, shape index: {}]
  %s22 = inlined_call_operand.vmem [shape: f32[16,32], index: 22, kind: output, shape index: {}]
  %s23 = sld [smem:[#allocation0]]
  $region98: #{transformer1_forward.6} parent=0
    _
  %s25 = ssub.s32 1, %s23
  %s26 = scalar_select 0, %s25, %s23
  // Predicated region
  $region2: #{transformer1_forward.6} parent=0 // pred_check
    _
  $region3: #{transformer1_forward.6} parent=0 // pred_check_branch
    %28 = sbr.rel (0) target = $region5
  $region4: #{transformer1_forward.6} parent=0 // pred_region
    _
  $region5: #{transformer1_forward.6} parent=0 // pred_fallthru
    _
  // Predicated region
  $region6: #{transformer1_forward.6} parent=0 // pred_check
    _
  $region7: #{transformer1_forward.6} parent=0 // pred_check_branch
    %30 = sbr.rel (0) target = $region9
  $region8: #{transformer1_forward.6} parent=0 // pred_region
    _
  $region9: #{transformer1_forward.6} parent=0 // pred_fallthru
    _
  // Predicated region
  $region10: #{transformer1_forward.6} parent=0 // pred_check
    _
  $region11: #{transformer1_forward.6} parent=0 // pred_check_branch
    %32 = sbr.rel (0) target = $region13
  $region12: #{transformer1_forward.6} parent=0 // pred_region
    _
  $region13: #{transformer1_forward.6} parent=0 // pred_fallthru
    _
  // Predicated region
  $region14: #{transformer1_forward.6} parent=0 // pred_check
    _
  $region15: #{transformer1_forward.6} parent=0 // pred_check_branch
    %34 = sbr.rel (0) target = $region17
  $region16: #{transformer1_forward.6} parent=0 // pred_region
    _
  $region17: #{transformer1_forward.6} parent=0 // pred_fallthru
    _
  // Predicated region
  $region18: #{transformer1_forward.6} parent=0 // pred_check
    _
  $region19: #{transformer1_forward.6} parent=0 // pred_check_branch
    %36 = sbr.rel (0) target = $region21
  $region20: #{transformer1_forward.6} parent=0 // pred_region
    _
  $region21: #{transformer1_forward.6} parent=0 // pred_fallthru
    _
  // Predicated region
  $region22: #{transformer1_forward.6} parent=0 // pred_check
    _
  $region23: #{transformer1_forward.6} parent=0 // pred_check_branch
    %38 = sbr.rel (0) target = $region25
  $region24: #{transformer1_forward.6} parent=0 // pred_region
    _
  $region25: #{transformer1_forward.6} parent=0 // pred_fallthru
    _
  // Predicated region
  $region26: #{transformer1_forward.6} parent=0 // pred_check
    _
  $region27: #{transformer1_forward.6} parent=0 // pred_check_branch
    %40 = sbr.rel (0) target = $region29
  $region28: #{transformer1_forward.6} parent=0 // pred_region
    _
  $region29: #{transformer1_forward.6} parent=0 // pred_fallthru
    _
  // Predicated region
  $region30: #{transformer1_forward.6} parent=0 // pred_check
    _
  $region31: #{transformer1_forward.6} parent=0 // pred_check_branch
    %42 = sbr.rel (0) target = $region33
  $region32: #{transformer1_forward.6} parent=0 // pred_region
    _
  $region33: #{transformer1_forward.6} parent=0 // pred_fallthru
    _
  // Predicated region
  $region34: #{transformer1_forward.6} parent=0 // pred_check
    _
  $region35: #{transformer1_forward.6} parent=0 // pred_check_branch
    %44 = sbr.rel (0) target = $region37
  $region36: #{transformer1_forward.6} parent=0 // pred_region
    _
  $region37: #{transformer1_forward.6} parent=0 // pred_fallthru
    _
  // Predicated region
  $region38: #{transformer1_forward.6} parent=0 // pred_check
    _
  $region39: #{transformer1_forward.6} parent=0 // pred_check_branch
    %46 = sbr.rel (0) target = $region41
  $region40: #{transformer1_forward.6} parent=0 // pred_region
    _
  $region41: #{transformer1_forward.6} parent=0 // pred_fallthru
    _
  // Predicated region
  $region42: #{transformer1_forward.6} parent=0 // pred_check
    _
  $region43: #{transformer1_forward.6} parent=0 // pred_check_branch
    %48 = sbr.rel (0) target = $region45
  $region44: #{transformer1_forward.6} parent=0 // pred_region
    _
  $region45: #{transformer1_forward.6} parent=0 // pred_fallthru
    _
  // Predicated region
  $region46: #{transformer1_forward.6} parent=0 // pred_check
    _
  $region47: #{transformer1_forward.6} parent=0 // pred_check_branch
    %50 = sbr.rel (0) target = $region49
  $region48: #{transformer1_forward.6} parent=0 // pred_region
    _
  $region49: #{transformer1_forward.6} parent=0 // pred_fallthru
    _
  // Predicated region
  $region50: #{transformer1_forward.6} parent=0 // pred_check
    _
  $region51: #{transformer1_forward.6} parent=0 // pred_check_branch
    %52 = sbr.rel (0) target = $region53
  $region52: #{transformer1_forward.6} parent=0 // pred_region
    _
  $region53: #{transformer1_forward.6} parent=0 // pred_fallthru
    _
  // Predicated region
  $region54: #{transformer1_forward.6} parent=0 // pred_check
    _
  $region55: #{transformer1_forward.6} parent=0 // pred_check_branch
    %54 = sbr.rel (0) target = $region57
  $region56: #{transformer1_forward.6} parent=0 // pred_region
    _
  $region57: #{transformer1_forward.6} parent=0 // pred_fallthru
    _
  // Predicated region
  $region58: #{transformer1_forward.6} parent=0 // pred_check
    _
  $region59: #{transformer1_forward.6} parent=0 // pred_check_branch
    %56 = sbr.rel (0) target = $region61
  $region60: #{transformer1_forward.6} parent=0 // pred_region
    _
  $region61: #{transformer1_forward.6} parent=0 // pred_fallthru
    _
  // Predicated region
  $region62: #{transformer1_forward.6} parent=0 // pred_check
    _
  $region63: #{transformer1_forward.6} parent=0 // pred_check_branch
    %58 = sbr.rel (0) target = $region65
  $region64: #{transformer1_forward.6} parent=0 // pred_region
    _
  $region65: #{transformer1_forward.6} parent=0 // pred_fallthru
    _
  // Predicated region
  $region66: #{transformer1_forward.6} parent=0 // pred_check
    _
  $region67: #{transformer1_forward.6} parent=0 // pred_check_branch
    %60 = sbr.rel (0) target = $region69
  $region68: #{transformer1_forward.6} parent=0 // pred_region
    _
  $region69: #{transformer1_forward.6} parent=0 // pred_fallthru
    _
  // Predicated region
  $region70: #{transformer1_forward.6} parent=0 // pred_check
    _
  $region71: #{transformer1_forward.6} parent=0 // pred_check_branch
    %62 = sbr.rel (0) target = $region73
  $region72: #{transformer1_forward.6} parent=0 // pred_region
    _
  $region73: #{transformer1_forward.6} parent=0 // pred_fallthru
    _
  // Predicated region
  $region74: #{transformer1_forward.6} parent=0 // pred_check
    _
  $region75: #{transformer1_forward.6} parent=0 // pred_check_branch
    %64 = sbr.rel (0) target = $region77
  $region76: #{transformer1_forward.6} parent=0 // pred_region
    _
  $region77: #{transformer1_forward.6} parent=0 // pred_fallthru
    _
  // Predicated region
  $region78: #{transformer1_forward.6} parent=0 // pred_check
    _
  $region79: #{transformer1_forward.6} parent=0 // pred_check_branch
    %66 = sbr.rel (0) target = $region81
  $region80: #{transformer1_forward.6} parent=0 // pred_region
    _
  $region81: #{transformer1_forward.6} parent=0 // pred_fallthru
    _
  // Predicated region
  $region82: #{transformer1_forward.6} parent=0 // pred_check
    _
  $region83: #{transformer1_forward.6} parent=0 // pred_check_branch
    %68 = sbr.rel (0) target = $region85
  $region84: #{transformer1_forward.6} parent=0 // pred_region
    _
  $region85: #{transformer1_forward.6} parent=0 // pred_fallthru
    _
  // Predicated region
  $region86: #{transformer1_forward.6} parent=0 // pred_check
    _
  $region87: #{transformer1_forward.6} parent=0 // pred_check_branch
    %70 = sbr.rel (0) target = $region89
  $region88: #{transformer1_forward.6} parent=0 // pred_region
    _
  $region89: #{transformer1_forward.6} parent=0 // pred_fallthru
    _
  %v71 = vld [vmem:[%s0] sm:$0xff]
  %v72 = vld [vmem:[%s0 + $0x8] sm:$0xff]
  %v73 = vld [vmem:[%s1] sm:$0xff]
  %v74 = vld [vmem:[%s1 + $0x8] sm:$0xff]
  %v75 = vld [vmem:[%s2] sm:$0xff]
  %v76 = vld [vmem:[%s2 + $0x8] sm:$0xff]
  %v77 = vld [vmem:[%s2 + $0x10] sm:$0xff]
  %v78 = vld [vmem:[%s2 + $0x18] sm:$0xff]
  %v79 = vld [vmem:[%s3] sm:$0x1]
  %v80 = vld [vmem:[%s4] sm:$0xff]
  %v81 = vld [vmem:[%s4 + $0x8] sm:$0xff]
  %v82 = vld [vmem:[%s4 + $0x10] sm:$0xff]
  %v83 = vld [vmem:[%s4 + $0x18] sm:$0xff]
  %v84 = vld [vmem:[%s5] sm:$0x1]
  %v86 = vlaneseq
  %v87 = vshrl.u32 %v86, 7
  %v88 = vsub.s32 0, %v87
  %v89 = vrot.slane %v79, %v88
  %vm91 = vcmask 261120
  %v93 = vsel %vm91, %v71, 0
  %v96 = vsel %vm91, %v72, 0
  %98 = vmatprep.subr.mxu0 0.0
  %99 = vmatpush1.msra.mxu0 %v75
  %100 = vmatprep.subr.mxu0 0.0
  %101 = vmatpush1.msra.mxu0 %v76
  %102 = vmatprep.subr.mxu0 0.0
  %103 = vmatpush1.msra.mxu0 %v77
  %104 = vmatprep.subr.mxu0 0.0
  %105 = vmatpush1.msra.mxu0 %v78
  %106 = vmatprep.subr.mxu0 0.0
  %107 = vmatpush1.msra.mxu0 0.0
  %108 = vmatprep.subr.mxu0 0.0
  %109 = vmatpush1.msra.mxu0 0.0
  %110 = vmatprep.subr.mxu0 0.0
  %111 = vmatpush1.msra.mxu0 0.0
  %112 = vmatprep.subr.mxu0 0.0
  %113 = vmatpush1.msra.mxu0 0.0
  %114 = vmatprep.subr.mxu0 0.0
  %115 = vmatpush1.msra.mxu0 0.0
  %116 = vmatprep.subr.mxu0 0.0
  %117 = vmatpush1.msra.mxu0 0.0
  %118 = vmatprep.subr.mxu0 0.0
  %119 = vmatpush1.msra.mxu0 0.0
  %120 = vmatprep.subr.mxu0 0.0
  %121 = vmatpush1.msra.mxu0 0.0
  %122 = vmatprep.subr.mxu0 0.0
  %123 = vmatpush1.msra.mxu0 0.0
  %124 = vmatprep.subr.mxu0 0.0
  %125 = vmatpush1.msra.mxu0 0.0
  %126 = vmatprep.subr.mxu0 0.0
  %127 = vmatpush1.msra.mxu0 0.0
  %128 = vmatprep.subr.mxu0 0.0
  %129 = vmatpush1.msra.mxu0 0.0
  %130 = vmatprep.subr.mxu0 0.0
  %131 = vmatpush1.msra.mxu0 0.0
  %132 = vmatprep.subr.mxu0 0.0
  %133 = vmatpush1.msra.mxu0 0.0
  %134 = vmatprep.subr.mxu0 0.0
  %135 = vmatpush1.msra.mxu0 0.0
  %136 = vmatprep.subr.mxu0 0.0
  %137 = vmatpush1.msra.mxu0 0.0
  %138 = vmatprep.subr.mxu0 0.0
  %139 = vmatpush1.msra.mxu0 0.0
  %140 = vmatprep.subr.mxu0 0.0
  %141 = vmatpush1.msra.mxu0 0.0
  %142 = vmatprep.subr.mxu0 0.0
  %143 = vmatpush1.msra.mxu0 0.0
  %144 = vmatprep.subr.mxu0 0.0
  %145 = vmatpush1.msra.mxu0 0.0
  %146 = vmatprep.subr.mxu0 0.0
  %147 = vmatpush1.msra.mxu0 0.0
  %148 = vmatprep.subr.mxu0 0.0
  %149 = vmatpush1.msra.mxu0 0.0
  %150 = vmatprep.subr.mxu0 0.0
  %151 = vmatpush1.msra.mxu0 0.0
  %152 = vmatprep.subr.mxu0 0.0
  %153 = vmatpush1.msra.mxu0 0.0
  %154 = vmatprep.subr.mxu0 0.0
  %155 = vmatpush1.msra.mxu0 0.0
  %156 = vmatprep.subr.mxu0 0.0
  %157 = vmatpush1.msra.mxu0 0.0
  %158 = vmatprep.subr.mxu0 0.0
  %159 = vmatpush1.msra.mxu0 0.0
  %160 = vmatprep.subr.mxu0 0.0
  %161 = vmatpush1.msra.mxu0 0.0
  %162 = vmatprep.mubr.f32.mxu0 0.0
  %163 = vmatmul.mubr.f32.gmra.mrb[0].mxu0 %v93
  %v164 = vpop.f32.mrb[0].mxu0
  %v165 = vadd.f32 %v89, %v164
  %v166 = vpop.f32.mrb[0].mxu0
  %167 = vmatprep.mubr.f32.mxu0 0.0
  %168 = vmatmul.mubr.f32.gmra.mrb[0].mxu0 %v96
  %v169 = vpop.f32.mrb[0].mxu0
  %v170 = vadd.f32 %v89, %v169
  %v171 = vpop.f32.mrb[0].mxu0
  %172 = vdwg.mxu0
  %174 = vrot.lane.b32.xlu0 %v165, 96
  %v175 = vpop.permute.xlu0 %174
  %vm176 = vcmask 64512
  %v177 = vsel %vm176, %v165, 0
  %v179 = vsel %vm176, %v175, 0
  %181 = vmatprep.subr.mxu0 0.0
  %182 = vmatpush1.xpose.msra.mxu0 %v179
  %183 = vmatprep.subr.mxu0 0.0
  %184 = vmatpush1.xpose.msra.mxu0 0.0
  %185 = vmatprep.subr.mxu0 0.0
  %186 = vmatpush1.xpose.msra.mxu0 0.0
  %187 = vmatprep.subr.mxu0 0.0
  %188 = vmatpush1.xpose.msra.mxu0 0.0
  %189 = vmatprep.subr.mxu0 0.0
  %190 = vmatpush1.xpose.msra.mxu0 0.0
  %191 = vmatprep.subr.mxu0 0.0
  %192 = vmatpush1.xpose.msra.mxu0 0.0
  %193 = vmatprep.subr.mxu0 0.0
  %194 = vmatpush1.xpose.msra.mxu0 0.0
  %195 = vmatprep.subr.mxu0 0.0
  %196 = vmatpush1.xpose.msra.mxu0 0.0
  %197 = vmatprep.subr.mxu0 0.0
  %198 = vmatpush1.xpose.msra.mxu0 0.0
  %199 = vmatprep.subr.mxu0 0.0
  %200 = vmatpush1.xpose.msra.mxu0 0.0
  %201 = vmatprep.subr.mxu0 0.0
  %202 = vmatpush1.xpose.msra.mxu0 0.0
  %203 = vmatprep.subr.mxu0 0.0
  %204 = vmatpush1.xpose.msra.mxu0 0.0
  %205 = vmatprep.subr.mxu0 0.0
  %206 = vmatpush1.xpose.msra.mxu0 0.0
  %207 = vmatprep.subr.mxu0 0.0
  %208 = vmatpush1.xpose.msra.mxu0 0.0
  %209 = vmatprep.subr.mxu0 0.0
  %210 = vmatpush1.xpose.msra.mxu0 0.0
  %211 = vmatprep.subr.mxu0 0.0
  %212 = vmatpush1.xpose.msra.mxu0 0.0
  %213 = vmatprep.subr.mxu0 0.0
  %214 = vmatpush1.xpose.msra.mxu0 0.0
  %215 = vmatprep.subr.mxu0 0.0
  %216 = vmatpush1.xpose.msra.mxu0 0.0
  %217 = vmatprep.subr.mxu0 0.0
  %218 = vmatpush1.xpose.msra.mxu0 0.0
  %219 = vmatprep.subr.mxu0 0.0
  %220 = vmatpush1.xpose.msra.mxu0 0.0
  %221 = vmatprep.subr.mxu0 0.0
  %222 = vmatpush1.xpose.msra.mxu0 0.0
  %223 = vmatprep.subr.mxu0 0.0
  %224 = vmatpush1.xpose.msra.mxu0 0.0
  %225 = vmatprep.subr.mxu0 0.0
  %226 = vmatpush1.xpose.msra.mxu0 0.0
  %227 = vmatprep.subr.mxu0 0.0
  %228 = vmatpush1.xpose.msra.mxu0 0.0
  %229 = vmatprep.subr.mxu0 0.0
  %230 = vmatpush1.xpose.msra.mxu0 0.0
  %231 = vmatprep.subr.mxu0 0.0
  %232 = vmatpush1.xpose.msra.mxu0 0.0
  %233 = vmatprep.subr.mxu0 0.0
  %234 = vmatpush1.xpose.msra.mxu0 0.0
  %235 = vmatprep.subr.mxu0 0.0
  %236 = vmatpush1.xpose.msra.mxu0 0.0
  %237 = vmatprep.subr.mxu0 0.0
  %238 = vmatpush1.xpose.msra.mxu0 0.0
  %239 = vmatprep.subr.mxu0 0.0
  %240 = vmatpush1.xpose.msra.mxu0 0.0
  %241 = vmatprep.subr.mxu0 0.0
  %242 = vmatpush1.xpose.msra.mxu0 0.0
  %243 = vmatprep.subr.mxu0 0.0
  %244 = vmatpush1.xpose.msra.mxu0 0.0
  %245 = vmatprep.mubr.f32.mxu0 0.0
  %246 = vmatmul.mubr.f32.gmra.mrb[0].mxu0 %v177
  %v247 = vpop.f32.mrb[0].mxu0
  %v248 = vadd.f32 0.0, %v247
  %v249 = vpop.f32.mrb[0].mxu0
  %250 = vdwg.mxu0
  %v251 = vmul.f32 %v248, 0.35355338
  %v252 = vsel %vm176, %v251, -inf
  %253 = vmax.xlane.f32.xlu0 %v252
  %v254 = vpop.xlane.xlu0 %253
  %v255 = vsub.f32 %v251, %v254
  %v256 = vmul.f32 %v255, 1.442695
  %v257 = vpow.pop %v256
  %v258 = vsel %vm176, %v257, 0.0
  %259 = vadd.xlane.f32.xlu0 %v258
  %v260 = vpop.xlane.xlu0 %259
  %v261 = vrcp.pop %v260
  %v262 = vmul.f32 %v257, %v261
  %263 = vrot.lane.b32.xlu0 %v165, 64
  %v264 = vpop.permute.xlu0 %263
  %v267 = vsel %vm176, %v262, 0
  %269 = vmatprep.subr.mxu0 0.0
  %270 = vmatpush1.msra.mxu0 %v264
  %271 = vmatprep.subr.mxu0 0.0
  %272 = vmatpush1.msra.mxu0 0.0
  %273 = vmatprep.subr.mxu0 0.0
  %274 = vmatpush1.msra.mxu0 0.0
  %275 = vmatprep.subr.mxu0 0.0
  %276 = vmatpush1.msra.mxu0 0.0
  %277 = vmatprep.subr.mxu0 0.0
  %278 = vmatpush1.msra.mxu0 0.0
  %279 = vmatprep.subr.mxu0 0.0
  %280 = vmatpush1.msra.mxu0 0.0
  %281 = vmatprep.subr.mxu0 0.0
  %282 = vmatpush1.msra.mxu0 0.0
  %283 = vmatprep.subr.mxu0 0.0
  %284 = vmatpush1.msra.mxu0 0.0
  %285 = vmatprep.subr.mxu0 0.0
  %286 = vmatpush1.msra.mxu0 0.0
  %287 = vmatprep.subr.mxu0 0.0
  %288 = vmatpush1.msra.mxu0 0.0
  %289 = vmatprep.subr.mxu0 0.0
  %290 = vmatpush1.msra.mxu0 0.0
  %291 = vmatprep.subr.mxu0 0.0
  %292 = vmatpush1.msra.mxu0 0.0
  %293 = vmatprep.subr.mxu0 0.0
  %294 = vmatpush1.msra.mxu0 0.0
  %295 = vmatprep.subr.mxu0 0.0
  %296 = vmatpush1.msra.mxu0 0.0
  %297 = vmatprep.subr.mxu0 0.0
  %298 = vmatpush1.msra.mxu0 0.0
  %299 = vmatprep.subr.mxu0 0.0
  %300 = vmatpush1.msra.mxu0 0.0
  %301 = vmatprep.subr.mxu0 0.0
  %302 = vmatpush1.msra.mxu0 0.0
  %303 = vmatprep.subr.mxu0 0.0
  %304 = vmatpush1.msra.mxu0 0.0
  %305 = vmatprep.subr.mxu0 0.0
  %306 = vmatpush1.msra.mxu0 0.0
  %307 = vmatprep.subr.mxu0 0.0
  %308 = vmatpush1.msra.mxu0 0.0
  %309 = vmatprep.subr.mxu0 0.0
  %310 = vmatpush1.msra.mxu0 0.0
  %311 = vmatprep.subr.mxu0 0.0
  %312 = vmatpush1.msra.mxu0 0.0
  %313 = vmatprep.subr.mxu0 0.0
  %314 = vmatpush1.msra.mxu0 0.0
  %315 = vmatprep.subr.mxu0 0.0
  %316 = vmatpush1.msra.mxu0 0.0
  %317 = vmatprep.subr.mxu0 0.0
  %318 = vmatpush1.msra.mxu0 0.0
  %319 = vmatprep.subr.mxu0 0.0
  %320 = vmatpush1.msra.mxu0 0.0
  %321 = vmatprep.subr.mxu0 0.0
  %322 = vmatpush1.msra.mxu0 0.0
  %323 = vmatprep.subr.mxu0 0.0
  %324 = vmatpush1.msra.mxu0 0.0
  %325 = vmatprep.subr.mxu0 0.0
  %326 = vmatpush1.msra.mxu0 0.0
  %327 = vmatprep.subr.mxu0 0.0
  %328 = vmatpush1.msra.mxu0 0.0
  %329 = vmatprep.subr.mxu0 0.0
  %330 = vmatpush1.msra.mxu0 0.0
  %331 = vmatprep.subr.mxu0 0.0
  %332 = vmatpush1.msra.mxu0 0.0
  %333 = vmatprep.mubr.f32.mxu0 0.0
  %334 = vmatmul.mubr.f32.gmra.mrb[0].mxu0 %v267
  %v335 = vpop.f32.mrb[0].mxu0
  %v336 = vadd.f32 0.0, %v335
  %v337 = vpop.f32.mrb[0].mxu0
  %338 = vdwg.mxu0
  %339 = vst.msk [vmem:[#allocation2] sm:$0xff] %vm176, %v336
  %340 = vrot.lane.b32.xlu0 %v165, 120
  %v341 = vpop.permute.xlu0 %340
  %342 = vrot.lane.b32.xlu0 %v165, 88
  %v343 = vpop.permute.xlu0 %342
  %v344 = vsel %vm176, %v341, 0
  %v346 = vsel %vm176, %v343, 0
  %348 = vmatprep.subr.mxu0 0.0
  %349 = vmatpush1.xpose.msra.mxu0 %v346
  %350 = vmatprep.subr.mxu0 0.0
  %351 = vmatpush1.xpose.msra.mxu0 0.0
  %352 = vmatprep.subr.mxu0 0.0
  %353 = vmatpush1.xpose.msra.mxu0 0.0
  %354 = vmatprep.subr.mxu0 0.0
  %355 = vmatpush1.xpose.msra.mxu0 0.0
  %356 = vmatprep.subr.mxu0 0.0
  %357 = vmatpush1.xpose.msra.mxu0 0.0
  %358 = vmatprep.subr.mxu0 0.0
  %359 = vmatpush1.xpose.msra.mxu0 0.0
  %360 = vmatprep.subr.mxu0 0.0
  %361 = vmatpush1.xpose.msra.mxu0 0.0
  %362 = vmatprep.subr.mxu0 0.0
  %363 = vmatpush1.xpose.msra.mxu0 0.0
  %364 = vmatprep.subr.mxu0 0.0
  %365 = vmatpush1.xpose.msra.mxu0 0.0
  %366 = vmatprep.subr.mxu0 0.0
  %367 = vmatpush1.xpose.msra.mxu0 0.0
  %368 = vmatprep.subr.mxu0 0.0
  %369 = vmatpush1.xpose.msra.mxu0 0.0
  %370 = vmatprep.subr.mxu0 0.0
  %371 = vmatpush1.xpose.msra.mxu0 0.0
  %372 = vmatprep.subr.mxu0 0.0
  %373 = vmatpush1.xpose.msra.mxu0 0.0
  %374 = vmatprep.subr.mxu0 0.0
  %375 = vmatpush1.xpose.msra.mxu0 0.0
  %376 = vmatprep.subr.mxu0 0.0
  %377 = vmatpush1.xpose.msra.mxu0 0.0
  %378 = vmatprep.subr.mxu0 0.0
  %379 = vmatpush1.xpose.msra.mxu0 0.0
  %380 = vmatprep.subr.mxu0 0.0
  %381 = vmatpush1.xpose.msra.mxu0 0.0
  %382 = vmatprep.subr.mxu0 0.0
  %383 = vmatpush1.xpose.msra.mxu0 0.0
  %384 = vmatprep.subr.mxu0 0.0
  %385 = vmatpush1.xpose.msra.mxu0 0.0
  %386 = vmatprep.subr.mxu0 0.0
  %387 = vmatpush1.xpose.msra.mxu0 0.0
  %388 = vmatprep.subr.mxu0 0.0
  %389 = vmatpush1.xpose.msra.mxu0 0.0
  %390 = vmatprep.subr.mxu0 0.0
  %391 = vmatpush1.xpose.msra.mxu0 0.0
  %392 = vmatprep.subr.mxu0 0.0
  %393 = vmatpush1.xpose.msra.mxu0 0.0
  %394 = vmatprep.subr.mxu0 0.0
  %395 = vmatpush1.xpose.msra.mxu0 0.0
  %396 = vmatprep.subr.mxu0 0.0
  %397 = vmatpush1.xpose.msra.mxu0 0.0
  %398 = vmatprep.subr.mxu0 0.0
  %399 = vmatpush1.xpose.msra.mxu0 0.0
  %400 = vmatprep.subr.mxu0 0.0
  %401 = vmatpush1.xpose.msra.mxu0 0.0
  %402 = vmatprep.subr.mxu0 0.0
  %403 = vmatpush1.xpose.msra.mxu0 0.0
  %404 = vmatprep.subr.mxu0 0.0
  %405 = vmatpush1.xpose.msra.mxu0 0.0
  %406 = vmatprep.subr.mxu0 0.0
  %407 = vmatpush1.xpose.msra.mxu0 0.0
  %408 = vmatprep.subr.mxu0 0.0
  %409 = vmatpush1.xpose.msra.mxu0 0.0
  %410 = vmatprep.subr.mxu0 0.0
  %411 = vmatpush1.xpose.msra.mxu0 0.0
  %412 = vmatprep.mubr.f32.mxu0 0.0
  %413 = vmatmul.mubr.f32.gmra.mrb[0].mxu0 %v344
  %v414 = vpop.f32.mrb[0].mxu0
  %v415 = vadd.f32 0.0, %v414
  %v416 = vpop.f32.mrb[0].mxu0
  %417 = vdwg.mxu0
  %v418 = vmul.f32 %v415, 0.35355338
  %v419 = vsel %vm176, %v418, -inf
  %420 = vmax.xlane.f32.xlu0 %v419
  %v421 = vpop.xlane.xlu0 %420
  %v422 = vsub.f32 %v418, %v421
  %v423 = vmul.f32 %v422, 1.442695
  %v424 = vpow.pop %v423
  %v425 = vsel %vm176, %v424, 0.0
  %426 = vadd.xlane.f32.xlu0 %v425
  %v427 = vpop.xlane.xlu0 %426
  %v428 = vrcp.pop %v427
  %v429 = vmul.f32 %v424, %v428
  %430 = vrot.lane.b32.xlu0 %v165, 56
  %v431 = vpop.permute.xlu0 %430
  %v434 = vsel %vm176, %v429, 0
  %436 = vmatprep.subr.mxu0 0.0
  %437 = vmatpush1.msra.mxu0 %v431
  %438 = vmatprep.subr.mxu0 0.0
  %439 = vmatpush1.msra.mxu0 0.0
  %440 = vmatprep.subr.mxu0 0.0
  %441 = vmatpush1.msra.mxu0 0.0
  %442 = vmatprep.subr.mxu0 0.0
  %443 = vmatpush1.msra.mxu0 0.0
  %444 = vmatprep.subr.mxu0 0.0
  %445 = vmatpush1.msra.mxu0 0.0
  %446 = vmatprep.subr.mxu0 0.0
  %447 = vmatpush1.msra.mxu0 0.0
  %448 = vmatprep.subr.mxu0 0.0
  %449 = vmatpush1.msra.mxu0 0.0
  %450 = vmatprep.subr.mxu0 0.0
  %451 = vmatpush1.msra.mxu0 0.0
  %452 = vmatprep.subr.mxu0 0.0
  %453 = vmatpush1.msra.mxu0 0.0
  %454 = vmatprep.subr.mxu0 0.0
  %455 = vmatpush1.msra.mxu0 0.0
  %456 = vmatprep.subr.mxu0 0.0
  %457 = vmatpush1.msra.mxu0 0.0
  %458 = vmatprep.subr.mxu0 0.0
  %459 = vmatpush1.msra.mxu0 0.0
  %460 = vmatprep.subr.mxu0 0.0
  %461 = vmatpush1.msra.mxu0 0.0
  %462 = vmatprep.subr.mxu0 0.0
  %463 = vmatpush1.msra.mxu0 0.0
  %464 = vmatprep.subr.mxu0 0.0
  %465 = vmatpush1.msra.mxu0 0.0
  %466 = vmatprep.subr.mxu0 0.0
  %467 = vmatpush1.msra.mxu0 0.0
  %468 = vmatprep.subr.mxu0 0.0
  %469 = vmatpush1.msra.mxu0 0.0
  %470 = vmatprep.subr.mxu0 0.0
  %471 = vmatpush1.msra.mxu0 0.0
  %472 = vmatprep.subr.mxu0 0.0
  %473 = vmatpush1.msra.mxu0 0.0
  %474 = vmatprep.subr.mxu0 0.0
  %475 = vmatpush1.msra.mxu0 0.0
  %476 = vmatprep.subr.mxu0 0.0
  %477 = vmatpush1.msra.mxu0 0.0
  %478 = vmatprep.subr.mxu0 0.0
  %479 = vmatpush1.msra.mxu0 0.0
  %480 = vmatprep.subr.mxu0 0.0
  %481 = vmatpush1.msra.mxu0 0.0
  %482 = vmatprep.subr.mxu0 0.0
  %483 = vmatpush1.msra.mxu0 0.0
  %484 = vmatprep.subr.mxu0 0.0
  %485 = vmatpush1.msra.mxu0 0.0
  %486 = vmatprep.subr.mxu0 0.0
  %487 = vmatpush1.msra.mxu0 0.0
  %488 = vmatprep.subr.mxu0 0.0
  %489 = vmatpush1.msra.mxu0 0.0
  %490 = vmatprep.subr.mxu0 0.0
  %491 = vmatpush1.msra.mxu0 0.0
  %492 = vmatprep.subr.mxu0 0.0
  %493 = vmatpush1.msra.mxu0 0.0
  %494 = vmatprep.subr.mxu0 0.0
  %495 = vmatpush1.msra.mxu0 0.0
  %496 = vmatprep.subr.mxu0 0.0
  %497 = vmatpush1.msra.mxu0 0.0
  %498 = vmatprep.subr.mxu0 0.0
  %499 = vmatpush1.msra.mxu0 0.0
  %500 = vmatprep.mubr.f32.mxu0 0.0
  %501 = vmatmul.mubr.f32.gmra.mrb[0].mxu0 %v434
  %v502 = vpop.f32.mrb[0].mxu0
  %v503 = vadd.f32 0.0, %v502
  %v504 = vpop.f32.mrb[0].mxu0
  %505 = vdwg.mxu0
  %507 = vrot.lane.b32.xlu0 %v503, 8
  %v508 = vpop.permute.xlu0 %507
  %vm510 = vcmask 130112
  %511 = vst.msk [vmem:[#allocation2] sm:$0xff] %vm510, %v508
  %512 = vrot.lane.b32.xlu0 %v165, 112
  %v513 = vpop.permute.xlu0 %512
  %514 = vrot.lane.b32.xlu0 %v165, 80
  %v515 = vpop.permute.xlu0 %514
  %v516 = vsel %vm176, %v513, 0
  %v518 = vsel %vm176, %v515, 0
  %520 = vmatprep.subr.mxu0 0.0
  %521 = vmatpush1.xpose.msra.mxu0 %v518
  %522 = vmatprep.subr.mxu0 0.0
  %523 = vmatpush1.xpose.msra.mxu0 0.0
  %524 = vmatprep.subr.mxu0 0.0
  %525 = vmatpush1.xpose.msra.mxu0 0.0
  %526 = vmatprep.subr.mxu0 0.0
  %527 = vmatpush1.xpose.msra.mxu0 0.0
  %528 = vmatprep.subr.mxu0 0.0
  %529 = vmatpush1.xpose.msra.mxu0 0.0
  %530 = vmatprep.subr.mxu0 0.0
  %531 = vmatpush1.xpose.msra.mxu0 0.0
  %532 = vmatprep.subr.mxu0 0.0
  %533 = vmatpush1.xpose.msra.mxu0 0.0
  %534 = vmatprep.subr.mxu0 0.0
  %535 = vmatpush1.xpose.msra.mxu0 0.0
  %536 = vmatprep.subr.mxu0 0.0
  %537 = vmatpush1.xpose.msra.mxu0 0.0
  %538 = vmatprep.subr.mxu0 0.0
  %539 = vmatpush1.xpose.msra.mxu0 0.0
  %540 = vmatprep.subr.mxu0 0.0
  %541 = vmatpush1.xpose.msra.mxu0 0.0
  %542 = vmatprep.subr.mxu0 0.0
  %543 = vmatpush1.xpose.msra.mxu0 0.0
  %544 = vmatprep.subr.mxu0 0.0
  %545 = vmatpush1.xpose.msra.mxu0 0.0
  %546 = vmatprep.subr.mxu0 0.0
  %547 = vmatpush1.xpose.msra.mxu0 0.0
  %548 = vmatprep.subr.mxu0 0.0
  %549 = vmatpush1.xpose.msra.mxu0 0.0
  %550 = vmatprep.subr.mxu0 0.0
  %551 = vmatpush1.xpose.msra.mxu0 0.0
  %552 = vmatprep.subr.mxu0 0.0
  %553 = vmatpush1.xpose.msra.mxu0 0.0
  %554 = vmatprep.subr.mxu0 0.0
  %555 = vmatpush1.xpose.msra.mxu0 0.0
  %556 = vmatprep.subr.mxu0 0.0
  %557 = vmatpush1.xpose.msra.mxu0 0.0
  %558 = vmatprep.subr.mxu0 0.0
  %559 = vmatpush1.xpose.msra.mxu0 0.0
  %560 = vmatprep.subr.mxu0 0.0
  %561 = vmatpush1.xpose.msra.mxu0 0.0
  %562 = vmatprep.subr.mxu0 0.0
  %563 = vmatpush1.xpose.msra.mxu0 0.0
  %564 = vmatprep.subr.mxu0 0.0
  %565 = vmatpush1.xpose.msra.mxu0 0.0
  %566 = vmatprep.subr.mxu0 0.0
  %567 = vmatpush1.xpose.msra.mxu0 0.0
  %568 = vmatprep.subr.mxu0 0.0
  %569 = vmatpush1.xpose.msra.mxu0 0.0
  %570 = vmatprep.subr.mxu0 0.0
  %571 = vmatpush1.xpose.msra.mxu0 0.0
  %572 = vmatprep.subr.mxu0 0.0
  %573 = vmatpush1.xpose.msra.mxu0 0.0
  %574 = vmatprep.subr.mxu0 0.0
  %575 = vmatpush1.xpose.msra.mxu0 0.0
  %576 = vmatprep.subr.mxu0 0.0
  %577 = vmatpush1.xpose.msra.mxu0 0.0
  %578 = vmatprep.subr.mxu0 0.0
  %579 = vmatpush1.xpose.msra.mxu0 0.0
  %580 = vmatprep.subr.mxu0 0.0
  %581 = vmatpush1.xpose.msra.mxu0 0.0
  %582 = vmatprep.subr.mxu0 0.0
  %583 = vmatpush1.xpose.msra.mxu0 0.0
  %584 = vmatprep.mubr.f32.mxu0 0.0
  %585 = vmatmul.mubr.f32.gmra.mrb[0].mxu0 %v516
  %v586 = vpop.f32.mrb[0].mxu0
  %v587 = vadd.f32 0.0, %v586
  %v588 = vpop.f32.mrb[0].mxu0
  %589 = vdwg.mxu0
  %v590 = vmul.f32 %v587, 0.35355338
  %v591 = vsel %vm176, %v590, -inf
  %592 = vmax.xlane.f32.xlu0 %v591
  %v593 = vpop.xlane.xlu0 %592
  %v594 = vsub.f32 %v590, %v593
  %v595 = vmul.f32 %v594, 1.442695
  %v596 = vpow.pop %v595
  %v597 = vsel %vm176, %v596, 0.0
  %598 = vadd.xlane.f32.xlu0 %v597
  %v599 = vpop.xlane.xlu0 %598
  %v600 = vrcp.pop %v599
  %v601 = vmul.f32 %v596, %v600
  %602 = vrot.lane.b32.xlu0 %v165, 48
  %v603 = vpop.permute.xlu0 %602
  %v606 = vsel %vm176, %v601, 0
  %608 = vmatprep.subr.mxu0 0.0
  %609 = vmatpush1.msra.mxu0 %v603
  %610 = vmatprep.subr.mxu0 0.0
  %611 = vmatpush1.msra.mxu0 0.0
  %612 = vmatprep.subr.mxu0 0.0
  %613 = vmatpush1.msra.mxu0 0.0
  %614 = vmatprep.subr.mxu0 0.0
  %615 = vmatpush1.msra.mxu0 0.0
  %616 = vmatprep.subr.mxu0 0.0
  %617 = vmatpush1.msra.mxu0 0.0
  %618 = vmatprep.subr.mxu0 0.0
  %619 = vmatpush1.msra.mxu0 0.0
  %620 = vmatprep.subr.mxu0 0.0
  %621 = vmatpush1.msra.mxu0 0.0
  %622 = vmatprep.subr.mxu0 0.0
  %623 = vmatpush1.msra.mxu0 0.0
  %624 = vmatprep.subr.mxu0 0.0
  %625 = vmatpush1.msra.mxu0 0.0
  %626 = vmatprep.subr.mxu0 0.0
  %627 = vmatpush1.msra.mxu0 0.0
  %628 = vmatprep.subr.mxu0 0.0
  %629 = vmatpush1.msra.mxu0 0.0
  %630 = vmatprep.subr.mxu0 0.0
  %631 = vmatpush1.msra.mxu0 0.0
  %632 = vmatprep.subr.mxu0 0.0
  %633 = vmatpush1.msra.mxu0 0.0
  %634 = vmatprep.subr.mxu0 0.0
  %635 = vmatpush1.msra.mxu0 0.0
  %636 = vmatprep.subr.mxu0 0.0
  %637 = vmatpush1.msra.mxu0 0.0
  %638 = vmatprep.subr.mxu0 0.0
  %639 = vmatpush1.msra.mxu0 0.0
  %640 = vmatprep.subr.mxu0 0.0
  %641 = vmatpush1.msra.mxu0 0.0
  %642 = vmatprep.subr.mxu0 0.0
  %643 = vmatpush1.msra.mxu0 0.0
  %644 = vmatprep.subr.mxu0 0.0
  %645 = vmatpush1.msra.mxu0 0.0
  %646 = vmatprep.subr.mxu0 0.0
  %647 = vmatpush1.msra.mxu0 0.0
  %648 = vmatprep.subr.mxu0 0.0
  %649 = vmatpush1.msra.mxu0 0.0
  %650 = vmatprep.subr.mxu0 0.0
  %651 = vmatpush1.msra.mxu0 0.0
  %652 = vmatprep.subr.mxu0 0.0
  %653 = vmatpush1.msra.mxu0 0.0
  %654 = vmatprep.subr.mxu0 0.0
  %655 = vmatpush1.msra.mxu0 0.0
  %656 = vmatprep.subr.mxu0 0.0
  %657 = vmatpush1.msra.mxu0 0.0
  %658 = vmatprep.subr.mxu0 0.0
  %659 = vmatpush1.msra.mxu0 0.0
  %660 = vmatprep.subr.mxu0 0.0
  %661 = vmatpush1.msra.mxu0 0.0
  %662 = vmatprep.subr.mxu0 0.0
  %663 = vmatpush1.msra.mxu0 0.0
  %664 = vmatprep.subr.mxu0 0.0
  %665 = vmatpush1.msra.mxu0 0.0
  %666 = vmatprep.subr.mxu0 0.0
  %667 = vmatpush1.msra.mxu0 0.0
  %668 = vmatprep.subr.mxu0 0.0
  %669 = vmatpush1.msra.mxu0 0.0
  %670 = vmatprep.subr.mxu0 0.0
  %671 = vmatpush1.msra.mxu0 0.0
  %672 = vmatprep.mubr.f32.mxu0 0.0
  %673 = vmatmul.mubr.f32.gmra.mrb[0].mxu0 %v606
  %v674 = vpop.f32.mrb[0].mxu0
  %v675 = vadd.f32 0.0, %v674
  %v676 = vpop.f32.mrb[0].mxu0
  %677 = vdwg.mxu0
  %679 = vrot.lane.b32.xlu0 %v675, 16
  %v680 = vpop.permute.xlu0 %679
  %vm682 = vcmask 195712
  %683 = vst.msk [vmem:[#allocation2] sm:$0xff] %vm682, %v680
  %684 = vrot.lane.b32.xlu0 %v165, 104
  %v685 = vpop.permute.xlu0 %684
  %686 = vrot.lane.b32.xlu0 %v165, 72
  %v687 = vpop.permute.xlu0 %686
  %v688 = vsel %vm176, %v685, 0
  %v690 = vsel %vm176, %v687, 0
  %692 = vmatprep.subr.mxu0 0.0
  %693 = vmatpush1.xpose.msra.mxu0 %v690
  %694 = vmatprep.subr.mxu0 0.0
  %695 = vmatpush1.xpose.msra.mxu0 0.0
  %696 = vmatprep.subr.mxu0 0.0
  %697 = vmatpush1.xpose.msra.mxu0 0.0
  %698 = vmatprep.subr.mxu0 0.0
  %699 = vmatpush1.xpose.msra.mxu0 0.0
  %700 = vmatprep.subr.mxu0 0.0
  %701 = vmatpush1.xpose.msra.mxu0 0.0
  %702 = vmatprep.subr.mxu0 0.0
  %703 = vmatpush1.xpose.msra.mxu0 0.0
  %704 = vmatprep.subr.mxu0 0.0
  %705 = vmatpush1.xpose.msra.mxu0 0.0
  %706 = vmatprep.subr.mxu0 0.0
  %707 = vmatpush1.xpose.msra.mxu0 0.0
  %708 = vmatprep.subr.mxu0 0.0
  %709 = vmatpush1.xpose.msra.mxu0 0.0
  %710 = vmatprep.subr.mxu0 0.0
  %711 = vmatpush1.xpose.msra.mxu0 0.0
  %712 = vmatprep.subr.mxu0 0.0
  %713 = vmatpush1.xpose.msra.mxu0 0.0
  %714 = vmatprep.subr.mxu0 0.0
  %715 = vmatpush1.xpose.msra.mxu0 0.0
  %716 = vmatprep.subr.mxu0 0.0
  %717 = vmatpush1.xpose.msra.mxu0 0.0
  %718 = vmatprep.subr.mxu0 0.0
  %719 = vmatpush1.xpose.msra.mxu0 0.0
  %720 = vmatprep.subr.mxu0 0.0
  %721 = vmatpush1.xpose.msra.mxu0 0.0
  %722 = vmatprep.subr.mxu0 0.0
  %723 = vmatpush1.xpose.msra.mxu0 0.0
  %724 = vmatprep.subr.mxu0 0.0
  %725 = vmatpush1.xpose.msra.mxu0 0.0
  %726 = vmatprep.subr.mxu0 0.0
  %727 = vmatpush1.xpose.msra.mxu0 0.0
  %728 = vmatprep.subr.mxu0 0.0
  %729 = vmatpush1.xpose.msra.mxu0 0.0
  %730 = vmatprep.subr.mxu0 0.0
  %731 = vmatpush1.xpose.msra.mxu0 0.0
  %732 = vmatprep.subr.mxu0 0.0
  %733 = vmatpush1.xpose.msra.mxu0 0.0
  %734 = vmatprep.subr.mxu0 0.0
  %735 = vmatpush1.xpose.msra.mxu0 0.0
  %736 = vmatprep.subr.mxu0 0.0
  %737 = vmatpush1.xpose.msra.mxu0 0.0
  %738 = vmatprep.subr.mxu0 0.0
  %739 = vmatpush1.xpose.msra.mxu0 0.0
  %740 = vmatprep.subr.mxu0 0.0
  %741 = vmatpush1.xpose.msra.mxu0 0.0
  %742 = vmatprep.subr.mxu0 0.0
  %743 = vmatpush1.xpose.msra.mxu0 0.0
  %744 = vmatprep.subr.mxu0 0.0
  %745 = vmatpush1.xpose.msra.mxu0 0.0
  %746 = vmatprep.subr.mxu0 0.0
  %747 = vmatpush1.xpose.msra.mxu0 0.0
  %748 = vmatprep.subr.mxu0 0.0
  %749 = vmatpush1.xpose.msra.mxu0 0.0
  %750 = vmatprep.subr.mxu0 0.0
  %751 = vmatpush1.xpose.msra.mxu0 0.0
  %752 = vmatprep.subr.mxu0 0.0
  %753 = vmatpush1.xpose.msra.mxu0 0.0
  %754 = vmatprep.subr.mxu0 0.0
  %755 = vmatpush1.xpose.msra.mxu0 0.0
  %756 = vmatprep.mubr.f32.mxu0 0.0
  %757 = vmatmul.mubr.f32.gmra.mrb[0].mxu0 %v688
  %v758 = vpop.f32.mrb[0].mxu0
  %v759 = vadd.f32 0.0, %v758
  %v760 = vpop.f32.mrb[0].mxu0
  %761 = vdwg.mxu0
  %v762 = vmul.f32 %v759, 0.35355338
  %v763 = vsel %vm176, %v762, -inf
  %764 = vmax.xlane.f32.xlu0 %v763
  %v765 = vpop.xlane.xlu0 %764
  %v766 = vsub.f32 %v762, %v765
  %v767 = vmul.f32 %v766, 1.442695
  %v768 = vpow.pop %v767
  %v769 = vsel %vm176, %v768, 0.0
  %770 = vadd.xlane.f32.xlu0 %v769
  %v771 = vpop.xlane.xlu0 %770
  %v772 = vrcp.pop %v771
  %v773 = vmul.f32 %v768, %v772
  %774 = vrot.lane.b32.xlu0 %v165, 40
  %v775 = vpop.permute.xlu0 %774
  %v778 = vsel %vm176, %v773, 0
  %780 = vmatprep.subr.mxu0 0.0
  %781 = vmatpush1.msra.mxu0 %v775
  %782 = vmatprep.subr.mxu0 0.0
  %783 = vmatpush1.msra.mxu0 0.0
  %784 = vmatprep.subr.mxu0 0.0
  %785 = vmatpush1.msra.mxu0 0.0
  %786 = vmatprep.subr.mxu0 0.0
  %787 = vmatpush1.msra.mxu0 0.0
  %788 = vmatprep.subr.mxu0 0.0
  %789 = vmatpush1.msra.mxu0 0.0
  %790 = vmatprep.subr.mxu0 0.0
  %791 = vmatpush1.msra.mxu0 0.0
  %792 = vmatprep.subr.mxu0 0.0
  %793 = vmatpush1.msra.mxu0 0.0
  %794 = vmatprep.subr.mxu0 0.0
  %795 = vmatpush1.msra.mxu0 0.0
  %796 = vmatprep.subr.mxu0 0.0
  %797 = vmatpush1.msra.mxu0 0.0
  %798 = vmatprep.subr.mxu0 0.0
  %799 = vmatpush1.msra.mxu0 0.0
  %800 = vmatprep.subr.mxu0 0.0
  %801 = vmatpush1.msra.mxu0 0.0
  %802 = vmatprep.subr.mxu0 0.0
  %803 = vmatpush1.msra.mxu0 0.0
  %804 = vmatprep.subr.mxu0 0.0
  %805 = vmatpush1.msra.mxu0 0.0
  %806 = vmatprep.subr.mxu0 0.0
  %807 = vmatpush1.msra.mxu0 0.0
  %808 = vmatprep.subr.mxu0 0.0
  %809 = vmatpush1.msra.mxu0 0.0
  %810 = vmatprep.subr.mxu0 0.0
  %811 = vmatpush1.msra.mxu0 0.0
  %812 = vmatprep.subr.mxu0 0.0
  %813 = vmatpush1.msra.mxu0 0.0
  %814 = vmatprep.subr.mxu0 0.0
  %815 = vmatpush1.msra.mxu0 0.0
  %816 = vmatprep.subr.mxu0 0.0
  %817 = vmatpush1.msra.mxu0 0.0
  %818 = vmatprep.subr.mxu0 0.0
  %819 = vmatpush1.msra.mxu0 0.0
  %820 = vmatprep.subr.mxu0 0.0
  %821 = vmatpush1.msra.mxu0 0.0
  %822 = vmatprep.subr.mxu0 0.0
  %823 = vmatpush1.msra.mxu0 0.0
  %824 = vmatprep.subr.mxu0 0.0
  %825 = vmatpush1.msra.mxu0 0.0
  %826 = vmatprep.subr.mxu0 0.0
  %827 = vmatpush1.msra.mxu0 0.0
  %828 = vmatprep.subr.mxu0 0.0
  %829 = vmatpush1.msra.mxu0 0.0
  %830 = vmatprep.subr.mxu0 0.0
  %831 = vmatpush1.msra.mxu0 0.0
  %832 = vmatprep.subr.mxu0 0.0
  %833 = vmatpush1.msra.mxu0 0.0
  %834 = vmatprep.subr.mxu0 0.0
  %835 = vmatpush1.msra.mxu0 0.0
  %836 = vmatprep.subr.mxu0 0.0
  %837 = vmatpush1.msra.mxu0 0.0
  %838 = vmatprep.subr.mxu0 0.0
  %839 = vmatpush1.msra.mxu0 0.0
  %840 = vmatprep.subr.mxu0 0.0
  %841 = vmatpush1.msra.mxu0 0.0
  %842 = vmatprep.subr.mxu0 0.0
  %843 = vmatpush1.msra.mxu0 0.0
  %844 = vmatprep.mubr.f32.mxu0 0.0
  %845 = vmatmul.mubr.f32.gmra.mrb[0].mxu0 %v778
  %v846 = vpop.f32.mrb[0].mxu0
  %v847 = vadd.f32 0.0, %v846
  %v848 = vpop.f32.mrb[0].mxu0
  %849 = vdwg.mxu0
  %851 = vrot.lane.b32.xlu0 %v847, 24
  %v852 = vpop.permute.xlu0 %851
  %vm854 = vcmask 261312
  %855 = vst.msk [vmem:[#allocation2] sm:$0xff] %vm854, %v852
  %857 = vrot.lane.b32.xlu0 %v170, 96
  %v858 = vpop.permute.xlu0 %857
  %v859 = vsel %vm176, %v170, 0
  %v861 = vsel %vm176, %v858, 0
  %863 = vmatprep.subr.mxu0 0.0
  %864 = vmatpush1.xpose.msra.mxu0 %v861
  %865 = vmatprep.subr.mxu0 0.0
  %866 = vmatpush1.xpose.msra.mxu0 0.0
  %867 = vmatprep.subr.mxu0 0.0
  %868 = vmatpush1.xpose.msra.mxu0 0.0
  %869 = vmatprep.subr.mxu0 0.0
  %870 = vmatpush1.xpose.msra.mxu0 0.0
  %871 = vmatprep.subr.mxu0 0.0
  %872 = vmatpush1.xpose.msra.mxu0 0.0
  %873 = vmatprep.subr.mxu0 0.0
  %874 = vmatpush1.xpose.msra.mxu0 0.0
  %875 = vmatprep.subr.mxu0 0.0
  %876 = vmatpush1.xpose.msra.mxu0 0.0
  %877 = vmatprep.subr.mxu0 0.0
  %878 = vmatpush1.xpose.msra.mxu0 0.0
  %879 = vmatprep.subr.mxu0 0.0
  %880 = vmatpush1.xpose.msra.mxu0 0.0
  %881 = vmatprep.subr.mxu0 0.0
  %882 = vmatpush1.xpose.msra.mxu0 0.0
  %883 = vmatprep.subr.mxu0 0.0
  %884 = vmatpush1.xpose.msra.mxu0 0.0
  %885 = vmatprep.subr.mxu0 0.0
  %886 = vmatpush1.xpose.msra.mxu0 0.0
  %887 = vmatprep.subr.mxu0 0.0
  %888 = vmatpush1.xpose.msra.mxu0 0.0
  %889 = vmatprep.subr.mxu0 0.0
  %890 = vmatpush1.xpose.msra.mxu0 0.0
  %891 = vmatprep.subr.mxu0 0.0
  %892 = vmatpush1.xpose.msra.mxu0 0.0
  %893 = vmatprep.subr.mxu0 0.0
  %894 = vmatpush1.xpose.msra.mxu0 0.0
  %895 = vmatprep.subr.mxu0 0.0
  %896 = vmatpush1.xpose.msra.mxu0 0.0
  %897 = vmatprep.subr.mxu0 0.0
  %898 = vmatpush1.xpose.msra.mxu0 0.0
  %899 = vmatprep.subr.mxu0 0.0
  %900 = vmatpush1.xpose.msra.mxu0 0.0
  %901 = vmatprep.subr.mxu0 0.0
  %902 = vmatpush1.xpose.msra.mxu0 0.0
  %903 = vmatprep.subr.mxu0 0.0
  %904 = vmatpush1.xpose.msra.mxu0 0.0
  %905 = vmatprep.subr.mxu0 0.0
  %906 = vmatpush1.xpose.msra.mxu0 0.0
  %907 = vmatprep.subr.mxu0 0.0
  %908 = vmatpush1.xpose.msra.mxu0 0.0
  %909 = vmatprep.subr.mxu0 0.0
  %910 = vmatpush1.xpose.msra.mxu0 0.0
  %911 = vmatprep.subr.mxu0 0.0
  %912 = vmatpush1.xpose.msra.mxu0 0.0
  %913 = vmatprep.subr.mxu0 0.0
  %914 = vmatpush1.xpose.msra.mxu0 0.0
  %915 = vmatprep.subr.mxu0 0.0
  %916 = vmatpush1.xpose.msra.mxu0 0.0
  %917 = vmatprep.subr.mxu0 0.0
  %918 = vmatpush1.xpose.msra.mxu0 0.0
  %919 = vmatprep.subr.mxu0 0.0
  %920 = vmatpush1.xpose.msra.mxu0 0.0
  %921 = vmatprep.subr.mxu0 0.0
  %922 = vmatpush1.xpose.msra.mxu0 0.0
  %923 = vmatprep.subr.mxu0 0.0
  %924 = vmatpush1.xpose.msra.mxu0 0.0
  %925 = vmatprep.subr.mxu0 0.0
  %926 = vmatpush1.xpose.msra.mxu0 0.0
  %927 = vmatprep.mubr.f32.mxu0 0.0
  %928 = vmatmul.mubr.f32.gmra.mrb[0].mxu0 %v859
  %v929 = vpop.f32.mrb[0].mxu0
  %v930 = vadd.f32 0.0, %v929
  %v931 = vpop.f32.mrb[0].mxu0
  %932 = vdwg.mxu0
  %v933 = vmul.f32 %v930, 0.35355338
  %v934 = vsel %vm176, %v933, -inf
  %935 = vmax.xlane.f32.xlu0 %v934
  %v936 = vpop.xlane.xlu0 %935
  %v937 = vsub.f32 %v933, %v936
  %v938 = vmul.f32 %v937, 1.442695
  %v939 = vpow.pop %v938
  %v940 = vsel %vm176, %v939, 0.0
  %941 = vadd.xlane.f32.xlu0 %v940
  %v942 = vpop.xlane.xlu0 %941
  %v943 = vrcp.pop %v942
  %v944 = vmul.f32 %v939, %v943
  %945 = vrot.lane.b32.xlu0 %v170, 64
  %v946 = vpop.permute.xlu0 %945
  %v949 = vsel %vm176, %v944, 0
  %951 = vmatprep.subr.mxu0 0.0
  %952 = vmatpush1.msra.mxu0 %v946
  %953 = vmatprep.subr.mxu0 0.0
  %954 = vmatpush1.msra.mxu0 0.0
  %955 = vmatprep.subr.mxu0 0.0
  %956 = vmatpush1.msra.mxu0 0.0
  %957 = vmatprep.subr.mxu0 0.0
  %958 = vmatpush1.msra.mxu0 0.0
  %959 = vmatprep.subr.mxu0 0.0
  %960 = vmatpush1.msra.mxu0 0.0
  %961 = vmatprep.subr.mxu0 0.0
  %962 = vmatpush1.msra.mxu0 0.0
  %963 = vmatprep.subr.mxu0 0.0
  %964 = vmatpush1.msra.mxu0 0.0
  %965 = vmatprep.subr.mxu0 0.0
  %966 = vmatpush1.msra.mxu0 0.0
  %967 = vmatprep.subr.mxu0 0.0
  %968 = vmatpush1.msra.mxu0 0.0
  %969 = vmatprep.subr.mxu0 0.0
  %970 = vmatpush1.msra.mxu0 0.0
  %971 = vmatprep.subr.mxu0 0.0
  %972 = vmatpush1.msra.mxu0 0.0
  %973 = vmatprep.subr.mxu0 0.0
  %974 = vmatpush1.msra.mxu0 0.0
  %975 = vmatprep.subr.mxu0 0.0
  %976 = vmatpush1.msra.mxu0 0.0
  %977 = vmatprep.subr.mxu0 0.0
  %978 = vmatpush1.msra.mxu0 0.0
  %979 = vmatprep.subr.mxu0 0.0
  %980 = vmatpush1.msra.mxu0 0.0
  %981 = vmatprep.subr.mxu0 0.0
  %982 = vmatpush1.msra.mxu0 0.0
  %983 = vmatprep.subr.mxu0 0.0
  %984 = vmatpush1.msra.mxu0 0.0
  %985 = vmatprep.subr.mxu0 0.0
  %986 = vmatpush1.msra.mxu0 0.0
  %987 = vmatprep.subr.mxu0 0.0
  %988 = vmatpush1.msra.mxu0 0.0
  %989 = vmatprep.subr.mxu0 0.0
  %990 = vmatpush1.msra.mxu0 0.0
  %991 = vmatprep.subr.mxu0 0.0
  %992 = vmatpush1.msra.mxu0 0.0
  %993 = vmatprep.subr.mxu0 0.0
  %994 = vmatpush1.msra.mxu0 0.0
  %995 = vmatprep.subr.mxu0 0.0
  %996 = vmatpush1.msra.mxu0 0.0
  %997 = vmatprep.subr.mxu0 0.0
  %998 = vmatpush1.msra.mxu0 0.0
  %999 = vmatprep.subr.mxu0 0.0
  %1000 = vmatpush1.msra.mxu0 0.0
  %1001 = vmatprep.subr.mxu0 0.0
  %1002 = vmatpush1.msra.mxu0 0.0
  %1003 = vmatprep.subr.mxu0 0.0
  %1004 = vmatpush1.msra.mxu0 0.0
  %1005 = vmatprep.subr.mxu0 0.0
  %1006 = vmatpush1.msra.mxu0 0.0
  %1007 = vmatprep.subr.mxu0 0.0
  %1008 = vmatpush1.msra.mxu0 0.0
  %1009 = vmatprep.subr.mxu0 0.0
  %1010 = vmatpush1.msra.mxu0 0.0
  %1011 = vmatprep.subr.mxu0 0.0
  %1012 = vmatpush1.msra.mxu0 0.0
  %1013 = vmatprep.subr.mxu0 0.0
  %1014 = vmatpush1.msra.mxu0 0.0
  %1015 = vmatprep.mubr.f32.mxu0 0.0
  %1016 = vmatmul.mubr.f32.gmra.mrb[0].mxu0 %v949
  %v1017 = vpop.f32.mrb[0].mxu0
  %v1018 = vadd.f32 0.0, %v1017
  %v1019 = vpop.f32.mrb[0].mxu0
  %1020 = vdwg.mxu0
  %1021 = vst.msk [vmem:[#allocation2 + $0x8] sm:$0xff] %vm176, %v1018
  %1022 = vrot.lane.b32.xlu0 %v170, 120
  %v1023 = vpop.permute.xlu0 %1022
  %1024 = vrot.lane.b32.xlu0 %v170, 88
  %v1025 = vpop.permute.xlu0 %1024
  %v1026 = vsel %vm176, %v1023, 0
  %v1028 = vsel %vm176, %v1025, 0
  %1030 = vmatprep.subr.mxu0 0.0
  %1031 = vmatpush1.xpose.msra.mxu0 %v1028
  %1032 = vmatprep.subr.mxu0 0.0
  %1033 = vmatpush1.xpose.msra.mxu0 0.0
  %1034 = vmatprep.subr.mxu0 0.0
  %1035 = vmatpush1.xpose.msra.mxu0 0.0
  %1036 = vmatprep.subr.mxu0 0.0
  %1037 = vmatpush1.xpose.msra.mxu0 0.0
  %1038 = vmatprep.subr.mxu0 0.0
  %1039 = vmatpush1.xpose.msra.mxu0 0.0
  %1040 = vmatprep.subr.mxu0 0.0
  %1041 = vmatpush1.xpose.msra.mxu0 0.0
  %1042 = vmatprep.subr.mxu0 0.0
  %1043 = vmatpush1.xpose.msra.mxu0 0.0
  %1044 = vmatprep.subr.mxu0 0.0
  %1045 = vmatpush1.xpose.msra.mxu0 0.0
  %1046 = vmatprep.subr.mxu0 0.0
  %1047 = vmatpush1.xpose.msra.mxu0 0.0
  %1048 = vmatprep.subr.mxu0 0.0
  %1049 = vmatpush1.xpose.msra.mxu0 0.0
  %1050 = vmatprep.subr.mxu0 0.0
  %1051 = vmatpush1.xpose.msra.mxu0 0.0
  %1052 = vmatprep.subr.mxu0 0.0
  %1053 = vmatpush1.xpose.msra.mxu0 0.0
  %1054 = vmatprep.subr.mxu0 0.0
  %1055 = vmatpush1.xpose.msra.mxu0 0.0
  %1056 = vmatprep.subr.mxu0 0.0
  %1057 = vmatpush1.xpose.msra.mxu0 0.0
  %1058 = vmatprep.subr.mxu0 0.0
  %1059 = vmatpush1.xpose.msra.mxu0 0.0
  %1060 = vmatprep.subr.mxu0 0.0
  %1061 = vmatpush1.xpose.msra.mxu0 0.0
  %1062 = vmatprep.subr.mxu0 0.0
  %1063 = vmatpush1.xpose.msra.mxu0 0.0
  %1064 = vmatprep.subr.mxu0 0.0
  %1065 = vmatpush1.xpose.msra.mxu0 0.0
  %1066 = vmatprep.subr.mxu0 0.0
  %1067 = vmatpush1.xpose.msra.mxu0 0.0
  %1068 = vmatprep.subr.mxu0 0.0
  %1069 = vmatpush1.xpose.msra.mxu0 0.0
  %1070 = vmatprep.subr.mxu0 0.0
  %1071 = vmatpush1.xpose.msra.mxu0 0.0
  %1072 = vmatprep.subr.mxu0 0.0
  %1073 = vmatpush1.xpose.msra.mxu0 0.0
  %1074 = vmatprep.subr.mxu0 0.0
  %1075 = vmatpush1.xpose.msra.mxu0 0.0
  %1076 = vmatprep.subr.mxu0 0.0
  %1077 = vmatpush1.xpose.msra.mxu0 0.0
  %1078 = vmatprep.subr.mxu0 0.0
  %1079 = vmatpush1.xpose.msra.mxu0 0.0
  %1080 = vmatprep.subr.mxu0 0.0
  %1081 = vmatpush1.xpose.msra.mxu0 0.0
  %1082 = vmatprep.subr.mxu0 0.0
  %1083 = vmatpush1.xpose.msra.mxu0 0.0
  %1084 = vmatprep.subr.mxu0 0.0
  %1085 = vmatpush1.xpose.msra.mxu0 0.0
  %1086 = vmatprep.subr.mxu0 0.0
  %1087 = vmatpush1.xpose.msra.mxu0 0.0
  %1088 = vmatprep.subr.mxu0 0.0
  %1089 = vmatpush1.xpose.msra.mxu0 0.0
  %1090 = vmatprep.subr.mxu0 0.0
  %1091 = vmatpush1.xpose.msra.mxu0 0.0
  %1092 = vmatprep.subr.mxu0 0.0
  %1093 = vmatpush1.xpose.msra.mxu0 0.0
  %1094 = vmatprep.mubr.f32.mxu0 0.0
  %1095 = vmatmul.mubr.f32.gmra.mrb[0].mxu0 %v1026
  %v1096 = vpop.f32.mrb[0].mxu0
  %v1097 = vadd.f32 0.0, %v1096
  %v1098 = vpop.f32.mrb[0].mxu0
  %1099 = vdwg.mxu0
  %v1100 = vmul.f32 %v1097, 0.35355338
  %v1101 = vsel %vm176, %v1100, -inf
  %1102 = vmax.xlane.f32.xlu0 %v1101
  %v1103 = vpop.xlane.xlu0 %1102
  %v1104 = vsub.f32 %v1100, %v1103
  %v1105 = vmul.f32 %v1104, 1.442695
  %v1106 = vpow.pop %v1105
  %v1107 = vsel %vm176, %v1106, 0.0
  %1108 = vadd.xlane.f32.xlu0 %v1107
  %v1109 = vpop.xlane.xlu0 %1108
  %v1110 = vrcp.pop %v1109
  %v1111 = vmul.f32 %v1106, %v1110
  %1112 = vrot.lane.b32.xlu0 %v170, 56
  %v1113 = vpop.permute.xlu0 %1112
  %v1116 = vsel %vm176, %v1111, 0
  %1118 = vmatprep.subr.mxu0 0.0
  %1119 = vmatpush1.msra.mxu0 %v1113
  %1120 = vmatprep.subr.mxu0 0.0
  %1121 = vmatpush1.msra.mxu0 0.0
  %1122 = vmatprep.subr.mxu0 0.0
  %1123 = vmatpush1.msra.mxu0 0.0
  %1124 = vmatprep.subr.mxu0 0.0
  %1125 = vmatpush1.msra.mxu0 0.0
  %1126 = vmatprep.subr.mxu0 0.0
  %1127 = vmatpush1.msra.mxu0 0.0
  %1128 = vmatprep.subr.mxu0 0.0
  %1129 = vmatpush1.msra.mxu0 0.0
  %1130 = vmatprep.subr.mxu0 0.0
  %1131 = vmatpush1.msra.mxu0 0.0
  %1132 = vmatprep.subr.mxu0 0.0
  %1133 = vmatpush1.msra.mxu0 0.0
  %1134 = vmatprep.subr.mxu0 0.0
  %1135 = vmatpush1.msra.mxu0 0.0
  %1136 = vmatprep.subr.mxu0 0.0
  %1137 = vmatpush1.msra.mxu0 0.0
  %1138 = vmatprep.subr.mxu0 0.0
  %1139 = vmatpush1.msra.mxu0 0.0
  %1140 = vmatprep.subr.mxu0 0.0
  %1141 = vmatpush1.msra.mxu0 0.0
  %1142 = vmatprep.subr.mxu0 0.0
  %1143 = vmatpush1.msra.mxu0 0.0
  %1144 = vmatprep.subr.mxu0 0.0
  %1145 = vmatpush1.msra.mxu0 0.0
  %1146 = vmatprep.subr.mxu0 0.0
  %1147 = vmatpush1.msra.mxu0 0.0
  %1148 = vmatprep.subr.mxu0 0.0
  %1149 = vmatpush1.msra.mxu0 0.0
  %1150 = vmatprep.subr.mxu0 0.0
  %1151 = vmatpush1.msra.mxu0 0.0
  %1152 = vmatprep.subr.mxu0 0.0
  %1153 = vmatpush1.msra.mxu0 0.0
  %1154 = vmatprep.subr.mxu0 0.0
  %1155 = vmatpush1.msra.mxu0 0.0
  %1156 = vmatprep.subr.mxu0 0.0
  %1157 = vmatpush1.msra.mxu0 0.0
  %1158 = vmatprep.subr.mxu0 0.0
  %1159 = vmatpush1.msra.mxu0 0.0
  %1160 = vmatprep.subr.mxu0 0.0
  %1161 = vmatpush1.msra.mxu0 0.0
  %1162 = vmatprep.subr.mxu0 0.0
  %1163 = vmatpush1.msra.mxu0 0.0
  %1164 = vmatprep.subr.mxu0 0.0
  %1165 = vmatpush1.msra.mxu0 0.0
  %1166 = vmatprep.subr.mxu0 0.0
  %1167 = vmatpush1.msra.mxu0 0.0
  %1168 = vmatprep.subr.mxu0 0.0
  %1169 = vmatpush1.msra.mxu0 0.0
  %1170 = vmatprep.subr.mxu0 0.0
  %1171 = vmatpush1.msra.mxu0 0.0
  %1172 = vmatprep.subr.mxu0 0.0
  %1173 = vmatpush1.msra.mxu0 0.0
  %1174 = vmatprep.subr.mxu0 0.0
  %1175 = vmatpush1.msra.mxu0 0.0
  %1176 = vmatprep.subr.mxu0 0.0
  %1177 = vmatpush1.msra.mxu0 0.0
  %1178 = vmatprep.subr.mxu0 0.0
  %1179 = vmatpush1.msra.mxu0 0.0
  %1180 = vmatprep.subr.mxu0 0.0
  %1181 = vmatpush1.msra.mxu0 0.0
  %1182 = vmatprep.mubr.f32.mxu0 0.0
  %1183 = vmatmul.mubr.f32.gmra.mrb[0].mxu0 %v1116
  %v1184 = vpop.f32.mrb[0].mxu0
  %v1185 = vadd.f32 0.0, %v1184
  %v1186 = vpop.f32.mrb[0].mxu0
  %1187 = vdwg.mxu0
  %1189 = vrot.lane.b32.xlu0 %v1185, 8
  %v1190 = vpop.permute.xlu0 %1189
  %1192 = vst.msk [vmem:[#allocation2 + $0x8] sm:$0xff] %vm510, %v1190
  %1193 = vrot.lane.b32.xlu0 %v170, 112
  %v1194 = vpop.permute.xlu0 %1193
  %1195 = vrot.lane.b32.xlu0 %v170, 80
  %v1196 = vpop.permute.xlu0 %1195
  %v1197 = vsel %vm176, %v1194, 0
  %v1199 = vsel %vm176, %v1196, 0
  %1201 = vmatprep.subr.mxu0 0.0
  %1202 = vmatpush1.xpose.msra.mxu0 %v1199
  %1203 = vmatprep.subr.mxu0 0.0
  %1204 = vmatpush1.xpose.msra.mxu0 0.0
  %1205 = vmatprep.subr.mxu0 0.0
  %1206 = vmatpush1.xpose.msra.mxu0 0.0
  %1207 = vmatprep.subr.mxu0 0.0
  %1208 = vmatpush1.xpose.msra.mxu0 0.0
  %1209 = vmatprep.subr.mxu0 0.0
  %1210 = vmatpush1.xpose.msra.mxu0 0.0
  %1211 = vmatprep.subr.mxu0 0.0
  %1212 = vmatpush1.xpose.msra.mxu0 0.0
  %1213 = vmatprep.subr.mxu0 0.0
  %1214 = vmatpush1.xpose.msra.mxu0 0.0
  %1215 = vmatprep.subr.mxu0 0.0
  %1216 = vmatpush1.xpose.msra.mxu0 0.0
  %1217 = vmatprep.subr.mxu0 0.0
  %1218 = vmatpush1.xpose.msra.mxu0 0.0
  %1219 = vmatprep.subr.mxu0 0.0
  %1220 = vmatpush1.xpose.msra.mxu0 0.0
  %1221 = vmatprep.subr.mxu0 0.0
  %1222 = vmatpush1.xpose.msra.mxu0 0.0
  %1223 = vmatprep.subr.mxu0 0.0
  %1224 = vmatpush1.xpose.msra.mxu0 0.0
  %1225 = vmatprep.subr.mxu0 0.0
  %1226 = vmatpush1.xpose.msra.mxu0 0.0
  %1227 = vmatprep.subr.mxu0 0.0
  %1228 = vmatpush1.xpose.msra.mxu0 0.0
  %1229 = vmatprep.subr.mxu0 0.0
  %1230 = vmatpush1.xpose.msra.mxu0 0.0
  %1231 = vmatprep.subr.mxu0 0.0
  %1232 = vmatpush1.xpose.msra.mxu0 0.0
  %1233 = vmatprep.subr.mxu0 0.0
  %1234 = vmatpush1.xpose.msra.mxu0 0.0
  %1235 = vmatprep.subr.mxu0 0.0
  %1236 = vmatpush1.xpose.msra.mxu0 0.0
  %1237 = vmatprep.subr.mxu0 0.0
  %1238 = vmatpush1.xpose.msra.mxu0 0.0
  %1239 = vmatprep.subr.mxu0 0.0
  %1240 = vmatpush1.xpose.msra.mxu0 0.0
  %1241 = vmatprep.subr.mxu0 0.0
  %1242 = vmatpush1.xpose.msra.mxu0 0.0
  %1243 = vmatprep.subr.mxu0 0.0
  %1244 = vmatpush1.xpose.msra.mxu0 0.0
  %1245 = vmatprep.subr.mxu0 0.0
  %1246 = vmatpush1.xpose.msra.mxu0 0.0
  %1247 = vmatprep.subr.mxu0 0.0
  %1248 = vmatpush1.xpose.msra.mxu0 0.0
  %1249 = vmatprep.subr.mxu0 0.0
  %1250 = vmatpush1.xpose.msra.mxu0 0.0
  %1251 = vmatprep.subr.mxu0 0.0
  %1252 = vmatpush1.xpose.msra.mxu0 0.0
  %1253 = vmatprep.subr.mxu0 0.0
  %1254 = vmatpush1.xpose.msra.mxu0 0.0
  %1255 = vmatprep.subr.mxu0 0.0
  %1256 = vmatpush1.xpose.msra.mxu0 0.0
  %1257 = vmatprep.subr.mxu0 0.0
  %1258 = vmatpush1.xpose.msra.mxu0 0.0
  %1259 = vmatprep.subr.mxu0 0.0
  %1260 = vmatpush1.xpose.msra.mxu0 0.0
  %1261 = vmatprep.subr.mxu0 0.0
  %1262 = vmatpush1.xpose.msra.mxu0 0.0
  %1263 = vmatprep.subr.mxu0 0.0
  %1264 = vmatpush1.xpose.msra.mxu0 0.0
  %1265 = vmatprep.mubr.f32.mxu0 0.0
  %1266 = vmatmul.mubr.f32.gmra.mrb[0].mxu0 %v1197
  %v1267 = vpop.f32.mrb[0].mxu0
  %v1268 = vadd.f32 0.0, %v1267
  %v1269 = vpop.f32.mrb[0].mxu0
  %1270 = vdwg.mxu0
  %v1271 = vmul.f32 %v1268, 0.35355338
  %v1272 = vsel %vm176, %v1271, -inf
  %1273 = vmax.xlane.f32.xlu0 %v1272
  %v1274 = vpop.xlane.xlu0 %1273
  %v1275 = vsub.f32 %v1271, %v1274
  %v1276 = vmul.f32 %v1275, 1.442695
  %v1277 = vpow.pop %v1276
  %v1278 = vsel %vm176, %v1277, 0.0
  %1279 = vadd.xlane.f32.xlu0 %v1278
  %v1280 = vpop.xlane.xlu0 %1279
  %v1281 = vrcp.pop %v1280
  %v1282 = vmul.f32 %v1277, %v1281
  %1283 = vrot.lane.b32.xlu0 %v170, 48
  %v1284 = vpop.permute.xlu0 %1283
  %v1287 = vsel %vm176, %v1282, 0
  %1289 = vmatprep.subr.mxu0 0.0
  %1290 = vmatpush1.msra.mxu0 %v1284
  %1291 = vmatprep.subr.mxu0 0.0
  %1292 = vmatpush1.msra.mxu0 0.0
  %1293 = vmatprep.subr.mxu0 0.0
  %1294 = vmatpush1.msra.mxu0 0.0
  %1295 = vmatprep.subr.mxu0 0.0
  %1296 = vmatpush1.msra.mxu0 0.0
  %1297 = vmatprep.subr.mxu0 0.0
  %1298 = vmatpush1.msra.mxu0 0.0
  %1299 = vmatprep.subr.mxu0 0.0
  %1300 = vmatpush1.msra.mxu0 0.0
  %1301 = vmatprep.subr.mxu0 0.0
  %1302 = vmatpush1.msra.mxu0 0.0
  %1303 = vmatprep.subr.mxu0 0.0
  %1304 = vmatpush1.msra.mxu0 0.0
  %1305 = vmatprep.subr.mxu0 0.0
  %1306 = vmatpush1.msra.mxu0 0.0
  %1307 = vmatprep.subr.mxu0 0.0
  %1308 = vmatpush1.msra.mxu0 0.0
  %1309 = vmatprep.subr.mxu0 0.0
  %1310 = vmatpush1.msra.mxu0 0.0
  %1311 = vmatprep.subr.mxu0 0.0
  %1312 = vmatpush1.msra.mxu0 0.0
  %1313 = vmatprep.subr.mxu0 0.0
  %1314 = vmatpush1.msra.mxu0 0.0
  %1315 = vmatprep.subr.mxu0 0.0
  %1316 = vmatpush1.msra.mxu0 0.0
  %1317 = vmatprep.subr.mxu0 0.0
  %1318 = vmatpush1.msra.mxu0 0.0
  %1319 = vmatprep.subr.mxu0 0.0
  %1320 = vmatpush1.msra.mxu0 0.0
  %1321 = vmatprep.subr.mxu0 0.0
  %1322 = vmatpush1.msra.mxu0 0.0
  %1323 = vmatprep.subr.mxu0 0.0
  %1324 = vmatpush1.msra.mxu0 0.0
  %1325 = vmatprep.subr.mxu0 0.0
  %1326 = vmatpush1.msra.mxu0 0.0
  %1327 = vmatprep.subr.mxu0 0.0
  %1328 = vmatpush1.msra.mxu0 0.0
  %1329 = vmatprep.subr.mxu0 0.0
  %1330 = vmatpush1.msra.mxu0 0.0
  %1331 = vmatprep.subr.mxu0 0.0
  %1332 = vmatpush1.msra.mxu0 0.0
  %1333 = vmatprep.subr.mxu0 0.0
  %1334 = vmatpush1.msra.mxu0 0.0
  %1335 = vmatprep.subr.mxu0 0.0
  %1336 = vmatpush1.msra.mxu0 0.0
  %1337 = vmatprep.subr.mxu0 0.0
  %1338 = vmatpush1.msra.mxu0 0.0
  %1339 = vmatprep.subr.mxu0 0.0
  %1340 = vmatpush1.msra.mxu0 0.0
  %1341 = vmatprep.subr.mxu0 0.0
  %1342 = vmatpush1.msra.mxu0 0.0
  %1343 = vmatprep.subr.mxu0 0.0
  %1344 = vmatpush1.msra.mxu0 0.0
  %1345 = vmatprep.subr.mxu0 0.0
  %1346 = vmatpush1.msra.mxu0 0.0
  %1347 = vmatprep.subr.mxu0 0.0
  %1348 = vmatpush1.msra.mxu0 0.0
  %1349 = vmatprep.subr.mxu0 0.0
  %1350 = vmatpush1.msra.mxu0 0.0
  %1351 = vmatprep.subr.mxu0 0.0
  %1352 = vmatpush1.msra.mxu0 0.0
  %1353 = vmatprep.mubr.f32.mxu0 0.0
  %1354 = vmatmul.mubr.f32.gmra.mrb[0].mxu0 %v1287
  %v1355 = vpop.f32.mrb[0].mxu0
  %v1356 = vadd.f32 0.0, %v1355
  %v1357 = vpop.f32.mrb[0].mxu0
  %1358 = vdwg.mxu0
  %1360 = vrot.lane.b32.xlu0 %v1356, 16
  %v1361 = vpop.permute.xlu0 %1360
  %1363 = vst.msk [vmem:[#allocation2 + $0x8] sm:$0xff] %vm682, %v1361
  %1364 = vrot.lane.b32.xlu0 %v170, 104
  %v1365 = vpop.permute.xlu0 %1364
  %1366 = vrot.lane.b32.xlu0 %v170, 72
  %v1367 = vpop.permute.xlu0 %1366
  %v1368 = vsel %vm176, %v1365, 0
  %v1370 = vsel %vm176, %v1367, 0
  %1372 = vmatprep.subr.mxu0 0.0
  %1373 = vmatpush1.xpose.msra.mxu0 %v1370
  %1374 = vmatprep.subr.mxu0 0.0
  %1375 = vmatpush1.xpose.msra.mxu0 0.0
  %1376 = vmatprep.subr.mxu0 0.0
  %1377 = vmatpush1.xpose.msra.mxu0 0.0
  %1378 = vmatprep.subr.mxu0 0.0
  %1379 = vmatpush1.xpose.msra.mxu0 0.0
  %1380 = vmatprep.subr.mxu0 0.0
  %1381 = vmatpush1.xpose.msra.mxu0 0.0
  %1382 = vmatprep.subr.mxu0 0.0
  %1383 = vmatpush1.xpose.msra.mxu0 0.0
  %1384 = vmatprep.subr.mxu0 0.0
  %1385 = vmatpush1.xpose.msra.mxu0 0.0
  %1386 = vmatprep.subr.mxu0 0.0
  %1387 = vmatpush1.xpose.msra.mxu0 0.0
  %1388 = vmatprep.subr.mxu0 0.0
  %1389 = vmatpush1.xpose.msra.mxu0 0.0
  %1390 = vmatprep.subr.mxu0 0.0
  %1391 = vmatpush1.xpose.msra.mxu0 0.0
  %1392 = vmatprep.subr.mxu0 0.0
  %1393 = vmatpush1.xpose.msra.mxu0 0.0
  %1394 = vmatprep.subr.mxu0 0.0
  %1395 = vmatpush1.xpose.msra.mxu0 0.0
  %1396 = vmatprep.subr.mxu0 0.0
  %1397 = vmatpush1.xpose.msra.mxu0 0.0
  %1398 = vmatprep.subr.mxu0 0.0
  %1399 = vmatpush1.xpose.msra.mxu0 0.0
  %1400 = vmatprep.subr.mxu0 0.0
  %1401 = vmatpush1.xpose.msra.mxu0 0.0
  %1402 = vmatprep.subr.mxu0 0.0
  %1403 = vmatpush1.xpose.msra.mxu0 0.0
  %1404 = vmatprep.subr.mxu0 0.0
  %1405 = vmatpush1.xpose.msra.mxu0 0.0
  %1406 = vmatprep.subr.mxu0 0.0
  %1407 = vmatpush1.xpose.msra.mxu0 0.0
  %1408 = vmatprep.subr.mxu0 0.0
  %1409 = vmatpush1.xpose.msra.mxu0 0.0
  %1410 = vmatprep.subr.mxu0 0.0
  %1411 = vmatpush1.xpose.msra.mxu0 0.0
  %1412 = vmatprep.subr.mxu0 0.0
  %1413 = vmatpush1.xpose.msra.mxu0 0.0
  %1414 = vmatprep.subr.mxu0 0.0
  %1415 = vmatpush1.xpose.msra.mxu0 0.0
  %1416 = vmatprep.subr.mxu0 0.0
  %1417 = vmatpush1.xpose.msra.mxu0 0.0
  %1418 = vmatprep.subr.mxu0 0.0
  %1419 = vmatpush1.xpose.msra.mxu0 0.0
  %1420 = vmatprep.subr.mxu0 0.0
  %1421 = vmatpush1.xpose.msra.mxu0 0.0
  %1422 = vmatprep.subr.mxu0 0.0
  %1423 = vmatpush1.xpose.msra.mxu0 0.0
  %1424 = vmatprep.subr.mxu0 0.0
  %1425 = vmatpush1.xpose.msra.mxu0 0.0
  %1426 = vmatprep.subr.mxu0 0.0
  %1427 = vmatpush1.xpose.msra.mxu0 0.0
  %1428 = vmatprep.subr.mxu0 0.0
  %1429 = vmatpush1.xpose.msra.mxu0 0.0
  %1430 = vmatprep.subr.mxu0 0.0
  %1431 = vmatpush1.xpose.msra.mxu0 0.0
  %1432 = vmatprep.subr.mxu0 0.0
  %1433 = vmatpush1.xpose.msra.mxu0 0.0
  %1434 = vmatprep.subr.mxu0 0.0
  %1435 = vmatpush1.xpose.msra.mxu0 0.0
  %1436 = vmatprep.mubr.f32.mxu0 0.0
  %1437 = vmatmul.mubr.f32.gmra.mrb[0].mxu0 %v1368
  %v1438 = vpop.f32.mrb[0].mxu0
  %v1439 = vadd.f32 0.0, %v1438
  %v1440 = vpop.f32.mrb[0].mxu0
  %1441 = vdwg.mxu0
  %v1442 = vmul.f32 %v1439, 0.35355338
  %v1443 = vsel %vm176, %v1442, -inf
  %1444 = vmax.xlane.f32.xlu0 %v1443
  %v1445 = vpop.xlane.xlu0 %1444
  %v1446 = vsub.f32 %v1442, %v1445
  %v1447 = vmul.f32 %v1446, 1.442695
  %v1448 = vpow.pop %v1447
  %v1449 = vsel %vm176, %v1448, 0.0
  %1450 = vadd.xlane.f32.xlu0 %v1449
  %v1451 = vpop.xlane.xlu0 %1450
  %v1452 = vrcp.pop %v1451
  %v1453 = vmul.f32 %v1448, %v1452
  %1454 = vrot.lane.b32.xlu0 %v170, 40
  %v1455 = vpop.permute.xlu0 %1454
  %v1458 = vsel %vm176, %v1453, 0
  %1460 = vmatprep.subr.mxu0 0.0
  %1461 = vmatpush1.msra.mxu0 %v1455
  %1462 = vmatprep.subr.mxu0 0.0
  %1463 = vmatpush1.msra.mxu0 0.0
  %1464 = vmatprep.subr.mxu0 0.0
  %1465 = vmatpush1.msra.mxu0 0.0
  %1466 = vmatprep.subr.mxu0 0.0
  %1467 = vmatpush1.msra.mxu0 0.0
  %1468 = vmatprep.subr.mxu0 0.0
  %1469 = vmatpush1.msra.mxu0 0.0
  %1470 = vmatprep.subr.mxu0 0.0
  %1471 = vmatpush1.msra.mxu0 0.0
  %1472 = vmatprep.subr.mxu0 0.0
  %1473 = vmatpush1.msra.mxu0 0.0
  %1474 = vmatprep.subr.mxu0 0.0
  %1475 = vmatpush1.msra.mxu0 0.0
  %1476 = vmatprep.subr.mxu0 0.0
  %1477 = vmatpush1.msra.mxu0 0.0
  %1478 = vmatprep.subr.mxu0 0.0
  %1479 = vmatpush1.msra.mxu0 0.0
  %1480 = vmatprep.subr.mxu0 0.0
  %1481 = vmatpush1.msra.mxu0 0.0
  %1482 = vmatprep.subr.mxu0 0.0
  %1483 = vmatpush1.msra.mxu0 0.0
  %1484 = vmatprep.subr.mxu0 0.0
  %1485 = vmatpush1.msra.mxu0 0.0
  %1486 = vmatprep.subr.mxu0 0.0
  %1487 = vmatpush1.msra.mxu0 0.0
  %1488 = vmatprep.subr.mxu0 0.0
  %1489 = vmatpush1.msra.mxu0 0.0
  %1490 = vmatprep.subr.mxu0 0.0
  %1491 = vmatpush1.msra.mxu0 0.0
  %1492 = vmatprep.subr.mxu0 0.0
  %1493 = vmatpush1.msra.mxu0 0.0
  %1494 = vmatprep.subr.mxu0 0.0
  %1495 = vmatpush1.msra.mxu0 0.0
  %1496 = vmatprep.subr.mxu0 0.0
  %1497 = vmatpush1.msra.mxu0 0.0
  %1498 = vmatprep.subr.mxu0 0.0
  %1499 = vmatpush1.msra.mxu0 0.0
  %1500 = vmatprep.subr.mxu0 0.0
  %1501 = vmatpush1.msra.mxu0 0.0
  %1502 = vmatprep.subr.mxu0 0.0
  %1503 = vmatpush1.msra.mxu0 0.0
  %1504 = vmatprep.subr.mxu0 0.0
  %1505 = vmatpush1.msra.mxu0 0.0
  %1506 = vmatprep.subr.mxu0 0.0
  %1507 = vmatpush1.msra.mxu0 0.0
  %1508 = vmatprep.subr.mxu0 0.0
  %1509 = vmatpush1.msra.mxu0 0.0
  %1510 = vmatprep.subr.mxu0 0.0
  %1511 = vmatpush1.msra.mxu0 0.0
  %1512 = vmatprep.subr.mxu0 0.0
  %1513 = vmatpush1.msra.mxu0 0.0
  %1514 = vmatprep.subr.mxu0 0.0
  %1515 = vmatpush1.msra.mxu0 0.0
  %1516 = vmatprep.subr.mxu0 0.0
  %1517 = vmatpush1.msra.mxu0 0.0
  %1518 = vmatprep.subr.mxu0 0.0
  %1519 = vmatpush1.msra.mxu0 0.0
  %1520 = vmatprep.subr.mxu0 0.0
  %1521 = vmatpush1.msra.mxu0 0.0
  %1522 = vmatprep.subr.mxu0 0.0
  %1523 = vmatpush1.msra.mxu0 0.0
  %1524 = vmatprep.mubr.f32.mxu0 0.0
  %1525 = vmatmul.mubr.f32.gmra.mrb[0].mxu0 %v1458
  %v1526 = vpop.f32.mrb[0].mxu0
  %v1527 = vadd.f32 0.0, %v1526
  %v1528 = vpop.f32.mrb[0].mxu0
  %1529 = vdwg.mxu0
  %1531 = vrot.lane.b32.xlu0 %v1527, 24
  %v1532 = vpop.permute.xlu0 %1531
  %1534 = vst.msk [vmem:[#allocation2 + $0x8] sm:$0xff] %vm854, %v1532
  %v1535 = vld [vmem:[#allocation2] sm:$0xff]
  %v1536 = vld [vmem:[#allocation2 + $0x8] sm:$0xff]
  %v1538 = vlaneseq
  %v1539 = vshrl.u32 %v1538, 7
  %v1540 = vsub.s32 0, %v1539
  %v1541 = vrot.slane %v84, %v1540
  %v1544 = vsel %vm91, %v1535, 0
  %v1547 = vsel %vm91, %v1536, 0
  %1549 = vmatprep.subr.mxu0 0.0
  %1550 = vmatpush1.msra.mxu0 %v80
  %1551 = vmatprep.subr.mxu0 0.0
  %1552 = vmatpush1.msra.mxu0 %v81
  %1553 = vmatprep.subr.mxu0 0.0
  %1554 = vmatpush1.msra.mxu0 %v82
  %1555 = vmatprep.subr.mxu0 0.0
  %1556 = vmatpush1.msra.mxu0 %v83
  %1557 = vmatprep.subr.mxu0 0.0
  %1558 = vmatpush1.msra.mxu0 0.0
  %1559 = vmatprep.subr.mxu0 0.0
  %1560 = vmatpush1.msra.mxu0 0.0
  %1561 = vmatprep.subr.mxu0 0.0
  %1562 = vmatpush1.msra.mxu0 0.0
  %1563 = vmatprep.subr.mxu0 0.0
  %1564 = vmatpush1.msra.mxu0 0.0
  %1565 = vmatprep.subr.mxu0 0.0
  %1566 = vmatpush1.msra.mxu0 0.0
  %1567 = vmatprep.subr.mxu0 0.0
  %1568 = vmatpush1.msra.mxu0 0.0
  %1569 = vmatprep.subr.mxu0 0.0
  %1570 = vmatpush1.msra.mxu0 0.0
  %1571 = vmatprep.subr.mxu0 0.0
  %1572 = vmatpush1.msra.mxu0 0.0
  %1573 = vmatprep.subr.mxu0 0.0
  %1574 = vmatpush1.msra.mxu0 0.0
  %1575 = vmatprep.subr.mxu0 0.0
  %1576 = vmatpush1.msra.mxu0 0.0
  %1577 = vmatprep.subr.mxu0 0.0
  %1578 = vmatpush1.msra.mxu0 0.0
  %1579 = vmatprep.subr.mxu0 0.0
  %1580 = vmatpush1.msra.mxu0 0.0
  %1581 = vmatprep.subr.mxu0 0.0
  %1582 = vmatpush1.msra.mxu0 0.0
  %1583 = vmatprep.subr.mxu0 0.0
  %1584 = vmatpush1.msra.mxu0 0.0
  %1585 = vmatprep.subr.mxu0 0.0
  %1586 = vmatpush1.msra.mxu0 0.0
  %1587 = vmatprep.subr.mxu0 0.0
  %1588 = vmatpush1.msra.mxu0 0.0
  %1589 = vmatprep.subr.mxu0 0.0
  %1590 = vmatpush1.msra.mxu0 0.0
  %1591 = vmatprep.subr.mxu0 0.0
  %1592 = vmatpush1.msra.mxu0 0.0
  %1593 = vmatprep.subr.mxu0 0.0
  %1594 = vmatpush1.msra.mxu0 0.0
  %1595 = vmatprep.subr.mxu0 0.0
  %1596 = vmatpush1.msra.mxu0 0.0
  %1597 = vmatprep.subr.mxu0 0.0
  %1598 = vmatpush1.msra.mxu0 0.0
  %1599 = vmatprep.subr.mxu0 0.0
  %1600 = vmatpush1.msra.mxu0 0.0
  %1601 = vmatprep.subr.mxu0 0.0
  %1602 = vmatpush1.msra.mxu0 0.0
  %1603 = vmatprep.subr.mxu0 0.0
  %1604 = vmatpush1.msra.mxu0 0.0
  %1605 = vmatprep.subr.mxu0 0.0
  %1606 = vmatpush1.msra.mxu0 0.0
  %1607 = vmatprep.subr.mxu0 0.0
  %1608 = vmatpush1.msra.mxu0 0.0
  %1609 = vmatprep.subr.mxu0 0.0
  %1610 = vmatpush1.msra.mxu0 0.0
  %1611 = vmatprep.subr.mxu0 0.0
  %1612 = vmatpush1.msra.mxu0 0.0
  %1613 = vmatprep.mubr.f32.mxu0 0.0
  %1614 = vmatmul.mubr.f32.gmra.mrb[0].mxu0 %v1544
  %v1615 = vpop.f32.mrb[0].mxu0
  %v1616 = vadd.f32 %v1541, %v1615
  %v1617 = vpop.f32.mrb[0].mxu0
  %1618 = vmatprep.mubr.f32.mxu0 0.0
  %1619 = vmatmul.mubr.f32.gmra.mrb[0].mxu0 %v1547
  %v1620 = vpop.f32.mrb[0].mxu0
  %v1621 = vadd.f32 %v1541, %v1620
  %v1622 = vpop.f32.mrb[0].mxu0
  %1623 = vdwg.mxu0
  %v1624 = vld [vmem:[%s6] sm:$0x1]
  %v1625 = vld [vmem:[%s7] sm:$0x1]
  %v1626 = vadd.f32 %v71, %v1616
  %v1627 = vadd.f32 %v72, %v1621
  %v1628 = vsel %vm91, %v1626, 0.0
  %1629 = vadd.xlane.f32.xlu0 %v1628
  %v1630 = vpop.xlane.xlu0 %1629
  %v1631 = vsel %vm91, %v1627, 0.0
  %1632 = vadd.xlane.f32.xlu0 %v1631
  %v1633 = vpop.xlane.xlu0 %1632
  %v1634 = vrcp.pop 32.0
  %v1635 = vmul.f32 %v1630, %v1634
  %v1636 = vmul.f32 %v1633, %v1634
  %v1637 = vsub.f32 %v1626, %v1635
  %v1638 = vsub.f32 %v1627, %v1636
  %v1639 = vmul.f32 %v1637, %v1637
  %v1640 = vmul.f32 %v1638, %v1638
  %v1641 = vsel %vm91, %v1639, 0.0
  %1642 = vadd.xlane.f32.xlu0 %v1641
  %v1643 = vpop.xlane.xlu0 %1642
  %v1644 = vsel %vm91, %v1640, 0.0
  %1645 = vadd.xlane.f32.xlu0 %v1644
  %v1646 = vpop.xlane.xlu0 %1645
  %v1647 = vmul.f32 %v1643, %v1634
  %v1648 = vmul.f32 %v1646, %v1634
  %v1649 = vadd.f32 %v1647, 1e-05
  %v1650 = vadd.f32 %v1648, 1e-05
  %v1651 = vrsqrt.pop %v1649
  %v1652 = vrsqrt.pop %v1650
  %v1653 = vmul.f32 %v1637, %v1651
  %v1654 = vmul.f32 %v1638, %v1652
  %v1656 = vlaneseq
  %v1657 = vshrl.u32 %v1656, 7
  %v1658 = vsub.s32 0, %v1657
  %v1659 = vrot.slane %v1624, %v1658
  %v1661 = vmul.f32 %v1653, %v1659
  %v1662 = vmul.f32 %v1654, %v1659
  %v1664 = vlaneseq
  %v1665 = vshrl.u32 %v1664, 7
  %v1666 = vsub.s32 0, %v1665
  %v1667 = vrot.slane %v1625, %v1666
  %v1669 = vadd.f32 %v1661, %v1667
  %v1670 = vadd.f32 %v1662, %v1667
  %v1671 = vld [vmem:[%s8] sm:$0xff]
  %v1672 = vld [vmem:[%s8 + $0x8] sm:$0xff]
  %v1673 = vld [vmem:[%s8 + $0x10] sm:$0xff]
  %v1674 = vld [vmem:[%s8 + $0x18] sm:$0xff]
  %v1675 = vld [vmem:[%s9] sm:$0x1]
  %v1676 = vld [vmem:[%s10] sm:$0xff]
  %v1677 = vld [vmem:[%s10 + $0x8] sm:$0xff]
  %v1678 = vld [vmem:[%s10 + $0x10] sm:$0xff]
  %v1679 = vld [vmem:[%s10 + $0x18] sm:$0xff]
  %v1680 = vld [vmem:[%s11] sm:$0x1]
  %v1681 = vld [vmem:[%s12] sm:$0xff]
  %v1682 = vld [vmem:[%s12 + $0x8] sm:$0xff]
  %v1683 = vld [vmem:[%s12 + $0x10] sm:$0xff]
  %v1684 = vld [vmem:[%s12 + $0x18] sm:$0xff]
  %v1685 = vld [vmem:[%s13] sm:$0x1]
  %v1687 = vlaneseq
  %v1688 = vshrl.u32 %v1687, 7
  %v1689 = vsub.s32 0, %v1688
  %v1690 = vrot.slane %v1675, %v1689
  %v1693 = vsel %vm91, %v1669, 0
  %v1696 = vsel %vm91, %v1670, 0
  %1698 = vmatprep.subr.mxu0 0.0
  %1699 = vmatpush1.msra.mxu0 %v1671
  %1700 = vmatprep.subr.mxu0 0.0
  %1701 = vmatpush1.msra.mxu0 %v1672
  %1702 = vmatprep.subr.mxu0 0.0
  %1703 = vmatpush1.msra.mxu0 %v1673
  %1704 = vmatprep.subr.mxu0 0.0
  %1705 = vmatpush1.msra.mxu0 %v1674
  %1706 = vmatprep.subr.mxu0 0.0
  %1707 = vmatpush1.msra.mxu0 0.0
  %1708 = vmatprep.subr.mxu0 0.0
  %1709 = vmatpush1.msra.mxu0 0.0
  %1710 = vmatprep.subr.mxu0 0.0
  %1711 = vmatpush1.msra.mxu0 0.0
  %1712 = vmatprep.subr.mxu0 0.0
  %1713 = vmatpush1.msra.mxu0 0.0
  %1714 = vmatprep.subr.mxu0 0.0
  %1715 = vmatpush1.msra.mxu0 0.0
  %1716 = vmatprep.subr.mxu0 0.0
  %1717 = vmatpush1.msra.mxu0 0.0
  %1718 = vmatprep.subr.mxu0 0.0
  %1719 = vmatpush1.msra.mxu0 0.0
  %1720 = vmatprep.subr.mxu0 0.0
  %1721 = vmatpush1.msra.mxu0 0.0
  %1722 = vmatprep.subr.mxu0 0.0
  %1723 = vmatpush1.msra.mxu0 0.0
  %1724 = vmatprep.subr.mxu0 0.0
  %1725 = vmatpush1.msra.mxu0 0.0
  %1726 = vmatprep.subr.mxu0 0.0
  %1727 = vmatpush1.msra.mxu0 0.0
  %1728 = vmatprep.subr.mxu0 0.0
  %1729 = vmatpush1.msra.mxu0 0.0
  %1730 = vmatprep.subr.mxu0 0.0
  %1731 = vmatpush1.msra.mxu0 0.0
  %1732 = vmatprep.subr.mxu0 0.0
  %1733 = vmatpush1.msra.mxu0 0.0
  %1734 = vmatprep.subr.mxu0 0.0
  %1735 = vmatpush1.msra.mxu0 0.0
  %1736 = vmatprep.subr.mxu0 0.0
  %1737 = vmatpush1.msra.mxu0 0.0
  %1738 = vmatprep.subr.mxu0 0.0
  %1739 = vmatpush1.msra.mxu0 0.0
  %1740 = vmatprep.subr.mxu0 0.0
  %1741 = vmatpush1.msra.mxu0 0.0
  %1742 = vmatprep.subr.mxu0 0.0
  %1743 = vmatpush1.msra.mxu0 0.0
  %1744 = vmatprep.subr.mxu0 0.0
  %1745 = vmatpush1.msra.mxu0 0.0
  %1746 = vmatprep.subr.mxu0 0.0
  %1747 = vmatpush1.msra.mxu0 0.0
  %1748 = vmatprep.subr.mxu0 0.0
  %1749 = vmatpush1.msra.mxu0 0.0
  %1750 = vmatprep.subr.mxu0 0.0
  %1751 = vmatpush1.msra.mxu0 0.0
  %1752 = vmatprep.subr.mxu0 0.0
  %1753 = vmatpush1.msra.mxu0 0.0
  %1754 = vmatprep.subr.mxu0 0.0
  %1755 = vmatpush1.msra.mxu0 0.0
  %1756 = vmatprep.subr.mxu0 0.0
  %1757 = vmatpush1.msra.mxu0 0.0
  %1758 = vmatprep.subr.mxu0 0.0
  %1759 = vmatpush1.msra.mxu0 0.0
  %1760 = vmatprep.subr.mxu0 0.0
  %1761 = vmatpush1.msra.mxu0 0.0
  %1762 = vmatprep.mubr.f32.mxu0 0.0
  %1763 = vmatmul.mubr.f32.gmra.mrb[0].mxu0 %v1693
  %v1764 = vpop.f32.mrb[0].mxu0
  %v1765 = vadd.f32 %v1690, %v1764
  %v1766 = vpop.f32.mrb[0].mxu0
  %1767 = vmatprep.mubr.f32.mxu0 0.0
  %1768 = vmatmul.mubr.f32.gmra.mrb[0].mxu0 %v1696
  %v1769 = vpop.f32.mrb[0].mxu0
  %v1770 = vadd.f32 %v1690, %v1769
  %v1771 = vpop.f32.mrb[0].mxu0
  %1772 = vdwg.mxu0
  %v1774 = vlaneseq
  %v1775 = vshrl.u32 %v1774, 7
  %v1776 = vsub.s32 0, %v1775
  %v1777 = vrot.slane %v1680, %v1776
  %v1780 = vsel %vm91, %v73, 0
  %v1783 = vsel %vm91, %v74, 0
  %1785 = vmatprep.subr.mxu0 0.0
  %1786 = vmatpush1.msra.mxu0 %v1676
  %1787 = vmatprep.subr.mxu0 0.0
  %1788 = vmatpush1.msra.mxu0 %v1677
  %1789 = vmatprep.subr.mxu0 0.0
  %1790 = vmatpush1.msra.mxu0 %v1678
  %1791 = vmatprep.subr.mxu0 0.0
  %1792 = vmatpush1.msra.mxu0 %v1679
  %1793 = vmatprep.subr.mxu0 0.0
  %1794 = vmatpush1.msra.mxu0 0.0
  %1795 = vmatprep.subr.mxu0 0.0
  %1796 = vmatpush1.msra.mxu0 0.0
  %1797 = vmatprep.subr.mxu0 0.0
  %1798 = vmatpush1.msra.mxu0 0.0
  %1799 = vmatprep.subr.mxu0 0.0
  %1800 = vmatpush1.msra.mxu0 0.0
  %1801 = vmatprep.subr.mxu0 0.0
  %1802 = vmatpush1.msra.mxu0 0.0
  %1803 = vmatprep.subr.mxu0 0.0
  %1804 = vmatpush1.msra.mxu0 0.0
  %1805 = vmatprep.subr.mxu0 0.0
  %1806 = vmatpush1.msra.mxu0 0.0
  %1807 = vmatprep.subr.mxu0 0.0
  %1808 = vmatpush1.msra.mxu0 0.0
  %1809 = vmatprep.subr.mxu0 0.0
  %1810 = vmatpush1.msra.mxu0 0.0
  %1811 = vmatprep.subr.mxu0 0.0
  %1812 = vmatpush1.msra.mxu0 0.0
  %1813 = vmatprep.subr.mxu0 0.0
  %1814 = vmatpush1.msra.mxu0 0.0
  %1815 = vmatprep.subr.mxu0 0.0
  %1816 = vmatpush1.msra.mxu0 0.0
  %1817 = vmatprep.subr.mxu0 0.0
  %1818 = vmatpush1.msra.mxu0 0.0
  %1819 = vmatprep.subr.mxu0 0.0
  %1820 = vmatpush1.msra.mxu0 0.0
  %1821 = vmatprep.subr.mxu0 0.0
  %1822 = vmatpush1.msra.mxu0 0.0
  %1823 = vmatprep.subr.mxu0 0.0
  %1824 = vmatpush1.msra.mxu0 0.0
  %1825 = vmatprep.subr.mxu0 0.0
  %1826 = vmatpush1.msra.mxu0 0.0
  %1827 = vmatprep.subr.mxu0 0.0
  %1828 = vmatpush1.msra.mxu0 0.0
  %1829 = vmatprep.subr.mxu0 0.0
  %1830 = vmatpush1.msra.mxu0 0.0
  %1831 = vmatprep.subr.mxu0 0.0
  %1832 = vmatpush1.msra.mxu0 0.0
  %1833 = vmatprep.subr.mxu0 0.0
  %1834 = vmatpush1.msra.mxu0 0.0
  %1835 = vmatprep.subr.mxu0 0.0
  %1836 = vmatpush1.msra.mxu0 0.0
  %1837 = vmatprep.subr.mxu0 0.0
  %1838 = vmatpush1.msra.mxu0 0.0
  %1839 = vmatprep.subr.mxu0 0.0
  %1840 = vmatpush1.msra.mxu0 0.0
  %1841 = vmatprep.subr.mxu0 0.0
  %1842 = vmatpush1.msra.mxu0 0.0
  %1843 = vmatprep.subr.mxu0 0.0
  %1844 = vmatpush1.msra.mxu0 0.0
  %1845 = vmatprep.subr.mxu0 0.0
  %1846 = vmatpush1.msra.mxu0 0.0
  %1847 = vmatprep.subr.mxu0 0.0
  %1848 = vmatpush1.msra.mxu0 0.0
  %1849 = vmatprep.mubr.f32.mxu0 0.0
  %1850 = vmatmul.mubr.f32.gmra.mrb[0].mxu0 %v1780
  %v1851 = vpop.f32.mrb[0].mxu0
  %v1852 = vadd.f32 %v1777, %v1851
  %v1853 = vpop.f32.mrb[0].mxu0
  %1854 = vmatprep.mubr.f32.mxu0 0.0
  %1855 = vmatmul.mubr.f32.gmra.mrb[0].mxu0 %v1783
  %v1856 = vpop.f32.mrb[0].mxu0
  %v1857 = vadd.f32 %v1777, %v1856
  %v1858 = vpop.f32.mrb[0].mxu0
  %1859 = vdwg.mxu0
  %v1861 = vsel %vm176, %v1765, 0
  %v1864 = vsel %vm176, %v1852, 0
  %1866 = vmatprep.subr.mxu0 0.0
  %1867 = vmatpush1.xpose.msra.mxu0 %v1864
  %1868 = vmatprep.subr.mxu0 0.0
  %1869 = vmatpush1.xpose.msra.mxu0 0.0
  %1870 = vmatprep.subr.mxu0 0.0
  %1871 = vmatpush1.xpose.msra.mxu0 0.0
  %1872 = vmatprep.subr.mxu0 0.0
  %1873 = vmatpush1.xpose.msra.mxu0 0.0
  %1874 = vmatprep.subr.mxu0 0.0
  %1875 = vmatpush1.xpose.msra.mxu0 0.0
  %1876 = vmatprep.subr.mxu0 0.0
  %1877 = vmatpush1.xpose.msra.mxu0 0.0
  %1878 = vmatprep.subr.mxu0 0.0
  %1879 = vmatpush1.xpose.msra.mxu0 0.0
  %1880 = vmatprep.subr.mxu0 0.0
  %1881 = vmatpush1.xpose.msra.mxu0 0.0
  %1882 = vmatprep.subr.mxu0 0.0
  %1883 = vmatpush1.xpose.msra.mxu0 0.0
  %1884 = vmatprep.subr.mxu0 0.0
  %1885 = vmatpush1.xpose.msra.mxu0 0.0
  %1886 = vmatprep.subr.mxu0 0.0
  %1887 = vmatpush1.xpose.msra.mxu0 0.0
  %1888 = vmatprep.subr.mxu0 0.0
  %1889 = vmatpush1.xpose.msra.mxu0 0.0
  %1890 = vmatprep.subr.mxu0 0.0
  %1891 = vmatpush1.xpose.msra.mxu0 0.0
  %1892 = vmatprep.subr.mxu0 0.0
  %1893 = vmatpush1.xpose.msra.mxu0 0.0
  %1894 = vmatprep.subr.mxu0 0.0
  %1895 = vmatpush1.xpose.msra.mxu0 0.0
  %1896 = vmatprep.subr.mxu0 0.0
  %1897 = vmatpush1.xpose.msra.mxu0 0.0
  %1898 = vmatprep.subr.mxu0 0.0
  %1899 = vmatpush1.xpose.msra.mxu0 0.0
  %1900 = vmatprep.subr.mxu0 0.0
  %1901 = vmatpush1.xpose.msra.mxu0 0.0
  %1902 = vmatprep.subr.mxu0 0.0
  %1903 = vmatpush1.xpose.msra.mxu0 0.0
  %1904 = vmatprep.subr.mxu0 0.0
  %1905 = vmatpush1.xpose.msra.mxu0 0.0
  %1906 = vmatprep.subr.mxu0 0.0
  %1907 = vmatpush1.xpose.msra.mxu0 0.0
  %1908 = vmatprep.subr.mxu0 0.0
  %1909 = vmatpush1.xpose.msra.mxu0 0.0
  %1910 = vmatprep.subr.mxu0 0.0
  %1911 = vmatpush1.xpose.msra.mxu0 0.0
  %1912 = vmatprep.subr.mxu0 0.0
  %1913 = vmatpush1.xpose.msra.mxu0 0.0
  %1914 = vmatprep.subr.mxu0 0.0
  %1915 = vmatpush1.xpose.msra.mxu0 0.0
  %1916 = vmatprep.subr.mxu0 0.0
  %1917 = vmatpush1.xpose.msra.mxu0 0.0
  %1918 = vmatprep.subr.mxu0 0.0
  %1919 = vmatpush1.xpose.msra.mxu0 0.0
  %1920 = vmatprep.subr.mxu0 0.0
  %1921 = vmatpush1.xpose.msra.mxu0 0.0
  %1922 = vmatprep.subr.mxu0 0.0
  %1923 = vmatpush1.xpose.msra.mxu0 0.0
  %1924 = vmatprep.subr.mxu0 0.0
  %1925 = vmatpush1.xpose.msra.mxu0 0.0
  %1926 = vmatprep.subr.mxu0 0.0
  %1927 = vmatpush1.xpose.msra.mxu0 0.0
  %1928 = vmatprep.subr.mxu0 0.0
  %1929 = vmatpush1.xpose.msra.mxu0 0.0
  %1930 = vmatprep.mubr.f32.mxu0 0.0
  %1931 = vmatmul.mubr.f32.gmra.mrb[0].mxu0 %v1861
  %v1932 = vpop.f32.mrb[0].mxu0
  %v1933 = vadd.f32 0.0, %v1932
  %v1934 = vpop.f32.mrb[0].mxu0
  %1935 = vdwg.mxu0
  %v1936 = vmul.f32 %v1933, 0.35355338
  %v1937 = vsel %vm176, %v1936, -inf
  %1938 = vmax.xlane.f32.xlu0 %v1937
  %v1939 = vpop.xlane.xlu0 %1938
  %v1940 = vsub.f32 %v1936, %v1939
  %v1941 = vmul.f32 %v1940, 1.442695
  %v1942 = vpow.pop %v1941
  %v1943 = vsel %vm176, %v1942, 0.0
  %1944 = vadd.xlane.f32.xlu0 %v1943
  %v1945 = vpop.xlane.xlu0 %1944
  %v1946 = vrcp.pop %v1945
  %v1947 = vmul.f32 %v1942, %v1946
  %1948 = vrot.lane.b32.xlu0 %v1852, 96
  %v1949 = vpop.permute.xlu0 %1948
  %v1952 = vsel %vm176, %v1947, 0
  %1954 = vmatprep.subr.mxu0 0.0
  %1955 = vmatpush1.msra.mxu0 %v1949
  %1956 = vmatprep.subr.mxu0 0.0
  %1957 = vmatpush1.msra.mxu0 0.0
  %1958 = vmatprep.subr.mxu0 0.0
  %1959 = vmatpush1.msra.mxu0 0.0
  %1960 = vmatprep.subr.mxu0 0.0
  %1961 = vmatpush1.msra.mxu0 0.0
  %1962 = vmatprep.subr.mxu0 0.0
  %1963 = vmatpush1.msra.mxu0 0.0
  %1964 = vmatprep.subr.mxu0 0.0
  %1965 = vmatpush1.msra.mxu0 0.0
  %1966 = vmatprep.subr.mxu0 0.0
  %1967 = vmatpush1.msra.mxu0 0.0
  %1968 = vmatprep.subr.mxu0 0.0
  %1969 = vmatpush1.msra.mxu0 0.0
  %1970 = vmatprep.subr.mxu0 0.0
  %1971 = vmatpush1.msra.mxu0 0.0
  %1972 = vmatprep.subr.mxu0 0.0
  %1973 = vmatpush1.msra.mxu0 0.0
  %1974 = vmatprep.subr.mxu0 0.0
  %1975 = vmatpush1.msra.mxu0 0.0
  %1976 = vmatprep.subr.mxu0 0.0
  %1977 = vmatpush1.msra.mxu0 0.0
  %1978 = vmatprep.subr.mxu0 0.0
  %1979 = vmatpush1.msra.mxu0 0.0
  %1980 = vmatprep.subr.mxu0 0.0
  %1981 = vmatpush1.msra.mxu0 0.0
  %1982 = vmatprep.subr.mxu0 0.0
  %1983 = vmatpush1.msra.mxu0 0.0
  %1984 = vmatprep.subr.mxu0 0.0
  %1985 = vmatpush1.msra.mxu0 0.0
  %1986 = vmatprep.subr.mxu0 0.0
  %1987 = vmatpush1.msra.mxu0 0.0
  %1988 = vmatprep.subr.mxu0 0.0
  %1989 = vmatpush1.msra.mxu0 0.0
  %1990 = vmatprep.subr.mxu0 0.0
  %1991 = vmatpush1.msra.mxu0 0.0
  %1992 = vmatprep.subr.mxu0 0.0
  %1993 = vmatpush1.msra.mxu0 0.0
  %1994 = vmatprep.subr.mxu0 0.0
  %1995 = vmatpush1.msra.mxu0 0.0
  %1996 = vmatprep.subr.mxu0 0.0
  %1997 = vmatpush1.msra.mxu0 0.0
  %1998 = vmatprep.subr.mxu0 0.0
  %1999 = vmatpush1.msra.mxu0 0.0
  %2000 = vmatprep.subr.mxu0 0.0
  %2001 = vmatpush1.msra.mxu0 0.0
  %2002 = vmatprep.subr.mxu0 0.0
  %2003 = vmatpush1.msra.mxu0 0.0
  %2004 = vmatprep.subr.mxu0 0.0
  %2005 = vmatpush1.msra.mxu0 0.0
  %2006 = vmatprep.subr.mxu0 0.0
  %2007 = vmatpush1.msra.mxu0 0.0
  %2008 = vmatprep.subr.mxu0 0.0
  %2009 = vmatpush1.msra.mxu0 0.0
  %2010 = vmatprep.subr.mxu0 0.0
  %2011 = vmatpush1.msra.mxu0 0.0
  %2012 = vmatprep.subr.mxu0 0.0
  %2013 = vmatpush1.msra.mxu0 0.0
  %2014 = vmatprep.subr.mxu0 0.0
  %2015 = vmatpush1.msra.mxu0 0.0
  %2016 = vmatprep.subr.mxu0 0.0
  %2017 = vmatpush1.msra.mxu0 0.0
  %2018 = vmatprep.mubr.f32.mxu0 0.0
  %2019 = vmatmul.mubr.f32.gmra.mrb[0].mxu0 %v1952
  %v2020 = vpop.f32.mrb[0].mxu0
  %v2021 = vadd.f32 0.0, %v2020
  %v2022 = vpop.f32.mrb[0].mxu0
  %2023 = vdwg.mxu0
  %2024 = vst.msk [vmem:[#allocation2] sm:$0xff] %vm176, %v2021
  %2025 = vrot.lane.b32.xlu0 %v1765, 120
  %v2026 = vpop.permute.xlu0 %2025
  %2027 = vrot.lane.b32.xlu0 %v1852, 120
  %v2028 = vpop.permute.xlu0 %2027
  %v2029 = vsel %vm176, %v2026, 0
  %v2031 = vsel %vm176, %v2028, 0
  %2033 = vmatprep.subr.mxu0 0.0
  %2034 = vmatpush1.xpose.msra.mxu0 %v2031
  %2035 = vmatprep.subr.mxu0 0.0
  %2036 = vmatpush1.xpose.msra.mxu0 0.0
  %2037 = vmatprep.subr.mxu0 0.0
  %2038 = vmatpush1.xpose.msra.mxu0 0.0
  %2039 = vmatprep.subr.mxu0 0.0
  %2040 = vmatpush1.xpose.msra.mxu0 0.0
  %2041 = vmatprep.subr.mxu0 0.0
  %2042 = vmatpush1.xpose.msra.mxu0 0.0
  %2043 = vmatprep.subr.mxu0 0.0
  %2044 = vmatpush1.xpose.msra.mxu0 0.0
  %2045 = vmatprep.subr.mxu0 0.0
  %2046 = vmatpush1.xpose.msra.mxu0 0.0
  %2047 = vmatprep.subr.mxu0 0.0
  %2048 = vmatpush1.xpose.msra.mxu0 0.0
  %2049 = vmatprep.subr.mxu0 0.0
  %2050 = vmatpush1.xpose.msra.mxu0 0.0
  %2051 = vmatprep.subr.mxu0 0.0
  %2052 = vmatpush1.xpose.msra.mxu0 0.0
  %2053 = vmatprep.subr.mxu0 0.0
  %2054 = vmatpush1.xpose.msra.mxu0 0.0
  %2055 = vmatprep.subr.mxu0 0.0
  %2056 = vmatpush1.xpose.msra.mxu0 0.0
  %2057 = vmatprep.subr.mxu0 0.0
  %2058 = vmatpush1.xpose.msra.mxu0 0.0
  %2059 = vmatprep.subr.mxu0 0.0
  %2060 = vmatpush1.xpose.msra.mxu0 0.0
  %2061 = vmatprep.subr.mxu0 0.0
  %2062 = vmatpush1.xpose.msra.mxu0 0.0
  %2063 = vmatprep.subr.mxu0 0.0
  %2064 = vmatpush1.xpose.msra.mxu0 0.0
  %2065 = vmatprep.subr.mxu0 0.0
  %2066 = vmatpush1.xpose.msra.mxu0 0.0
  %2067 = vmatprep.subr.mxu0 0.0
  %2068 = vmatpush1.xpose.msra.mxu0 0.0
  %2069 = vmatprep.subr.mxu0 0.0
  %2070 = vmatpush1.xpose.msra.mxu0 0.0
  %2071 = vmatprep.subr.mxu0 0.0
  %2072 = vmatpush1.xpose.msra.mxu0 0.0
  %2073 = vmatprep.subr.mxu0 0.0
  %2074 = vmatpush1.xpose.msra.mxu0 0.0
  %2075 = vmatprep.subr.mxu0 0.0
  %2076 = vmatpush1.xpose.msra.mxu0 0.0
  %2077 = vmatprep.subr.mxu0 0.0
  %2078 = vmatpush1.xpose.msra.mxu0 0.0
  %2079 = vmatprep.subr.mxu0 0.0
  %2080 = vmatpush1.xpose.msra.mxu0 0.0
  %2081 = vmatprep.subr.mxu0 0.0
  %2082 = vmatpush1.xpose.msra.mxu0 0.0
  %2083 = vmatprep.subr.mxu0 0.0
  %2084 = vmatpush1.xpose.msra.mxu0 0.0
  %2085 = vmatprep.subr.mxu0 0.0
  %2086 = vmatpush1.xpose.msra.mxu0 0.0
  %2087 = vmatprep.subr.mxu0 0.0
  %2088 = vmatpush1.xpose.msra.mxu0 0.0
  %2089 = vmatprep.subr.mxu0 0.0
  %2090 = vmatpush1.xpose.msra.mxu0 0.0
  %2091 = vmatprep.subr.mxu0 0.0
  %2092 = vmatpush1.xpose.msra.mxu0 0.0
  %2093 = vmatprep.subr.mxu0 0.0
  %2094 = vmatpush1.xpose.msra.mxu0 0.0
  %2095 = vmatprep.subr.mxu0 0.0
  %2096 = vmatpush1.xpose.msra.mxu0 0.0
  %2097 = vmatprep.mubr.f32.mxu0 0.0
  %2098 = vmatmul.mubr.f32.gmra.mrb[0].mxu0 %v2029
  %v2099 = vpop.f32.mrb[0].mxu0
  %v2100 = vadd.f32 0.0, %v2099
  %v2101 = vpop.f32.mrb[0].mxu0
  %2102 = vdwg.mxu0
  %v2103 = vmul.f32 %v2100, 0.35355338
  %v2104 = vsel %vm176, %v2103, -inf
  %2105 = vmax.xlane.f32.xlu0 %v2104
  %v2106 = vpop.xlane.xlu0 %2105
  %v2107 = vsub.f32 %v2103, %v2106
  %v2108 = vmul.f32 %v2107, 1.442695
  %v2109 = vpow.pop %v2108
  %v2110 = vsel %vm176, %v2109, 0.0
  %2111 = vadd.xlane.f32.xlu0 %v2110
  %v2112 = vpop.xlane.xlu0 %2111
  %v2113 = vrcp.pop %v2112
  %v2114 = vmul.f32 %v2109, %v2113
  %2115 = vrot.lane.b32.xlu0 %v1852, 88
  %v2116 = vpop.permute.xlu0 %2115
  %v2119 = vsel %vm176, %v2114, 0
  %2121 = vmatprep.subr.mxu0 0.0
  %2122 = vmatpush1.msra.mxu0 %v2116
  %2123 = vmatprep.subr.mxu0 0.0
  %2124 = vmatpush1.msra.mxu0 0.0
  %2125 = vmatprep.subr.mxu0 0.0
  %2126 = vmatpush1.msra.mxu0 0.0
  %2127 = vmatprep.subr.mxu0 0.0
  %2128 = vmatpush1.msra.mxu0 0.0
  %2129 = vmatprep.subr.mxu0 0.0
  %2130 = vmatpush1.msra.mxu0 0.0
  %2131 = vmatprep.subr.mxu0 0.0
  %2132 = vmatpush1.msra.mxu0 0.0
  %2133 = vmatprep.subr.mxu0 0.0
  %2134 = vmatpush1.msra.mxu0 0.0
  %2135 = vmatprep.subr.mxu0 0.0
  %2136 = vmatpush1.msra.mxu0 0.0
  %2137 = vmatprep.subr.mxu0 0.0
  %2138 = vmatpush1.msra.mxu0 0.0
  %2139 = vmatprep.subr.mxu0 0.0
  %2140 = vmatpush1.msra.mxu0 0.0
  %2141 = vmatprep.subr.mxu0 0.0
  %2142 = vmatpush1.msra.mxu0 0.0
  %2143 = vmatprep.subr.mxu0 0.0
  %2144 = vmatpush1.msra.mxu0 0.0
  %2145 = vmatprep.subr.mxu0 0.0
  %2146 = vmatpush1.msra.mxu0 0.0
  %2147 = vmatprep.subr.mxu0 0.0
  %2148 = vmatpush1.msra.mxu0 0.0
  %2149 = vmatprep.subr.mxu0 0.0
  %2150 = vmatpush1.msra.mxu0 0.0
  %2151 = vmatprep.subr.mxu0 0.0
  %2152 = vmatpush1.msra.mxu0 0.0
  %2153 = vmatprep.subr.mxu0 0.0
  %2154 = vmatpush1.msra.mxu0 0.0
  %2155 = vmatprep.subr.mxu0 0.0
  %2156 = vmatpush1.msra.mxu0 0.0
  %2157 = vmatprep.subr.mxu0 0.0
  %2158 = vmatpush1.msra.mxu0 0.0
  %2159 = vmatprep.subr.mxu0 0.0
  %2160 = vmatpush1.msra.mxu0 0.0
  %2161 = vmatprep.subr.mxu0 0.0
  %2162 = vmatpush1.msra.mxu0 0.0
  %2163 = vmatprep.subr.mxu0 0.0
  %2164 = vmatpush1.msra.mxu0 0.0
  %2165 = vmatprep.subr.mxu0 0.0
  %2166 = vmatpush1.msra.mxu0 0.0
  %2167 = vmatprep.subr.mxu0 0.0
  %2168 = vmatpush1.msra.mxu0 0.0
  %2169 = vmatprep.subr.mxu0 0.0
  %2170 = vmatpush1.msra.mxu0 0.0
  %2171 = vmatprep.subr.mxu0 0.0
  %2172 = vmatpush1.msra.mxu0 0.0
  %2173 = vmatprep.subr.mxu0 0.0
  %2174 = vmatpush1.msra.mxu0 0.0
  %2175 = vmatprep.subr.mxu0 0.0
  %2176 = vmatpush1.msra.mxu0 0.0
  %2177 = vmatprep.subr.mxu0 0.0
  %2178 = vmatpush1.msra.mxu0 0.0
  %2179 = vmatprep.subr.mxu0 0.0
  %2180 = vmatpush1.msra.mxu0 0.0
  %2181 = vmatprep.subr.mxu0 0.0
  %2182 = vmatpush1.msra.mxu0 0.0
  %2183 = vmatprep.subr.mxu0 0.0
  %2184 = vmatpush1.msra.mxu0 0.0
  %2185 = vmatprep.mubr.f32.mxu0 0.0
  %2186 = vmatmul.mubr.f32.gmra.mrb[0].mxu0 %v2119
  %v2187 = vpop.f32.mrb[0].mxu0
  %v2188 = vadd.f32 0.0, %v2187
  %v2189 = vpop.f32.mrb[0].mxu0
  %2190 = vdwg.mxu0
  %2192 = vrot.lane.b32.xlu0 %v2188, 8
  %v2193 = vpop.permute.xlu0 %2192
  %2195 = vst.msk [vmem:[#allocation2] sm:$0xff] %vm510, %v2193
  %2196 = vrot.lane.b32.xlu0 %v1765, 112
  %v2197 = vpop.permute.xlu0 %2196
  %2198 = vrot.lane.b32.xlu0 %v1852, 112
  %v2199 = vpop.permute.xlu0 %2198
  %v2200 = vsel %vm176, %v2197, 0
  %v2202 = vsel %vm176, %v2199, 0
  %2204 = vmatprep.subr.mxu0 0.0
  %2205 = vmatpush1.xpose.msra.mxu0 %v2202
  %2206 = vmatprep.subr.mxu0 0.0
  %2207 = vmatpush1.xpose.msra.mxu0 0.0
  %2208 = vmatprep.subr.mxu0 0.0
  %2209 = vmatpush1.xpose.msra.mxu0 0.0
  %2210 = vmatprep.subr.mxu0 0.0
  %2211 = vmatpush1.xpose.msra.mxu0 0.0
  %2212 = vmatprep.subr.mxu0 0.0
  %2213 = vmatpush1.xpose.msra.mxu0 0.0
  %2214 = vmatprep.subr.mxu0 0.0
  %2215 = vmatpush1.xpose.msra.mxu0 0.0
  %2216 = vmatprep.subr.mxu0 0.0
  %2217 = vmatpush1.xpose.msra.mxu0 0.0
  %2218 = vmatprep.subr.mxu0 0.0
  %2219 = vmatpush1.xpose.msra.mxu0 0.0
  %2220 = vmatprep.subr.mxu0 0.0
  %2221 = vmatpush1.xpose.msra.mxu0 0.0
  %2222 = vmatprep.subr.mxu0 0.0
  %2223 = vmatpush1.xpose.msra.mxu0 0.0
  %2224 = vmatprep.subr.mxu0 0.0
  %2225 = vmatpush1.xpose.msra.mxu0 0.0
  %2226 = vmatprep.subr.mxu0 0.0
  %2227 = vmatpush1.xpose.msra.mxu0 0.0
  %2228 = vmatprep.subr.mxu0 0.0
  %2229 = vmatpush1.xpose.msra.mxu0 0.0
  %2230 = vmatprep.subr.mxu0 0.0
  %2231 = vmatpush1.xpose.msra.mxu0 0.0
  %2232 = vmatprep.subr.mxu0 0.0
  %2233 = vmatpush1.xpose.msra.mxu0 0.0
  %2234 = vmatprep.subr.mxu0 0.0
  %2235 = vmatpush1.xpose.msra.mxu0 0.0
  %2236 = vmatprep.subr.mxu0 0.0
  %2237 = vmatpush1.xpose.msra.mxu0 0.0
  %2238 = vmatprep.subr.mxu0 0.0
  %2239 = vmatpush1.xpose.msra.mxu0 0.0
  %2240 = vmatprep.subr.mxu0 0.0
  %2241 = vmatpush1.xpose.msra.mxu0 0.0
  %2242 = vmatprep.subr.mxu0 0.0
  %2243 = vmatpush1.xpose.msra.mxu0 0.0
  %2244 = vmatprep.subr.mxu0 0.0
  %2245 = vmatpush1.xpose.msra.mxu0 0.0
  %2246 = vmatprep.subr.mxu0 0.0
  %2247 = vmatpush1.xpose.msra.mxu0 0.0
  %2248 = vmatprep.subr.mxu0 0.0
  %2249 = vmatpush1.xpose.msra.mxu0 0.0
  %2250 = vmatprep.subr.mxu0 0.0
  %2251 = vmatpush1.xpose.msra.mxu0 0.0
  %2252 = vmatprep.subr.mxu0 0.0
  %2253 = vmatpush1.xpose.msra.mxu0 0.0
  %2254 = vmatprep.subr.mxu0 0.0
  %2255 = vmatpush1.xpose.msra.mxu0 0.0
  %2256 = vmatprep.subr.mxu0 0.0
  %2257 = vmatpush1.xpose.msra.mxu0 0.0
  %2258 = vmatprep.subr.mxu0 0.0
  %2259 = vmatpush1.xpose.msra.mxu0 0.0
  %2260 = vmatprep.subr.mxu0 0.0
  %2261 = vmatpush1.xpose.msra.mxu0 0.0
  %2262 = vmatprep.subr.mxu0 0.0
  %2263 = vmatpush1.xpose.msra.mxu0 0.0
  %2264 = vmatprep.subr.mxu0 0.0
  %2265 = vmatpush1.xpose.msra.mxu0 0.0
  %2266 = vmatprep.subr.mxu0 0.0
  %2267 = vmatpush1.xpose.msra.mxu0 0.0
  %2268 = vmatprep.mubr.f32.mxu0 0.0
  %2269 = vmatmul.mubr.f32.gmra.mrb[0].mxu0 %v2200
  %v2270 = vpop.f32.mrb[0].mxu0
  %v2271 = vadd.f32 0.0, %v2270
  %v2272 = vpop.f32.mrb[0].mxu0
  %2273 = vdwg.mxu0
  %v2274 = vmul.f32 %v2271, 0.35355338
  %v2275 = vsel %vm176, %v2274, -inf
  %2276 = vmax.xlane.f32.xlu0 %v2275
  %v2277 = vpop.xlane.xlu0 %2276
  %v2278 = vsub.f32 %v2274, %v2277
  %v2279 = vmul.f32 %v2278, 1.442695
  %v2280 = vpow.pop %v2279
  %v2281 = vsel %vm176, %v2280, 0.0
  %2282 = vadd.xlane.f32.xlu0 %v2281
  %v2283 = vpop.xlane.xlu0 %2282
  %v2284 = vrcp.pop %v2283
  %v2285 = vmul.f32 %v2280, %v2284
  %2286 = vrot.lane.b32.xlu0 %v1852, 80
  %v2287 = vpop.permute.xlu0 %2286
  %v2290 = vsel %vm176, %v2285, 0
  %2292 = vmatprep.subr.mxu0 0.0
  %2293 = vmatpush1.msra.mxu0 %v2287
  %2294 = vmatprep.subr.mxu0 0.0
  %2295 = vmatpush1.msra.mxu0 0.0
  %2296 = vmatprep.subr.mxu0 0.0
  %2297 = vmatpush1.msra.mxu0 0.0
  %2298 = vmatprep.subr.mxu0 0.0
  %2299 = vmatpush1.msra.mxu0 0.0
  %2300 = vmatprep.subr.mxu0 0.0
  %2301 = vmatpush1.msra.mxu0 0.0
  %2302 = vmatprep.subr.mxu0 0.0
  %2303 = vmatpush1.msra.mxu0 0.0
  %2304 = vmatprep.subr.mxu0 0.0
  %2305 = vmatpush1.msra.mxu0 0.0
  %2306 = vmatprep.subr.mxu0 0.0
  %2307 = vmatpush1.msra.mxu0 0.0
  %2308 = vmatprep.subr.mxu0 0.0
  %2309 = vmatpush1.msra.mxu0 0.0
  %2310 = vmatprep.subr.mxu0 0.0
  %2311 = vmatpush1.msra.mxu0 0.0
  %2312 = vmatprep.subr.mxu0 0.0
  %2313 = vmatpush1.msra.mxu0 0.0
  %2314 = vmatprep.subr.mxu0 0.0
  %2315 = vmatpush1.msra.mxu0 0.0
  %2316 = vmatprep.subr.mxu0 0.0
  %2317 = vmatpush1.msra.mxu0 0.0
  %2318 = vmatprep.subr.mxu0 0.0
  %2319 = vmatpush1.msra.mxu0 0.0
  %2320 = vmatprep.subr.mxu0 0.0
  %2321 = vmatpush1.msra.mxu0 0.0
  %2322 = vmatprep.subr.mxu0 0.0
  %2323 = vmatpush1.msra.mxu0 0.0
  %2324 = vmatprep.subr.mxu0 0.0
  %2325 = vmatpush1.msra.mxu0 0.0
  %2326 = vmatprep.subr.mxu0 0.0
  %2327 = vmatpush1.msra.mxu0 0.0
  %2328 = vmatprep.subr.mxu0 0.0
  %2329 = vmatpush1.msra.mxu0 0.0
  %2330 = vmatprep.subr.mxu0 0.0
  %2331 = vmatpush1.msra.mxu0 0.0
  %2332 = vmatprep.subr.mxu0 0.0
  %2333 = vmatpush1.msra.mxu0 0.0
  %2334 = vmatprep.subr.mxu0 0.0
  %2335 = vmatpush1.msra.mxu0 0.0
  %2336 = vmatprep.subr.mxu0 0.0
  %2337 = vmatpush1.msra.mxu0 0.0
  %2338 = vmatprep.subr.mxu0 0.0
  %2339 = vmatpush1.msra.mxu0 0.0
  %2340 = vmatprep.subr.mxu0 0.0
  %2341 = vmatpush1.msra.mxu0 0.0
  %2342 = vmatprep.subr.mxu0 0.0
  %2343 = vmatpush1.msra.mxu0 0.0
  %2344 = vmatprep.subr.mxu0 0.0
  %2345 = vmatpush1.msra.mxu0 0.0
  %2346 = vmatprep.subr.mxu0 0.0
  %2347 = vmatpush1.msra.mxu0 0.0
  %2348 = vmatprep.subr.mxu0 0.0
  %2349 = vmatpush1.msra.mxu0 0.0
  %2350 = vmatprep.subr.mxu0 0.0
  %2351 = vmatpush1.msra.mxu0 0.0
  %2352 = vmatprep.subr.mxu0 0.0
  %2353 = vmatpush1.msra.mxu0 0.0
  %2354 = vmatprep.subr.mxu0 0.0
  %2355 = vmatpush1.msra.mxu0 0.0
  %2356 = vmatprep.mubr.f32.mxu0 0.0
  %2357 = vmatmul.mubr.f32.gmra.mrb[0].mxu0 %v2290
  %v2358 = vpop.f32.mrb[0].mxu0
  %v2359 = vadd.f32 0.0, %v2358
  %v2360 = vpop.f32.mrb[0].mxu0
  %2361 = vdwg.mxu0
  %2363 = vrot.lane.b32.xlu0 %v2359, 16
  %v2364 = vpop.permute.xlu0 %2363
  %2366 = vst.msk [vmem:[#allocation2] sm:$0xff] %vm682, %v2364
  %2367 = vrot.lane.b32.xlu0 %v1765, 104
  %v2368 = vpop.permute.xlu0 %2367
  %2369 = vrot.lane.b32.xlu0 %v1852, 104
  %v2370 = vpop.permute.xlu0 %2369
  %v2371 = vsel %vm176, %v2368, 0
  %v2373 = vsel %vm176, %v2370, 0
  %2375 = vmatprep.subr.mxu0 0.0
  %2376 = vmatpush1.xpose.msra.mxu0 %v2373
  %2377 = vmatprep.subr.mxu0 0.0
  %2378 = vmatpush1.xpose.msra.mxu0 0.0
  %2379 = vmatprep.subr.mxu0 0.0
  %2380 = vmatpush1.xpose.msra.mxu0 0.0
  %2381 = vmatprep.subr.mxu0 0.0
  %2382 = vmatpush1.xpose.msra.mxu0 0.0
  %2383 = vmatprep.subr.mxu0 0.0
  %2384 = vmatpush1.xpose.msra.mxu0 0.0
  %2385 = vmatprep.subr.mxu0 0.0
  %2386 = vmatpush1.xpose.msra.mxu0 0.0
  %2387 = vmatprep.subr.mxu0 0.0
  %2388 = vmatpush1.xpose.msra.mxu0 0.0
  %2389 = vmatprep.subr.mxu0 0.0
  %2390 = vmatpush1.xpose.msra.mxu0 0.0
  %2391 = vmatprep.subr.mxu0 0.0
  %2392 = vmatpush1.xpose.msra.mxu0 0.0
  %2393 = vmatprep.subr.mxu0 0.0
  %2394 = vmatpush1.xpose.msra.mxu0 0.0
  %2395 = vmatprep.subr.mxu0 0.0
  %2396 = vmatpush1.xpose.msra.mxu0 0.0
  %2397 = vmatprep.subr.mxu0 0.0
  %2398 = vmatpush1.xpose.msra.mxu0 0.0
  %2399 = vmatprep.subr.mxu0 0.0
  %2400 = vmatpush1.xpose.msra.mxu0 0.0
  %2401 = vmatprep.subr.mxu0 0.0
  %2402 = vmatpush1.xpose.msra.mxu0 0.0
  %2403 = vmatprep.subr.mxu0 0.0
  %2404 = vmatpush1.xpose.msra.mxu0 0.0
  %2405 = vmatprep.subr.mxu0 0.0
  %2406 = vmatpush1.xpose.msra.mxu0 0.0
  %2407 = vmatprep.subr.mxu0 0.0
  %2408 = vmatpush1.xpose.msra.mxu0 0.0
  %2409 = vmatprep.subr.mxu0 0.0
  %2410 = vmatpush1.xpose.msra.mxu0 0.0
  %2411 = vmatprep.subr.mxu0 0.0
  %2412 = vmatpush1.xpose.msra.mxu0 0.0
  %2413 = vmatprep.subr.mxu0 0.0
  %2414 = vmatpush1.xpose.msra.mxu0 0.0
  %2415 = vmatprep.subr.mxu0 0.0
  %2416 = vmatpush1.xpose.msra.mxu0 0.0
  %2417 = vmatprep.subr.mxu0 0.0
  %2418 = vmatpush1.xpose.msra.mxu0 0.0
  %2419 = vmatprep.subr.mxu0 0.0
  %2420 = vmatpush1.xpose.msra.mxu0 0.0
  %2421 = vmatprep.subr.mxu0 0.0
  %2422 = vmatpush1.xpose.msra.mxu0 0.0
  %2423 = vmatprep.subr.mxu0 0.0
  %2424 = vmatpush1.xpose.msra.mxu0 0.0
  %2425 = vmatprep.subr.mxu0 0.0
  %2426 = vmatpush1.xpose.msra.mxu0 0.0
  %2427 = vmatprep.subr.mxu0 0.0
  %2428 = vmatpush1.xpose.msra.mxu0 0.0
  %2429 = vmatprep.subr.mxu0 0.0
  %2430 = vmatpush1.xpose.msra.mxu0 0.0
  %2431 = vmatprep.subr.mxu0 0.0
  %2432 = vmatpush1.xpose.msra.mxu0 0.0
  %2433 = vmatprep.subr.mxu0 0.0
  %2434 = vmatpush1.xpose.msra.mxu0 0.0
  %2435 = vmatprep.subr.mxu0 0.0
  %2436 = vmatpush1.xpose.msra.mxu0 0.0
  %2437 = vmatprep.subr.mxu0 0.0
  %2438 = vmatpush1.xpose.msra.mxu0 0.0
  %2439 = vmatprep.mubr.f32.mxu0 0.0
  %2440 = vmatmul.mubr.f32.gmra.mrb[0].mxu0 %v2371
  %v2441 = vpop.f32.mrb[0].mxu0
  %v2442 = vadd.f32 0.0, %v2441
  %v2443 = vpop.f32.mrb[0].mxu0
  %2444 = vdwg.mxu0
  %v2445 = vmul.f32 %v2442, 0.35355338
  %v2446 = vsel %vm176, %v2445, -inf
  %2447 = vmax.xlane.f32.xlu0 %v2446
  %v2448 = vpop.xlane.xlu0 %2447
  %v2449 = vsub.f32 %v2445, %v2448
  %v2450 = vmul.f32 %v2449, 1.442695
  %v2451 = vpow.pop %v2450
  %v2452 = vsel %vm176, %v2451, 0.0
  %2453 = vadd.xlane.f32.xlu0 %v2452
  %v2454 = vpop.xlane.xlu0 %2453
  %v2455 = vrcp.pop %v2454
  %v2456 = vmul.f32 %v2451, %v2455
  %2457 = vrot.lane.b32.xlu0 %v1852, 72
  %v2458 = vpop.permute.xlu0 %2457
  %v2461 = vsel %vm176, %v2456, 0
  %2463 = vmatprep.subr.mxu0 0.0
  %2464 = vmatpush1.msra.mxu0 %v2458
  %2465 = vmatprep.subr.mxu0 0.0
  %2466 = vmatpush1.msra.mxu0 0.0
  %2467 = vmatprep.subr.mxu0 0.0
  %2468 = vmatpush1.msra.mxu0 0.0
  %2469 = vmatprep.subr.mxu0 0.0
  %2470 = vmatpush1.msra.mxu0 0.0
  %2471 = vmatprep.subr.mxu0 0.0
  %2472 = vmatpush1.msra.mxu0 0.0
  %2473 = vmatprep.subr.mxu0 0.0
  %2474 = vmatpush1.msra.mxu0 0.0
  %2475 = vmatprep.subr.mxu0 0.0
  %2476 = vmatpush1.msra.mxu0 0.0
  %2477 = vmatprep.subr.mxu0 0.0
  %2478 = vmatpush1.msra.mxu0 0.0
  %2479 = vmatprep.subr.mxu0 0.0
  %2480 = vmatpush1.msra.mxu0 0.0
  %2481 = vmatprep.subr.mxu0 0.0
  %2482 = vmatpush1.msra.mxu0 0.0
  %2483 = vmatprep.subr.mxu0 0.0
  %2484 = vmatpush1.msra.mxu0 0.0
  %2485 = vmatprep.subr.mxu0 0.0
  %2486 = vmatpush1.msra.mxu0 0.0
  %2487 = vmatprep.subr.mxu0 0.0
  %2488 = vmatpush1.msra.mxu0 0.0
  %2489 = vmatprep.subr.mxu0 0.0
  %2490 = vmatpush1.msra.mxu0 0.0
  %2491 = vmatprep.subr.mxu0 0.0
  %2492 = vmatpush1.msra.mxu0 0.0
  %2493 = vmatprep.subr.mxu0 0.0
  %2494 = vmatpush1.msra.mxu0 0.0
  %2495 = vmatprep.subr.mxu0 0.0
  %2496 = vmatpush1.msra.mxu0 0.0
  %2497 = vmatprep.subr.mxu0 0.0
  %2498 = vmatpush1.msra.mxu0 0.0
  %2499 = vmatprep.subr.mxu0 0.0
  %2500 = vmatpush1.msra.mxu0 0.0
  %2501 = vmatprep.subr.mxu0 0.0
  %2502 = vmatpush1.msra.mxu0 0.0
  %2503 = vmatprep.subr.mxu0 0.0
  %2504 = vmatpush1.msra.mxu0 0.0
  %2505 = vmatprep.subr.mxu0 0.0
  %2506 = vmatpush1.msra.mxu0 0.0
  %2507 = vmatprep.subr.mxu0 0.0
  %2508 = vmatpush1.msra.mxu0 0.0
  %2509 = vmatprep.subr.mxu0 0.0
  %2510 = vmatpush1.msra.mxu0 0.0
  %2511 = vmatprep.subr.mxu0 0.0
  %2512 = vmatpush1.msra.mxu0 0.0
  %2513 = vmatprep.subr.mxu0 0.0
  %2514 = vmatpush1.msra.mxu0 0.0
  %2515 = vmatprep.subr.mxu0 0.0
  %2516 = vmatpush1.msra.mxu0 0.0
  %2517 = vmatprep.subr.mxu0 0.0
  %2518 = vmatpush1.msra.mxu0 0.0
  %2519 = vmatprep.subr.mxu0 0.0
  %2520 = vmatpush1.msra.mxu0 0.0
  %2521 = vmatprep.subr.mxu0 0.0
  %2522 = vmatpush1.msra.mxu0 0.0
  %2523 = vmatprep.subr.mxu0 0.0
  %2524 = vmatpush1.msra.mxu0 0.0
  %2525 = vmatprep.subr.mxu0 0.0
  %2526 = vmatpush1.msra.mxu0 0.0
  %2527 = vmatprep.mubr.f32.mxu0 0.0
  %2528 = vmatmul.mubr.f32.gmra.mrb[0].mxu0 %v2461
  %v2529 = vpop.f32.mrb[0].mxu0
  %v2530 = vadd.f32 0.0, %v2529
  %v2531 = vpop.f32.mrb[0].mxu0
  %2532 = vdwg.mxu0
  %2534 = vrot.lane.b32.xlu0 %v2530, 24
  %v2535 = vpop.permute.xlu0 %2534
  %2537 = vst.msk [vmem:[#allocation2] sm:$0xff] %vm854, %v2535
  %v2539 = vsel %vm176, %v1770, 0
  %v2542 = vsel %vm176, %v1857, 0
  %2544 = vmatprep.subr.mxu0 0.0
  %2545 = vmatpush1.xpose.msra.mxu0 %v2542
  %2546 = vmatprep.subr.mxu0 0.0
  %2547 = vmatpush1.xpose.msra.mxu0 0.0
  %2548 = vmatprep.subr.mxu0 0.0
  %2549 = vmatpush1.xpose.msra.mxu0 0.0
  %2550 = vmatprep.subr.mxu0 0.0
  %2551 = vmatpush1.xpose.msra.mxu0 0.0
  %2552 = vmatprep.subr.mxu0 0.0
  %2553 = vmatpush1.xpose.msra.mxu0 0.0
  %2554 = vmatprep.subr.mxu0 0.0
  %2555 = vmatpush1.xpose.msra.mxu0 0.0
  %2556 = vmatprep.subr.mxu0 0.0
  %2557 = vmatpush1.xpose.msra.mxu0 0.0
  %2558 = vmatprep.subr.mxu0 0.0
  %2559 = vmatpush1.xpose.msra.mxu0 0.0
  %2560 = vmatprep.subr.mxu0 0.0
  %2561 = vmatpush1.xpose.msra.mxu0 0.0
  %2562 = vmatprep.subr.mxu0 0.0
  %2563 = vmatpush1.xpose.msra.mxu0 0.0
  %2564 = vmatprep.subr.mxu0 0.0
  %2565 = vmatpush1.xpose.msra.mxu0 0.0
  %2566 = vmatprep.subr.mxu0 0.0
  %2567 = vmatpush1.xpose.msra.mxu0 0.0
  %2568 = vmatprep.subr.mxu0 0.0
  %2569 = vmatpush1.xpose.msra.mxu0 0.0
  %2570 = vmatprep.subr.mxu0 0.0
  %2571 = vmatpush1.xpose.msra.mxu0 0.0
  %2572 = vmatprep.subr.mxu0 0.0
  %2573 = vmatpush1.xpose.msra.mxu0 0.0
  %2574 = vmatprep.subr.mxu0 0.0
  %2575 = vmatpush1.xpose.msra.mxu0 0.0
  %2576 = vmatprep.subr.mxu0 0.0
  %2577 = vmatpush1.xpose.msra.mxu0 0.0
  %2578 = vmatprep.subr.mxu0 0.0
  %2579 = vmatpush1.xpose.msra.mxu0 0.0
  %2580 = vmatprep.subr.mxu0 0.0
  %2581 = vmatpush1.xpose.msra.mxu0 0.0
  %2582 = vmatprep.subr.mxu0 0.0
  %2583 = vmatpush1.xpose.msra.mxu0 0.0
  %2584 = vmatprep.subr.mxu0 0.0
  %2585 = vmatpush1.xpose.msra.mxu0 0.0
  %2586 = vmatprep.subr.mxu0 0.0
  %2587 = vmatpush1.xpose.msra.mxu0 0.0
  %2588 = vmatprep.subr.mxu0 0.0
  %2589 = vmatpush1.xpose.msra.mxu0 0.0
  %2590 = vmatprep.subr.mxu0 0.0
  %2591 = vmatpush1.xpose.msra.mxu0 0.0
  %2592 = vmatprep.subr.mxu0 0.0
  %2593 = vmatpush1.xpose.msra.mxu0 0.0
  %2594 = vmatprep.subr.mxu0 0.0
  %2595 = vmatpush1.xpose.msra.mxu0 0.0
  %2596 = vmatprep.subr.mxu0 0.0
  %2597 = vmatpush1.xpose.msra.mxu0 0.0
  %2598 = vmatprep.subr.mxu0 0.0
  %2599 = vmatpush1.xpose.msra.mxu0 0.0
  %2600 = vmatprep.subr.mxu0 0.0
  %2601 = vmatpush1.xpose.msra.mxu0 0.0
  %2602 = vmatprep.subr.mxu0 0.0
  %2603 = vmatpush1.xpose.msra.mxu0 0.0
  %2604 = vmatprep.subr.mxu0 0.0
  %2605 = vmatpush1.xpose.msra.mxu0 0.0
  %2606 = vmatprep.subr.mxu0 0.0
  %2607 = vmatpush1.xpose.msra.mxu0 0.0
  %2608 = vmatprep.mubr.f32.mxu0 0.0
  %2609 = vmatmul.mubr.f32.gmra.mrb[0].mxu0 %v2539
  %v2610 = vpop.f32.mrb[0].mxu0
  %v2611 = vadd.f32 0.0, %v2610
  %v2612 = vpop.f32.mrb[0].mxu0
  %2613 = vdwg.mxu0
  %v2614 = vmul.f32 %v2611, 0.35355338
  %v2615 = vsel %vm176, %v2614, -inf
  %2616 = vmax.xlane.f32.xlu0 %v2615
  %v2617 = vpop.xlane.xlu0 %2616
  %v2618 = vsub.f32 %v2614, %v2617
  %v2619 = vmul.f32 %v2618, 1.442695
  %v2620 = vpow.pop %v2619
  %v2621 = vsel %vm176, %v2620, 0.0
  %2622 = vadd.xlane.f32.xlu0 %v2621
  %v2623 = vpop.xlane.xlu0 %2622
  %v2624 = vrcp.pop %v2623
  %v2625 = vmul.f32 %v2620, %v2624
  %2626 = vrot.lane.b32.xlu0 %v1857, 96
  %v2627 = vpop.permute.xlu0 %2626
  %v2630 = vsel %vm176, %v2625, 0
  %2632 = vmatprep.subr.mxu0 0.0
  %2633 = vmatpush1.msra.mxu0 %v2627
  %2634 = vmatprep.subr.mxu0 0.0
  %2635 = vmatpush1.msra.mxu0 0.0
  %2636 = vmatprep.subr.mxu0 0.0
  %2637 = vmatpush1.msra.mxu0 0.0
  %2638 = vmatprep.subr.mxu0 0.0
  %2639 = vmatpush1.msra.mxu0 0.0
  %2640 = vmatprep.subr.mxu0 0.0
  %2641 = vmatpush1.msra.mxu0 0.0
  %2642 = vmatprep.subr.mxu0 0.0
  %2643 = vmatpush1.msra.mxu0 0.0
  %2644 = vmatprep.subr.mxu0 0.0
  %2645 = vmatpush1.msra.mxu0 0.0
  %2646 = vmatprep.subr.mxu0 0.0
  %2647 = vmatpush1.msra.mxu0 0.0
  %2648 = vmatprep.subr.mxu0 0.0
  %2649 = vmatpush1.msra.mxu0 0.0
  %2650 = vmatprep.subr.mxu0 0.0
  %2651 = vmatpush1.msra.mxu0 0.0
  %2652 = vmatprep.subr.mxu0 0.0
  %2653 = vmatpush1.msra.mxu0 0.0
  %2654 = vmatprep.subr.mxu0 0.0
  %2655 = vmatpush1.msra.mxu0 0.0
  %2656 = vmatprep.subr.mxu0 0.0
  %2657 = vmatpush1.msra.mxu0 0.0
  %2658 = vmatprep.subr.mxu0 0.0
  %2659 = vmatpush1.msra.mxu0 0.0
  %2660 = vmatprep.subr.mxu0 0.0
  %2661 = vmatpush1.msra.mxu0 0.0
  %2662 = vmatprep.subr.mxu0 0.0
  %2663 = vmatpush1.msra.mxu0 0.0
  %2664 = vmatprep.subr.mxu0 0.0
  %2665 = vmatpush1.msra.mxu0 0.0
  %2666 = vmatprep.subr.mxu0 0.0
  %2667 = vmatpush1.msra.mxu0 0.0
  %2668 = vmatprep.subr.mxu0 0.0
  %2669 = vmatpush1.msra.mxu0 0.0
  %2670 = vmatprep.subr.mxu0 0.0
  %2671 = vmatpush1.msra.mxu0 0.0
  %2672 = vmatprep.subr.mxu0 0.0
  %2673 = vmatpush1.msra.mxu0 0.0
  %2674 = vmatprep.subr.mxu0 0.0
  %2675 = vmatpush1.msra.mxu0 0.0
  %2676 = vmatprep.subr.mxu0 0.0
  %2677 = vmatpush1.msra.mxu0 0.0
  %2678 = vmatprep.subr.mxu0 0.0
  %2679 = vmatpush1.msra.mxu0 0.0
  %2680 = vmatprep.subr.mxu0 0.0
  %2681 = vmatpush1.msra.mxu0 0.0
  %2682 = vmatprep.subr.mxu0 0.0
  %2683 = vmatpush1.msra.mxu0 0.0
  %2684 = vmatprep.subr.mxu0 0.0
  %2685 = vmatpush1.msra.mxu0 0.0
  %2686 = vmatprep.subr.mxu0 0.0
  %2687 = vmatpush1.msra.mxu0 0.0
  %2688 = vmatprep.subr.mxu0 0.0
  %2689 = vmatpush1.msra.mxu0 0.0
  %2690 = vmatprep.subr.mxu0 0.0
  %2691 = vmatpush1.msra.mxu0 0.0
  %2692 = vmatprep.subr.mxu0 0.0
  %2693 = vmatpush1.msra.mxu0 0.0
  %2694 = vmatprep.subr.mxu0 0.0
  %2695 = vmatpush1.msra.mxu0 0.0
  %2696 = vmatprep.mubr.f32.mxu0 0.0
  %2697 = vmatmul.mubr.f32.gmra.mrb[0].mxu0 %v2630
  %v2698 = vpop.f32.mrb[0].mxu0
  %v2699 = vadd.f32 0.0, %v2698
  %v2700 = vpop.f32.mrb[0].mxu0
  %2701 = vdwg.mxu0
  %2702 = vst.msk [vmem:[#allocation2 + $0x8] sm:$0xff] %vm176, %v2699
  %2703 = vrot.lane.b32.xlu0 %v1770, 120
  %v2704 = vpop.permute.xlu0 %2703
  %2705 = vrot.lane.b32.xlu0 %v1857, 120
  %v2706 = vpop.permute.xlu0 %2705
  %v2707 = vsel %vm176, %v2704, 0
  %v2709 = vsel %vm176, %v2706, 0
  %2711 = vmatprep.subr.mxu0 0.0
  %2712 = vmatpush1.xpose.msra.mxu0 %v2709
  %2713 = vmatprep.subr.mxu0 0.0
  %2714 = vmatpush1.xpose.msra.mxu0 0.0
  %2715 = vmatprep.subr.mxu0 0.0
  %2716 = vmatpush1.xpose.msra.mxu0 0.0
  %2717 = vmatprep.subr.mxu0 0.0
  %2718 = vmatpush1.xpose.msra.mxu0 0.0
  %2719 = vmatprep.subr.mxu0 0.0
  %2720 = vmatpush1.xpose.msra.mxu0 0.0
  %2721 = vmatprep.subr.mxu0 0.0
  %2722 = vmatpush1.xpose.msra.mxu0 0.0
  %2723 = vmatprep.subr.mxu0 0.0
  %2724 = vmatpush1.xpose.msra.mxu0 0.0
  %2725 = vmatprep.subr.mxu0 0.0
  %2726 = vmatpush1.xpose.msra.mxu0 0.0
  %2727 = vmatprep.subr.mxu0 0.0
  %2728 = vmatpush1.xpose.msra.mxu0 0.0
  %2729 = vmatprep.subr.mxu0 0.0
  %2730 = vmatpush1.xpose.msra.mxu0 0.0
  %2731 = vmatprep.subr.mxu0 0.0
  %2732 = vmatpush1.xpose.msra.mxu0 0.0
  %2733 = vmatprep.subr.mxu0 0.0
  %2734 = vmatpush1.xpose.msra.mxu0 0.0
  %2735 = vmatprep.subr.mxu0 0.0
  %2736 = vmatpush1.xpose.msra.mxu0 0.0
  %2737 = vmatprep.subr.mxu0 0.0
  %2738 = vmatpush1.xpose.msra.mxu0 0.0
  %2739 = vmatprep.subr.mxu0 0.0
  %2740 = vmatpush1.xpose.msra.mxu0 0.0
  %2741 = vmatprep.subr.mxu0 0.0
  %2742 = vmatpush1.xpose.msra.mxu0 0.0
  %2743 = vmatprep.subr.mxu0 0.0
  %2744 = vmatpush1.xpose.msra.mxu0 0.0
  %2745 = vmatprep.subr.mxu0 0.0
  %2746 = vmatpush1.xpose.msra.mxu0 0.0
  %2747 = vmatprep.subr.mxu0 0.0
  %2748 = vmatpush1.xpose.msra.mxu0 0.0
  %2749 = vmatprep.subr.mxu0 0.0
  %2750 = vmatpush1.xpose.msra.mxu0 0.0
  %2751 = vmatprep.subr.mxu0 0.0
  %2752 = vmatpush1.xpose.msra.mxu0 0.0
  %2753 = vmatprep.subr.mxu0 0.0
  %2754 = vmatpush1.xpose.msra.mxu0 0.0
  %2755 = vmatprep.subr.mxu0 0.0
  %2756 = vmatpush1.xpose.msra.mxu0 0.0
  %2757 = vmatprep.subr.mxu0 0.0
  %2758 = vmatpush1.xpose.msra.mxu0 0.0
  %2759 = vmatprep.subr.mxu0 0.0
  %2760 = vmatpush1.xpose.msra.mxu0 0.0
  %2761 = vmatprep.subr.mxu0 0.0
  %2762 = vmatpush1.xpose.msra.mxu0 0.0
  %2763 = vmatprep.subr.mxu0 0.0
  %2764 = vmatpush1.xpose.msra.mxu0 0.0
  %2765 = vmatprep.subr.mxu0 0.0
  %2766 = vmatpush1.xpose.msra.mxu0 0.0
  %2767 = vmatprep.subr.mxu0 0.0
  %2768 = vmatpush1.xpose.msra.mxu0 0.0
  %2769 = vmatprep.subr.mxu0 0.0
  %2770 = vmatpush1.xpose.msra.mxu0 0.0
  %2771 = vmatprep.subr.mxu0 0.0
  %2772 = vmatpush1.xpose.msra.mxu0 0.0
  %2773 = vmatprep.subr.mxu0 0.0
  %2774 = vmatpush1.xpose.msra.mxu0 0.0
  %2775 = vmatprep.mubr.f32.mxu0 0.0
  %2776 = vmatmul.mubr.f32.gmra.mrb[0].mxu0 %v2707
  %v2777 = vpop.f32.mrb[0].mxu0
  %v2778 = vadd.f32 0.0, %v2777
  %v2779 = vpop.f32.mrb[0].mxu0
  %2780 = vdwg.mxu0
  %v2781 = vmul.f32 %v2778, 0.35355338
  %v2782 = vsel %vm176, %v2781, -inf
  %2783 = vmax.xlane.f32.xlu0 %v2782
  %v2784 = vpop.xlane.xlu0 %2783
  %v2785 = vsub.f32 %v2781, %v2784
  %v2786 = vmul.f32 %v2785, 1.442695
  %v2787 = vpow.pop %v2786
  %v2788 = vsel %vm176, %v2787, 0.0
  %2789 = vadd.xlane.f32.xlu0 %v2788
  %v2790 = vpop.xlane.xlu0 %2789
  %v2791 = vrcp.pop %v2790
  %v2792 = vmul.f32 %v2787, %v2791
  %2793 = vrot.lane.b32.xlu0 %v1857, 88
  %v2794 = vpop.permute.xlu0 %2793
  %v2797 = vsel %vm176, %v2792, 0
  %2799 = vmatprep.subr.mxu0 0.0
  %2800 = vmatpush1.msra.mxu0 %v2794
  %2801 = vmatprep.subr.mxu0 0.0
  %2802 = vmatpush1.msra.mxu0 0.0
  %2803 = vmatprep.subr.mxu0 0.0
  %2804 = vmatpush1.msra.mxu0 0.0
  %2805 = vmatprep.subr.mxu0 0.0
  %2806 = vmatpush1.msra.mxu0 0.0
  %2807 = vmatprep.subr.mxu0 0.0
  %2808 = vmatpush1.msra.mxu0 0.0
  %2809 = vmatprep.subr.mxu0 0.0
  %2810 = vmatpush1.msra.mxu0 0.0
  %2811 = vmatprep.subr.mxu0 0.0
  %2812 = vmatpush1.msra.mxu0 0.0
  %2813 = vmatprep.subr.mxu0 0.0
  %2814 = vmatpush1.msra.mxu0 0.0
  %2815 = vmatprep.subr.mxu0 0.0
  %2816 = vmatpush1.msra.mxu0 0.0
  %2817 = vmatprep.subr.mxu0 0.0
  %2818 = vmatpush1.msra.mxu0 0.0
  %2819 = vmatprep.subr.mxu0 0.0
  %2820 = vmatpush1.msra.mxu0 0.0
  %2821 = vmatprep.subr.mxu0 0.0
  %2822 = vmatpush1.msra.mxu0 0.0
  %2823 = vmatprep.subr.mxu0 0.0
  %2824 = vmatpush1.msra.mxu0 0.0
  %2825 = vmatprep.subr.mxu0 0.0
  %2826 = vmatpush1.msra.mxu0 0.0
  %2827 = vmatprep.subr.mxu0 0.0
  %2828 = vmatpush1.msra.mxu0 0.0
  %2829 = vmatprep.subr.mxu0 0.0
  %2830 = vmatpush1.msra.mxu0 0.0
  %2831 = vmatprep.subr.mxu0 0.0
  %2832 = vmatpush1.msra.mxu0 0.0
  %2833 = vmatprep.subr.mxu0 0.0
  %2834 = vmatpush1.msra.mxu0 0.0
  %2835 = vmatprep.subr.mxu0 0.0
  %2836 = vmatpush1.msra.mxu0 0.0
  %2837 = vmatprep.subr.mxu0 0.0
  %2838 = vmatpush1.msra.mxu0 0.0
  %2839 = vmatprep.subr.mxu0 0.0
  %2840 = vmatpush1.msra.mxu0 0.0
  %2841 = vmatprep.subr.mxu0 0.0
  %2842 = vmatpush1.msra.mxu0 0.0
  %2843 = vmatprep.subr.mxu0 0.0
  %2844 = vmatpush1.msra.mxu0 0.0
  %2845 = vmatprep.subr.mxu0 0.0
  %2846 = vmatpush1.msra.mxu0 0.0
  %2847 = vmatprep.subr.mxu0 0.0
  %2848 = vmatpush1.msra.mxu0 0.0
  %2849 = vmatprep.subr.mxu0 0.0
  %2850 = vmatpush1.msra.mxu0 0.0
  %2851 = vmatprep.subr.mxu0 0.0
  %2852 = vmatpush1.msra.mxu0 0.0
  %2853 = vmatprep.subr.mxu0 0.0
  %2854 = vmatpush1.msra.mxu0 0.0
  %2855 = vmatprep.subr.mxu0 0.0
  %2856 = vmatpush1.msra.mxu0 0.0
  %2857 = vmatprep.subr.mxu0 0.0
  %2858 = vmatpush1.msra.mxu0 0.0
  %2859 = vmatprep.subr.mxu0 0.0
  %2860 = vmatpush1.msra.mxu0 0.0
  %2861 = vmatprep.subr.mxu0 0.0
  %2862 = vmatpush1.msra.mxu0 0.0
  %2863 = vmatprep.mubr.f32.mxu0 0.0
  %2864 = vmatmul.mubr.f32.gmra.mrb[0].mxu0 %v2797
  %v2865 = vpop.f32.mrb[0].mxu0
  %v2866 = vadd.f32 0.0, %v2865
  %v2867 = vpop.f32.mrb[0].mxu0
  %2868 = vdwg.mxu0
  %2870 = vrot.lane.b32.xlu0 %v2866, 8
  %v2871 = vpop.permute.xlu0 %2870
  %2873 = vst.msk [vmem:[#allocation2 + $0x8] sm:$0xff] %vm510, %v2871
  %2874 = vrot.lane.b32.xlu0 %v1770, 112
  %v2875 = vpop.permute.xlu0 %2874
  %2876 = vrot.lane.b32.xlu0 %v1857, 112
  %v2877 = vpop.permute.xlu0 %2876
  %v2878 = vsel %vm176, %v2875, 0
  %v2880 = vsel %vm176, %v2877, 0
  %2882 = vmatprep.subr.mxu0 0.0
  %2883 = vmatpush1.xpose.msra.mxu0 %v2880
  %2884 = vmatprep.subr.mxu0 0.0
  %2885 = vmatpush1.xpose.msra.mxu0 0.0
  %2886 = vmatprep.subr.mxu0 0.0
  %2887 = vmatpush1.xpose.msra.mxu0 0.0
  %2888 = vmatprep.subr.mxu0 0.0
  %2889 = vmatpush1.xpose.msra.mxu0 0.0
  %2890 = vmatprep.subr.mxu0 0.0
  %2891 = vmatpush1.xpose.msra.mxu0 0.0
  %2892 = vmatprep.subr.mxu0 0.0
  %2893 = vmatpush1.xpose.msra.mxu0 0.0
  %2894 = vmatprep.subr.mxu0 0.0
  %2895 = vmatpush1.xpose.msra.mxu0 0.0
  %2896 = vmatprep.subr.mxu0 0.0
  %2897 = vmatpush1.xpose.msra.mxu0 0.0
  %2898 = vmatprep.subr.mxu0 0.0
  %2899 = vmatpush1.xpose.msra.mxu0 0.0
  %2900 = vmatprep.subr.mxu0 0.0
  %2901 = vmatpush1.xpose.msra.mxu0 0.0
  %2902 = vmatprep.subr.mxu0 0.0
  %2903 = vmatpush1.xpose.msra.mxu0 0.0
  %2904 = vmatprep.subr.mxu0 0.0
  %2905 = vmatpush1.xpose.msra.mxu0 0.0
  %2906 = vmatprep.subr.mxu0 0.0
  %2907 = vmatpush1.xpose.msra.mxu0 0.0
  %2908 = vmatprep.subr.mxu0 0.0
  %2909 = vmatpush1.xpose.msra.mxu0 0.0
  %2910 = vmatprep.subr.mxu0 0.0
  %2911 = vmatpush1.xpose.msra.mxu0 0.0
  %2912 = vmatprep.subr.mxu0 0.0
  %2913 = vmatpush1.xpose.msra.mxu0 0.0
  %2914 = vmatprep.subr.mxu0 0.0
  %2915 = vmatpush1.xpose.msra.mxu0 0.0
  %2916 = vmatprep.subr.mxu0 0.0
  %2917 = vmatpush1.xpose.msra.mxu0 0.0
  %2918 = vmatprep.subr.mxu0 0.0
  %2919 = vmatpush1.xpose.msra.mxu0 0.0
  %2920 = vmatprep.subr.mxu0 0.0
  %2921 = vmatpush1.xpose.msra.mxu0 0.0
  %2922 = vmatprep.subr.mxu0 0.0
  %2923 = vmatpush1.xpose.msra.mxu0 0.0
  %2924 = vmatprep.subr.mxu0 0.0
  %2925 = vmatpush1.xpose.msra.mxu0 0.0
  %2926 = vmatprep.subr.mxu0 0.0
  %2927 = vmatpush1.xpose.msra.mxu0 0.0
  %2928 = vmatprep.subr.mxu0 0.0
  %2929 = vmatpush1.xpose.msra.mxu0 0.0
  %2930 = vmatprep.subr.mxu0 0.0
  %2931 = vmatpush1.xpose.msra.mxu0 0.0
  %2932 = vmatprep.subr.mxu0 0.0
  %2933 = vmatpush1.xpose.msra.mxu0 0.0
  %2934 = vmatprep.subr.mxu0 0.0
  %2935 = vmatpush1.xpose.msra.mxu0 0.0
  %2936 = vmatprep.subr.mxu0 0.0
  %2937 = vmatpush1.xpose.msra.mxu0 0.0
  %2938 = vmatprep.subr.mxu0 0.0
  %2939 = vmatpush1.xpose.msra.mxu0 0.0
  %2940 = vmatprep.subr.mxu0 0.0
  %2941 = vmatpush1.xpose.msra.mxu0 0.0
  %2942 = vmatprep.subr.mxu0 0.0
  %2943 = vmatpush1.xpose.msra.mxu0 0.0
  %2944 = vmatprep.subr.mxu0 0.0
  %2945 = vmatpush1.xpose.msra.mxu0 0.0
  %2946 = vmatprep.mubr.f32.mxu0 0.0
  %2947 = vmatmul.mubr.f32.gmra.mrb[0].mxu0 %v2878
  %v2948 = vpop.f32.mrb[0].mxu0
  %v2949 = vadd.f32 0.0, %v2948
  %v2950 = vpop.f32.mrb[0].mxu0
  %2951 = vdwg.mxu0
  %v2952 = vmul.f32 %v2949, 0.35355338
  %v2953 = vsel %vm176, %v2952, -inf
  %2954 = vmax.xlane.f32.xlu0 %v2953
  %v2955 = vpop.xlane.xlu0 %2954
  %v2956 = vsub.f32 %v2952, %v2955
  %v2957 = vmul.f32 %v2956, 1.442695
  %v2958 = vpow.pop %v2957
  %v2959 = vsel %vm176, %v2958, 0.0
  %2960 = vadd.xlane.f32.xlu0 %v2959
  %v2961 = vpop.xlane.xlu0 %2960
  %v2962 = vrcp.pop %v2961
  %v2963 = vmul.f32 %v2958, %v2962
  %2964 = vrot.lane.b32.xlu0 %v1857, 80
  %v2965 = vpop.permute.xlu0 %2964
  %v2968 = vsel %vm176, %v2963, 0
  %2970 = vmatprep.subr.mxu0 0.0
  %2971 = vmatpush1.msra.mxu0 %v2965
  %2972 = vmatprep.subr.mxu0 0.0
  %2973 = vmatpush1.msra.mxu0 0.0
  %2974 = vmatprep.subr.mxu0 0.0
  %2975 = vmatpush1.msra.mxu0 0.0
  %2976 = vmatprep.subr.mxu0 0.0
  %2977 = vmatpush1.msra.mxu0 0.0
  %2978 = vmatprep.subr.mxu0 0.0
  %2979 = vmatpush1.msra.mxu0 0.0
  %2980 = vmatprep.subr.mxu0 0.0
  %2981 = vmatpush1.msra.mxu0 0.0
  %2982 = vmatprep.subr.mxu0 0.0
  %2983 = vmatpush1.msra.mxu0 0.0
  %2984 = vmatprep.subr.mxu0 0.0
  %2985 = vmatpush1.msra.mxu0 0.0
  %2986 = vmatprep.subr.mxu0 0.0
  %2987 = vmatpush1.msra.mxu0 0.0
  %2988 = vmatprep.subr.mxu0 0.0
  %2989 = vmatpush1.msra.mxu0 0.0
  %2990 = vmatprep.subr.mxu0 0.0
  %2991 = vmatpush1.msra.mxu0 0.0
  %2992 = vmatprep.subr.mxu0 0.0
  %2993 = vmatpush1.msra.mxu0 0.0
  %2994 = vmatprep.subr.mxu0 0.0
  %2995 = vmatpush1.msra.mxu0 0.0
  %2996 = vmatprep.subr.mxu0 0.0
  %2997 = vmatpush1.msra.mxu0 0.0
  %2998 = vmatprep.subr.mxu0 0.0
  %2999 = vmatpush1.msra.mxu0 0.0
  %3000 = vmatprep.subr.mxu0 0.0
  %3001 = vmatpush1.msra.mxu0 0.0
  %3002 = vmatprep.subr.mxu0 0.0
  %3003 = vmatpush1.msra.mxu0 0.0
  %3004 = vmatprep.subr.mxu0 0.0
  %3005 = vmatpush1.msra.mxu0 0.0
  %3006 = vmatprep.subr.mxu0 0.0
  %3007 = vmatpush1.msra.mxu0 0.0
  %3008 = vmatprep.subr.mxu0 0.0
  %3009 = vmatpush1.msra.mxu0 0.0
  %3010 = vmatprep.subr.mxu0 0.0
  %3011 = vmatpush1.msra.mxu0 0.0
  %3012 = vmatprep.subr.mxu0 0.0
  %3013 = vmatpush1.msra.mxu0 0.0
  %3014 = vmatprep.subr.mxu0 0.0
  %3015 = vmatpush1.msra.mxu0 0.0
  %3016 = vmatprep.subr.mxu0 0.0
  %3017 = vmatpush1.msra.mxu0 0.0
  %3018 = vmatprep.subr.mxu0 0.0
  %3019 = vmatpush1.msra.mxu0 0.0
  %3020 = vmatprep.subr.mxu0 0.0
  %3021 = vmatpush1.msra.mxu0 0.0
  %3022 = vmatprep.subr.mxu0 0.0
  %3023 = vmatpush1.msra.mxu0 0.0
  %3024 = vmatprep.subr.mxu0 0.0
  %3025 = vmatpush1.msra.mxu0 0.0
  %3026 = vmatprep.subr.mxu0 0.0
  %3027 = vmatpush1.msra.mxu0 0.0
  %3028 = vmatprep.subr.mxu0 0.0
  %3029 = vmatpush1.msra.mxu0 0.0
  %3030 = vmatprep.subr.mxu0 0.0
  %3031 = vmatpush1.msra.mxu0 0.0
  %3032 = vmatprep.subr.mxu0 0.0
  %3033 = vmatpush1.msra.mxu0 0.0
  %3034 = vmatprep.mubr.f32.mxu0 0.0
  %3035 = vmatmul.mubr.f32.gmra.mrb[0].mxu0 %v2968
  %v3036 = vpop.f32.mrb[0].mxu0
  %v3037 = vadd.f32 0.0, %v3036
  %v3038 = vpop.f32.mrb[0].mxu0
  %3039 = vdwg.mxu0
  %3041 = vrot.lane.b32.xlu0 %v3037, 16
  %v3042 = vpop.permute.xlu0 %3041
  %3044 = vst.msk [vmem:[#allocation2 + $0x8] sm:$0xff] %vm682, %v3042
  %3045 = vrot.lane.b32.xlu0 %v1770, 104
  %v3046 = vpop.permute.xlu0 %3045
  %3047 = vrot.lane.b32.xlu0 %v1857, 104
  %v3048 = vpop.permute.xlu0 %3047
  %v3049 = vsel %vm176, %v3046, 0
  %v3051 = vsel %vm176, %v3048, 0
  %3053 = vmatprep.subr.mxu0 0.0
  %3054 = vmatpush1.xpose.msra.mxu0 %v3051
  %3055 = vmatprep.subr.mxu0 0.0
  %3056 = vmatpush1.xpose.msra.mxu0 0.0
  %3057 = vmatprep.subr.mxu0 0.0
  %3058 = vmatpush1.xpose.msra.mxu0 0.0
  %3059 = vmatprep.subr.mxu0 0.0
  %3060 = vmatpush1.xpose.msra.mxu0 0.0
  %3061 = vmatprep.subr.mxu0 0.0
  %3062 = vmatpush1.xpose.msra.mxu0 0.0
  %3063 = vmatprep.subr.mxu0 0.0
  %3064 = vmatpush1.xpose.msra.mxu0 0.0
  %3065 = vmatprep.subr.mxu0 0.0
  %3066 = vmatpush1.xpose.msra.mxu0 0.0
  %3067 = vmatprep.subr.mxu0 0.0
  %3068 = vmatpush1.xpose.msra.mxu0 0.0
  %3069 = vmatprep.subr.mxu0 0.0
  %3070 = vmatpush1.xpose.msra.mxu0 0.0
  %3071 = vmatprep.subr.mxu0 0.0
  %3072 = vmatpush1.xpose.msra.mxu0 0.0
  %3073 = vmatprep.subr.mxu0 0.0
  %3074 = vmatpush1.xpose.msra.mxu0 0.0
  %3075 = vmatprep.subr.mxu0 0.0
  %3076 = vmatpush1.xpose.msra.mxu0 0.0
  %3077 = vmatprep.subr.mxu0 0.0
  %3078 = vmatpush1.xpose.msra.mxu0 0.0
  %3079 = vmatprep.subr.mxu0 0.0
  %3080 = vmatpush1.xpose.msra.mxu0 0.0
  %3081 = vmatprep.subr.mxu0 0.0
  %3082 = vmatpush1.xpose.msra.mxu0 0.0
  %3083 = vmatprep.subr.mxu0 0.0
  %3084 = vmatpush1.xpose.msra.mxu0 0.0
  %3085 = vmatprep.subr.mxu0 0.0
  %3086 = vmatpush1.xpose.msra.mxu0 0.0
  %3087 = vmatprep.subr.mxu0 0.0
  %3088 = vmatpush1.xpose.msra.mxu0 0.0
  %3089 = vmatprep.subr.mxu0 0.0
  %3090 = vmatpush1.xpose.msra.mxu0 0.0
  %3091 = vmatprep.subr.mxu0 0.0
  %3092 = vmatpush1.xpose.msra.mxu0 0.0
  %3093 = vmatprep.subr.mxu0 0.0
  %3094 = vmatpush1.xpose.msra.mxu0 0.0
  %3095 = vmatprep.subr.mxu0 0.0
  %3096 = vmatpush1.xpose.msra.mxu0 0.0
  %3097 = vmatprep.subr.mxu0 0.0
  %3098 = vmatpush1.xpose.msra.mxu0 0.0
  %3099 = vmatprep.subr.mxu0 0.0
  %3100 = vmatpush1.xpose.msra.mxu0 0.0
  %3101 = vmatprep.subr.mxu0 0.0
  %3102 = vmatpush1.xpose.msra.mxu0 0.0
  %3103 = vmatprep.subr.mxu0 0.0
  %3104 = vmatpush1.xpose.msra.mxu0 0.0
  %3105 = vmatprep.subr.mxu0 0.0
  %3106 = vmatpush1.xpose.msra.mxu0 0.0
  %3107 = vmatprep.subr.mxu0 0.0
  %3108 = vmatpush1.xpose.msra.mxu0 0.0
  %3109 = vmatprep.subr.mxu0 0.0
  %3110 = vmatpush1.xpose.msra.mxu0 0.0
  %3111 = vmatprep.subr.mxu0 0.0
  %3112 = vmatpush1.xpose.msra.mxu0 0.0
  %3113 = vmatprep.subr.mxu0 0.0
  %3114 = vmatpush1.xpose.msra.mxu0 0.0
  %3115 = vmatprep.subr.mxu0 0.0
  %3116 = vmatpush1.xpose.msra.mxu0 0.0
  %3117 = vmatprep.mubr.f32.mxu0 0.0
  %3118 = vmatmul.mubr.f32.gmra.mrb[0].mxu0 %v3049
  %v3119 = vpop.f32.mrb[0].mxu0
  %v3120 = vadd.f32 0.0, %v3119
  %v3121 = vpop.f32.mrb[0].mxu0
  %3122 = vdwg.mxu0
  %v3123 = vmul.f32 %v3120, 0.35355338
  %v3124 = vsel %vm176, %v3123, -inf
  %3125 = vmax.xlane.f32.xlu0 %v3124
  %v3126 = vpop.xlane.xlu0 %3125
  %v3127 = vsub.f32 %v3123, %v3126
  %v3128 = vmul.f32 %v3127, 1.442695
  %v3129 = vpow.pop %v3128
  %v3130 = vsel %vm176, %v3129, 0.0
  %3131 = vadd.xlane.f32.xlu0 %v3130
  %v3132 = vpop.xlane.xlu0 %3131
  %v3133 = vrcp.pop %v3132
  %v3134 = vmul.f32 %v3129, %v3133
  %3135 = vrot.lane.b32.xlu0 %v1857, 72
  %v3136 = vpop.permute.xlu0 %3135
  %v3139 = vsel %vm176, %v3134, 0
  %3141 = vmatprep.subr.mxu0 0.0
  %3142 = vmatpush1.msra.mxu0 %v3136
  %3143 = vmatprep.subr.mxu0 0.0
  %3144 = vmatpush1.msra.mxu0 0.0
  %3145 = vmatprep.subr.mxu0 0.0
  %3146 = vmatpush1.msra.mxu0 0.0
  %3147 = vmatprep.subr.mxu0 0.0
  %3148 = vmatpush1.msra.mxu0 0.0
  %3149 = vmatprep.subr.mxu0 0.0
  %3150 = vmatpush1.msra.mxu0 0.0
  %3151 = vmatprep.subr.mxu0 0.0
  %3152 = vmatpush1.msra.mxu0 0.0
  %3153 = vmatprep.subr.mxu0 0.0
  %3154 = vmatpush1.msra.mxu0 0.0
  %3155 = vmatprep.subr.mxu0 0.0
  %3156 = vmatpush1.msra.mxu0 0.0
  %3157 = vmatprep.subr.mxu0 0.0
  %3158 = vmatpush1.msra.mxu0 0.0
  %3159 = vmatprep.subr.mxu0 0.0
  %3160 = vmatpush1.msra.mxu0 0.0
  %3161 = vmatprep.subr.mxu0 0.0
  %3162 = vmatpush1.msra.mxu0 0.0
  %3163 = vmatprep.subr.mxu0 0.0
  %3164 = vmatpush1.msra.mxu0 0.0
  %3165 = vmatprep.subr.mxu0 0.0
  %3166 = vmatpush1.msra.mxu0 0.0
  %3167 = vmatprep.subr.mxu0 0.0
  %3168 = vmatpush1.msra.mxu0 0.0
  %3169 = vmatprep.subr.mxu0 0.0
  %3170 = vmatpush1.msra.mxu0 0.0
  %3171 = vmatprep.subr.mxu0 0.0
  %3172 = vmatpush1.msra.mxu0 0.0
  %3173 = vmatprep.subr.mxu0 0.0
  %3174 = vmatpush1.msra.mxu0 0.0
  %3175 = vmatprep.subr.mxu0 0.0
  %3176 = vmatpush1.msra.mxu0 0.0
  %3177 = vmatprep.subr.mxu0 0.0
  %3178 = vmatpush1.msra.mxu0 0.0
  %3179 = vmatprep.subr.mxu0 0.0
  %3180 = vmatpush1.msra.mxu0 0.0
  %3181 = vmatprep.subr.mxu0 0.0
  %3182 = vmatpush1.msra.mxu0 0.0
  %3183 = vmatprep.subr.mxu0 0.0
  %3184 = vmatpush1.msra.mxu0 0.0
  %3185 = vmatprep.subr.mxu0 0.0
  %3186 = vmatpush1.msra.mxu0 0.0
  %3187 = vmatprep.subr.mxu0 0.0
  %3188 = vmatpush1.msra.mxu0 0.0
  %3189 = vmatprep.subr.mxu0 0.0
  %3190 = vmatpush1.msra.mxu0 0.0
  %3191 = vmatprep.subr.mxu0 0.0
  %3192 = vmatpush1.msra.mxu0 0.0
  %3193 = vmatprep.subr.mxu0 0.0
  %3194 = vmatpush1.msra.mxu0 0.0
  %3195 = vmatprep.subr.mxu0 0.0
  %3196 = vmatpush1.msra.mxu0 0.0
  %3197 = vmatprep.subr.mxu0 0.0
  %3198 = vmatpush1.msra.mxu0 0.0
  %3199 = vmatprep.subr.mxu0 0.0
  %3200 = vmatpush1.msra.mxu0 0.0
  %3201 = vmatprep.subr.mxu0 0.0
  %3202 = vmatpush1.msra.mxu0 0.0
  %3203 = vmatprep.subr.mxu0 0.0
  %3204 = vmatpush1.msra.mxu0 0.0
  %3205 = vmatprep.mubr.f32.mxu0 0.0
  %3206 = vmatmul.mubr.f32.gmra.mrb[0].mxu0 %v3139
  %v3207 = vpop.f32.mrb[0].mxu0
  %v3208 = vadd.f32 0.0, %v3207
  %v3209 = vpop.f32.mrb[0].mxu0
  %3210 = vdwg.mxu0
  %3212 = vrot.lane.b32.xlu0 %v3208, 24
  %v3213 = vpop.permute.xlu0 %3212
  %3215 = vst.msk [vmem:[#allocation2 + $0x8] sm:$0xff] %vm854, %v3213
  %v3216 = vld [vmem:[#allocation2] sm:$0xff]
  %v3217 = vld [vmem:[#allocation2 + $0x8] sm:$0xff]
  %v3219 = vlaneseq
  %v3220 = vshrl.u32 %v3219, 7
  %v3221 = vsub.s32 0, %v3220
  %v3222 = vrot.slane %v1685, %v3221
  %v3225 = vsel %vm91, %v3216, 0
  %v3228 = vsel %vm91, %v3217, 0
  %3230 = vmatprep.subr.mxu0 0.0
  %3231 = vmatpush1.msra.mxu0 %v1681
  %3232 = vmatprep.subr.mxu0 0.0
  %3233 = vmatpush1.msra.mxu0 %v1682
  %3234 = vmatprep.subr.mxu0 0.0
  %3235 = vmatpush1.msra.mxu0 %v1683
  %3236 = vmatprep.subr.mxu0 0.0
  %3237 = vmatpush1.msra.mxu0 %v1684
  %3238 = vmatprep.subr.mxu0 0.0
  %3239 = vmatpush1.msra.mxu0 0.0
  %3240 = vmatprep.subr.mxu0 0.0
  %3241 = vmatpush1.msra.mxu0 0.0
  %3242 = vmatprep.subr.mxu0 0.0
  %3243 = vmatpush1.msra.mxu0 0.0
  %3244 = vmatprep.subr.mxu0 0.0
  %3245 = vmatpush1.msra.mxu0 0.0
  %3246 = vmatprep.subr.mxu0 0.0
  %3247 = vmatpush1.msra.mxu0 0.0
  %3248 = vmatprep.subr.mxu0 0.0
  %3249 = vmatpush1.msra.mxu0 0.0
  %3250 = vmatprep.subr.mxu0 0.0
  %3251 = vmatpush1.msra.mxu0 0.0
  %3252 = vmatprep.subr.mxu0 0.0
  %3253 = vmatpush1.msra.mxu0 0.0
  %3254 = vmatprep.subr.mxu0 0.0
  %3255 = vmatpush1.msra.mxu0 0.0
  %3256 = vmatprep.subr.mxu0 0.0
  %3257 = vmatpush1.msra.mxu0 0.0
  %3258 = vmatprep.subr.mxu0 0.0
  %3259 = vmatpush1.msra.mxu0 0.0
  %3260 = vmatprep.subr.mxu0 0.0
  %3261 = vmatpush1.msra.mxu0 0.0
  %3262 = vmatprep.subr.mxu0 0.0
  %3263 = vmatpush1.msra.mxu0 0.0
  %3264 = vmatprep.subr.mxu0 0.0
  %3265 = vmatpush1.msra.mxu0 0.0
  %3266 = vmatprep.subr.mxu0 0.0
  %3267 = vmatpush1.msra.mxu0 0.0
  %3268 = vmatprep.subr.mxu0 0.0
  %3269 = vmatpush1.msra.mxu0 0.0
  %3270 = vmatprep.subr.mxu0 0.0
  %3271 = vmatpush1.msra.mxu0 0.0
  %3272 = vmatprep.subr.mxu0 0.0
  %3273 = vmatpush1.msra.mxu0 0.0
  %3274 = vmatprep.subr.mxu0 0.0
  %3275 = vmatpush1.msra.mxu0 0.0
  %3276 = vmatprep.subr.mxu0 0.0
  %3277 = vmatpush1.msra.mxu0 0.0
  %3278 = vmatprep.subr.mxu0 0.0
  %3279 = vmatpush1.msra.mxu0 0.0
  %3280 = vmatprep.subr.mxu0 0.0
  %3281 = vmatpush1.msra.mxu0 0.0
  %3282 = vmatprep.subr.mxu0 0.0
  %3283 = vmatpush1.msra.mxu0 0.0
  %3284 = vmatprep.subr.mxu0 0.0
  %3285 = vmatpush1.msra.mxu0 0.0
  %3286 = vmatprep.subr.mxu0 0.0
  %3287 = vmatpush1.msra.mxu0 0.0
  %3288 = vmatprep.subr.mxu0 0.0
  %3289 = vmatpush1.msra.mxu0 0.0
  %3290 = vmatprep.subr.mxu0 0.0
  %3291 = vmatpush1.msra.mxu0 0.0
  %3292 = vmatprep.subr.mxu0 0.0
  %3293 = vmatpush1.msra.mxu0 0.0
  %3294 = vmatprep.mubr.f32.mxu0 0.0
  %3295 = vmatmul.mubr.f32.gmra.mrb[0].mxu0 %v3225
  %v3296 = vpop.f32.mrb[0].mxu0
  %v3297 = vadd.f32 %v3222, %v3296
  %v3298 = vpop.f32.mrb[0].mxu0
  %3299 = vmatprep.mubr.f32.mxu0 0.0
  %3300 = vmatmul.mubr.f32.gmra.mrb[0].mxu0 %v3228
  %v3301 = vpop.f32.mrb[0].mxu0
  %v3302 = vadd.f32 %v3222, %v3301
  %v3303 = vpop.f32.mrb[0].mxu0
  %3304 = vdwg.mxu0
  %v3305 = vld [vmem:[%s14] sm:$0x1]
  %v3306 = vld [vmem:[%s15] sm:$0x1]
  %v3307 = vadd.f32 %v1669, %v3297
  %v3308 = vadd.f32 %v1670, %v3302
  %v3309 = vsel %vm91, %v3307, 0.0
  %3310 = vadd.xlane.f32.xlu0 %v3309
  %v3311 = vpop.xlane.xlu0 %3310
  %v3312 = vsel %vm91, %v3308, 0.0
  %3313 = vadd.xlane.f32.xlu0 %v3312
  %v3314 = vpop.xlane.xlu0 %3313
  %v3315 = vmul.f32 %v3311, %v1634
  %v3316 = vmul.f32 %v3314, %v1634
  %v3317 = vsub.f32 %v3307, %v3315
  %v3318 = vsub.f32 %v3308, %v3316
  %v3319 = vmul.f32 %v3317, %v3317
  %v3320 = vmul.f32 %v3318, %v3318
  %v3321 = vsel %vm91, %v3319, 0.0
  %3322 = vadd.xlane.f32.xlu0 %v3321
  %v3323 = vpop.xlane.xlu0 %3322
  %v3324 = vsel %vm91, %v3320, 0.0
  %3325 = vadd.xlane.f32.xlu0 %v3324
  %v3326 = vpop.xlane.xlu0 %3325
  %v3327 = vmul.f32 %v3323, %v1634
  %v3328 = vmul.f32 %v3326, %v1634
  %v3329 = vadd.f32 %v3327, 1e-05
  %v3330 = vadd.f32 %v3328, 1e-05
  %v3331 = vrsqrt.pop %v3329
  %v3332 = vrsqrt.pop %v3330
  %v3333 = vmul.f32 %v3317, %v3331
  %v3334 = vmul.f32 %v3318, %v3332
  %v3336 = vlaneseq
  %v3337 = vshrl.u32 %v3336, 7
  %v3338 = vsub.s32 0, %v3337
  %v3339 = vrot.slane %v3305, %v3338
  %v3341 = vmul.f32 %v3333, %v3339
  %v3342 = vmul.f32 %v3334, %v3339
  %v3344 = vlaneseq
  %v3345 = vshrl.u32 %v3344, 7
  %v3346 = vsub.s32 0, %v3345
  %v3347 = vrot.slane %v3306, %v3346
  %v3349 = vadd.f32 %v3341, %v3347
  %v3350 = vadd.f32 %v3342, %v3347
  %v3351 = vld [vmem:[%s16] sm:$0xff]
  %v3352 = vld [vmem:[%s16 + $0x8] sm:$0xff]
  %v3353 = vld [vmem:[%s16 + $0x10] sm:$0xff]
  %v3354 = vld [vmem:[%s16 + $0x18] sm:$0xff]
  %v3355 = vld [vmem:[%s16 + $0x20] sm:$0xff]
  %v3356 = vld [vmem:[%s16 + $0x28] sm:$0xff]
  %v3357 = vld [vmem:[%s16 + $0x30] sm:$0xff]
  %v3358 = vld [vmem:[%s16 + $0x38] sm:$0xff]
  %v3359 = vld [vmem:[%s16 + $0x40] sm:$0xff]
  %v3360 = vld [vmem:[%s16 + $0x48] sm:$0xff]
  %v3361 = vld [vmem:[%s16 + $0x50] sm:$0xff]
  %v3362 = vld [vmem:[%s16 + $0x58] sm:$0xff]
  %v3363 = vld [vmem:[%s16 + $0x60] sm:$0xff]
  %v3364 = vld [vmem:[%s16 + $0x68] sm:$0xff]
  %v3365 = vld [vmem:[%s16 + $0x70] sm:$0xff]
  %v3366 = vld [vmem:[%s16 + $0x78] sm:$0xff]
  %v3367 = vld [vmem:[%s16 + $0x80] sm:$0xff]
  %v3368 = vld [vmem:[%s16 + $0x88] sm:$0xff]
  %v3369 = vld [vmem:[%s16 + $0x90] sm:$0xff]
  %v3370 = vld [vmem:[%s16 + $0x98] sm:$0xff]
  %v3371 = vld [vmem:[%s16 + $0xa0] sm:$0xff]
  %v3372 = vld [vmem:[%s16 + $0xa8] sm:$0xff]
  %v3373 = vld [vmem:[%s16 + $0xb0] sm:$0xff]
  %v3374 = vld [vmem:[%s16 + $0xb8] sm:$0xff]
  %v3375 = vld [vmem:[%s16 + $0xc0] sm:$0xff]
  %v3376 = vld [vmem:[%s16 + $0xc8] sm:$0xff]
  %v3377 = vld [vmem:[%s16 + $0xd0] sm:$0xff]
  %v3378 = vld [vmem:[%s16 + $0xd8] sm:$0xff]
  %v3379 = vld [vmem:[%s16 + $0xe0] sm:$0xff]
  %v3380 = vld [vmem:[%s16 + $0xe8] sm:$0xff]
  %v3381 = vld [vmem:[%s16 + $0xf0] sm:$0xff]
  %v3382 = vld [vmem:[%s16 + $0xf8] sm:$0xff]
  %v3383 = vld [vmem:[%s16 + $0x100] sm:$0xff]
  %v3384 = vld [vmem:[%s16 + $0x108] sm:$0xff]
  %v3385 = vld [vmem:[%s16 + $0x110] sm:$0xff]
  %v3386 = vld [vmem:[%s16 + $0x118] sm:$0xff]
  %v3387 = vld [vmem:[%s16 + $0x120] sm:$0xff]
  %v3388 = vld [vmem:[%s16 + $0x128] sm:$0xff]
  %v3389 = vld [vmem:[%s16 + $0x130] sm:$0xff]
  %v3390 = vld [vmem:[%s16 + $0x138] sm:$0xff]
  %v3391 = vld [vmem:[%s16 + $0x140] sm:$0xff]
  %v3392 = vld [vmem:[%s16 + $0x148] sm:$0xff]
  %v3393 = vld [vmem:[%s16 + $0x150] sm:$0xff]
  %v3394 = vld [vmem:[%s16 + $0x158] sm:$0xff]
  %v3395 = vld [vmem:[%s16 + $0x160] sm:$0xff]
  %v3396 = vld [vmem:[%s16 + $0x168] sm:$0xff]
  %v3397 = vld [vmem:[%s16 + $0x170] sm:$0xff]
  %v3398 = vld [vmem:[%s16 + $0x178] sm:$0xff]
  %v3399 = vld [vmem:[%s16 + $0x180] sm:$0xff]
  %v3400 = vld [vmem:[%s16 + $0x188] sm:$0xff]
  %v3401 = vld [vmem:[%s16 + $0x190] sm:$0xff]
  %v3402 = vld [vmem:[%s16 + $0x198] sm:$0xff]
  %v3403 = vld [vmem:[%s16 + $0x1a0] sm:$0xff]
  %v3404 = vld [vmem:[%s16 + $0x1a8] sm:$0xff]
  %v3405 = vld [vmem:[%s16 + $0x1b0] sm:$0xff]
  %v3406 = vld [vmem:[%s16 + $0x1b8] sm:$0xff]
  %v3407 = vld [vmem:[%s16 + $0x1c0] sm:$0xff]
  %v3408 = vld [vmem:[%s16 + $0x1c8] sm:$0xff]
  %v3409 = vld [vmem:[%s16 + $0x1d0] sm:$0xff]
  %v3410 = vld [vmem:[%s16 + $0x1d8] sm:$0xff]
  %v3411 = vld [vmem:[%s16 + $0x1e0] sm:$0xff]
  %v3412 = vld [vmem:[%s16 + $0x1e8] sm:$0xff]
  %v3413 = vld [vmem:[%s16 + $0x1f0] sm:$0xff]
  %v3414 = vld [vmem:[%s16 + $0x1f8] sm:$0xff]
  %v3415 = vld [vmem:[%s17] sm:$0xff]
  %v3416 = vld [vmem:[%s17 + $0x8] sm:$0xff]
  %v3417 = vld [vmem:[%s18] sm:$0xff]
  %v3418 = vld [vmem:[%s18 + $0x8] sm:$0xff]
  %v3419 = vld [vmem:[%s18 + $0x10] sm:$0xff]
  %v3420 = vld [vmem:[%s18 + $0x18] sm:$0xff]
  %v3421 = vld [vmem:[%s18 + $0x20] sm:$0xff]
  %v3422 = vld [vmem:[%s18 + $0x28] sm:$0xff]
  %v3423 = vld [vmem:[%s18 + $0x30] sm:$0xff]
  %v3424 = vld [vmem:[%s18 + $0x38] sm:$0xff]
  %v3425 = vld [vmem:[%s18 + $0x40] sm:$0xff]
  %v3426 = vld [vmem:[%s18 + $0x48] sm:$0xff]
  %v3427 = vld [vmem:[%s18 + $0x50] sm:$0xff]
  %v3428 = vld [vmem:[%s18 + $0x58] sm:$0xff]
  %v3429 = vld [vmem:[%s18 + $0x60] sm:$0xff]
  %v3430 = vld [vmem:[%s18 + $0x68] sm:$0xff]
  %v3431 = vld [vmem:[%s18 + $0x70] sm:$0xff]
  %v3432 = vld [vmem:[%s18 + $0x78] sm:$0xff]
  %v3433 = vld [vmem:[%s18 + $0x80] sm:$0xff]
  %v3434 = vld [vmem:[%s18 + $0x88] sm:$0xff]
  %v3435 = vld [vmem:[%s18 + $0x90] sm:$0xff]
  %v3436 = vld [vmem:[%s18 + $0x98] sm:$0xff]
  %v3437 = vld [vmem:[%s18 + $0xa0] sm:$0xff]
  %v3438 = vld [vmem:[%s18 + $0xa8] sm:$0xff]
  %v3439 = vld [vmem:[%s18 + $0xb0] sm:$0xff]
  %v3440 = vld [vmem:[%s18 + $0xb8] sm:$0xff]
  %v3441 = vld [vmem:[%s18 + $0xc0] sm:$0xff]
  %v3442 = vld [vmem:[%s18 + $0xc8] sm:$0xff]
  %v3443 = vld [vmem:[%s18 + $0xd0] sm:$0xff]
  %v3444 = vld [vmem:[%s18 + $0xd8] sm:$0xff]
  %v3445 = vld [vmem:[%s18 + $0xe0] sm:$0xff]
  %v3446 = vld [vmem:[%s18 + $0xe8] sm:$0xff]
  %v3447 = vld [vmem:[%s18 + $0xf0] sm:$0xff]
  %v3448 = vld [vmem:[%s18 + $0xf8] sm:$0xff]
  %v3449 = vld [vmem:[%s18 + $0x100] sm:$0xff]
  %v3450 = vld [vmem:[%s18 + $0x108] sm:$0xff]
  %v3451 = vld [vmem:[%s18 + $0x110] sm:$0xff]
  %v3452 = vld [vmem:[%s18 + $0x118] sm:$0xff]
  %v3453 = vld [vmem:[%s18 + $0x120] sm:$0xff]
  %v3454 = vld [vmem:[%s18 + $0x128] sm:$0xff]
  %v3455 = vld [vmem:[%s18 + $0x130] sm:$0xff]
  %v3456 = vld [vmem:[%s18 + $0x138] sm:$0xff]
  %v3457 = vld [vmem:[%s18 + $0x140] sm:$0xff]
  %v3458 = vld [vmem:[%s18 + $0x148] sm:$0xff]
  %v3459 = vld [vmem:[%s18 + $0x150] sm:$0xff]
  %v3460 = vld [vmem:[%s18 + $0x158] sm:$0xff]
  %v3461 = vld [vmem:[%s18 + $0x160] sm:$0xff]
  %v3462 = vld [vmem:[%s18 + $0x168] sm:$0xff]
  %v3463 = vld [vmem:[%s18 + $0x170] sm:$0xff]
  %v3464 = vld [vmem:[%s18 + $0x178] sm:$0xff]
  %v3465 = vld [vmem:[%s18 + $0x180] sm:$0xff]
  %v3466 = vld [vmem:[%s18 + $0x188] sm:$0xff]
  %v3467 = vld [vmem:[%s18 + $0x190] sm:$0xff]
  %v3468 = vld [vmem:[%s18 + $0x198] sm:$0xff]
  %v3469 = vld [vmem:[%s18 + $0x1a0] sm:$0xff]
  %v3470 = vld [vmem:[%s18 + $0x1a8] sm:$0xff]
  %v3471 = vld [vmem:[%s18 + $0x1b0] sm:$0xff]
  %v3472 = vld [vmem:[%s18 + $0x1b8] sm:$0xff]
  %v3473 = vld [vmem:[%s18 + $0x1c0] sm:$0xff]
  %v3474 = vld [vmem:[%s18 + $0x1c8] sm:$0xff]
  %v3475 = vld [vmem:[%s18 + $0x1d0] sm:$0xff]
  %v3476 = vld [vmem:[%s18 + $0x1d8] sm:$0xff]
  %v3477 = vld [vmem:[%s18 + $0x1e0] sm:$0xff]
  %v3478 = vld [vmem:[%s18 + $0x1e8] sm:$0xff]
  %v3479 = vld [vmem:[%s18 + $0x1f0] sm:$0xff]
  %v3480 = vld [vmem:[%s18 + $0x1f8] sm:$0xff]
  %v3481 = vld [vmem:[%s18 + $0x200] sm:$0xff]
  %v3482 = vld [vmem:[%s18 + $0x208] sm:$0xff]
  %v3483 = vld [vmem:[%s18 + $0x210] sm:$0xff]
  %v3484 = vld [vmem:[%s18 + $0x218] sm:$0xff]
  %v3485 = vld [vmem:[%s18 + $0x220] sm:$0xff]
  %v3486 = vld [vmem:[%s18 + $0x228] sm:$0xff]
  %v3487 = vld [vmem:[%s18 + $0x230] sm:$0xff]
  %v3488 = vld [vmem:[%s18 + $0x238] sm:$0xff]
  %v3489 = vld [vmem:[%s18 + $0x240] sm:$0xff]
  %v3490 = vld [vmem:[%s18 + $0x248] sm:$0xff]
  %v3491 = vld [vmem:[%s18 + $0x250] sm:$0xff]
  %v3492 = vld [vmem:[%s18 + $0x258] sm:$0xff]
  %v3493 = vld [vmem:[%s18 + $0x260] sm:$0xff]
  %v3494 = vld [vmem:[%s18 + $0x268] sm:$0xff]
  %v3495 = vld [vmem:[%s18 + $0x270] sm:$0xff]
  %v3496 = vld [vmem:[%s18 + $0x278] sm:$0xff]
  %v3497 = vld [vmem:[%s18 + $0x280] sm:$0xff]
  %v3498 = vld [vmem:[%s18 + $0x288] sm:$0xff]
  %v3499 = vld [vmem:[%s18 + $0x290] sm:$0xff]
  %v3500 = vld [vmem:[%s18 + $0x298] sm:$0xff]
  %v3501 = vld [vmem:[%s18 + $0x2a0] sm:$0xff]
  %v3502 = vld [vmem:[%s18 + $0x2a8] sm:$0xff]
  %v3503 = vld [vmem:[%s18 + $0x2b0] sm:$0xff]
  %v3504 = vld [vmem:[%s18 + $0x2b8] sm:$0xff]
  %v3505 = vld [vmem:[%s18 + $0x2c0] sm:$0xff]
  %v3506 = vld [vmem:[%s18 + $0x2c8] sm:$0xff]
  %v3507 = vld [vmem:[%s18 + $0x2d0] sm:$0xff]
  %v3508 = vld [vmem:[%s18 + $0x2d8] sm:$0xff]
  %v3509 = vld [vmem:[%s18 + $0x2e0] sm:$0xff]
  %v3510 = vld [vmem:[%s18 + $0x2e8] sm:$0xff]
  %v3511 = vld [vmem:[%s18 + $0x2f0] sm:$0xff]
  %v3512 = vld [vmem:[%s18 + $0x2f8] sm:$0xff]
  %v3513 = vld [vmem:[%s18 + $0x300] sm:$0xff]
  %v3514 = vld [vmem:[%s18 + $0x308] sm:$0xff]
  %v3515 = vld [vmem:[%s18 + $0x310] sm:$0xff]
  %v3516 = vld [vmem:[%s18 + $0x318] sm:$0xff]
  %v3517 = vld [vmem:[%s18 + $0x320] sm:$0xff]
  %v3518 = vld [vmem:[%s18 + $0x328] sm:$0xff]
  %v3519 = vld [vmem:[%s18 + $0x330] sm:$0xff]
  %v3520 = vld [vmem:[%s18 + $0x338] sm:$0xff]
  %v3521 = vld [vmem:[%s18 + $0x340] sm:$0xff]
  %v3522 = vld [vmem:[%s18 + $0x348] sm:$0xff]
  %v3523 = vld [vmem:[%s18 + $0x350] sm:$0xff]
  %v3524 = vld [vmem:[%s18 + $0x358] sm:$0xff]
  %v3525 = vld [vmem:[%s18 + $0x360] sm:$0xff]
  %v3526 = vld [vmem:[%s18 + $0x368] sm:$0xff]
  %v3527 = vld [vmem:[%s18 + $0x370] sm:$0xff]
  %v3528 = vld [vmem:[%s18 + $0x378] sm:$0xff]
  %v3529 = vld [vmem:[%s18 + $0x380] sm:$0xff]
  %v3530 = vld [vmem:[%s18 + $0x388] sm:$0xff]
  %v3531 = vld [vmem:[%s18 + $0x390] sm:$0xff]
  %v3532 = vld [vmem:[%s18 + $0x398] sm:$0xff]
  %v3533 = vld [vmem:[%s18 + $0x3a0] sm:$0xff]
  %v3534 = vld [vmem:[%s18 + $0x3a8] sm:$0xff]
  %v3535 = vld [vmem:[%s18 + $0x3b0] sm:$0xff]
  %v3536 = vld [vmem:[%s18 + $0x3b8] sm:$0xff]
  %v3537 = vld [vmem:[%s18 + $0x3c0] sm:$0xff]
  %v3538 = vld [vmem:[%s18 + $0x3c8] sm:$0xff]
  %v3539 = vld [vmem:[%s18 + $0x3d0] sm:$0xff]
  %v3540 = vld [vmem:[%s18 + $0x3d8] sm:$0xff]
  %v3541 = vld [vmem:[%s18 + $0x3e0] sm:$0xff]
  %v3542 = vld [vmem:[%s18 + $0x3e8] sm:$0xff]
  %v3543 = vld [vmem:[%s18 + $0x3f0] sm:$0xff]
  %v3544 = vld [vmem:[%s18 + $0x3f8] sm:$0xff]
  %v3545 = vld [vmem:[%s18 + $0x400] sm:$0xff]
  %v3546 = vld [vmem:[%s18 + $0x408] sm:$0xff]
  %v3547 = vld [vmem:[%s18 + $0x410] sm:$0xff]
  %v3548 = vld [vmem:[%s18 + $0x418] sm:$0xff]
  %v3549 = vld [vmem:[%s18 + $0x420] sm:$0xff]
  %v3550 = vld [vmem:[%s18 + $0x428] sm:$0xff]
  %v3551 = vld [vmem:[%s18 + $0x430] sm:$0xff]
  %v3552 = vld [vmem:[%s18 + $0x438] sm:$0xff]
  %v3553 = vld [vmem:[%s18 + $0x440] sm:$0xff]
  %v3554 = vld [vmem:[%s18 + $0x448] sm:$0xff]
  %v3555 = vld [vmem:[%s18 + $0x450] sm:$0xff]
  %v3556 = vld [vmem:[%s18 + $0x458] sm:$0xff]
  %v3557 = vld [vmem:[%s18 + $0x460] sm:$0xff]
  %v3558 = vld [vmem:[%s18 + $0x468] sm:$0xff]
  %v3559 = vld [vmem:[%s18 + $0x470] sm:$0xff]
  %v3560 = vld [vmem:[%s18 + $0x478] sm:$0xff]
  %v3561 = vld [vmem:[%s18 + $0x480] sm:$0xff]
  %v3562 = vld [vmem:[%s18 + $0x488] sm:$0xff]
  %v3563 = vld [vmem:[%s18 + $0x490] sm:$0xff]
  %v3564 = vld [vmem:[%s18 + $0x498] sm:$0xff]
  %v3565 = vld [vmem:[%s18 + $0x4a0] sm:$0xff]
  %v3566 = vld [vmem:[%s18 + $0x4a8] sm:$0xff]
  %v3567 = vld [vmem:[%s18 + $0x4b0] sm:$0xff]
  %v3568 = vld [vmem:[%s18 + $0x4b8] sm:$0xff]
  %v3569 = vld [vmem:[%s18 + $0x4c0] sm:$0xff]
  %v3570 = vld [vmem:[%s18 + $0x4c8] sm:$0xff]
  %v3571 = vld [vmem:[%s18 + $0x4d0] sm:$0xff]
  %v3572 = vld [vmem:[%s18 + $0x4d8] sm:$0xff]
  %v3573 = vld [vmem:[%s18 + $0x4e0] sm:$0xff]
  %v3574 = vld [vmem:[%s18 + $0x4e8] sm:$0xff]
  %v3575 = vld [vmem:[%s18 + $0x4f0] sm:$0xff]
  %v3576 = vld [vmem:[%s18 + $0x4f8] sm:$0xff]
  %v3577 = vld [vmem:[%s18 + $0x500] sm:$0xff]
  %v3578 = vld [vmem:[%s18 + $0x508] sm:$0xff]
  %v3579 = vld [vmem:[%s18 + $0x510] sm:$0xff]
  %v3580 = vld [vmem:[%s18 + $0x518] sm:$0xff]
  %v3581 = vld [vmem:[%s18 + $0x520] sm:$0xff]
  %v3582 = vld [vmem:[%s18 + $0x528] sm:$0xff]
  %v3583 = vld [vmem:[%s18 + $0x530] sm:$0xff]
  %v3584 = vld [vmem:[%s18 + $0x538] sm:$0xff]
  %v3585 = vld [vmem:[%s18 + $0x540] sm:$0xff]
  %v3586 = vld [vmem:[%s18 + $0x548] sm:$0xff]
  %v3587 = vld [vmem:[%s18 + $0x550] sm:$0xff]
  %v3588 = vld [vmem:[%s18 + $0x558] sm:$0xff]
  %v3589 = vld [vmem:[%s18 + $0x560] sm:$0xff]
  %v3590 = vld [vmem:[%s18 + $0x568] sm:$0xff]
  %v3591 = vld [vmem:[%s18 + $0x570] sm:$0xff]
  %v3592 = vld [vmem:[%s18 + $0x578] sm:$0xff]
  %v3593 = vld [vmem:[%s18 + $0x580] sm:$0xff]
  %v3594 = vld [vmem:[%s18 + $0x588] sm:$0xff]
  %v3595 = vld [vmem:[%s18 + $0x590] sm:$0xff]
  %v3596 = vld [vmem:[%s18 + $0x598] sm:$0xff]
  %v3597 = vld [vmem:[%s18 + $0x5a0] sm:$0xff]
  %v3598 = vld [vmem:[%s18 + $0x5a8] sm:$0xff]
  %v3599 = vld [vmem:[%s18 + $0x5b0] sm:$0xff]
  %v3600 = vld [vmem:[%s18 + $0x5b8] sm:$0xff]
  %v3601 = vld [vmem:[%s18 + $0x5c0] sm:$0xff]
  %v3602 = vld [vmem:[%s18 + $0x5c8] sm:$0xff]
  %v3603 = vld [vmem:[%s18 + $0x5d0] sm:$0xff]
  %v3604 = vld [vmem:[%s18 + $0x5d8] sm:$0xff]
  %v3605 = vld [vmem:[%s18 + $0x5e0] sm:$0xff]
  %v3606 = vld [vmem:[%s18 + $0x5e8] sm:$0xff]
  %v3607 = vld [vmem:[%s18 + $0x5f0] sm:$0xff]
  %v3608 = vld [vmem:[%s18 + $0x5f8] sm:$0xff]
  %v3609 = vld [vmem:[%s18 + $0x600] sm:$0xff]
  %v3610 = vld [vmem:[%s18 + $0x608] sm:$0xff]
  %v3611 = vld [vmem:[%s18 + $0x610] sm:$0xff]
  %v3612 = vld [vmem:[%s18 + $0x618] sm:$0xff]
  %v3613 = vld [vmem:[%s18 + $0x620] sm:$0xff]
  %v3614 = vld [vmem:[%s18 + $0x628] sm:$0xff]
  %v3615 = vld [vmem:[%s18 + $0x630] sm:$0xff]
  %v3616 = vld [vmem:[%s18 + $0x638] sm:$0xff]
  %v3617 = vld [vmem:[%s18 + $0x640] sm:$0xff]
  %v3618 = vld [vmem:[%s18 + $0x648] sm:$0xff]
  %v3619 = vld [vmem:[%s18 + $0x650] sm:$0xff]
  %v3620 = vld [vmem:[%s18 + $0x658] sm:$0xff]
  %v3621 = vld [vmem:[%s18 + $0x660] sm:$0xff]
  %v3622 = vld [vmem:[%s18 + $0x668] sm:$0xff]
  %v3623 = vld [vmem:[%s18 + $0x670] sm:$0xff]
  %v3624 = vld [vmem:[%s18 + $0x678] sm:$0xff]
  %v3625 = vld [vmem:[%s18 + $0x680] sm:$0xff]
  %v3626 = vld [vmem:[%s18 + $0x688] sm:$0xff]
  %v3627 = vld [vmem:[%s18 + $0x690] sm:$0xff]
  %v3628 = vld [vmem:[%s18 + $0x698] sm:$0xff]
  %v3629 = vld [vmem:[%s18 + $0x6a0] sm:$0xff]
  %v3630 = vld [vmem:[%s18 + $0x6a8] sm:$0xff]
  %v3631 = vld [vmem:[%s18 + $0x6b0] sm:$0xff]
  %v3632 = vld [vmem:[%s18 + $0x6b8] sm:$0xff]
  %v3633 = vld [vmem:[%s18 + $0x6c0] sm:$0xff]
  %v3634 = vld [vmem:[%s18 + $0x6c8] sm:$0xff]
  %v3635 = vld [vmem:[%s18 + $0x6d0] sm:$0xff]
  %v3636 = vld [vmem:[%s18 + $0x6d8] sm:$0xff]
  %v3637 = vld [vmem:[%s18 + $0x6e0] sm:$0xff]
  %v3638 = vld [vmem:[%s18 + $0x6e8] sm:$0xff]
  %v3639 = vld [vmem:[%s18 + $0x6f0] sm:$0xff]
  %v3640 = vld [vmem:[%s18 + $0x6f8] sm:$0xff]
  %v3641 = vld [vmem:[%s18 + $0x700] sm:$0xff]
  %v3642 = vld [vmem:[%s18 + $0x708] sm:$0xff]
  %v3643 = vld [vmem:[%s18 + $0x710] sm:$0xff]
  %v3644 = vld [vmem:[%s18 + $0x718] sm:$0xff]
  %v3645 = vld [vmem:[%s18 + $0x720] sm:$0xff]
  %v3646 = vld [vmem:[%s18 + $0x728] sm:$0xff]
  %v3647 = vld [vmem:[%s18 + $0x730] sm:$0xff]
  %v3648 = vld [vmem:[%s18 + $0x738] sm:$0xff]
  %v3649 = vld [vmem:[%s18 + $0x740] sm:$0xff]
  %v3650 = vld [vmem:[%s18 + $0x748] sm:$0xff]
  %v3651 = vld [vmem:[%s18 + $0x750] sm:$0xff]
  %v3652 = vld [vmem:[%s18 + $0x758] sm:$0xff]
  %v3653 = vld [vmem:[%s18 + $0x760] sm:$0xff]
  %v3654 = vld [vmem:[%s18 + $0x768] sm:$0xff]
  %v3655 = vld [vmem:[%s18 + $0x770] sm:$0xff]
  %v3656 = vld [vmem:[%s18 + $0x778] sm:$0xff]
  %v3657 = vld [vmem:[%s18 + $0x780] sm:$0xff]
  %v3658 = vld [vmem:[%s18 + $0x788] sm:$0xff]
  %v3659 = vld [vmem:[%s18 + $0x790] sm:$0xff]
  %v3660 = vld [vmem:[%s18 + $0x798] sm:$0xff]
  %v3661 = vld [vmem:[%s18 + $0x7a0] sm:$0xff]
  %v3662 = vld [vmem:[%s18 + $0x7a8] sm:$0xff]
  %v3663 = vld [vmem:[%s18 + $0x7b0] sm:$0xff]
  %v3664 = vld [vmem:[%s18 + $0x7b8] sm:$0xff]
  %v3665 = vld [vmem:[%s18 + $0x7c0] sm:$0xff]
  %v3666 = vld [vmem:[%s18 + $0x7c8] sm:$0xff]
  %v3667 = vld [vmem:[%s18 + $0x7d0] sm:$0xff]
  %v3668 = vld [vmem:[%s18 + $0x7d8] sm:$0xff]
  %v3669 = vld [vmem:[%s18 + $0x7e0] sm:$0xff]
  %v3670 = vld [vmem:[%s18 + $0x7e8] sm:$0xff]
  %v3671 = vld [vmem:[%s18 + $0x7f0] sm:$0xff]
  %v3672 = vld [vmem:[%s18 + $0x7f8] sm:$0xff]
  %v3673 = vld [vmem:[%s19] sm:$0x1]
  %v3676 = vlaneseq
  %v3677 = vshrl.u32 %v3676, 7
  %v3678 = vsub.s32 0, %v3677
  %v3679 = vrot.slane %v3415, %v3678
  %v3680 = vlaneseq
  %v3681 = vshrl.u32 %v3680, 7
  %v3682 = vsub.s32 1, %v3681
  %v3683 = vrot.slane %v3415, %v3682
  %v3684 = vlaneseq
  %v3685 = vshrl.u32 %v3684, 7
  %v3686 = vsub.s32 2, %v3685
  %v3687 = vrot.slane %v3415, %v3686
  %v3688 = vlaneseq
  %v3689 = vshrl.u32 %v3688, 7
  %v3690 = vsub.s32 3, %v3689
  %v3691 = vrot.slane %v3415, %v3690
  %v3692 = vlaneseq
  %v3693 = vshrl.u32 %v3692, 7
  %v3694 = vsub.s32 4, %v3693
  %v3695 = vrot.slane %v3415, %v3694
  %v3696 = vlaneseq
  %v3697 = vshrl.u32 %v3696, 7
  %v3698 = vsub.s32 5, %v3697
  %v3699 = vrot.slane %v3415, %v3698
  %v3700 = vlaneseq
  %v3701 = vshrl.u32 %v3700, 7
  %v3702 = vsub.s32 6, %v3701
  %v3703 = vrot.slane %v3415, %v3702
  %v3704 = vlaneseq
  %v3705 = vshrl.u32 %v3704, 7
  %v3706 = vsub.s32 7, %v3705
  %v3707 = vrot.slane %v3415, %v3706
  %v3708 = vlaneseq
  %v3709 = vshrl.u32 %v3708, 7
  %v3710 = vsub.s32 0, %v3709
  %v3711 = vrot.slane %v3416, %v3710
  %v3712 = vlaneseq
  %v3713 = vshrl.u32 %v3712, 7
  %v3714 = vsub.s32 1, %v3713
  %v3715 = vrot.slane %v3416, %v3714
  %v3716 = vlaneseq
  %v3717 = vshrl.u32 %v3716, 7
  %v3718 = vsub.s32 2, %v3717
  %v3719 = vrot.slane %v3416, %v3718
  %v3720 = vlaneseq
  %v3721 = vshrl.u32 %v3720, 7
  %v3722 = vsub.s32 3, %v3721
  %v3723 = vrot.slane %v3416, %v3722
  %v3724 = vlaneseq
  %v3725 = vshrl.u32 %v3724, 7
  %v3726 = vsub.s32 4, %v3725
  %v3727 = vrot.slane %v3416, %v3726
  %v3728 = vlaneseq
  %v3729 = vshrl.u32 %v3728, 7
  %v3730 = vsub.s32 5, %v3729
  %v3731 = vrot.slane %v3416, %v3730
  %v3732 = vlaneseq
  %v3733 = vshrl.u32 %v3732, 7
  %v3734 = vsub.s32 6, %v3733
  %v3735 = vrot.slane %v3416, %v3734
  %v3736 = vlaneseq
  %v3737 = vshrl.u32 %v3736, 7
  %v3738 = vsub.s32 7, %v3737
  %v3739 = vrot.slane %v3416, %v3738
  %v3757 = vsel %vm91, %v3349, 0
  %v3760 = vsel %vm91, %v3350, 0
  %3762 = vmatprep.subr.mxu0 %v3352
  %3763 = vmatpush1.msra.mxu0 %v3351
  %3764 = vmatprep.subr.mxu0 %v3368
  %3765 = vmatpush1.msra.mxu0 %v3367
  %3766 = vmatprep.subr.mxu0 %v3384
  %3767 = vmatpush1.msra.mxu0 %v3383
  %3768 = vmatprep.subr.mxu0 %v3400
  %3769 = vmatpush1.msra.mxu0 %v3399
  %3770 = vmatprep.subr.mxu0 0.0
  %3771 = vmatpush1.msra.mxu0 0.0
  %3772 = vmatprep.subr.mxu0 0.0
  %3773 = vmatpush1.msra.mxu0 0.0
  %3774 = vmatprep.subr.mxu0 0.0
  %3775 = vmatpush1.msra.mxu0 0.0
  %3776 = vmatprep.subr.mxu0 0.0
  %3777 = vmatpush1.msra.mxu0 0.0
  %3778 = vmatprep.subr.mxu0 0.0
  %3779 = vmatpush1.msra.mxu0 0.0
  %3780 = vmatprep.subr.mxu0 0.0
  %3781 = vmatpush1.msra.mxu0 0.0
  %3782 = vmatprep.subr.mxu0 0.0
  %3783 = vmatpush1.msra.mxu0 0.0
  %3784 = vmatprep.subr.mxu0 0.0
  %3785 = vmatpush1.msra.mxu0 0.0
  %3786 = vmatprep.subr.mxu0 0.0
  %3787 = vmatpush1.msra.mxu0 0.0
  %3788 = vmatprep.subr.mxu0 0.0
  %3789 = vmatpush1.msra.mxu0 0.0
  %3790 = vmatprep.subr.mxu0 0.0
  %3791 = vmatpush1.msra.mxu0 0.0
  %3792 = vmatprep.subr.mxu0 0.0
  %3793 = vmatpush1.msra.mxu0 0.0
  %3794 = vmatprep.subr.mxu0 0.0
  %3795 = vmatpush1.msra.mxu0 0.0
  %3796 = vmatprep.subr.mxu0 0.0
  %3797 = vmatpush1.msra.mxu0 0.0
  %3798 = vmatprep.subr.mxu0 0.0
  %3799 = vmatpush1.msra.mxu0 0.0
  %3800 = vmatprep.subr.mxu0 0.0
  %3801 = vmatpush1.msra.mxu0 0.0
  %3802 = vmatprep.subr.mxu0 0.0
  %3803 = vmatpush1.msra.mxu0 0.0
  %3804 = vmatprep.subr.mxu0 0.0
  %3805 = vmatpush1.msra.mxu0 0.0
  %3806 = vmatprep.subr.mxu0 0.0
  %3807 = vmatpush1.msra.mxu0 0.0
  %3808 = vmatprep.subr.mxu0 0.0
  %3809 = vmatpush1.msra.mxu0 0.0
  %3810 = vmatprep.subr.mxu0 0.0
  %3811 = vmatpush1.msra.mxu0 0.0
  %3812 = vmatprep.subr.mxu0 0.0
  %3813 = vmatpush1.msra.mxu0 0.0
  %3814 = vmatprep.subr.mxu0 0.0
  %3815 = vmatpush1.msra.mxu0 0.0
  %3816 = vmatprep.subr.mxu0 0.0
  %3817 = vmatpush1.msra.mxu0 0.0
  %3818 = vmatprep.subr.mxu0 0.0
  %3819 = vmatpush1.msra.mxu0 0.0
  %3820 = vmatprep.subr.mxu0 0.0
  %3821 = vmatpush1.msra.mxu0 0.0
  %3822 = vmatprep.subr.mxu0 0.0
  %3823 = vmatpush1.msra.mxu0 0.0
  %3824 = vmatprep.subr.mxu0 0.0
  %3825 = vmatpush1.msra.mxu0 0.0
  %3826 = vmatprep.mubr.f32.mxu0 0.0
  %3827 = vmatmul.mubr.f32.gmra.mrb[0].mxu0 %v3757
  %v3828 = vpop.f32.mrb[0].mxu0
  %v3829 = vadd.f32 %v3679, %v3828
  %v3830 = vpop.f32.mrb[0].mxu0
  %v3831 = vadd.f32 %v3683, %v3830
  %3832 = vmatprep.mubr.f32.mxu0 0.0
  %3833 = vmatmul.mubr.f32.gmra.mrb[0].mxu0 %v3760
  %v3834 = vpop.f32.mrb[0].mxu0
  %v3835 = vadd.f32 %v3679, %v3834
  %v3836 = vpop.f32.mrb[0].mxu0
  %v3837 = vadd.f32 %v3683, %v3836
  %3838 = vdwg.mxu0
  %3839 = vmatprep.subr.mxu0 %v3354
  %3840 = vmatpush1.msra.mxu0 %v3353
  %3841 = vmatprep.subr.mxu0 %v3370
  %3842 = vmatpush1.msra.mxu0 %v3369
  %3843 = vmatprep.subr.mxu0 %v3386
  %3844 = vmatpush1.msra.mxu0 %v3385
  %3845 = vmatprep.subr.mxu0 %v3402
  %3846 = vmatpush1.msra.mxu0 %v3401
  %3847 = vmatprep.subr.mxu0 0.0
  %3848 = vmatpush1.msra.mxu0 0.0
  %3849 = vmatprep.subr.mxu0 0.0
  %3850 = vmatpush1.msra.mxu0 0.0
  %3851 = vmatprep.subr.mxu0 0.0
  %3852 = vmatpush1.msra.mxu0 0.0
  %3853 = vmatprep.subr.mxu0 0.0
  %3854 = vmatpush1.msra.mxu0 0.0
  %3855 = vmatprep.subr.mxu0 0.0
  %3856 = vmatpush1.msra.mxu0 0.0
  %3857 = vmatprep.subr.mxu0 0.0
  %3858 = vmatpush1.msra.mxu0 0.0
  %3859 = vmatprep.subr.mxu0 0.0
  %3860 = vmatpush1.msra.mxu0 0.0
  %3861 = vmatprep.subr.mxu0 0.0
  %3862 = vmatpush1.msra.mxu0 0.0
  %3863 = vmatprep.subr.mxu0 0.0
  %3864 = vmatpush1.msra.mxu0 0.0
  %3865 = vmatprep.subr.mxu0 0.0
  %3866 = vmatpush1.msra.mxu0 0.0
  %3867 = vmatprep.subr.mxu0 0.0
  %3868 = vmatpush1.msra.mxu0 0.0
  %3869 = vmatprep.subr.mxu0 0.0
  %3870 = vmatpush1.msra.mxu0 0.0
  %3871 = vmatprep.subr.mxu0 0.0
  %3872 = vmatpush1.msra.mxu0 0.0
  %3873 = vmatprep.subr.mxu0 0.0
  %3874 = vmatpush1.msra.mxu0 0.0
  %3875 = vmatprep.subr.mxu0 0.0
  %3876 = vmatpush1.msra.mxu0 0.0
  %3877 = vmatprep.subr.mxu0 0.0
  %3878 = vmatpush1.msra.mxu0 0.0
  %3879 = vmatprep.subr.mxu0 0.0
  %3880 = vmatpush1.msra.mxu0 0.0
  %3881 = vmatprep.subr.mxu0 0.0
  %3882 = vmatpush1.msra.mxu0 0.0
  %3883 = vmatprep.subr.mxu0 0.0
  %3884 = vmatpush1.msra.mxu0 0.0
  %3885 = vmatprep.subr.mxu0 0.0
  %3886 = vmatpush1.msra.mxu0 0.0
  %3887 = vmatprep.subr.mxu0 0.0
  %3888 = vmatpush1.msra.mxu0 0.0
  %3889 = vmatprep.subr.mxu0 0.0
  %3890 = vmatpush1.msra.mxu0 0.0
  %3891 = vmatprep.subr.mxu0 0.0
  %3892 = vmatpush1.msra.mxu0 0.0
  %3893 = vmatprep.subr.mxu0 0.0
  %3894 = vmatpush1.msra.mxu0 0.0
  %3895 = vmatprep.subr.mxu0 0.0
  %3896 = vmatpush1.msra.mxu0 0.0
  %3897 = vmatprep.subr.mxu0 0.0
  %3898 = vmatpush1.msra.mxu0 0.0
  %3899 = vmatprep.subr.mxu0 0.0
  %3900 = vmatpush1.msra.mxu0 0.0
  %3901 = vmatprep.subr.mxu0 0.0
  %3902 = vmatpush1.msra.mxu0 0.0
  %3903 = vmatprep.mubr.f32.mxu0 0.0
  %3904 = vmatmul.mubr.f32.gmra.mrb[0].mxu0 %v3757
  %v3905 = vpop.f32.mrb[0].mxu0
  %v3906 = vadd.f32 %v3687, %v3905
  %v3907 = vpop.f32.mrb[0].mxu0
  %v3908 = vadd.f32 %v3691, %v3907
  %3909 = vmatprep.mubr.f32.mxu0 0.0
  %3910 = vmatmul.mubr.f32.gmra.mrb[0].mxu0 %v3760
  %v3911 = vpop.f32.mrb[0].mxu0
  %v3912 = vadd.f32 %v3687, %v3911
  %v3913 = vpop.f32.mrb[0].mxu0
  %v3914 = vadd.f32 %v3691, %v3913
  %3915 = vdwg.mxu0
  %3916 = vmatprep.subr.mxu0 %v3356
  %3917 = vmatpush1.msra.mxu0 %v3355
  %3918 = vmatprep.subr.mxu0 %v3372
  %3919 = vmatpush1.msra.mxu0 %v3371
  %3920 = vmatprep.subr.mxu0 %v3388
  %3921 = vmatpush1.msra.mxu0 %v3387
  %3922 = vmatprep.subr.mxu0 %v3404
  %3923 = vmatpush1.msra.mxu0 %v3403
  %3924 = vmatprep.subr.mxu0 0.0
  %3925 = vmatpush1.msra.mxu0 0.0
  %3926 = vmatprep.subr.mxu0 0.0
  %3927 = vmatpush1.msra.mxu0 0.0
  %3928 = vmatprep.subr.mxu0 0.0
  %3929 = vmatpush1.msra.mxu0 0.0
  %3930 = vmatprep.subr.mxu0 0.0
  %3931 = vmatpush1.msra.mxu0 0.0
  %3932 = vmatprep.subr.mxu0 0.0
  %3933 = vmatpush1.msra.mxu0 0.0
  %3934 = vmatprep.subr.mxu0 0.0
  %3935 = vmatpush1.msra.mxu0 0.0
  %3936 = vmatprep.subr.mxu0 0.0
  %3937 = vmatpush1.msra.mxu0 0.0
  %3938 = vmatprep.subr.mxu0 0.0
  %3939 = vmatpush1.msra.mxu0 0.0
  %3940 = vmatprep.subr.mxu0 0.0
  %3941 = vmatpush1.msra.mxu0 0.0
  %3942 = vmatprep.subr.mxu0 0.0
  %3943 = vmatpush1.msra.mxu0 0.0
  %3944 = vmatprep.subr.mxu0 0.0
  %3945 = vmatpush1.msra.mxu0 0.0
  %3946 = vmatprep.subr.mxu0 0.0
  %3947 = vmatpush1.msra.mxu0 0.0
  %3948 = vmatprep.subr.mxu0 0.0
  %3949 = vmatpush1.msra.mxu0 0.0
  %3950 = vmatprep.subr.mxu0 0.0
  %3951 = vmatpush1.msra.mxu0 0.0
  %3952 = vmatprep.subr.mxu0 0.0
  %3953 = vmatpush1.msra.mxu0 0.0
  %3954 = vmatprep.subr.mxu0 0.0
  %3955 = vmatpush1.msra.mxu0 0.0
  %3956 = vmatprep.subr.mxu0 0.0
  %3957 = vmatpush1.msra.mxu0 0.0
  %3958 = vmatprep.subr.mxu0 0.0
  %3959 = vmatpush1.msra.mxu0 0.0
  %3960 = vmatprep.subr.mxu0 0.0
  %3961 = vmatpush1.msra.mxu0 0.0
  %3962 = vmatprep.subr.mxu0 0.0
  %3963 = vmatpush1.msra.mxu0 0.0
  %3964 = vmatprep.subr.mxu0 0.0
  %3965 = vmatpush1.msra.mxu0 0.0
  %3966 = vmatprep.subr.mxu0 0.0
  %3967 = vmatpush1.msra.mxu0 0.0
  %3968 = vmatprep.subr.mxu0 0.0
  %3969 = vmatpush1.msra.mxu0 0.0
  %3970 = vmatprep.subr.mxu0 0.0
  %3971 = vmatpush1.msra.mxu0 0.0
  %3972 = vmatprep.subr.mxu0 0.0
  %3973 = vmatpush1.msra.mxu0 0.0
  %3974 = vmatprep.subr.mxu0 0.0
  %3975 = vmatpush1.msra.mxu0 0.0
  %3976 = vmatprep.subr.mxu0 0.0
  %3977 = vmatpush1.msra.mxu0 0.0
  %3978 = vmatprep.subr.mxu0 0.0
  %3979 = vmatpush1.msra.mxu0 0.0
  %3980 = vmatprep.mubr.f32.mxu0 0.0
  %3981 = vmatmul.mubr.f32.gmra.mrb[0].mxu0 %v3757
  %v3982 = vpop.f32.mrb[0].mxu0
  %v3983 = vadd.f32 %v3695, %v3982
  %v3984 = vpop.f32.mrb[0].mxu0
  %v3985 = vadd.f32 %v3699, %v3984
  %3986 = vmatprep.mubr.f32.mxu0 0.0
  %3987 = vmatmul.mubr.f32.gmra.mrb[0].mxu0 %v3760
  %v3988 = vpop.f32.mrb[0].mxu0
  %v3989 = vadd.f32 %v3695, %v3988
  %v3990 = vpop.f32.mrb[0].mxu0
  %v3991 = vadd.f32 %v3699, %v3990
  %3992 = vdwg.mxu0
  %3993 = vmatprep.subr.mxu0 %v3358
  %3994 = vmatpush1.msra.mxu0 %v3357
  %3995 = vmatprep.subr.mxu0 %v3374
  %3996 = vmatpush1.msra.mxu0 %v3373
  %3997 = vmatprep.subr.mxu0 %v3390
  %3998 = vmatpush1.msra.mxu0 %v3389
  %3999 = vmatprep.subr.mxu0 %v3406
  %4000 = vmatpush1.msra.mxu0 %v3405
  %4001 = vmatprep.subr.mxu0 0.0
  %4002 = vmatpush1.msra.mxu0 0.0
  %4003 = vmatprep.subr.mxu0 0.0
  %4004 = vmatpush1.msra.mxu0 0.0
  %4005 = vmatprep.subr.mxu0 0.0
  %4006 = vmatpush1.msra.mxu0 0.0
  %4007 = vmatprep.subr.mxu0 0.0
  %4008 = vmatpush1.msra.mxu0 0.0
  %4009 = vmatprep.subr.mxu0 0.0
  %4010 = vmatpush1.msra.mxu0 0.0
  %4011 = vmatprep.subr.mxu0 0.0
  %4012 = vmatpush1.msra.mxu0 0.0
  %4013 = vmatprep.subr.mxu0 0.0
  %4014 = vmatpush1.msra.mxu0 0.0
  %4015 = vmatprep.subr.mxu0 0.0
  %4016 = vmatpush1.msra.mxu0 0.0
  %4017 = vmatprep.subr.mxu0 0.0
  %4018 = vmatpush1.msra.mxu0 0.0
  %4019 = vmatprep.subr.mxu0 0.0
  %4020 = vmatpush1.msra.mxu0 0.0
  %4021 = vmatprep.subr.mxu0 0.0
  %4022 = vmatpush1.msra.mxu0 0.0
  %4023 = vmatprep.subr.mxu0 0.0
  %4024 = vmatpush1.msra.mxu0 0.0
  %4025 = vmatprep.subr.mxu0 0.0
  %4026 = vmatpush1.msra.mxu0 0.0
  %4027 = vmatprep.subr.mxu0 0.0
  %4028 = vmatpush1.msra.mxu0 0.0
  %4029 = vmatprep.subr.mxu0 0.0
  %4030 = vmatpush1.msra.mxu0 0.0
  %4031 = vmatprep.subr.mxu0 0.0
  %4032 = vmatpush1.msra.mxu0 0.0
  %4033 = vmatprep.subr.mxu0 0.0
  %4034 = vmatpush1.msra.mxu0 0.0
  %4035 = vmatprep.subr.mxu0 0.0
  %4036 = vmatpush1.msra.mxu0 0.0
  %4037 = vmatprep.subr.mxu0 0.0
  %4038 = vmatpush1.msra.mxu0 0.0
  %4039 = vmatprep.subr.mxu0 0.0
  %4040 = vmatpush1.msra.mxu0 0.0
  %4041 = vmatprep.subr.mxu0 0.0
  %4042 = vmatpush1.msra.mxu0 0.0
  %4043 = vmatprep.subr.mxu0 0.0
  %4044 = vmatpush1.msra.mxu0 0.0
  %4045 = vmatprep.subr.mxu0 0.0
  %4046 = vmatpush1.msra.mxu0 0.0
  %4047 = vmatprep.subr.mxu0 0.0
  %4048 = vmatpush1.msra.mxu0 0.0
  %4049 = vmatprep.subr.mxu0 0.0
  %4050 = vmatpush1.msra.mxu0 0.0
  %4051 = vmatprep.subr.mxu0 0.0
  %4052 = vmatpush1.msra.mxu0 0.0
  %4053 = vmatprep.subr.mxu0 0.0
  %4054 = vmatpush1.msra.mxu0 0.0
  %4055 = vmatprep.subr.mxu0 0.0
  %4056 = vmatpush1.msra.mxu0 0.0
  %4057 = vmatprep.mubr.f32.mxu0 0.0
  %4058 = vmatmul.mubr.f32.gmra.mrb[0].mxu0 %v3757
  %v4059 = vpop.f32.mrb[0].mxu0
  %v4060 = vadd.f32 %v3703, %v4059
  %v4061 = vpop.f32.mrb[0].mxu0
  %v4062 = vadd.f32 %v3707, %v4061
  %4063 = vmatprep.mubr.f32.mxu0 0.0
  %4064 = vmatmul.mubr.f32.gmra.mrb[0].mxu0 %v3760
  %v4065 = vpop.f32.mrb[0].mxu0
  %v4066 = vadd.f32 %v3703, %v4065
  %v4067 = vpop.f32.mrb[0].mxu0
  %v4068 = vadd.f32 %v3707, %v4067
  %4069 = vdwg.mxu0
  %4070 = vmatprep.subr.mxu0 %v3360
  %4071 = vmatpush1.msra.mxu0 %v3359
  %4072 = vmatprep.subr.mxu0 %v3376
  %4073 = vmatpush1.msra.mxu0 %v3375
  %4074 = vmatprep.subr.mxu0 %v3392
  %4075 = vmatpush1.msra.mxu0 %v3391
  %4076 = vmatprep.subr.mxu0 %v3408
  %4077 = vmatpush1.msra.mxu0 %v3407
  %4078 = vmatprep.subr.mxu0 0.0
  %4079 = vmatpush1.msra.mxu0 0.0
  %4080 = vmatprep.subr.mxu0 0.0
  %4081 = vmatpush1.msra.mxu0 0.0
  %4082 = vmatprep.subr.mxu0 0.0
  %4083 = vmatpush1.msra.mxu0 0.0
  %4084 = vmatprep.subr.mxu0 0.0
  %4085 = vmatpush1.msra.mxu0 0.0
  %4086 = vmatprep.subr.mxu0 0.0
  %4087 = vmatpush1.msra.mxu0 0.0
  %4088 = vmatprep.subr.mxu0 0.0
  %4089 = vmatpush1.msra.mxu0 0.0
  %4090 = vmatprep.subr.mxu0 0.0
  %4091 = vmatpush1.msra.mxu0 0.0
  %4092 = vmatprep.subr.mxu0 0.0
  %4093 = vmatpush1.msra.mxu0 0.0
  %4094 = vmatprep.subr.mxu0 0.0
  %4095 = vmatpush1.msra.mxu0 0.0
  %4096 = vmatprep.subr.mxu0 0.0
  %4097 = vmatpush1.msra.mxu0 0.0
  %4098 = vmatprep.subr.mxu0 0.0
  %4099 = vmatpush1.msra.mxu0 0.0
  %4100 = vmatprep.subr.mxu0 0.0
  %4101 = vmatpush1.msra.mxu0 0.0
  %4102 = vmatprep.subr.mxu0 0.0
  %4103 = vmatpush1.msra.mxu0 0.0
  %4104 = vmatprep.subr.mxu0 0.0
  %4105 = vmatpush1.msra.mxu0 0.0
  %4106 = vmatprep.subr.mxu0 0.0
  %4107 = vmatpush1.msra.mxu0 0.0
  %4108 = vmatprep.subr.mxu0 0.0
  %4109 = vmatpush1.msra.mxu0 0.0
  %4110 = vmatprep.subr.mxu0 0.0
  %4111 = vmatpush1.msra.mxu0 0.0
  %4112 = vmatprep.subr.mxu0 0.0
  %4113 = vmatpush1.msra.mxu0 0.0
  %4114 = vmatprep.subr.mxu0 0.0
  %4115 = vmatpush1.msra.mxu0 0.0
  %4116 = vmatprep.subr.mxu0 0.0
  %4117 = vmatpush1.msra.mxu0 0.0
  %4118 = vmatprep.subr.mxu0 0.0
  %4119 = vmatpush1.msra.mxu0 0.0
  %4120 = vmatprep.subr.mxu0 0.0
  %4121 = vmatpush1.msra.mxu0 0.0
  %4122 = vmatprep.subr.mxu0 0.0
  %4123 = vmatpush1.msra.mxu0 0.0
  %4124 = vmatprep.subr.mxu0 0.0
  %4125 = vmatpush1.msra.mxu0 0.0
  %4126 = vmatprep.subr.mxu0 0.0
  %4127 = vmatpush1.msra.mxu0 0.0
  %4128 = vmatprep.subr.mxu0 0.0
  %4129 = vmatpush1.msra.mxu0 0.0
  %4130 = vmatprep.subr.mxu0 0.0
  %4131 = vmatpush1.msra.mxu0 0.0
  %4132 = vmatprep.subr.mxu0 0.0
  %4133 = vmatpush1.msra.mxu0 0.0
  %4134 = vmatprep.mubr.f32.mxu0 0.0
  %4135 = vmatmul.mubr.f32.gmra.mrb[0].mxu0 %v3757
  %v4136 = vpop.f32.mrb[0].mxu0
  %v4137 = vadd.f32 %v3711, %v4136
  %v4138 = vpop.f32.mrb[0].mxu0
  %v4139 = vadd.f32 %v3715, %v4138
  %4140 = vmatprep.mubr.f32.mxu0 0.0
  %4141 = vmatmul.mubr.f32.gmra.mrb[0].mxu0 %v3760
  %v4142 = vpop.f32.mrb[0].mxu0
  %v4143 = vadd.f32 %v3711, %v4142
  %v4144 = vpop.f32.mrb[0].mxu0
  %v4145 = vadd.f32 %v3715, %v4144
  %4146 = vdwg.mxu0
  %4147 = vmatprep.subr.mxu0 %v3362
  %4148 = vmatpush1.msra.mxu0 %v3361
  %4149 = vmatprep.subr.mxu0 %v3378
  %4150 = vmatpush1.msra.mxu0 %v3377
  %4151 = vmatprep.subr.mxu0 %v3394
  %4152 = vmatpush1.msra.mxu0 %v3393
  %4153 = vmatprep.subr.mxu0 %v3410
  %4154 = vmatpush1.msra.mxu0 %v3409
  %4155 = vmatprep.subr.mxu0 0.0
  %4156 = vmatpush1.msra.mxu0 0.0
  %4157 = vmatprep.subr.mxu0 0.0
  %4158 = vmatpush1.msra.mxu0 0.0
  %4159 = vmatprep.subr.mxu0 0.0
  %4160 = vmatpush1.msra.mxu0 0.0
  %4161 = vmatprep.subr.mxu0 0.0
  %4162 = vmatpush1.msra.mxu0 0.0
  %4163 = vmatprep.subr.mxu0 0.0
  %4164 = vmatpush1.msra.mxu0 0.0
  %4165 = vmatprep.subr.mxu0 0.0
  %4166 = vmatpush1.msra.mxu0 0.0
  %4167 = vmatprep.subr.mxu0 0.0
  %4168 = vmatpush1.msra.mxu0 0.0
  %4169 = vmatprep.subr.mxu0 0.0
  %4170 = vmatpush1.msra.mxu0 0.0
  %4171 = vmatprep.subr.mxu0 0.0
  %4172 = vmatpush1.msra.mxu0 0.0
  %4173 = vmatprep.subr.mxu0 0.0
  %4174 = vmatpush1.msra.mxu0 0.0
  %4175 = vmatprep.subr.mxu0 0.0
  %4176 = vmatpush1.msra.mxu0 0.0
  %4177 = vmatprep.subr.mxu0 0.0
  %4178 = vmatpush1.msra.mxu0 0.0
  %4179 = vmatprep.subr.mxu0 0.0
  %4180 = vmatpush1.msra.mxu0 0.0
  %4181 = vmatprep.subr.mxu0 0.0
  %4182 = vmatpush1.msra.mxu0 0.0
  %4183 = vmatprep.subr.mxu0 0.0
  %4184 = vmatpush1.msra.mxu0 0.0
  %4185 = vmatprep.subr.mxu0 0.0
  %4186 = vmatpush1.msra.mxu0 0.0
  %4187 = vmatprep.subr.mxu0 0.0
  %4188 = vmatpush1.msra.mxu0 0.0
  %4189 = vmatprep.subr.mxu0 0.0
  %4190 = vmatpush1.msra.mxu0 0.0
  %4191 = vmatprep.subr.mxu0 0.0
  %4192 = vmatpush1.msra.mxu0 0.0
  %4193 = vmatprep.subr.mxu0 0.0
  %4194 = vmatpush1.msra.mxu0 0.0
  %4195 = vmatprep.subr.mxu0 0.0
  %4196 = vmatpush1.msra.mxu0 0.0
  %4197 = vmatprep.subr.mxu0 0.0
  %4198 = vmatpush1.msra.mxu0 0.0
  %4199 = vmatprep.subr.mxu0 0.0
  %4200 = vmatpush1.msra.mxu0 0.0
  %4201 = vmatprep.subr.mxu0 0.0
  %4202 = vmatpush1.msra.mxu0 0.0
  %4203 = vmatprep.subr.mxu0 0.0
  %4204 = vmatpush1.msra.mxu0 0.0
  %4205 = vmatprep.subr.mxu0 0.0
  %4206 = vmatpush1.msra.mxu0 0.0
  %4207 = vmatprep.subr.mxu0 0.0
  %4208 = vmatpush1.msra.mxu0 0.0
  %4209 = vmatprep.subr.mxu0 0.0
  %4210 = vmatpush1.msra.mxu0 0.0
  %4211 = vmatprep.mubr.f32.mxu0 0.0
  %4212 = vmatmul.mubr.f32.gmra.mrb[0].mxu0 %v3757
  %v4213 = vpop.f32.mrb[0].mxu0
  %v4214 = vadd.f32 %v3719, %v4213
  %v4215 = vpop.f32.mrb[0].mxu0
  %v4216 = vadd.f32 %v3723, %v4215
  %4217 = vmatprep.mubr.f32.mxu0 0.0
  %4218 = vmatmul.mubr.f32.gmra.mrb[0].mxu0 %v3760
  %v4219 = vpop.f32.mrb[0].mxu0
  %v4220 = vadd.f32 %v3719, %v4219
  %v4221 = vpop.f32.mrb[0].mxu0
  %v4222 = vadd.f32 %v3723, %v4221
  %4223 = vdwg.mxu0
  %4224 = vmatprep.subr.mxu0 %v3364
  %4225 = vmatpush1.msra.mxu0 %v3363
  %4226 = vmatprep.subr.mxu0 %v3380
  %4227 = vmatpush1.msra.mxu0 %v3379
  %4228 = vmatprep.subr.mxu0 %v3396
  %4229 = vmatpush1.msra.mxu0 %v3395
  %4230 = vmatprep.subr.mxu0 %v3412
  %4231 = vmatpush1.msra.mxu0 %v3411
  %4232 = vmatprep.subr.mxu0 0.0
  %4233 = vmatpush1.msra.mxu0 0.0
  %4234 = vmatprep.subr.mxu0 0.0
  %4235 = vmatpush1.msra.mxu0 0.0
  %4236 = vmatprep.subr.mxu0 0.0
  %4237 = vmatpush1.msra.mxu0 0.0
  %4238 = vmatprep.subr.mxu0 0.0
  %4239 = vmatpush1.msra.mxu0 0.0
  %4240 = vmatprep.subr.mxu0 0.0
  %4241 = vmatpush1.msra.mxu0 0.0
  %4242 = vmatprep.subr.mxu0 0.0
  %4243 = vmatpush1.msra.mxu0 0.0
  %4244 = vmatprep.subr.mxu0 0.0
  %4245 = vmatpush1.msra.mxu0 0.0
  %4246 = vmatprep.subr.mxu0 0.0
  %4247 = vmatpush1.msra.mxu0 0.0
  %4248 = vmatprep.subr.mxu0 0.0
  %4249 = vmatpush1.msra.mxu0 0.0
  %4250 = vmatprep.subr.mxu0 0.0
  %4251 = vmatpush1.msra.mxu0 0.0
  %4252 = vmatprep.subr.mxu0 0.0
  %4253 = vmatpush1.msra.mxu0 0.0
  %4254 = vmatprep.subr.mxu0 0.0
  %4255 = vmatpush1.msra.mxu0 0.0
  %4256 = vmatprep.subr.mxu0 0.0
  %4257 = vmatpush1.msra.mxu0 0.0
  %4258 = vmatprep.subr.mxu0 0.0
  %4259 = vmatpush1.msra.mxu0 0.0
  %4260 = vmatprep.subr.mxu0 0.0
  %4261 = vmatpush1.msra.mxu0 0.0
  %4262 = vmatprep.subr.mxu0 0.0
  %4263 = vmatpush1.msra.mxu0 0.0
  %4264 = vmatprep.subr.mxu0 0.0
  %4265 = vmatpush1.msra.mxu0 0.0
  %4266 = vmatprep.subr.mxu0 0.0
  %4267 = vmatpush1.msra.mxu0 0.0
  %4268 = vmatprep.subr.mxu0 0.0
  %4269 = vmatpush1.msra.mxu0 0.0
  %4270 = vmatprep.subr.mxu0 0.0
  %4271 = vmatpush1.msra.mxu0 0.0
  %4272 = vmatprep.subr.mxu0 0.0
  %4273 = vmatpush1.msra.mxu0 0.0
  %4274 = vmatprep.subr.mxu0 0.0
  %4275 = vmatpush1.msra.mxu0 0.0
  %4276 = vmatprep.subr.mxu0 0.0
  %4277 = vmatpush1.msra.mxu0 0.0
  %4278 = vmatprep.subr.mxu0 0.0
  %4279 = vmatpush1.msra.mxu0 0.0
  %4280 = vmatprep.subr.mxu0 0.0
  %4281 = vmatpush1.msra.mxu0 0.0
  %4282 = vmatprep.subr.mxu0 0.0
  %4283 = vmatpush1.msra.mxu0 0.0
  %4284 = vmatprep.subr.mxu0 0.0
  %4285 = vmatpush1.msra.mxu0 0.0
  %4286 = vmatprep.subr.mxu0 0.0
  %4287 = vmatpush1.msra.mxu0 0.0
  %4288 = vmatprep.mubr.f32.mxu0 0.0
  %4289 = vmatmul.mubr.f32.gmra.mrb[0].mxu0 %v3757
  %v4290 = vpop.f32.mrb[0].mxu0
  %v4291 = vadd.f32 %v3727, %v4290
  %v4292 = vpop.f32.mrb[0].mxu0
  %v4293 = vadd.f32 %v3731, %v4292
  %4294 = vmatprep.mubr.f32.mxu0 0.0
  %4295 = vmatmul.mubr.f32.gmra.mrb[0].mxu0 %v3760
  %v4296 = vpop.f32.mrb[0].mxu0
  %v4297 = vadd.f32 %v3727, %v4296
  %v4298 = vpop.f32.mrb[0].mxu0
  %v4299 = vadd.f32 %v3731, %v4298
  %4300 = vdwg.mxu0
  %4301 = vmatprep.subr.mxu0 %v3366
  %4302 = vmatpush1.msra.mxu0 %v3365
  %4303 = vmatprep.subr.mxu0 %v3382
  %4304 = vmatpush1.msra.mxu0 %v3381
  %4305 = vmatprep.subr.mxu0 %v3398
  %4306 = vmatpush1.msra.mxu0 %v3397
  %4307 = vmatprep.subr.mxu0 %v3414
  %4308 = vmatpush1.msra.mxu0 %v3413
  %4309 = vmatprep.subr.mxu0 0.0
  %4310 = vmatpush1.msra.mxu0 0.0
  %4311 = vmatprep.subr.mxu0 0.0
  %4312 = vmatpush1.msra.mxu0 0.0
  %4313 = vmatprep.subr.mxu0 0.0
  %4314 = vmatpush1.msra.mxu0 0.0
  %4315 = vmatprep.subr.mxu0 0.0
  %4316 = vmatpush1.msra.mxu0 0.0
  %4317 = vmatprep.subr.mxu0 0.0
  %4318 = vmatpush1.msra.mxu0 0.0
  %4319 = vmatprep.subr.mxu0 0.0
  %4320 = vmatpush1.msra.mxu0 0.0
  %4321 = vmatprep.subr.mxu0 0.0
  %4322 = vmatpush1.msra.mxu0 0.0
  %4323 = vmatprep.subr.mxu0 0.0
  %4324 = vmatpush1.msra.mxu0 0.0
  %4325 = vmatprep.subr.mxu0 0.0
  %4326 = vmatpush1.msra.mxu0 0.0
  %4327 = vmatprep.subr.mxu0 0.0
  %4328 = vmatpush1.msra.mxu0 0.0
  %4329 = vmatprep.subr.mxu0 0.0
  %4330 = vmatpush1.msra.mxu0 0.0
  %4331 = vmatprep.subr.mxu0 0.0
  %4332 = vmatpush1.msra.mxu0 0.0
  %4333 = vmatprep.subr.mxu0 0.0
  %4334 = vmatpush1.msra.mxu0 0.0
  %4335 = vmatprep.subr.mxu0 0.0
  %4336 = vmatpush1.msra.mxu0 0.0
  %4337 = vmatprep.subr.mxu0 0.0
  %4338 = vmatpush1.msra.mxu0 0.0
  %4339 = vmatprep.subr.mxu0 0.0
  %4340 = vmatpush1.msra.mxu0 0.0
  %4341 = vmatprep.subr.mxu0 0.0
  %4342 = vmatpush1.msra.mxu0 0.0
  %4343 = vmatprep.subr.mxu0 0.0
  %4344 = vmatpush1.msra.mxu0 0.0
  %4345 = vmatprep.subr.mxu0 0.0
  %4346 = vmatpush1.msra.mxu0 0.0
  %4347 = vmatprep.subr.mxu0 0.0
  %4348 = vmatpush1.msra.mxu0 0.0
  %4349 = vmatprep.subr.mxu0 0.0
  %4350 = vmatpush1.msra.mxu0 0.0
  %4351 = vmatprep.subr.mxu0 0.0
  %4352 = vmatpush1.msra.mxu0 0.0
  %4353 = vmatprep.subr.mxu0 0.0
  %4354 = vmatpush1.msra.mxu0 0.0
  %4355 = vmatprep.subr.mxu0 0.0
  %4356 = vmatpush1.msra.mxu0 0.0
  %4357 = vmatprep.subr.mxu0 0.0
  %4358 = vmatpush1.msra.mxu0 0.0
  %4359 = vmatprep.subr.mxu0 0.0
  %4360 = vmatpush1.msra.mxu0 0.0
  %4361 = vmatprep.subr.mxu0 0.0
  %4362 = vmatpush1.msra.mxu0 0.0
  %4363 = vmatprep.subr.mxu0 0.0
  %4364 = vmatpush1.msra.mxu0 0.0
  %4365 = vmatprep.mubr.f32.mxu0 0.0
  %4366 = vmatmul.mubr.f32.gmra.mrb[0].mxu0 %v3757
  %v4367 = vpop.f32.mrb[0].mxu0
  %v4368 = vadd.f32 %v3735, %v4367
  %v4369 = vpop.f32.mrb[0].mxu0
  %v4370 = vadd.f32 %v3739, %v4369
  %4371 = vmatprep.mubr.f32.mxu0 0.0
  %4372 = vmatmul.mubr.f32.gmra.mrb[0].mxu0 %v3760
  %v4373 = vpop.f32.mrb[0].mxu0
  %v4374 = vadd.f32 %v3735, %v4373
  %v4375 = vpop.f32.mrb[0].mxu0
  %v4376 = vadd.f32 %v3739, %v4375
  %4377 = vdwg.mxu0
  %v4378 = vmax.f32 %v3829, 0.0
  %v4379 = vmax.f32 %v3831, 0.0
  %v4380 = vmax.f32 %v3906, 0.0
  %v4381 = vmax.f32 %v3908, 0.0
  %v4382 = vmax.f32 %v3983, 0.0
  %v4383 = vmax.f32 %v3985, 0.0
  %v4384 = vmax.f32 %v4060, 0.0
  %v4385 = vmax.f32 %v4062, 0.0
  %v4386 = vmax.f32 %v4137, 0.0
  %v4387 = vmax.f32 %v4139, 0.0
  %v4388 = vmax.f32 %v4214, 0.0
  %v4389 = vmax.f32 %v4216, 0.0
  %v4390 = vmax.f32 %v4291, 0.0
  %v4391 = vmax.f32 %v4293, 0.0
  %v4392 = vmax.f32 %v4368, 0.0
  %v4393 = vmax.f32 %v4370, 0.0
  %v4394 = vmax.f32 %v3835, 0.0
  %v4395 = vmax.f32 %v3837, 0.0
  %v4396 = vmax.f32 %v3912, 0.0
  %v4397 = vmax.f32 %v3914, 0.0
  %v4398 = vmax.f32 %v3989, 0.0
  %v4399 = vmax.f32 %v3991, 0.0
  %v4400 = vmax.f32 %v4066, 0.0
  %v4401 = vmax.f32 %v4068, 0.0
  %v4402 = vmax.f32 %v4143, 0.0
  %v4403 = vmax.f32 %v4145, 0.0
  %v4404 = vmax.f32 %v4220, 0.0
  %v4405 = vmax.f32 %v4222, 0.0
  %v4406 = vmax.f32 %v4297, 0.0
  %v4407 = vmax.f32 %v4299, 0.0
  %v4408 = vmax.f32 %v4374, 0.0
  %v4409 = vmax.f32 %v4376, 0.0
  %v4411 = vlaneseq
  %v4412 = vshrl.u32 %v4411, 7
  %v4413 = vsub.s32 0, %v4412
  %v4414 = vrot.slane %v3673, %v4413
  %4416 = vmatprep.subr.mxu0 0.0
  %4417 = vmatpush1.msra.mxu0 %v3417
  %4418 = vmatprep.subr.mxu0 0.0
  %4419 = vmatpush1.msra.mxu0 %v3418
  %4420 = vmatprep.subr.mxu0 0.0
  %4421 = vmatpush1.msra.mxu0 %v3419
  %4422 = vmatprep.subr.mxu0 0.0
  %4423 = vmatpush1.msra.mxu0 %v3420
  %4424 = vmatprep.subr.mxu0 0.0
  %4425 = vmatpush1.msra.mxu0 %v3421
  %4426 = vmatprep.subr.mxu0 0.0
  %4427 = vmatpush1.msra.mxu0 %v3422
  %4428 = vmatprep.subr.mxu0 0.0
  %4429 = vmatpush1.msra.mxu0 %v3423
  %4430 = vmatprep.subr.mxu0 0.0
  %4431 = vmatpush1.msra.mxu0 %v3424
  %4432 = vmatprep.subr.mxu0 0.0
  %4433 = vmatpush1.msra.mxu0 %v3425
  %4434 = vmatprep.subr.mxu0 0.0
  %4435 = vmatpush1.msra.mxu0 %v3426
  %4436 = vmatprep.subr.mxu0 0.0
  %4437 = vmatpush1.msra.mxu0 %v3427
  %4438 = vmatprep.subr.mxu0 0.0
  %4439 = vmatpush1.msra.mxu0 %v3428
  %4440 = vmatprep.subr.mxu0 0.0
  %4441 = vmatpush1.msra.mxu0 %v3429
  %4442 = vmatprep.subr.mxu0 0.0
  %4443 = vmatpush1.msra.mxu0 %v3430
  %4444 = vmatprep.subr.mxu0 0.0
  %4445 = vmatpush1.msra.mxu0 %v3431
  %4446 = vmatprep.subr.mxu0 0.0
  %4447 = vmatpush1.msra.mxu0 %v3432
  %4448 = vmatprep.subr.mxu0 0.0
  %4449 = vmatpush1.msra.mxu0 %v3433
  %4450 = vmatprep.subr.mxu0 0.0
  %4451 = vmatpush1.msra.mxu0 %v3434
  %4452 = vmatprep.subr.mxu0 0.0
  %4453 = vmatpush1.msra.mxu0 %v3435
  %4454 = vmatprep.subr.mxu0 0.0
  %4455 = vmatpush1.msra.mxu0 %v3436
  %4456 = vmatprep.subr.mxu0 0.0
  %4457 = vmatpush1.msra.mxu0 %v3437
  %4458 = vmatprep.subr.mxu0 0.0
  %4459 = vmatpush1.msra.mxu0 %v3438
  %4460 = vmatprep.subr.mxu0 0.0
  %4461 = vmatpush1.msra.mxu0 %v3439
  %4462 = vmatprep.subr.mxu0 0.0
  %4463 = vmatpush1.msra.mxu0 %v3440
  %4464 = vmatprep.subr.mxu0 0.0
  %4465 = vmatpush1.msra.mxu0 %v3441
  %4466 = vmatprep.subr.mxu0 0.0
  %4467 = vmatpush1.msra.mxu0 %v3442
  %4468 = vmatprep.subr.mxu0 0.0
  %4469 = vmatpush1.msra.mxu0 %v3443
  %4470 = vmatprep.subr.mxu0 0.0
  %4471 = vmatpush1.msra.mxu0 %v3444
  %4472 = vmatprep.subr.mxu0 0.0
  %4473 = vmatpush1.msra.mxu0 %v3445
  %4474 = vmatprep.subr.mxu0 0.0
  %4475 = vmatpush1.msra.mxu0 %v3446
  %4476 = vmatprep.subr.mxu0 0.0
  %4477 = vmatpush1.msra.mxu0 %v3447
  %4478 = vmatprep.subr.mxu0 0.0
  %4479 = vmatpush1.msra.mxu0 %v3448
  %4480 = vmatprep.mubr.f32.mxu0 %v4379
  %4481 = vmatmul.mubr.f32.gmra.mrb[0].mxu0 %v4378
  %v4482 = vpop.f32.mrb[0].mxu0
  %v4483 = vadd.f32 %v4414, %v4482
  %v4484 = vpop.f32.mrb[0].mxu0
  %4485 = vmatprep.mubr.f32.mxu0 %v4395
  %4486 = vmatmul.mubr.f32.gmra.mrb[0].mxu0 %v4394
  %v4487 = vpop.f32.mrb[0].mxu0
  %v4488 = vadd.f32 %v4414, %v4487
  %v4489 = vpop.f32.mrb[0].mxu0
  %4490 = vdwg.mxu0
  %4491 = vmatprep.subr.mxu0 0.0
  %4492 = vmatpush1.msra.mxu0 %v3449
  %4493 = vmatprep.subr.mxu0 0.0
  %4494 = vmatpush1.msra.mxu0 %v3450
  %4495 = vmatprep.subr.mxu0 0.0
  %4496 = vmatpush1.msra.mxu0 %v3451
  %4497 = vmatprep.subr.mxu0 0.0
  %4498 = vmatpush1.msra.mxu0 %v3452
  %4499 = vmatprep.subr.mxu0 0.0
  %4500 = vmatpush1.msra.mxu0 %v3453
  %4501 = vmatprep.subr.mxu0 0.0
  %4502 = vmatpush1.msra.mxu0 %v3454
  %4503 = vmatprep.subr.mxu0 0.0
  %4504 = vmatpush1.msra.mxu0 %v3455
  %4505 = vmatprep.subr.mxu0 0.0
  %4506 = vmatpush1.msra.mxu0 %v3456
  %4507 = vmatprep.subr.mxu0 0.0
  %4508 = vmatpush1.msra.mxu0 %v3457
  %4509 = vmatprep.subr.mxu0 0.0
  %4510 = vmatpush1.msra.mxu0 %v3458
  %4511 = vmatprep.subr.mxu0 0.0
  %4512 = vmatpush1.msra.mxu0 %v3459
  %4513 = vmatprep.subr.mxu0 0.0
  %4514 = vmatpush1.msra.mxu0 %v3460
  %4515 = vmatprep.subr.mxu0 0.0
  %4516 = vmatpush1.msra.mxu0 %v3461
  %4517 = vmatprep.subr.mxu0 0.0
  %4518 = vmatpush1.msra.mxu0 %v3462
  %4519 = vmatprep.subr.mxu0 0.0
  %4520 = vmatpush1.msra.mxu0 %v3463
  %4521 = vmatprep.subr.mxu0 0.0
  %4522 = vmatpush1.msra.mxu0 %v3464
  %4523 = vmatprep.subr.mxu0 0.0
  %4524 = vmatpush1.msra.mxu0 %v3465
  %4525 = vmatprep.subr.mxu0 0.0
  %4526 = vmatpush1.msra.mxu0 %v3466
  %4527 = vmatprep.subr.mxu0 0.0
  %4528 = vmatpush1.msra.mxu0 %v3467
  %4529 = vmatprep.subr.mxu0 0.0
  %4530 = vmatpush1.msra.mxu0 %v3468
  %4531 = vmatprep.subr.mxu0 0.0
  %4532 = vmatpush1.msra.mxu0 %v3469
  %4533 = vmatprep.subr.mxu0 0.0
  %4534 = vmatpush1.msra.mxu0 %v3470
  %4535 = vmatprep.subr.mxu0 0.0
  %4536 = vmatpush1.msra.mxu0 %v3471
  %4537 = vmatprep.subr.mxu0 0.0
  %4538 = vmatpush1.msra.mxu0 %v3472
  %4539 = vmatprep.subr.mxu0 0.0
  %4540 = vmatpush1.msra.mxu0 %v3473
  %4541 = vmatprep.subr.mxu0 0.0
  %4542 = vmatpush1.msra.mxu0 %v3474
  %4543 = vmatprep.subr.mxu0 0.0
  %4544 = vmatpush1.msra.mxu0 %v3475
  %4545 = vmatprep.subr.mxu0 0.0
  %4546 = vmatpush1.msra.mxu0 %v3476
  %4547 = vmatprep.subr.mxu0 0.0
  %4548 = vmatpush1.msra.mxu0 %v3477
  %4549 = vmatprep.subr.mxu0 0.0
  %4550 = vmatpush1.msra.mxu0 %v3478
  %4551 = vmatprep.subr.mxu0 0.0
  %4552 = vmatpush1.msra.mxu0 %v3479
  %4553 = vmatprep.subr.mxu0 0.0
  %4554 = vmatpush1.msra.mxu0 %v3480
  %4555 = vmatprep.mubr.f32.mxu0 %v4381
  %4556 = vmatmul.mubr.f32.gmra.mrb[0].mxu0 %v4380
  %v4557 = vpop.f32.mrb[0].mxu0
  %v4558 = vadd.f32 %v4483, %v4557
  %v4559 = vpop.f32.mrb[0].mxu0
  %4560 = vmatprep.mubr.f32.mxu0 %v4397
  %4561 = vmatmul.mubr.f32.gmra.mrb[0].mxu0 %v4396
  %v4562 = vpop.f32.mrb[0].mxu0
  %v4563 = vadd.f32 %v4488, %v4562
  %v4564 = vpop.f32.mrb[0].mxu0
  %4565 = vdwg.mxu0
  %4566 = vmatprep.subr.mxu0 0.0
  %4567 = vmatpush1.msra.mxu0 %v3481
  %4568 = vmatprep.subr.mxu0 0.0
  %4569 = vmatpush1.msra.mxu0 %v3482
  %4570 = vmatprep.subr.mxu0 0.0
  %4571 = vmatpush1.msra.mxu0 %v3483
  %4572 = vmatprep.subr.mxu0 0.0
  %4573 = vmatpush1.msra.mxu0 %v3484
  %4574 = vmatprep.subr.mxu0 0.0
  %4575 = vmatpush1.msra.mxu0 %v3485
  %4576 = vmatprep.subr.mxu0 0.0
  %4577 = vmatpush1.msra.mxu0 %v3486
  %4578 = vmatprep.subr.mxu0 0.0
  %4579 = vmatpush1.msra.mxu0 %v3487
  %4580 = vmatprep.subr.mxu0 0.0
  %4581 = vmatpush1.msra.mxu0 %v3488
  %4582 = vmatprep.subr.mxu0 0.0
  %4583 = vmatpush1.msra.mxu0 %v3489
  %4584 = vmatprep.subr.mxu0 0.0
  %4585 = vmatpush1.msra.mxu0 %v3490
  %4586 = vmatprep.subr.mxu0 0.0
  %4587 = vmatpush1.msra.mxu0 %v3491
  %4588 = vmatprep.subr.mxu0 0.0
  %4589 = vmatpush1.msra.mxu0 %v3492
  %4590 = vmatprep.subr.mxu0 0.0
  %4591 = vmatpush1.msra.mxu0 %v3493
  %4592 = vmatprep.subr.mxu0 0.0
  %4593 = vmatpush1.msra.mxu0 %v3494
  %4594 = vmatprep.subr.mxu0 0.0
  %4595 = vmatpush1.msra.mxu0 %v3495
  %4596 = vmatprep.subr.mxu0 0.0
  %4597 = vmatpush1.msra.mxu0 %v3496
  %4598 = vmatprep.subr.mxu0 0.0
  %4599 = vmatpush1.msra.mxu0 %v3497
  %4600 = vmatprep.subr.mxu0 0.0
  %4601 = vmatpush1.msra.mxu0 %v3498
  %4602 = vmatprep.subr.mxu0 0.0
  %4603 = vmatpush1.msra.mxu0 %v3499
  %4604 = vmatprep.subr.mxu0 0.0
  %4605 = vmatpush1.msra.mxu0 %v3500
  %4606 = vmatprep.subr.mxu0 0.0
  %4607 = vmatpush1.msra.mxu0 %v3501
  %4608 = vmatprep.subr.mxu0 0.0
  %4609 = vmatpush1.msra.mxu0 %v3502
  %4610 = vmatprep.subr.mxu0 0.0
  %4611 = vmatpush1.msra.mxu0 %v3503
  %4612 = vmatprep.subr.mxu0 0.0
  %4613 = vmatpush1.msra.mxu0 %v3504
  %4614 = vmatprep.subr.mxu0 0.0
  %4615 = vmatpush1.msra.mxu0 %v3505
  %4616 = vmatprep.subr.mxu0 0.0
  %4617 = vmatpush1.msra.mxu0 %v3506
  %4618 = vmatprep.subr.mxu0 0.0
  %4619 = vmatpush1.msra.mxu0 %v3507
  %4620 = vmatprep.subr.mxu0 0.0
  %4621 = vmatpush1.msra.mxu0 %v3508
  %4622 = vmatprep.subr.mxu0 0.0
  %4623 = vmatpush1.msra.mxu0 %v3509
  %4624 = vmatprep.subr.mxu0 0.0
  %4625 = vmatpush1.msra.mxu0 %v3510
  %4626 = vmatprep.subr.mxu0 0.0
  %4627 = vmatpush1.msra.mxu0 %v3511
  %4628 = vmatprep.subr.mxu0 0.0
  %4629 = vmatpush1.msra.mxu0 %v3512
  %4630 = vmatprep.mubr.f32.mxu0 %v4383
  %4631 = vmatmul.mubr.f32.gmra.mrb[0].mxu0 %v4382
  %v4632 = vpop.f32.mrb[0].mxu0
  %v4633 = vadd.f32 %v4558, %v4632
  %v4634 = vpop.f32.mrb[0].mxu0
  %4635 = vmatprep.mubr.f32.mxu0 %v4399
  %4636 = vmatmul.mubr.f32.gmra.mrb[0].mxu0 %v4398
  %v4637 = vpop.f32.mrb[0].mxu0
  %v4638 = vadd.f32 %v4563, %v4637
  %v4639 = vpop.f32.mrb[0].mxu0
  %4640 = vdwg.mxu0
  %4641 = vmatprep.subr.mxu0 0.0
  %4642 = vmatpush1.msra.mxu0 %v3513
  %4643 = vmatprep.subr.mxu0 0.0
  %4644 = vmatpush1.msra.mxu0 %v3514
  %4645 = vmatprep.subr.mxu0 0.0
  %4646 = vmatpush1.msra.mxu0 %v3515
  %4647 = vmatprep.subr.mxu0 0.0
  %4648 = vmatpush1.msra.mxu0 %v3516
  %4649 = vmatprep.subr.mxu0 0.0
  %4650 = vmatpush1.msra.mxu0 %v3517
  %4651 = vmatprep.subr.mxu0 0.0
  %4652 = vmatpush1.msra.mxu0 %v3518
  %4653 = vmatprep.subr.mxu0 0.0
  %4654 = vmatpush1.msra.mxu0 %v3519
  %4655 = vmatprep.subr.mxu0 0.0
  %4656 = vmatpush1.msra.mxu0 %v3520
  %4657 = vmatprep.subr.mxu0 0.0
  %4658 = vmatpush1.msra.mxu0 %v3521
  %4659 = vmatprep.subr.mxu0 0.0
  %4660 = vmatpush1.msra.mxu0 %v3522
  %4661 = vmatprep.subr.mxu0 0.0
  %4662 = vmatpush1.msra.mxu0 %v3523
  %4663 = vmatprep.subr.mxu0 0.0
  %4664 = vmatpush1.msra.mxu0 %v3524
  %4665 = vmatprep.subr.mxu0 0.0
  %4666 = vmatpush1.msra.mxu0 %v3525
  %4667 = vmatprep.subr.mxu0 0.0
  %4668 = vmatpush1.msra.mxu0 %v3526
  %4669 = vmatprep.subr.mxu0 0.0
  %4670 = vmatpush1.msra.mxu0 %v3527
  %4671 = vmatprep.subr.mxu0 0.0
  %4672 = vmatpush1.msra.mxu0 %v3528
  %4673 = vmatprep.subr.mxu0 0.0
  %4674 = vmatpush1.msra.mxu0 %v3529
  %4675 = vmatprep.subr.mxu0 0.0
  %4676 = vmatpush1.msra.mxu0 %v3530
  %4677 = vmatprep.subr.mxu0 0.0
  %4678 = vmatpush1.msra.mxu0 %v3531
  %4679 = vmatprep.subr.mxu0 0.0
  %4680 = vmatpush1.msra.mxu0 %v3532
  %4681 = vmatprep.subr.mxu0 0.0
  %4682 = vmatpush1.msra.mxu0 %v3533
  %4683 = vmatprep.subr.mxu0 0.0
  %4684 = vmatpush1.msra.mxu0 %v3534
  %4685 = vmatprep.subr.mxu0 0.0
  %4686 = vmatpush1.msra.mxu0 %v3535
  %4687 = vmatprep.subr.mxu0 0.0
  %4688 = vmatpush1.msra.mxu0 %v3536
  %4689 = vmatprep.subr.mxu0 0.0
  %4690 = vmatpush1.msra.mxu0 %v3537
  %4691 = vmatprep.subr.mxu0 0.0
  %4692 = vmatpush1.msra.mxu0 %v3538
  %4693 = vmatprep.subr.mxu0 0.0
  %4694 = vmatpush1.msra.mxu0 %v3539
  %4695 = vmatprep.subr.mxu0 0.0
  %4696 = vmatpush1.msra.mxu0 %v3540
  %4697 = vmatprep.subr.mxu0 0.0
  %4698 = vmatpush1.msra.mxu0 %v3541
  %4699 = vmatprep.subr.mxu0 0.0
  %4700 = vmatpush1.msra.mxu0 %v3542
  %4701 = vmatprep.subr.mxu0 0.0
  %4702 = vmatpush1.msra.mxu0 %v3543
  %4703 = vmatprep.subr.mxu0 0.0
  %4704 = vmatpush1.msra.mxu0 %v3544
  %4705 = vmatprep.mubr.f32.mxu0 %v4385
  %4706 = vmatmul.mubr.f32.gmra.mrb[0].mxu0 %v4384
  %v4707 = vpop.f32.mrb[0].mxu0
  %v4708 = vadd.f32 %v4633, %v4707
  %v4709 = vpop.f32.mrb[0].mxu0
  %4710 = vmatprep.mubr.f32.mxu0 %v4401
  %4711 = vmatmul.mubr.f32.gmra.mrb[0].mxu0 %v4400
  %v4712 = vpop.f32.mrb[0].mxu0
  %v4713 = vadd.f32 %v4638, %v4712
  %v4714 = vpop.f32.mrb[0].mxu0
  %4715 = vdwg.mxu0
  %4716 = vmatprep.subr.mxu0 0.0
  %4717 = vmatpush1.msra.mxu0 %v3545
  %4718 = vmatprep.subr.mxu0 0.0
  %4719 = vmatpush1.msra.mxu0 %v3546
  %4720 = vmatprep.subr.mxu0 0.0
  %4721 = vmatpush1.msra.mxu0 %v3547
  %4722 = vmatprep.subr.mxu0 0.0
  %4723 = vmatpush1.msra.mxu0 %v3548
  %4724 = vmatprep.subr.mxu0 0.0
  %4725 = vmatpush1.msra.mxu0 %v3549
  %4726 = vmatprep.subr.mxu0 0.0
  %4727 = vmatpush1.msra.mxu0 %v3550
  %4728 = vmatprep.subr.mxu0 0.0
  %4729 = vmatpush1.msra.mxu0 %v3551
  %4730 = vmatprep.subr.mxu0 0.0
  %4731 = vmatpush1.msra.mxu0 %v3552
  %4732 = vmatprep.subr.mxu0 0.0
  %4733 = vmatpush1.msra.mxu0 %v3553
  %4734 = vmatprep.subr.mxu0 0.0
  %4735 = vmatpush1.msra.mxu0 %v3554
  %4736 = vmatprep.subr.mxu0 0.0
  %4737 = vmatpush1.msra.mxu0 %v3555
  %4738 = vmatprep.subr.mxu0 0.0
  %4739 = vmatpush1.msra.mxu0 %v3556
  %4740 = vmatprep.subr.mxu0 0.0
  %4741 = vmatpush1.msra.mxu0 %v3557
  %4742 = vmatprep.subr.mxu0 0.0
  %4743 = vmatpush1.msra.mxu0 %v3558
  %4744 = vmatprep.subr.mxu0 0.0
  %4745 = vmatpush1.msra.mxu0 %v3559
  %4746 = vmatprep.subr.mxu0 0.0
  %4747 = vmatpush1.msra.mxu0 %v3560
  %4748 = vmatprep.subr.mxu0 0.0
  %4749 = vmatpush1.msra.mxu0 %v3561
  %4750 = vmatprep.subr.mxu0 0.0
  %4751 = vmatpush1.msra.mxu0 %v3562
  %4752 = vmatprep.subr.mxu0 0.0
  %4753 = vmatpush1.msra.mxu0 %v3563
  %4754 = vmatprep.subr.mxu0 0.0
  %4755 = vmatpush1.msra.mxu0 %v3564
  %4756 = vmatprep.subr.mxu0 0.0
  %4757 = vmatpush1.msra.mxu0 %v3565
  %4758 = vmatprep.subr.mxu0 0.0
  %4759 = vmatpush1.msra.mxu0 %v3566
  %4760 = vmatprep.subr.mxu0 0.0
  %4761 = vmatpush1.msra.mxu0 %v3567
  %4762 = vmatprep.subr.mxu0 0.0
  %4763 = vmatpush1.msra.mxu0 %v3568
  %4764 = vmatprep.subr.mxu0 0.0
  %4765 = vmatpush1.msra.mxu0 %v3569
  %4766 = vmatprep.subr.mxu0 0.0
  %4767 = vmatpush1.msra.mxu0 %v3570
  %4768 = vmatprep.subr.mxu0 0.0
  %4769 = vmatpush1.msra.mxu0 %v3571
  %4770 = vmatprep.subr.mxu0 0.0
  %4771 = vmatpush1.msra.mxu0 %v3572
  %4772 = vmatprep.subr.mxu0 0.0
  %4773 = vmatpush1.msra.mxu0 %v3573
  %4774 = vmatprep.subr.mxu0 0.0
  %4775 = vmatpush1.msra.mxu0 %v3574
  %4776 = vmatprep.subr.mxu0 0.0
  %4777 = vmatpush1.msra.mxu0 %v3575
  %4778 = vmatprep.subr.mxu0 0.0
  %4779 = vmatpush1.msra.mxu0 %v3576
  %4780 = vmatprep.mubr.f32.mxu0 %v4387
  %4781 = vmatmul.mubr.f32.gmra.mrb[0].mxu0 %v4386
  %v4782 = vpop.f32.mrb[0].mxu0
  %v4783 = vadd.f32 %v4708, %v4782
  %v4784 = vpop.f32.mrb[0].mxu0
  %4785 = vmatprep.mubr.f32.mxu0 %v4403
  %4786 = vmatmul.mubr.f32.gmra.mrb[0].mxu0 %v4402
  %v4787 = vpop.f32.mrb[0].mxu0
  %v4788 = vadd.f32 %v4713, %v4787
  %v4789 = vpop.f32.mrb[0].mxu0
  %4790 = vdwg.mxu0
  %4791 = vmatprep.subr.mxu0 0.0
  %4792 = vmatpush1.msra.mxu0 %v3577
  %4793 = vmatprep.subr.mxu0 0.0
  %4794 = vmatpush1.msra.mxu0 %v3578
  %4795 = vmatprep.subr.mxu0 0.0
  %4796 = vmatpush1.msra.mxu0 %v3579
  %4797 = vmatprep.subr.mxu0 0.0
  %4798 = vmatpush1.msra.mxu0 %v3580
  %4799 = vmatprep.subr.mxu0 0.0
  %4800 = vmatpush1.msra.mxu0 %v3581
  %4801 = vmatprep.subr.mxu0 0.0
  %4802 = vmatpush1.msra.mxu0 %v3582
  %4803 = vmatprep.subr.mxu0 0.0
  %4804 = vmatpush1.msra.mxu0 %v3583
  %4805 = vmatprep.subr.mxu0 0.0
  %4806 = vmatpush1.msra.mxu0 %v3584
  %4807 = vmatprep.subr.mxu0 0.0
  %4808 = vmatpush1.msra.mxu0 %v3585
  %4809 = vmatprep.subr.mxu0 0.0
  %4810 = vmatpush1.msra.mxu0 %v3586
  %4811 = vmatprep.subr.mxu0 0.0
  %4812 = vmatpush1.msra.mxu0 %v3587
  %4813 = vmatprep.subr.mxu0 0.0
  %4814 = vmatpush1.msra.mxu0 %v3588
  %4815 = vmatprep.subr.mxu0 0.0
  %4816 = vmatpush1.msra.mxu0 %v3589
  %4817 = vmatprep.subr.mxu0 0.0
  %4818 = vmatpush1.msra.mxu0 %v3590
  %4819 = vmatprep.subr.mxu0 0.0
  %4820 = vmatpush1.msra.mxu0 %v3591
  %4821 = vmatprep.subr.mxu0 0.0
  %4822 = vmatpush1.msra.mxu0 %v3592
  %4823 = vmatprep.subr.mxu0 0.0
  %4824 = vmatpush1.msra.mxu0 %v3593
  %4825 = vmatprep.subr.mxu0 0.0
  %4826 = vmatpush1.msra.mxu0 %v3594
  %4827 = vmatprep.subr.mxu0 0.0
  %4828 = vmatpush1.msra.mxu0 %v3595
  %4829 = vmatprep.subr.mxu0 0.0
  %4830 = vmatpush1.msra.mxu0 %v3596
  %4831 = vmatprep.subr.mxu0 0.0
  %4832 = vmatpush1.msra.mxu0 %v3597
  %4833 = vmatprep.subr.mxu0 0.0
  %4834 = vmatpush1.msra.mxu0 %v3598
  %4835 = vmatprep.subr.mxu0 0.0
  %4836 = vmatpush1.msra.mxu0 %v3599
  %4837 = vmatprep.subr.mxu0 0.0
  %4838 = vmatpush1.msra.mxu0 %v3600
  %4839 = vmatprep.subr.mxu0 0.0
  %4840 = vmatpush1.msra.mxu0 %v3601
  %4841 = vmatprep.subr.mxu0 0.0
  %4842 = vmatpush1.msra.mxu0 %v3602
  %4843 = vmatprep.subr.mxu0 0.0
  %4844 = vmatpush1.msra.mxu0 %v3603
  %4845 = vmatprep.subr.mxu0 0.0
  %4846 = vmatpush1.msra.mxu0 %v3604
  %4847 = vmatprep.subr.mxu0 0.0
  %4848 = vmatpush1.msra.mxu0 %v3605
  %4849 = vmatprep.subr.mxu0 0.0
  %4850 = vmatpush1.msra.mxu0 %v3606
  %4851 = vmatprep.subr.mxu0 0.0
  %4852 = vmatpush1.msra.mxu0 %v3607
  %4853 = vmatprep.subr.mxu0 0.0
  %4854 = vmatpush1.msra.mxu0 %v3608
  %4855 = vmatprep.mubr.f32.mxu0 %v4389
  %4856 = vmatmul.mubr.f32.gmra.mrb[0].mxu0 %v4388
  %v4857 = vpop.f32.mrb[0].mxu0
  %v4858 = vadd.f32 %v4783, %v4857
  %v4859 = vpop.f32.mrb[0].mxu0
  %4860 = vmatprep.mubr.f32.mxu0 %v4405
  %4861 = vmatmul.mubr.f32.gmra.mrb[0].mxu0 %v4404
  %v4862 = vpop.f32.mrb[0].mxu0
  %v4863 = vadd.f32 %v4788, %v4862
  %v4864 = vpop.f32.mrb[0].mxu0
  %4865 = vdwg.mxu0
  %4866 = vmatprep.subr.mxu0 0.0
  %4867 = vmatpush1.msra.mxu0 %v3609
  %4868 = vmatprep.subr.mxu0 0.0
  %4869 = vmatpush1.msra.mxu0 %v3610
  %4870 = vmatprep.subr.mxu0 0.0
  %4871 = vmatpush1.msra.mxu0 %v3611
  %4872 = vmatprep.subr.mxu0 0.0
  %4873 = vmatpush1.msra.mxu0 %v3612
  %4874 = vmatprep.subr.mxu0 0.0
  %4875 = vmatpush1.msra.mxu0 %v3613
  %4876 = vmatprep.subr.mxu0 0.0
  %4877 = vmatpush1.msra.mxu0 %v3614
  %4878 = vmatprep.subr.mxu0 0.0
  %4879 = vmatpush1.msra.mxu0 %v3615
  %4880 = vmatprep.subr.mxu0 0.0
  %4881 = vmatpush1.msra.mxu0 %v3616
  %4882 = vmatprep.subr.mxu0 0.0
  %4883 = vmatpush1.msra.mxu0 %v3617
  %4884 = vmatprep.subr.mxu0 0.0
  %4885 = vmatpush1.msra.mxu0 %v3618
  %4886 = vmatprep.subr.mxu0 0.0
  %4887 = vmatpush1.msra.mxu0 %v3619
  %4888 = vmatprep.subr.mxu0 0.0
  %4889 = vmatpush1.msra.mxu0 %v3620
  %4890 = vmatprep.subr.mxu0 0.0
  %4891 = vmatpush1.msra.mxu0 %v3621
  %4892 = vmatprep.subr.mxu0 0.0
  %4893 = vmatpush1.msra.mxu0 %v3622
  %4894 = vmatprep.subr.mxu0 0.0
  %4895 = vmatpush1.msra.mxu0 %v3623
  %4896 = vmatprep.subr.mxu0 0.0
  %4897 = vmatpush1.msra.mxu0 %v3624
  %4898 = vmatprep.subr.mxu0 0.0
  %4899 = vmatpush1.msra.mxu0 %v3625
  %4900 = vmatprep.subr.mxu0 0.0
  %4901 = vmatpush1.msra.mxu0 %v3626
  %4902 = vmatprep.subr.mxu0 0.0
  %4903 = vmatpush1.msra.mxu0 %v3627
  %4904 = vmatprep.subr.mxu0 0.0
  %4905 = vmatpush1.msra.mxu0 %v3628
  %4906 = vmatprep.subr.mxu0 0.0
  %4907 = vmatpush1.msra.mxu0 %v3629
  %4908 = vmatprep.subr.mxu0 0.0
  %4909 = vmatpush1.msra.mxu0 %v3630
  %4910 = vmatprep.subr.mxu0 0.0
  %4911 = vmatpush1.msra.mxu0 %v3631
  %4912 = vmatprep.subr.mxu0 0.0
  %4913 = vmatpush1.msra.mxu0 %v3632
  %4914 = vmatprep.subr.mxu0 0.0
  %4915 = vmatpush1.msra.mxu0 %v3633
  %4916 = vmatprep.subr.mxu0 0.0
  %4917 = vmatpush1.msra.mxu0 %v3634
  %4918 = vmatprep.subr.mxu0 0.0
  %4919 = vmatpush1.msra.mxu0 %v3635
  %4920 = vmatprep.subr.mxu0 0.0
  %4921 = vmatpush1.msra.mxu0 %v3636
  %4922 = vmatprep.subr.mxu0 0.0
  %4923 = vmatpush1.msra.mxu0 %v3637
  %4924 = vmatprep.subr.mxu0 0.0
  %4925 = vmatpush1.msra.mxu0 %v3638
  %4926 = vmatprep.subr.mxu0 0.0
  %4927 = vmatpush1.msra.mxu0 %v3639
  %4928 = vmatprep.subr.mxu0 0.0
  %4929 = vmatpush1.msra.mxu0 %v3640
  %4930 = vmatprep.mubr.f32.mxu0 %v4391
  %4931 = vmatmul.mubr.f32.gmra.mrb[0].mxu0 %v4390
  %v4932 = vpop.f32.mrb[0].mxu0
  %v4933 = vadd.f32 %v4858, %v4932
  %v4934 = vpop.f32.mrb[0].mxu0
  %4935 = vmatprep.mubr.f32.mxu0 %v4407
  %4936 = vmatmul.mubr.f32.gmra.mrb[0].mxu0 %v4406
  %v4937 = vpop.f32.mrb[0].mxu0
  %v4938 = vadd.f32 %v4863, %v4937
  %v4939 = vpop.f32.mrb[0].mxu0
  %4940 = vdwg.mxu0
  %4941 = vmatprep.subr.mxu0 0.0
  %4942 = vmatpush1.msra.mxu0 %v3641
  %4943 = vmatprep.subr.mxu0 0.0
  %4944 = vmatpush1.msra.mxu0 %v3642
  %4945 = vmatprep.subr.mxu0 0.0
  %4946 = vmatpush1.msra.mxu0 %v3643
  %4947 = vmatprep.subr.mxu0 0.0
  %4948 = vmatpush1.msra.mxu0 %v3644
  %4949 = vmatprep.subr.mxu0 0.0
  %4950 = vmatpush1.msra.mxu0 %v3645
  %4951 = vmatprep.subr.mxu0 0.0
  %4952 = vmatpush1.msra.mxu0 %v3646
  %4953 = vmatprep.subr.mxu0 0.0
  %4954 = vmatpush1.msra.mxu0 %v3647
  %4955 = vmatprep.subr.mxu0 0.0
  %4956 = vmatpush1.msra.mxu0 %v3648
  %4957 = vmatprep.subr.mxu0 0.0
  %4958 = vmatpush1.msra.mxu0 %v3649
  %4959 = vmatprep.subr.mxu0 0.0
  %4960 = vmatpush1.msra.mxu0 %v3650
  %4961 = vmatprep.subr.mxu0 0.0
  %4962 = vmatpush1.msra.mxu0 %v3651
  %4963 = vmatprep.subr.mxu0 0.0
  %4964 = vmatpush1.msra.mxu0 %v3652
  %4965 = vmatprep.subr.mxu0 0.0
  %4966 = vmatpush1.msra.mxu0 %v3653
  %4967 = vmatprep.subr.mxu0 0.0
  %4968 = vmatpush1.msra.mxu0 %v3654
  %4969 = vmatprep.subr.mxu0 0.0
  %4970 = vmatpush1.msra.mxu0 %v3655
  %4971 = vmatprep.subr.mxu0 0.0
  %4972 = vmatpush1.msra.mxu0 %v3656
  %4973 = vmatprep.subr.mxu0 0.0
  %4974 = vmatpush1.msra.mxu0 %v3657
  %4975 = vmatprep.subr.mxu0 0.0
  %4976 = vmatpush1.msra.mxu0 %v3658
  %4977 = vmatprep.subr.mxu0 0.0
  %4978 = vmatpush1.msra.mxu0 %v3659
  %4979 = vmatprep.subr.mxu0 0.0
  %4980 = vmatpush1.msra.mxu0 %v3660
  %4981 = vmatprep.subr.mxu0 0.0
  %4982 = vmatpush1.msra.mxu0 %v3661
  %4983 = vmatprep.subr.mxu0 0.0
  %4984 = vmatpush1.msra.mxu0 %v3662
  %4985 = vmatprep.subr.mxu0 0.0
  %4986 = vmatpush1.msra.mxu0 %v3663
  %4987 = vmatprep.subr.mxu0 0.0
  %4988 = vmatpush1.msra.mxu0 %v3664
  %4989 = vmatprep.subr.mxu0 0.0
  %4990 = vmatpush1.msra.mxu0 %v3665
  %4991 = vmatprep.subr.mxu0 0.0
  %4992 = vmatpush1.msra.mxu0 %v3666
  %4993 = vmatprep.subr.mxu0 0.0
  %4994 = vmatpush1.msra.mxu0 %v3667
  %4995 = vmatprep.subr.mxu0 0.0
  %4996 = vmatpush1.msra.mxu0 %v3668
  %4997 = vmatprep.subr.mxu0 0.0
  %4998 = vmatpush1.msra.mxu0 %v3669
  %4999 = vmatprep.subr.mxu0 0.0
  %5000 = vmatpush1.msra.mxu0 %v3670
  %5001 = vmatprep.subr.mxu0 0.0
  %5002 = vmatpush1.msra.mxu0 %v3671
  %5003 = vmatprep.subr.mxu0 0.0
  %5004 = vmatpush1.msra.mxu0 %v3672
  %5005 = vmatprep.mubr.f32.mxu0 %v4393
  %5006 = vmatmul.mubr.f32.gmra.mrb[0].mxu0 %v4392
  %v5007 = vpop.f32.mrb[0].mxu0
  %v5008 = vadd.f32 %v4933, %v5007
  %v5009 = vpop.f32.mrb[0].mxu0
  %5010 = vmatprep.mubr.f32.mxu0 %v4409
  %5011 = vmatmul.mubr.f32.gmra.mrb[0].mxu0 %v4408
  %v5012 = vpop.f32.mrb[0].mxu0
  %v5013 = vadd.f32 %v4938, %v5012
  %v5014 = vpop.f32.mrb[0].mxu0
  %5015 = vdwg.mxu0
  %v5016 = vld [vmem:[%s20] sm:$0x1]
  %v5017 = vld [vmem:[%s21] sm:$0x1]
  %v5018 = vadd.f32 %v3349, %v5008
  %v5019 = vadd.f32 %v3350, %v5013
  %v5020 = vsel %vm91, %v5018, 0.0
  %5021 = vadd.xlane.f32.xlu0 %v5020
  %v5022 = vpop.xlane.xlu0 %5021
  %v5023 = vsel %vm91, %v5019, 0.0
  %5024 = vadd.xlane.f32.xlu0 %v5023
  %v5025 = vpop.xlane.xlu0 %5024
  %v5026 = vmul.f32 %v5022, %v1634
  %v5027 = vmul.f32 %v5025, %v1634
  %v5028 = vsub.f32 %v5018, %v5026
  %v5029 = vsub.f32 %v5019, %v5027
  %v5030 = vmul.f32 %v5028, %v5028
  %v5031 = vmul.f32 %v5029, %v5029
  %v5032 = vsel %vm91, %v5030, 0.0
  %5033 = vadd.xlane.f32.xlu0 %v5032
  %v5034 = vpop.xlane.xlu0 %5033
  %v5035 = vsel %vm91, %v5031, 0.0
  %5036 = vadd.xlane.f32.xlu0 %v5035
  %v5037 = vpop.xlane.xlu0 %5036
  %v5038 = vmul.f32 %v5034, %v1634
  %v5039 = vmul.f32 %v5037, %v1634
  %v5040 = vadd.f32 %v5038, 1e-05
  %v5041 = vadd.f32 %v5039, 1e-05
  %v5042 = vrsqrt.pop %v5040
  %v5043 = vrsqrt.pop %v5041
  %v5044 = vmul.f32 %v5028, %v5042
  %v5045 = vmul.f32 %v5029, %v5043
  %v5047 = vlaneseq
  %v5048 = vshrl.u32 %v5047, 7
  %v5049 = vsub.s32 0, %v5048
  %v5050 = vrot.slane %v5016, %v5049
  %v5052 = vmul.f32 %v5044, %v5050
  %v5053 = vmul.f32 %v5045, %v5050
  %v5055 = vlaneseq
  %v5056 = vshrl.u32 %v5055, 7
  %v5057 = vsub.s32 0, %v5056
  %v5058 = vrot.slane %v5017, %v5057
  %v5060 = vadd.f32 %v5052, %v5058
  %v5061 = vadd.f32 %v5053, %v5058
  %5062 = vst.msk [vmem:[%s22] sm:$0xff] %vm91, %v5060
  %5063 = vst.msk [vmem:[%s22 + $0x8] sm:$0xff] %vm91, %v5061
  // Predicated region
  $region90: #{transformer1_forward.6} parent=0 // pred_check
    _
  $region91: #{transformer1_forward.6} parent=0 // pred_check_branch
    %5065 = sbr.rel (0) target = $region93
  $region92: #{transformer1_forward.6} parent=0 // pred_region
    _
  $region93: #{transformer1_forward.6} parent=0 // pred_fallthru
    _
  // Predicated region
  $region94: #{transformer1_forward.6} parent=0 // pred_check
    _
  $region95: #{transformer1_forward.6} parent=0 // pred_check_branch
    %5067 = sbr.rel (0) target = $region97
  $region96: #{transformer1_forward.6} parent=0 // pred_region
    _
  $region97: #{transformer1_forward.6} parent=0 // pred_fallthru
    _

</llo_original>
